<compile_context>
chip_gen: v6e
topology: v6e:2x2x1
jax: 0.10.0
libtpu: 0.0.40
codegen_flags: <defaults>
</compile_context>

<pallas_src>
import jax
import jax.numpy as jnp
import numpy as np
from jax.experimental import pallas as pl
from jax.experimental.pallas import tpu as pltpu

EPS = 1e-5  # nn.BatchNorm2d default eps


# ----------------------------- kernel helpers ------------------------------
def _pad_into(scr, interior):
    """Write `interior` (N,H,W,C) into a (N,H+2,W+2,C) scratch with a zero halo.

    Only the 1-wide border is zeroed; the interior is written exactly once.
    """
    N, Hp, Wp, C = scr.shape
    H, W = Hp - 2, Wp - 2
    zrow = jnp.zeros((N, 1, Wp, C), jnp.float32)
    zcol = jnp.zeros((N, Hp, 1, C), jnp.float32)
    scr[:, 0:1, :, :] = zrow
    scr[:, Hp - 1:Hp, :, :] = zrow
    scr[:, :, 0:1, :] = zcol
    scr[:, :, Wp - 1:Wp, :] = zcol
    scr[:, 1:H + 1, 1:W + 1, :] = interior


def _im2col_3x3(xpad, cols_scr):
    """Assemble the im2col LHS (N*H*W, 9*C) for a 3x3/pad=1 conv.

    `xpad` is the padded (N, H+2, W+2, C) value; columns are ordered
    (ky, kx, c) to match the pre-flattened (9*C, Cout) weight matrix.
    """
    N, Hp, Wp, C = xpad.shape
    H, W = Hp - 2, Wp - 2
    NHW = N * H * W
    for dy in range(3):
        for dx in range(3):
            t = dy * 3 + dx
            cols_scr[:, t * C:(t + 1) * C] = (
                xpad[:, dy:dy + H, dx:dx + W, :].reshape(NHW, C))
    return cols_scr[...]


def _bn_relu(h, gamma, beta, inv_n):
    """Training-mode BatchNorm (one-pass biased stats) + ReLU on flat (M, C)."""
    mean = jnp.sum(h, axis=0, keepdims=True) * inv_n
    ex2 = jnp.sum(h * h, axis=0, keepdims=True) * inv_n
    var = ex2 - mean * mean
    scale = gamma * jax.lax.rsqrt(var + EPS)
    shift = beta - mean * scale
    return jnp.maximum(h * scale + shift, 0.0)


# --------------------------------- kernel ----------------------------------
def conv_block_kernel(x_ref, w1_ref, b1_ref, g1_ref, be1_ref,
                      w2_ref, b2_ref, g2_ref, be2_ref, temb_ref,
                      o_ref,
                      xpad_scr, hpad_scr, cols1_scr, cols2_scr):
    N, H, W, Cin = x_ref.shape
    Cout = o_ref.shape[-1]
    NHW = N * H * W
    inv_n = 1.0 / float(NHW)

    # ---- stage 0: in-kernel zero padding of the input (no wrapper jnp.pad) ----
    _pad_into(xpad_scr, x_ref[...])

    # ---- stage 1: conv1 as a single im2col matmul (K = 9*Cin) + BN1 + ReLU ----
    lhs1 = _im2col_3x3(xpad_scr[...], cols1_scr)               # (NHW, 9*Cin)
    h = jax.lax.dot_general(lhs1, w1_ref[...],
                            (((1,), (0,)), ((), ())),
                            preferred_element_type=jnp.float32)  # (NHW, Cout)
    h = h + b1_ref[...]
    h = _bn_relu(h, g1_ref[...], be1_ref[...], inv_n)

    # ---- stage 2: conv2 (halo-only pad of h, im2col, one matmul) + BN2 + ReLU ----
    _pad_into(hpad_scr, h.reshape(N, H, W, Cout))
    lhs2 = _im2col_3x3(hpad_scr[...], cols2_scr)               # (NHW, 9*Cout)
    h2 = jax.lax.dot_general(lhs2, w2_ref[...],
                             (((1,), (0,)), ((), ())),
                             preferred_element_type=jnp.float32)
    h2 = h2 + b2_ref[...]
    h2 = _bn_relu(h2, g2_ref[...], be2_ref[...], inv_n)

    # ---- stage 3: broadcast-add time embedding per (batch, channel) ----
    o3 = h2.reshape(N, H * W, Cout) + temb_ref[...].reshape(N, 1, Cout)
    o_ref[...] = o3.reshape(NHW, Cout)


# -------------------------------- wrapper -----------------------------------
def conv_block_forward(x_nchw, time_idx, p):
    """x_nchw: (N, Cin, H, W) f32; time_idx: (N,) int32."""
    N, Cin, H, W = x_nchw.shape
    Cout = p["b1"].shape[-1]
    NHW = N * H * W

    x_nhwc = jnp.transpose(x_nchw, (0, 2, 3, 1))               # (N, H, W, Cin)
    temb = p["emb"][time_idx]                                  # (N, Cout)

    flops = 2 * NHW * (9 * Cin) * Cout + 2 * NHW * (9 * Cout) * Cout
    bytes_accessed = 4 * (N * H * W * Cin + 9 * Cin * Cout + 9 * Cout * Cout
                          + 6 * Cout + N * Cout + NHW * Cout)

    vmem = pl.BlockSpec(memory_space=pltpu.MemorySpace.VMEM)
    out_flat = pl.pallas_call(
        conv_block_kernel,
        out_shape=jax.ShapeDtypeStruct((NHW, Cout), jnp.float32),
        in_specs=[vmem] * 10,
        out_specs=vmem,
        scratch_shapes=[
            pltpu.VMEM((N, H + 2, W + 2, Cin), jnp.float32),   # padded input
            pltpu.VMEM((N, H + 2, W + 2, Cout), jnp.float32),  # padded conv1 act
            pltpu.VMEM((NHW, 9 * Cin), jnp.float32),           # im2col LHS, conv1
            pltpu.VMEM((NHW, 9 * Cout), jnp.float32),          # im2col LHS, conv2
        ],
        compiler_params=pltpu.CompilerParams(
            vmem_limit_bytes=32 * 1024 * 1024),
        cost_estimate=pl.CostEstimate(flops=flops,
                                      transcendentals=2 * Cout,
                                      bytes_accessed=bytes_accessed),
    )(x_nhwc, p["w1f"], p["b1"], p["g1"], p["be1"],
      p["w2f"], p["b2"], p["g2"], p["be2"], temb)

    out_nhwc = out_flat.reshape(N, H, W, Cout)
    return jnp.transpose(out_nhwc, (0, 3, 1, 2))               # back to NCHW


# ------------------------------ pure-JAX reference ---------------------------
def ref_forward(x_nchw, time_idx, p):
    """Reference mirroring the PyTorch module (training-mode BN)."""
    def conv(x, w_oihw, b):
        y = jax.lax.conv_general_dilated(
            x, w_oihw, (1, 1), ((1, 1), (1, 1)),
            dimension_numbers=("NCHW", "OIHW", "NCHW"))
        return y + b.reshape(1, -1, 1, 1)

    def bn(x, g, b):
        m = x.mean(axis=(0, 2, 3), keepdims=True)
        v = ((x - m) ** 2).mean(axis=(0, 2, 3), keepdims=True)
        return (x - m) / jnp.sqrt(v + EPS) * g.reshape(1, -1, 1, 1) + b.reshape(1, -1, 1, 1)

    h = jnp.maximum(bn(conv(x_nchw, p["w1_oihw"], p["b1"][0]), p["g1"][0], p["be1"][0]), 0.0)
    h = jnp.maximum(bn(conv(h, p["w2_oihw"], p["b2"][0]), p["g2"][0], p["be2"][0]), 0.0)
    temb = p["emb"][time_idx].reshape(-1, p["emb"].shape[1], 1, 1)
    return h + temb


def init_params(key, in_c, out_c, time_steps):
    ks = jax.random.split(key, 5)
    w1_oihw = jax.random.normal(ks[0], (out_c, in_c, 3, 3), jnp.float32) * 0.1
    w2_oihw = jax.random.normal(ks[1], (out_c, out_c, 3, 3), jnp.float32) * 0.1
    b1 = jax.random.normal(ks[2], (out_c,), jnp.float32) * 0.05
    b2 = jax.random.normal(ks[3], (out_c,), jnp.float32) * 0.05
    emb = jax.random.normal(ks[4], (time_steps, out_c), jnp.float32)  # nn.Embedding ~ N(0,1)
    # im2col weight layout: rows ordered (ky, kx, cin) to match in-kernel columns.
    w1f = jnp.transpose(w1_oihw, (2, 3, 1, 0)).reshape(9 * in_c, out_c)
    w2f = jnp.transpose(w2_oihw, (2, 3, 1, 0)).reshape(9 * out_c, out_c)
    return {
        "w1f": w1f, "w2f": w2f,
        "w1_oihw": w1_oihw, "w2_oihw": w2_oihw,
        # biases / BN params kept 2D (1, Cout) for VMEM
        "b1": b1.reshape(1, out_c), "b2": b2.reshape(1, out_c),
        "g1": jnp.ones((1, out_c), jnp.float32), "be1": jnp.zeros((1, out_c), jnp.float32),
        "g2": jnp.ones((1, out_c), jnp.float32), "be2": jnp.zeros((1, out_c), jnp.float32),
        "emb": emb,
    }


if __name__ == "__main__":
    N, in_c, out_c, H, W = 2, 4, 8, 16, 16
    time_steps = 1000

    key = jax.random.PRNGKey(0)
    kx, kt, kp = jax.random.split(key, 3)
    x = jax.random.normal(kx, (N, in_c, H, W), jnp.float32)
    time_idx = jax.random.randint(kt, (N,), 0, time_steps, dtype=jnp.int32)
    params = init_params(kp, in_c, out_c, time_steps)

    out = jax.block_until_ready(conv_block_forward(x, time_idx, params))
    ref = jax.block_until_ready(ref_forward(x, time_idx, params))

    assert out.shape == (N, out_c, H, W)
    np.testing.assert_allclose(np.asarray(out), np.asarray(ref), atol=1e-4, rtol=1e-4)
    print("KERNEL_OK")
</pallas_src>

<mosaic_0001>
module attributes {stable_mosaic.version = 11 : i64} {
  func.func @conv_block_kernel(%arg0: memref<2x16x16x4xf32, #tpu.memory_space<vmem>>, %arg1: memref<36x8xf32, #tpu.memory_space<vmem>>, %arg2: memref<1x8xf32, #tpu.memory_space<vmem>>, %arg3: memref<1x8xf32, #tpu.memory_space<vmem>>, %arg4: memref<1x8xf32, #tpu.memory_space<vmem>>, %arg5: memref<72x8xf32, #tpu.memory_space<vmem>>, %arg6: memref<1x8xf32, #tpu.memory_space<vmem>>, %arg7: memref<1x8xf32, #tpu.memory_space<vmem>>, %arg8: memref<1x8xf32, #tpu.memory_space<vmem>>, %arg9: memref<2x8xf32, #tpu.memory_space<vmem>>, %arg10: memref<512x8xf32, #tpu.memory_space<vmem>>, %arg11: memref<2x18x18x4xf32, #tpu.memory_space<vmem>>, %arg12: memref<2x18x18x8xf32, #tpu.memory_space<vmem>>, %arg13: memref<512x36xf32, #tpu.memory_space<vmem>>, %arg14: memref<512x72xf32, #tpu.memory_space<vmem>>) attributes {dimension_semantics = [], scalar_prefetch = 0 : i64, scratch_operands = 4 : i64, tpu.core_type = #tpu.core_type<tc>} {
    %c0 = arith.constant 0 : index
    %c0_0 = arith.constant 0 : index
    %c0_1 = arith.constant 0 : index
    %c0_2 = arith.constant 0 : index
    %0 = vector.load %arg0[%c0, %c0_0, %c0_1, %c0_2] : memref<2x16x16x4xf32, #tpu.memory_space<vmem>>, vector<2x16x16x4xf32>
    %cst = arith.constant 0.000000e+00 : f32
    %1 = vector.broadcast %cst : f32 to vector<2x1x18x4xf32>
    %cst_3 = arith.constant 0.000000e+00 : f32
    %2 = vector.broadcast %cst_3 : f32 to vector<2x18x1x4xf32>
    %c0_4 = arith.constant 0 : index
    %c0_5 = arith.constant 0 : index
    %c0_6 = arith.constant 0 : index
    %c0_7 = arith.constant 0 : index
    %3 = vector.load %arg11[%c0_4, %c0_5, %c0_6, %c0_7] : memref<2x18x18x4xf32, #tpu.memory_space<vmem>>, vector<2x1x18x4xf32>
    tpu.vector_store %arg11[%c0_4, %c0_5, %c0_6, %c0_7], %1 {strides = array<i32>} : memref<2x18x18x4xf32, #tpu.memory_space<vmem>>, vector<2x1x18x4xf32>,
    %c0_8 = arith.constant 0 : index
    %c17 = arith.constant 17 : index
    %c0_9 = arith.constant 0 : index
    %c0_10 = arith.constant 0 : index
    %4 = vector.load %arg11[%c0_8, %c17, %c0_9, %c0_10] : memref<2x18x18x4xf32, #tpu.memory_space<vmem>>, vector<2x1x18x4xf32>
    tpu.vector_store %arg11[%c0_8, %c17, %c0_9, %c0_10], %1 {strides = array<i32>} : memref<2x18x18x4xf32, #tpu.memory_space<vmem>>, vector<2x1x18x4xf32>,
    %c0_11 = arith.constant 0 : index
    %c0_12 = arith.constant 0 : index
    %c0_13 = arith.constant 0 : index
    %c0_14 = arith.constant 0 : index
    %5 = vector.load %arg11[%c0_11, %c0_12, %c0_13, %c0_14] : memref<2x18x18x4xf32, #tpu.memory_space<vmem>>, vector<2x18x1x4xf32>
    tpu.vector_store %arg11[%c0_11, %c0_12, %c0_13, %c0_14], %2 {strides = array<i32>} : memref<2x18x18x4xf32, #tpu.memory_space<vmem>>, vector<2x18x1x4xf32>,
    %c0_15 = arith.constant 0 : index
    %c0_16 = arith.constant 0 : index
    %c17_17 = arith.constant 17 : index
    %c0_18 = arith.constant 0 : index
    %6 = vector.load %arg11[%c0_15, %c0_16, %c17_17, %c0_18] : memref<2x18x18x4xf32, #tpu.memory_space<vmem>>, vector<2x18x1x4xf32>
    tpu.vector_store %arg11[%c0_15, %c0_16, %c17_17, %c0_18], %2 {strides = array<i32>} : memref<2x18x18x4xf32, #tpu.memory_space<vmem>>, vector<2x18x1x4xf32>,
    %c0_19 = arith.constant 0 : index
    %c1 = arith.constant 1 : index
    %c1_20 = arith.constant 1 : index
    %c0_21 = arith.constant 0 : index
    %7 = vector.load %arg11[%c0_19, %c1, %c1_20, %c0_21] : memref<2x18x18x4xf32, #tpu.memory_space<vmem>>, vector<2x16x16x4xf32>
    tpu.vector_store %arg11[%c0_19, %c1, %c1_20, %c0_21], %0 {strides = array<i32>} : memref<2x18x18x4xf32, #tpu.memory_space<vmem>>, vector<2x16x16x4xf32>,
    %c0_22 = arith.constant 0 : index
    %c0_23 = arith.constant 0 : index
    %c0_24 = arith.constant 0 : index
    %c0_25 = arith.constant 0 : index
    %8 = vector.load %arg11[%c0_22, %c0_23, %c0_24, %c0_25] : memref<2x18x18x4xf32, #tpu.memory_space<vmem>>, vector<2x18x18x4xf32>
    %9 = vector.extract_strided_slice %8 {offsets = [0, 0, 0, 0], sizes = [2, 16, 16, 4], strides = [1, 1, 1, 1]} : vector<2x18x18x4xf32> to vector<2x16x16x4xf32>
    %10 = vector.shape_cast %9 : vector<2x16x16x4xf32> to vector<512x4xf32>
    %c0_26 = arith.constant 0 : index
    %c0_27 = arith.constant 0 : index
    %11 = vector.load %arg13[%c0_26, %c0_27] : memref<512x36xf32, #tpu.memory_space<vmem>>, vector<512x4xf32>
    tpu.vector_store %arg13[%c0_26, %c0_27], %10 {strides = array<i32>} : memref<512x36xf32, #tpu.memory_space<vmem>>, vector<512x4xf32>,
    %12 = vector.extract_strided_slice %8 {offsets = [0, 0, 1, 0], sizes = [2, 16, 16, 4], strides = [1, 1, 1, 1]} : vector<2x18x18x4xf32> to vector<2x16x16x4xf32>
    %13 = vector.shape_cast %12 : vector<2x16x16x4xf32> to vector<512x4xf32>
    %c0_28 = arith.constant 0 : index
    %c4 = arith.constant 4 : index
    %14 = vector.load %arg13[%c0_28, %c4] : memref<512x36xf32, #tpu.memory_space<vmem>>, vector<512x4xf32>
    tpu.vector_store %arg13[%c0_28, %c4], %13 {strides = array<i32>} : memref<512x36xf32, #tpu.memory_space<vmem>>, vector<512x4xf32>,
    %15 = vector.extract_strided_slice %8 {offsets = [0, 0, 2, 0], sizes = [2, 16, 16, 4], strides = [1, 1, 1, 1]} : vector<2x18x18x4xf32> to vector<2x16x16x4xf32>
    %16 = vector.shape_cast %15 : vector<2x16x16x4xf32> to vector<512x4xf32>
    %c0_29 = arith.constant 0 : index
    %c8 = arith.constant 8 : index
    %17 = vector.load %arg13[%c0_29, %c8] : memref<512x36xf32, #tpu.memory_space<vmem>>, vector<512x4xf32>
    tpu.vector_store %arg13[%c0_29, %c8], %16 {strides = array<i32>} : memref<512x36xf32, #tpu.memory_space<vmem>>, vector<512x4xf32>,
    %18 = vector.extract_strided_slice %8 {offsets = [0, 1, 0, 0], sizes = [2, 16, 16, 4], strides = [1, 1, 1, 1]} : vector<2x18x18x4xf32> to vector<2x16x16x4xf32>
    %19 = vector.shape_cast %18 : vector<2x16x16x4xf32> to vector<512x4xf32>
    %c0_30 = arith.constant 0 : index
    %c12 = arith.constant 12 : index
    %20 = vector.load %arg13[%c0_30, %c12] : memref<512x36xf32, #tpu.memory_space<vmem>>, vector<512x4xf32>
    tpu.vector_store %arg13[%c0_30, %c12], %19 {strides = array<i32>} : memref<512x36xf32, #tpu.memory_space<vmem>>, vector<512x4xf32>,
    %21 = vector.extract_strided_slice %8 {offsets = [0, 1, 1, 0], sizes = [2, 16, 16, 4], strides = [1, 1, 1, 1]} : vector<2x18x18x4xf32> to vector<2x16x16x4xf32>
    %22 = vector.shape_cast %21 : vector<2x16x16x4xf32> to vector<512x4xf32>
    %c0_31 = arith.constant 0 : index
    %c16 = arith.constant 16 : index
    %23 = vector.load %arg13[%c0_31, %c16] : memref<512x36xf32, #tpu.memory_space<vmem>>, vector<512x4xf32>
    tpu.vector_store %arg13[%c0_31, %c16], %22 {strides = array<i32>} : memref<512x36xf32, #tpu.memory_space<vmem>>, vector<512x4xf32>,
    %24 = vector.extract_strided_slice %8 {offsets = [0, 1, 2, 0], sizes = [2, 16, 16, 4], strides = [1, 1, 1, 1]} : vector<2x18x18x4xf32> to vector<2x16x16x4xf32>
    %25 = vector.shape_cast %24 : vector<2x16x16x4xf32> to vector<512x4xf32>
    %c0_32 = arith.constant 0 : index
    %c20 = arith.constant 20 : index
    %26 = vector.load %arg13[%c0_32, %c20] : memref<512x36xf32, #tpu.memory_space<vmem>>, vector<512x4xf32>
    tpu.vector_store %arg13[%c0_32, %c20], %25 {strides = array<i32>} : memref<512x36xf32, #tpu.memory_space<vmem>>, vector<512x4xf32>,
    %27 = vector.extract_strided_slice %8 {offsets = [0, 2, 0, 0], sizes = [2, 16, 16, 4], strides = [1, 1, 1, 1]} : vector<2x18x18x4xf32> to vector<2x16x16x4xf32>
    %28 = vector.shape_cast %27 : vector<2x16x16x4xf32> to vector<512x4xf32>
    %c0_33 = arith.constant 0 : index
    %c24 = arith.constant 24 : index
    %29 = vector.load %arg13[%c0_33, %c24] : memref<512x36xf32, #tpu.memory_space<vmem>>, vector<512x4xf32>
    tpu.vector_store %arg13[%c0_33, %c24], %28 {strides = array<i32>} : memref<512x36xf32, #tpu.memory_space<vmem>>, vector<512x4xf32>,
    %30 = vector.extract_strided_slice %8 {offsets = [0, 2, 1, 0], sizes = [2, 16, 16, 4], strides = [1, 1, 1, 1]} : vector<2x18x18x4xf32> to vector<2x16x16x4xf32>
    %31 = vector.shape_cast %30 : vector<2x16x16x4xf32> to vector<512x4xf32>
    %c0_34 = arith.constant 0 : index
    %c28 = arith.constant 28 : index
    %32 = vector.load %arg13[%c0_34, %c28] : memref<512x36xf32, #tpu.memory_space<vmem>>, vector<512x4xf32>
    tpu.vector_store %arg13[%c0_34, %c28], %31 {strides = array<i32>} : memref<512x36xf32, #tpu.memory_space<vmem>>, vector<512x4xf32>,
    %33 = vector.extract_strided_slice %8 {offsets = [0, 2, 2, 0], sizes = [2, 16, 16, 4], strides = [1, 1, 1, 1]} : vector<2x18x18x4xf32> to vector<2x16x16x4xf32>
    %34 = vector.shape_cast %33 : vector<2x16x16x4xf32> to vector<512x4xf32>
    %c0_35 = arith.constant 0 : index
    %c32 = arith.constant 32 : index
    %35 = vector.load %arg13[%c0_35, %c32] : memref<512x36xf32, #tpu.memory_space<vmem>>, vector<512x4xf32>
    tpu.vector_store %arg13[%c0_35, %c32], %34 {strides = array<i32>} : memref<512x36xf32, #tpu.memory_space<vmem>>, vector<512x4xf32>,
    %c0_36 = arith.constant 0 : index
    %c0_37 = arith.constant 0 : index
    %36 = vector.load %arg13[%c0_36, %c0_37] : memref<512x36xf32, #tpu.memory_space<vmem>>, vector<512x36xf32>
    %c0_38 = arith.constant 0 : index
    %c0_39 = arith.constant 0 : index
    %37 = vector.load %arg1[%c0_38, %c0_39] : memref<36x8xf32, #tpu.memory_space<vmem>>, vector<36x8xf32>
    %cst_40 = arith.constant dense<0.000000e+00> : vector<512x8xf32>
    %38 = tpu.matmul %36, %37, %cst_40 {dimension_numbers = #tpu.dot_dimension_numbers<[1], [0], [0], [1], [0, 0, 1, 1], [], []>} : vector<512x36xf32>, vector<36x8xf32>, vector<512x8xf32> -> vector<512x8xf32>
    %c0_41 = arith.constant 0 : index
    %c0_42 = arith.constant 0 : index
    %39 = vector.load %arg2[%c0_41, %c0_42] : memref<1x8xf32, #tpu.memory_space<vmem>>, vector<1x8xf32>
    %40 = vector.broadcast %39 : vector<1x8xf32> to vector<512x8xf32>
    %41 = arith.addf %38, %40 : vector<512x8xf32>
    %c0_43 = arith.constant 0 : index
    %c0_44 = arith.constant 0 : index
    %42 = vector.load %arg3[%c0_43, %c0_44] : memref<1x8xf32, #tpu.memory_space<vmem>>, vector<1x8xf32>
    %c0_45 = arith.constant 0 : index
    %c0_46 = arith.constant 0 : index
    %43 = vector.load %arg4[%c0_45, %c0_46] : memref<1x8xf32, #tpu.memory_space<vmem>>, vector<1x8xf32>
    %cst_47 = arith.constant dense<0.000000e+00> : vector<8xf32>
    %44 = vector.multi_reduction <add>, %41, %cst_47 [0] : vector<512x8xf32> to vector<8xf32>
    %45 = vector.shape_cast %44 : vector<8xf32> to vector<1x8xf32>
    %cst_48 = arith.constant 0.001953125 : f32
    %46 = vector.broadcast %cst_48 : f32 to vector<1x8xf32>
    %47 = arith.mulf %45, %46 : vector<1x8xf32>
    %48 = arith.mulf %41, %41 : vector<512x8xf32>
    %cst_49 = arith.constant dense<0.000000e+00> : vector<8xf32>
    %49 = vector.multi_reduction <add>, %48, %cst_49 [0] : vector<512x8xf32> to vector<8xf32>
    %50 = vector.shape_cast %49 : vector<8xf32> to vector<1x8xf32>
    %cst_50 = arith.constant 0.001953125 : f32
    %51 = vector.broadcast %cst_50 : f32 to vector<1x8xf32>
    %52 = arith.mulf %50, %51 : vector<1x8xf32>
    %53 = arith.mulf %47, %47 : vector<1x8xf32>
    %54 = arith.subf %52, %53 : vector<1x8xf32>
    %cst_51 = arith.constant 9.99999974E-6 : f32
    %55 = vector.broadcast %cst_51 : f32 to vector<1x8xf32>
    %56 = arith.addf %54, %55 : vector<1x8xf32>
    %57 = math.rsqrt %56 : vector<1x8xf32>
    %58 = arith.mulf %42, %57 : vector<1x8xf32>
    %59 = arith.mulf %47, %58 : vector<1x8xf32>
    %60 = arith.subf %43, %59 : vector<1x8xf32>
    %61 = vector.broadcast %58 : vector<1x8xf32> to vector<512x8xf32>
    %62 = arith.mulf %41, %61 : vector<512x8xf32>
    %63 = vector.broadcast %60 : vector<1x8xf32> to vector<512x8xf32>
    %64 = arith.addf %62, %63 : vector<512x8xf32>
    %cst_52 = arith.constant 0.000000e+00 : f32
    %65 = vector.broadcast %cst_52 : f32 to vector<512x8xf32>
    %66 = arith.maximumf %64, %65 : vector<512x8xf32>
    %67 = vector.shape_cast %66 : vector<512x8xf32> to vector<2x16x16x8xf32>
    %cst_53 = arith.constant 0.000000e+00 : f32
    %68 = vector.broadcast %cst_53 : f32 to vector<2x1x18x8xf32>
    %cst_54 = arith.constant 0.000000e+00 : f32
    %69 = vector.broadcast %cst_54 : f32 to vector<2x18x1x8xf32>
    %c0_55 = arith.constant 0 : index
    %c0_56 = arith.constant 0 : index
    %c0_57 = arith.constant 0 : index
    %c0_58 = arith.constant 0 : index
    %70 = vector.load %arg12[%c0_55, %c0_56, %c0_57, %c0_58] : memref<2x18x18x8xf32, #tpu.memory_space<vmem>>, vector<2x1x18x8xf32>
    tpu.vector_store %arg12[%c0_55, %c0_56, %c0_57, %c0_58], %68 {strides = array<i32>} : memref<2x18x18x8xf32, #tpu.memory_space<vmem>>, vector<2x1x18x8xf32>,
    %c0_59 = arith.constant 0 : index
    %c17_60 = arith.constant 17 : index
    %c0_61 = arith.constant 0 : index
    %c0_62 = arith.constant 0 : index
    %71 = vector.load %arg12[%c0_59, %c17_60, %c0_61, %c0_62] : memref<2x18x18x8xf32, #tpu.memory_space<vmem>>, vector<2x1x18x8xf32>
    tpu.vector_store %arg12[%c0_59, %c17_60, %c0_61, %c0_62], %68 {strides = array<i32>} : memref<2x18x18x8xf32, #tpu.memory_space<vmem>>, vector<2x1x18x8xf32>,
    %c0_63 = arith.constant 0 : index
    %c0_64 = arith.constant 0 : index
    %c0_65 = arith.constant 0 : index
    %c0_66 = arith.constant 0 : index
    %72 = vector.load %arg12[%c0_63, %c0_64, %c0_65, %c0_66] : memref<2x18x18x8xf32, #tpu.memory_space<vmem>>, vector<2x18x1x8xf32>
    tpu.vector_store %arg12[%c0_63, %c0_64, %c0_65, %c0_66], %69 {strides = array<i32>} : memref<2x18x18x8xf32, #tpu.memory_space<vmem>>, vector<2x18x1x8xf32>,
    %c0_67 = arith.constant 0 : index
    %c0_68 = arith.constant 0 : index
    %c17_69 = arith.constant 17 : index
    %c0_70 = arith.constant 0 : index
    %73 = vector.load %arg12[%c0_67, %c0_68, %c17_69, %c0_70] : memref<2x18x18x8xf32, #tpu.memory_space<vmem>>, vector<2x18x1x8xf32>
    tpu.vector_store %arg12[%c0_67, %c0_68, %c17_69, %c0_70], %69 {strides = array<i32>} : memref<2x18x18x8xf32, #tpu.memory_space<vmem>>, vector<2x18x1x8xf32>,
    %c0_71 = arith.constant 0 : index
    %c1_72 = arith.constant 1 : index
    %c1_73 = arith.constant 1 : index
    %c0_74 = arith.constant 0 : index
    %74 = vector.load %arg12[%c0_71, %c1_72, %c1_73, %c0_74] : memref<2x18x18x8xf32, #tpu.memory_space<vmem>>, vector<2x16x16x8xf32>
    tpu.vector_store %arg12[%c0_71, %c1_72, %c1_73, %c0_74], %67 {strides = array<i32>} : memref<2x18x18x8xf32, #tpu.memory_space<vmem>>, vector<2x16x16x8xf32>,
    %c0_75 = arith.constant 0 : index
    %c0_76 = arith.constant 0 : index
    %c0_77 = arith.constant 0 : index
    %c0_78 = arith.constant 0 : index
    %75 = vector.load %arg12[%c0_75, %c0_76, %c0_77, %c0_78] : memref<2x18x18x8xf32, #tpu.memory_space<vmem>>, vector<2x18x18x8xf32>
    %76 = vector.extract_strided_slice %75 {offsets = [0, 0, 0, 0], sizes = [2, 16, 16, 8], strides = [1, 1, 1, 1]} : vector<2x18x18x8xf32> to vector<2x16x16x8xf32>
    %77 = vector.shape_cast %76 : vector<2x16x16x8xf32> to vector<512x8xf32>
    %c0_79 = arith.constant 0 : index
    %c0_80 = arith.constant 0 : index
    %78 = vector.load %arg14[%c0_79, %c0_80] : memref<512x72xf32, #tpu.memory_space<vmem>>, vector<512x8xf32>
    tpu.vector_store %arg14[%c0_79, %c0_80], %77 {strides = array<i32>} : memref<512x72xf32, #tpu.memory_space<vmem>>, vector<512x8xf32>,
    %79 = vector.extract_strided_slice %75 {offsets = [0, 0, 1, 0], sizes = [2, 16, 16, 8], strides = [1, 1, 1, 1]} : vector<2x18x18x8xf32> to vector<2x16x16x8xf32>
    %80 = vector.shape_cast %79 : vector<2x16x16x8xf32> to vector<512x8xf32>
    %c0_81 = arith.constant 0 : index
    %c8_82 = arith.constant 8 : index
    %81 = vector.load %arg14[%c0_81, %c8_82] : memref<512x72xf32, #tpu.memory_space<vmem>>, vector<512x8xf32>
    tpu.vector_store %arg14[%c0_81, %c8_82], %80 {strides = array<i32>} : memref<512x72xf32, #tpu.memory_space<vmem>>, vector<512x8xf32>,
    %82 = vector.extract_strided_slice %75 {offsets = [0, 0, 2, 0], sizes = [2, 16, 16, 8], strides = [1, 1, 1, 1]} : vector<2x18x18x8xf32> to vector<2x16x16x8xf32>
    %83 = vector.shape_cast %82 : vector<2x16x16x8xf32> to vector<512x8xf32>
    %c0_83 = arith.constant 0 : index
    %c16_84 = arith.constant 16 : index
    %84 = vector.load %arg14[%c0_83, %c16_84] : memref<512x72xf32, #tpu.memory_space<vmem>>, vector<512x8xf32>
    tpu.vector_store %arg14[%c0_83, %c16_84], %83 {strides = array<i32>} : memref<512x72xf32, #tpu.memory_space<vmem>>, vector<512x8xf32>,
    %85 = vector.extract_strided_slice %75 {offsets = [0, 1, 0, 0], sizes = [2, 16, 16, 8], strides = [1, 1, 1, 1]} : vector<2x18x18x8xf32> to vector<2x16x16x8xf32>
    %86 = vector.shape_cast %85 : vector<2x16x16x8xf32> to vector<512x8xf32>
    %c0_85 = arith.constant 0 : index
    %c24_86 = arith.constant 24 : index
    %87 = vector.load %arg14[%c0_85, %c24_86] : memref<512x72xf32, #tpu.memory_space<vmem>>, vector<512x8xf32>
    tpu.vector_store %arg14[%c0_85, %c24_86], %86 {strides = array<i32>} : memref<512x72xf32, #tpu.memory_space<vmem>>, vector<512x8xf32>,
    %88 = vector.extract_strided_slice %75 {offsets = [0, 1, 1, 0], sizes = [2, 16, 16, 8], strides = [1, 1, 1, 1]} : vector<2x18x18x8xf32> to vector<2x16x16x8xf32>
    %89 = vector.shape_cast %88 : vector<2x16x16x8xf32> to vector<512x8xf32>
    %c0_87 = arith.constant 0 : index
    %c32_88 = arith.constant 32 : index
    %90 = vector.load %arg14[%c0_87, %c32_88] : memref<512x72xf32, #tpu.memory_space<vmem>>, vector<512x8xf32>
    tpu.vector_store %arg14[%c0_87, %c32_88], %89 {strides = array<i32>} : memref<512x72xf32, #tpu.memory_space<vmem>>, vector<512x8xf32>,
    %91 = vector.extract_strided_slice %75 {offsets = [0, 1, 2, 0], sizes = [2, 16, 16, 8], strides = [1, 1, 1, 1]} : vector<2x18x18x8xf32> to vector<2x16x16x8xf32>
    %92 = vector.shape_cast %91 : vector<2x16x16x8xf32> to vector<512x8xf32>
    %c0_89 = arith.constant 0 : index
    %c40 = arith.constant 40 : index
    %93 = vector.load %arg14[%c0_89, %c40] : memref<512x72xf32, #tpu.memory_space<vmem>>, vector<512x8xf32>
    tpu.vector_store %arg14[%c0_89, %c40], %92 {strides = array<i32>} : memref<512x72xf32, #tpu.memory_space<vmem>>, vector<512x8xf32>,
    %94 = vector.extract_strided_slice %75 {offsets = [0, 2, 0, 0], sizes = [2, 16, 16, 8], strides = [1, 1, 1, 1]} : vector<2x18x18x8xf32> to vector<2x16x16x8xf32>
    %95 = vector.shape_cast %94 : vector<2x16x16x8xf32> to vector<512x8xf32>
    %c0_90 = arith.constant 0 : index
    %c48 = arith.constant 48 : index
    %96 = vector.load %arg14[%c0_90, %c48] : memref<512x72xf32, #tpu.memory_space<vmem>>, vector<512x8xf32>
    tpu.vector_store %arg14[%c0_90, %c48], %95 {strides = array<i32>} : memref<512x72xf32, #tpu.memory_space<vmem>>, vector<512x8xf32>,
    %97 = vector.extract_strided_slice %75 {offsets = [0, 2, 1, 0], sizes = [2, 16, 16, 8], strides = [1, 1, 1, 1]} : vector<2x18x18x8xf32> to vector<2x16x16x8xf32>
    %98 = vector.shape_cast %97 : vector<2x16x16x8xf32> to vector<512x8xf32>
    %c0_91 = arith.constant 0 : index
    %c56 = arith.constant 56 : index
    %99 = vector.load %arg14[%c0_91, %c56] : memref<512x72xf32, #tpu.memory_space<vmem>>, vector<512x8xf32>
    tpu.vector_store %arg14[%c0_91, %c56], %98 {strides = array<i32>} : memref<512x72xf32, #tpu.memory_space<vmem>>, vector<512x8xf32>,
    %100 = vector.extract_strided_slice %75 {offsets = [0, 2, 2, 0], sizes = [2, 16, 16, 8], strides = [1, 1, 1, 1]} : vector<2x18x18x8xf32> to vector<2x16x16x8xf32>
    %101 = vector.shape_cast %100 : vector<2x16x16x8xf32> to vector<512x8xf32>
    %c0_92 = arith.constant 0 : index
    %c64 = arith.constant 64 : index
    %102 = vector.load %arg14[%c0_92, %c64] : memref<512x72xf32, #tpu.memory_space<vmem>>, vector<512x8xf32>
    tpu.vector_store %arg14[%c0_92, %c64], %101 {strides = array<i32>} : memref<512x72xf32, #tpu.memory_space<vmem>>, vector<512x8xf32>,
    %c0_93 = arith.constant 0 : index
    %c0_94 = arith.constant 0 : index
    %103 = vector.load %arg14[%c0_93, %c0_94] : memref<512x72xf32, #tpu.memory_space<vmem>>, vector<512x72xf32>
    %c0_95 = arith.constant 0 : index
    %c0_96 = arith.constant 0 : index
    %104 = vector.load %arg5[%c0_95, %c0_96] : memref<72x8xf32, #tpu.memory_space<vmem>>, vector<72x8xf32>
    %cst_97 = arith.constant dense<0.000000e+00> : vector<512x8xf32>
    %105 = tpu.matmul %103, %104, %cst_97 {dimension_numbers = #tpu.dot_dimension_numbers<[1], [0], [0], [1], [0, 0, 1, 1], [], []>} : vector<512x72xf32>, vector<72x8xf32>, vector<512x8xf32> -> vector<512x8xf32>
    %c0_98 = arith.constant 0 : index
    %c0_99 = arith.constant 0 : index
    %106 = vector.load %arg6[%c0_98, %c0_99] : memref<1x8xf32, #tpu.memory_space<vmem>>, vector<1x8xf32>
    %107 = vector.broadcast %106 : vector<1x8xf32> to vector<512x8xf32>
    %108 = arith.addf %105, %107 : vector<512x8xf32>
    %c0_100 = arith.constant 0 : index
    %c0_101 = arith.constant 0 : index
    %109 = vector.load %arg7[%c0_100, %c0_101] : memref<1x8xf32, #tpu.memory_space<vmem>>, vector<1x8xf32>
    %c0_102 = arith.constant 0 : index
    %c0_103 = arith.constant 0 : index
    %110 = vector.load %arg8[%c0_102, %c0_103] : memref<1x8xf32, #tpu.memory_space<vmem>>, vector<1x8xf32>
    %cst_104 = arith.constant dense<0.000000e+00> : vector<8xf32>
    %111 = vector.multi_reduction <add>, %108, %cst_104 [0] : vector<512x8xf32> to vector<8xf32>
    %112 = vector.shape_cast %111 : vector<8xf32> to vector<1x8xf32>
    %cst_105 = arith.constant 0.001953125 : f32
    %113 = vector.broadcast %cst_105 : f32 to vector<1x8xf32>
    %114 = arith.mulf %112, %113 : vector<1x8xf32>
    %115 = arith.mulf %108, %108 : vector<512x8xf32>
    %cst_106 = arith.constant dense<0.000000e+00> : vector<8xf32>
    %116 = vector.multi_reduction <add>, %115, %cst_106 [0] : vector<512x8xf32> to vector<8xf32>
    %117 = vector.shape_cast %116 : vector<8xf32> to vector<1x8xf32>
    %cst_107 = arith.constant 0.001953125 : f32
    %118 = vector.broadcast %cst_107 : f32 to vector<1x8xf32>
    %119 = arith.mulf %117, %118 : vector<1x8xf32>
    %120 = arith.mulf %114, %114 : vector<1x8xf32>
    %121 = arith.subf %119, %120 : vector<1x8xf32>
    %cst_108 = arith.constant 9.99999974E-6 : f32
    %122 = vector.broadcast %cst_108 : f32 to vector<1x8xf32>
    %123 = arith.addf %121, %122 : vector<1x8xf32>
    %124 = math.rsqrt %123 : vector<1x8xf32>
    %125 = arith.mulf %109, %124 : vector<1x8xf32>
    %126 = arith.mulf %114, %125 : vector<1x8xf32>
    %127 = arith.subf %110, %126 : vector<1x8xf32>
    %128 = vector.broadcast %125 : vector<1x8xf32> to vector<512x8xf32>
    %129 = arith.mulf %108, %128 : vector<512x8xf32>
    %130 = vector.broadcast %127 : vector<1x8xf32> to vector<512x8xf32>
    %131 = arith.addf %129, %130 : vector<512x8xf32>
    %cst_109 = arith.constant 0.000000e+00 : f32
    %132 = vector.broadcast %cst_109 : f32 to vector<512x8xf32>
    %133 = arith.maximumf %131, %132 : vector<512x8xf32>
    %134 = vector.shape_cast %133 : vector<512x8xf32> to vector<2x256x8xf32>
    %c0_110 = arith.constant 0 : index
    %c0_111 = arith.constant 0 : index
    %135 = vector.load %arg9[%c0_110, %c0_111] : memref<2x8xf32, #tpu.memory_space<vmem>>, vector<2x8xf32>
    %136 = vector.shape_cast %135 : vector<2x8xf32> to vector<2x1x8xf32>
    %137 = vector.broadcast %136 : vector<2x1x8xf32> to vector<2x256x8xf32>
    %138 = arith.addf %134, %137 : vector<2x256x8xf32>
    %139 = vector.shape_cast %138 : vector<2x256x8xf32> to vector<512x8xf32>
    %c0_112 = arith.constant 0 : index
    %c0_113 = arith.constant 0 : index
    %140 = vector.load %arg10[%c0_112, %c0_113] : memref<512x8xf32, #tpu.memory_space<vmem>>, vector<512x8xf32>
    tpu.vector_store %arg10[%c0_112, %c0_113], %139 {strides = array<i32>} : memref<512x8xf32, #tpu.memory_space<vmem>>, vector<512x8xf32>,
    return
  }
}

</mosaic_0001>

<llo_original>
// kernel: tpu_custom_call.1
$region0: #{tpu_custom_call.1}
  #allocation0 [shape = 'u32[]', space=smem, size = 0x4, offset = 0x4, fixed_abs, tag = 'smem constant byte address 0x4 - core index']
  #allocation1 [shape = 'u32[144,128]{1,0:T(1,128)}', space=vmem, size = 0x12000, scoped, tag = 'internal scratch']
  #allocation2 [shape = 'f32[2,18,18,4]{3,2,1,0:T(8,128)}', space=vmem, size = 0x6c000, scoped, tag = 'scratch operand']
  #allocation3 [shape = 'f32[2,18,18,8]{3,2,1,0:T(8,128)}', space=vmem, size = 0x6c000, scoped, tag = 'scratch operand']
  #allocation4 [shape = 'f32[512,36]{1,0:T(8,128)}', space=vmem, size = 0x40000, scoped, tag = 'scratch operand']
  #allocation5 [shape = 'f32[512,72]{1,0:T(8,128)}', space=vmem, size = 0x40000, scoped, tag = 'scratch operand']
  %s0 = inlined_call_operand.vmem [shape: f32[2,16,16,4], index: 0, kind: input, shape index: {}]
  %s1 = inlined_call_operand.vmem [shape: f32[36,8], index: 1, kind: input, shape index: {}]
  %s2 = inlined_call_operand.vmem [shape: f32[1,8], index: 2, kind: input, shape index: {}]
  %s3 = inlined_call_operand.vmem [shape: f32[1,8], index: 3, kind: input, shape index: {}]
  %s4 = inlined_call_operand.vmem [shape: f32[1,8], index: 4, kind: input, shape index: {}]
  %s5 = inlined_call_operand.vmem [shape: f32[72,8], index: 5, kind: input, shape index: {}]
  %s6 = inlined_call_operand.vmem [shape: f32[1,8], index: 6, kind: input, shape index: {}]
  %s7 = inlined_call_operand.vmem [shape: f32[1,8], index: 7, kind: input, shape index: {}]
  %s8 = inlined_call_operand.vmem [shape: f32[1,8], index: 8, kind: input, shape index: {}]
  %s9 = inlined_call_operand.vmem [shape: f32[2,8], index: 9, kind: input, shape index: {}]
  %s10 = inlined_call_operand.vmem [shape: f32[512,8], index: 10, kind: output, shape index: {}]
  %s11 = sld [smem:[#allocation0]]
  $region50: #{tpu_custom_call.1} parent=0
    _
  %s13 = ssub.s32 1, %s11
  %s14 = scalar_select 0, %s13, %s11
  // Predicated region
  $region2: #{tpu_custom_call.1} parent=0 // pred_check
    _
  $region3: #{tpu_custom_call.1} parent=0 // pred_check_branch
    %16 = sbr.rel (0) target = $region5
  $region4: #{tpu_custom_call.1} parent=0 // pred_region
    _
  $region5: #{tpu_custom_call.1} parent=0 // pred_fallthru
    _
  // Predicated region
  $region6: #{tpu_custom_call.1} parent=0 // pred_check
    _
  $region7: #{tpu_custom_call.1} parent=0 // pred_check_branch
    %18 = sbr.rel (0) target = $region9
  $region8: #{tpu_custom_call.1} parent=0 // pred_region
    _
  $region9: #{tpu_custom_call.1} parent=0 // pred_fallthru
    _
  // Predicated region
  $region10: #{tpu_custom_call.1} parent=0 // pred_check
    _
  $region11: #{tpu_custom_call.1} parent=0 // pred_check_branch
    %20 = sbr.rel (0) target = $region13
  $region12: #{tpu_custom_call.1} parent=0 // pred_region
    _
  $region13: #{tpu_custom_call.1} parent=0 // pred_fallthru
    _
  // Predicated region
  $region14: #{tpu_custom_call.1} parent=0 // pred_check
    _
  $region15: #{tpu_custom_call.1} parent=0 // pred_check_branch
    %22 = sbr.rel (0) target = $region17
  $region16: #{tpu_custom_call.1} parent=0 // pred_region
    _
  $region17: #{tpu_custom_call.1} parent=0 // pred_fallthru
    _
  // Predicated region
  $region18: #{tpu_custom_call.1} parent=0 // pred_check
    _
  $region19: #{tpu_custom_call.1} parent=0 // pred_check_branch
    %24 = sbr.rel (0) target = $region21
  $region20: #{tpu_custom_call.1} parent=0 // pred_region
    _
  $region21: #{tpu_custom_call.1} parent=0 // pred_fallthru
    _
  // Predicated region
  $region22: #{tpu_custom_call.1} parent=0 // pred_check
    _
  $region23: #{tpu_custom_call.1} parent=0 // pred_check_branch
    %26 = sbr.rel (0) target = $region25
  $region24: #{tpu_custom_call.1} parent=0 // pred_region
    _
  $region25: #{tpu_custom_call.1} parent=0 // pred_fallthru
    _
  // Predicated region
  $region26: #{tpu_custom_call.1} parent=0 // pred_check
    _
  $region27: #{tpu_custom_call.1} parent=0 // pred_check_branch
    %28 = sbr.rel (0) target = $region29
  $region28: #{tpu_custom_call.1} parent=0 // pred_region
    _
  $region29: #{tpu_custom_call.1} parent=0 // pred_fallthru
    _
  // Predicated region
  $region30: #{tpu_custom_call.1} parent=0 // pred_check
    _
  $region31: #{tpu_custom_call.1} parent=0 // pred_check_branch
    %30 = sbr.rel (0) target = $region33
  $region32: #{tpu_custom_call.1} parent=0 // pred_region
    _
  $region33: #{tpu_custom_call.1} parent=0 // pred_fallthru
    _
  // Predicated region
  $region34: #{tpu_custom_call.1} parent=0 // pred_check
    _
  $region35: #{tpu_custom_call.1} parent=0 // pred_check_branch
    %32 = sbr.rel (0) target = $region37
  $region36: #{tpu_custom_call.1} parent=0 // pred_region
    _
  $region37: #{tpu_custom_call.1} parent=0 // pred_fallthru
    _
  // Predicated region
  $region38: #{tpu_custom_call.1} parent=0 // pred_check
    _
  $region39: #{tpu_custom_call.1} parent=0 // pred_check_branch
    %34 = sbr.rel (0) target = $region41
  $region40: #{tpu_custom_call.1} parent=0 // pred_region
    _
  $region41: #{tpu_custom_call.1} parent=0 // pred_fallthru
    _
  %v35 = vld [vmem:[%s0] sm:$0xff]
  %v36 = vld [vmem:[%s0 + $0x8] sm:$0xff]
  %v37 = vld [vmem:[%s0 + $0x10] sm:$0xff]
  %v38 = vld [vmem:[%s0 + $0x18] sm:$0xff]
  %v39 = vld [vmem:[%s0 + $0x20] sm:$0xff]
  %v40 = vld [vmem:[%s0 + $0x28] sm:$0xff]
  %v41 = vld [vmem:[%s0 + $0x30] sm:$0xff]
  %v42 = vld [vmem:[%s0 + $0x38] sm:$0xff]
  %v43 = vld [vmem:[%s0 + $0x40] sm:$0xff]
  %v44 = vld [vmem:[%s0 + $0x48] sm:$0xff]
  %v45 = vld [vmem:[%s0 + $0x50] sm:$0xff]
  %v46 = vld [vmem:[%s0 + $0x58] sm:$0xff]
  %v47 = vld [vmem:[%s0 + $0x60] sm:$0xff]
  %v48 = vld [vmem:[%s0 + $0x68] sm:$0xff]
  %v49 = vld [vmem:[%s0 + $0x70] sm:$0xff]
  %v50 = vld [vmem:[%s0 + $0x78] sm:$0xff]
  %v51 = vld [vmem:[%s0 + $0x80] sm:$0xff]
  %v52 = vld [vmem:[%s0 + $0x88] sm:$0xff]
  %v53 = vld [vmem:[%s0 + $0x90] sm:$0xff]
  %v54 = vld [vmem:[%s0 + $0x98] sm:$0xff]
  %v55 = vld [vmem:[%s0 + $0xa0] sm:$0xff]
  %v56 = vld [vmem:[%s0 + $0xa8] sm:$0xff]
  %v57 = vld [vmem:[%s0 + $0xb0] sm:$0xff]
  %v58 = vld [vmem:[%s0 + $0xb8] sm:$0xff]
  %v59 = vld [vmem:[%s0 + $0xc0] sm:$0xff]
  %v60 = vld [vmem:[%s0 + $0xc8] sm:$0xff]
  %v61 = vld [vmem:[%s0 + $0xd0] sm:$0xff]
  %v62 = vld [vmem:[%s0 + $0xd8] sm:$0xff]
  %v63 = vld [vmem:[%s0 + $0xe0] sm:$0xff]
  %v64 = vld [vmem:[%s0 + $0xe8] sm:$0xff]
  %v65 = vld [vmem:[%s0 + $0xf0] sm:$0xff]
  %v66 = vld [vmem:[%s0 + $0xf8] sm:$0xff]
  %v67 = vld [vmem:[%s0 + $0x100] sm:$0xff]
  %v68 = vld [vmem:[%s0 + $0x108] sm:$0xff]
  %v69 = vld [vmem:[%s0 + $0x110] sm:$0xff]
  %v70 = vld [vmem:[%s0 + $0x118] sm:$0xff]
  %v71 = vld [vmem:[%s0 + $0x120] sm:$0xff]
  %v72 = vld [vmem:[%s0 + $0x128] sm:$0xff]
  %v73 = vld [vmem:[%s0 + $0x130] sm:$0xff]
  %v74 = vld [vmem:[%s0 + $0x138] sm:$0xff]
  %v75 = vld [vmem:[%s0 + $0x140] sm:$0xff]
  %v76 = vld [vmem:[%s0 + $0x148] sm:$0xff]
  %v77 = vld [vmem:[%s0 + $0x150] sm:$0xff]
  %v78 = vld [vmem:[%s0 + $0x158] sm:$0xff]
  %v79 = vld [vmem:[%s0 + $0x160] sm:$0xff]
  %v80 = vld [vmem:[%s0 + $0x168] sm:$0xff]
  %v81 = vld [vmem:[%s0 + $0x170] sm:$0xff]
  %v82 = vld [vmem:[%s0 + $0x178] sm:$0xff]
  %v83 = vld [vmem:[%s0 + $0x180] sm:$0xff]
  %v84 = vld [vmem:[%s0 + $0x188] sm:$0xff]
  %v85 = vld [vmem:[%s0 + $0x190] sm:$0xff]
  %v86 = vld [vmem:[%s0 + $0x198] sm:$0xff]
  %v87 = vld [vmem:[%s0 + $0x1a0] sm:$0xff]
  %v88 = vld [vmem:[%s0 + $0x1a8] sm:$0xff]
  %v89 = vld [vmem:[%s0 + $0x1b0] sm:$0xff]
  %v90 = vld [vmem:[%s0 + $0x1b8] sm:$0xff]
  %v91 = vld [vmem:[%s0 + $0x1c0] sm:$0xff]
  %v92 = vld [vmem:[%s0 + $0x1c8] sm:$0xff]
  %v93 = vld [vmem:[%s0 + $0x1d0] sm:$0xff]
  %v94 = vld [vmem:[%s0 + $0x1d8] sm:$0xff]
  %v95 = vld [vmem:[%s0 + $0x1e0] sm:$0xff]
  %v96 = vld [vmem:[%s0 + $0x1e8] sm:$0xff]
  %v97 = vld [vmem:[%s0 + $0x1f0] sm:$0xff]
  %v98 = vld [vmem:[%s0 + $0x1f8] sm:$0xff]
  %vm99 = vcmask 31744
  %100 = vst.msk [vmem:[#allocation2] sm:$0xff] %vm99, 0.0
  %101 = vst.msk [vmem:[#allocation2 + $0x8] sm:$0xff] %vm99, 0.0
  %vm102 = vcmask 25600
  %103 = vst.msk [vmem:[#allocation2 + $0x10] sm:$0x3] %vm102, 0.0
  %104 = vst.msk [vmem:[#allocation2 + $0x1b0] sm:$0xff] %vm99, 0.0
  %105 = vst.msk [vmem:[#allocation2 + $0x1b8] sm:$0xff] %vm99, 0.0
  %106 = vst.msk [vmem:[#allocation2 + $0x1c0] sm:$0x3] %vm102, 0.0
  %s107 = scalar_lea.vmem [#allocation2], 408
  %108 = vst.msk [vmem:[%s107] sm:$0xff] %vm99, 0.0
  %109 = vst.msk [vmem:[%s107 + $0x8] sm:$0xff] %vm99, 0.0
  %110 = vst.msk [vmem:[%s107 + $0x10] sm:$0x3] %vm102, 0.0
  %111 = vst.msk [vmem:[%s107 + $0x1b0] sm:$0xff] %vm99, 0.0
  %112 = vst.msk [vmem:[%s107 + $0x1b8] sm:$0xff] %vm99, 0.0
  %113 = vst.msk [vmem:[%s107 + $0x1c0] sm:$0x3] %vm102, 0.0
  %vm114 = vcmask 24576
  %115 = vst.msk [vmem:[#allocation2] sm:$0x1] %vm114, 0.0
  %116 = vst.msk [vmem:[#allocation2 + $0x18] sm:$0x1] %vm114, 0.0
  %117 = vst.msk [vmem:[#allocation2 + $0x30] sm:$0x1] %vm114, 0.0
  %118 = vst.msk [vmem:[#allocation2 + $0x48] sm:$0x1] %vm114, 0.0
  %119 = vst.msk [vmem:[#allocation2 + $0x60] sm:$0x1] %vm114, 0.0
  %120 = vst.msk [vmem:[#allocation2 + $0x78] sm:$0x1] %vm114, 0.0
  %121 = vst.msk [vmem:[#allocation2 + $0x90] sm:$0x1] %vm114, 0.0
  %122 = vst.msk [vmem:[#allocation2 + $0xa8] sm:$0x1] %vm114, 0.0
  %123 = vst.msk [vmem:[#allocation2 + $0xc0] sm:$0x1] %vm114, 0.0
  %124 = vst.msk [vmem:[#allocation2 + $0xd8] sm:$0x1] %vm114, 0.0
  %125 = vst.msk [vmem:[#allocation2 + $0xf0] sm:$0x1] %vm114, 0.0
  %126 = vst.msk [vmem:[#allocation2 + $0x108] sm:$0x1] %vm114, 0.0
  %127 = vst.msk [vmem:[#allocation2 + $0x120] sm:$0x1] %vm114, 0.0
  %128 = vst.msk [vmem:[#allocation2 + $0x138] sm:$0x1] %vm114, 0.0
  %129 = vst.msk [vmem:[#allocation2 + $0x150] sm:$0x1] %vm114, 0.0
  %130 = vst.msk [vmem:[#allocation2 + $0x168] sm:$0x1] %vm114, 0.0
  %131 = vst.msk [vmem:[#allocation2 + $0x180] sm:$0x1] %vm114, 0.0
  %132 = vst.msk [vmem:[#allocation2 + $0x198] sm:$0x1] %vm114, 0.0
  %133 = vst.msk [vmem:[#allocation2 + $0x1b0] sm:$0x1] %vm114, 0.0
  %134 = vst.msk [vmem:[#allocation2 + $0x1c8] sm:$0x1] %vm114, 0.0
  %135 = vst.msk [vmem:[#allocation2 + $0x1e0] sm:$0x1] %vm114, 0.0
  %136 = vst.msk [vmem:[#allocation2 + $0x1f8] sm:$0x1] %vm114, 0.0
  %137 = vst.msk [vmem:[#allocation2 + $0x210] sm:$0x1] %vm114, 0.0
  %138 = vst.msk [vmem:[#allocation2 + $0x228] sm:$0x1] %vm114, 0.0
  %139 = vst.msk [vmem:[#allocation2 + $0x240] sm:$0x1] %vm114, 0.0
  %140 = vst.msk [vmem:[#allocation2 + $0x258] sm:$0x1] %vm114, 0.0
  %141 = vst.msk [vmem:[#allocation2 + $0x270] sm:$0x1] %vm114, 0.0
  %142 = vst.msk [vmem:[#allocation2 + $0x288] sm:$0x1] %vm114, 0.0
  %143 = vst.msk [vmem:[#allocation2 + $0x2a0] sm:$0x1] %vm114, 0.0
  %144 = vst.msk [vmem:[#allocation2 + $0x2b8] sm:$0x1] %vm114, 0.0
  %145 = vst.msk [vmem:[#allocation2 + $0x2d0] sm:$0x1] %vm114, 0.0
  %146 = vst.msk [vmem:[#allocation2 + $0x2e8] sm:$0x1] %vm114, 0.0
  %147 = vst.msk [vmem:[#allocation2 + $0x300] sm:$0x1] %vm114, 0.0
  %148 = vst.msk [vmem:[#allocation2 + $0x318] sm:$0x1] %vm114, 0.0
  %149 = vst.msk [vmem:[#allocation2 + $0x330] sm:$0x1] %vm114, 0.0
  %150 = vst.msk [vmem:[#allocation2 + $0x348] sm:$0x1] %vm114, 0.0
  %151 = vst.msk [vmem:[#allocation2 + $0x11] sm:$0x1] %vm114, 0.0
  %152 = vst.msk [vmem:[#allocation2 + $0x29] sm:$0x1] %vm114, 0.0
  %153 = vst.msk [vmem:[#allocation2 + $0x41] sm:$0x1] %vm114, 0.0
  %154 = vst.msk [vmem:[#allocation2 + $0x59] sm:$0x1] %vm114, 0.0
  %155 = vst.msk [vmem:[#allocation2 + $0x71] sm:$0x1] %vm114, 0.0
  %156 = vst.msk [vmem:[#allocation2 + $0x89] sm:$0x1] %vm114, 0.0
  %157 = vst.msk [vmem:[#allocation2 + $0xa1] sm:$0x1] %vm114, 0.0
  %158 = vst.msk [vmem:[#allocation2 + $0xb9] sm:$0x1] %vm114, 0.0
  %159 = vst.msk [vmem:[#allocation2 + $0xd1] sm:$0x1] %vm114, 0.0
  %160 = vst.msk [vmem:[#allocation2 + $0xe9] sm:$0x1] %vm114, 0.0
  %161 = vst.msk [vmem:[#allocation2 + $0x101] sm:$0x1] %vm114, 0.0
  %162 = vst.msk [vmem:[#allocation2 + $0x119] sm:$0x1] %vm114, 0.0
  %163 = vst.msk [vmem:[#allocation2 + $0x131] sm:$0x1] %vm114, 0.0
  %164 = vst.msk [vmem:[#allocation2 + $0x149] sm:$0x1] %vm114, 0.0
  %165 = vst.msk [vmem:[#allocation2 + $0x161] sm:$0x1] %vm114, 0.0
  %166 = vst.msk [vmem:[#allocation2 + $0x179] sm:$0x1] %vm114, 0.0
  %167 = vst.msk [vmem:[#allocation2 + $0x191] sm:$0x1] %vm114, 0.0
  %168 = vst.msk [vmem:[#allocation2 + $0x1a9] sm:$0x1] %vm114, 0.0
  %169 = vst.msk [vmem:[#allocation2 + $0x1c1] sm:$0x1] %vm114, 0.0
  %170 = vst.msk [vmem:[#allocation2 + $0x1d9] sm:$0x1] %vm114, 0.0
  %171 = vst.msk [vmem:[#allocation2 + $0x1f1] sm:$0x1] %vm114, 0.0
  %172 = vst.msk [vmem:[#allocation2 + $0x209] sm:$0x1] %vm114, 0.0
  %173 = vst.msk [vmem:[#allocation2 + $0x221] sm:$0x1] %vm114, 0.0
  %174 = vst.msk [vmem:[#allocation2 + $0x239] sm:$0x1] %vm114, 0.0
  %175 = vst.msk [vmem:[#allocation2 + $0x251] sm:$0x1] %vm114, 0.0
  %176 = vst.msk [vmem:[#allocation2 + $0x269] sm:$0x1] %vm114, 0.0
  %177 = vst.msk [vmem:[#allocation2 + $0x281] sm:$0x1] %vm114, 0.0
  %178 = vst.msk [vmem:[#allocation2 + $0x299] sm:$0x1] %vm114, 0.0
  %179 = vst.msk [vmem:[#allocation2 + $0x2b1] sm:$0x1] %vm114, 0.0
  %180 = vst.msk [vmem:[#allocation2 + $0x2c9] sm:$0x1] %vm114, 0.0
  %181 = vst.msk [vmem:[#allocation2 + $0x2e1] sm:$0x1] %vm114, 0.0
  %182 = vst.msk [vmem:[#allocation2 + $0x2f9] sm:$0x1] %vm114, 0.0
  %183 = vst.msk [vmem:[#allocation2 + $0x311] sm:$0x1] %vm114, 0.0
  %184 = vst.msk [vmem:[#allocation2 + $0x329] sm:$0x1] %vm114, 0.0
  %185 = vst.msk [vmem:[#allocation2 + $0x341] sm:$0x1] %vm114, 0.0
  %186 = vst.msk [vmem:[#allocation2 + $0x359] sm:$0x1] %vm114, 0.0
  %s187 = scalar_lea.vmem [#allocation2], 24
  %188 = vst.msk [vmem:[%s187 + $0x1] sm:$0xff] %vm99, %v35
  %189 = vst.msk [vmem:[%s187 + $0x9] sm:$0xff] %vm99, %v36
  %190 = vst.msk [vmem:[%s187 + $0x19] sm:$0xff] %vm99, %v37
  %191 = vst.msk [vmem:[%s187 + $0x21] sm:$0xff] %vm99, %v38
  %192 = vst.msk [vmem:[%s187 + $0x31] sm:$0xff] %vm99, %v39
  %193 = vst.msk [vmem:[%s187 + $0x39] sm:$0xff] %vm99, %v40
  %194 = vst.msk [vmem:[%s187 + $0x49] sm:$0xff] %vm99, %v41
  %195 = vst.msk [vmem:[%s187 + $0x51] sm:$0xff] %vm99, %v42
  %196 = vst.msk [vmem:[%s187 + $0x61] sm:$0xff] %vm99, %v43
  %197 = vst.msk [vmem:[%s187 + $0x69] sm:$0xff] %vm99, %v44
  %198 = vst.msk [vmem:[%s187 + $0x79] sm:$0xff] %vm99, %v45
  %199 = vst.msk [vmem:[%s187 + $0x81] sm:$0xff] %vm99, %v46
  %200 = vst.msk [vmem:[%s187 + $0x91] sm:$0xff] %vm99, %v47
  %201 = vst.msk [vmem:[%s187 + $0x99] sm:$0xff] %vm99, %v48
  %202 = vst.msk [vmem:[%s187 + $0xa9] sm:$0xff] %vm99, %v49
  %203 = vst.msk [vmem:[%s187 + $0xb1] sm:$0xff] %vm99, %v50
  %204 = vst.msk [vmem:[%s187 + $0xc1] sm:$0xff] %vm99, %v51
  %205 = vst.msk [vmem:[%s187 + $0xc9] sm:$0xff] %vm99, %v52
  %206 = vst.msk [vmem:[%s187 + $0xd9] sm:$0xff] %vm99, %v53
  %207 = vst.msk [vmem:[%s187 + $0xe1] sm:$0xff] %vm99, %v54
  %208 = vst.msk [vmem:[%s187 + $0xf1] sm:$0xff] %vm99, %v55
  %209 = vst.msk [vmem:[%s187 + $0xf9] sm:$0xff] %vm99, %v56
  %210 = vst.msk [vmem:[%s187 + $0x109] sm:$0xff] %vm99, %v57
  %211 = vst.msk [vmem:[%s187 + $0x111] sm:$0xff] %vm99, %v58
  %212 = vst.msk [vmem:[%s187 + $0x121] sm:$0xff] %vm99, %v59
  %213 = vst.msk [vmem:[%s187 + $0x129] sm:$0xff] %vm99, %v60
  %214 = vst.msk [vmem:[%s187 + $0x139] sm:$0xff] %vm99, %v61
  %215 = vst.msk [vmem:[%s187 + $0x141] sm:$0xff] %vm99, %v62
  %216 = vst.msk [vmem:[%s187 + $0x151] sm:$0xff] %vm99, %v63
  %217 = vst.msk [vmem:[%s187 + $0x159] sm:$0xff] %vm99, %v64
  %218 = vst.msk [vmem:[%s187 + $0x169] sm:$0xff] %vm99, %v65
  %219 = vst.msk [vmem:[%s187 + $0x171] sm:$0xff] %vm99, %v66
  %220 = vst.msk [vmem:[%s187 + $0x1b1] sm:$0xff] %vm99, %v67
  %221 = vst.msk [vmem:[%s187 + $0x1b9] sm:$0xff] %vm99, %v68
  %222 = vst.msk [vmem:[%s187 + $0x1c9] sm:$0xff] %vm99, %v69
  %223 = vst.msk [vmem:[%s187 + $0x1d1] sm:$0xff] %vm99, %v70
  %224 = vst.msk [vmem:[%s187 + $0x1e1] sm:$0xff] %vm99, %v71
  %225 = vst.msk [vmem:[%s187 + $0x1e9] sm:$0xff] %vm99, %v72
  %226 = vst.msk [vmem:[%s187 + $0x1f9] sm:$0xff] %vm99, %v73
  %227 = vst.msk [vmem:[%s187 + $0x201] sm:$0xff] %vm99, %v74
  %228 = vst.msk [vmem:[%s187 + $0x211] sm:$0xff] %vm99, %v75
  %229 = vst.msk [vmem:[%s187 + $0x219] sm:$0xff] %vm99, %v76
  %230 = vst.msk [vmem:[%s187 + $0x229] sm:$0xff] %vm99, %v77
  %231 = vst.msk [vmem:[%s187 + $0x231] sm:$0xff] %vm99, %v78
  %232 = vst.msk [vmem:[%s187 + $0x241] sm:$0xff] %vm99, %v79
  %233 = vst.msk [vmem:[%s187 + $0x249] sm:$0xff] %vm99, %v80
  %234 = vst.msk [vmem:[%s187 + $0x259] sm:$0xff] %vm99, %v81
  %235 = vst.msk [vmem:[%s187 + $0x261] sm:$0xff] %vm99, %v82
  %236 = vst.msk [vmem:[%s187 + $0x271] sm:$0xff] %vm99, %v83
  %237 = vst.msk [vmem:[%s187 + $0x279] sm:$0xff] %vm99, %v84
  %238 = vst.msk [vmem:[%s187 + $0x289] sm:$0xff] %vm99, %v85
  %239 = vst.msk [vmem:[%s187 + $0x291] sm:$0xff] %vm99, %v86
  %240 = vst.msk [vmem:[%s187 + $0x2a1] sm:$0xff] %vm99, %v87
  %241 = vst.msk [vmem:[%s187 + $0x2a9] sm:$0xff] %vm99, %v88
  %242 = vst.msk [vmem:[%s187 + $0x2b9] sm:$0xff] %vm99, %v89
  %243 = vst.msk [vmem:[%s187 + $0x2c1] sm:$0xff] %vm99, %v90
  %244 = vst.msk [vmem:[%s187 + $0x2d1] sm:$0xff] %vm99, %v91
  %245 = vst.msk [vmem:[%s187 + $0x2d9] sm:$0xff] %vm99, %v92
  %246 = vst.msk [vmem:[%s187 + $0x2e9] sm:$0xff] %vm99, %v93
  %247 = vst.msk [vmem:[%s187 + $0x2f1] sm:$0xff] %vm99, %v94
  %248 = vst.msk [vmem:[%s187 + $0x301] sm:$0xff] %vm99, %v95
  %249 = vst.msk [vmem:[%s187 + $0x309] sm:$0xff] %vm99, %v96
  %250 = vst.msk [vmem:[%s187 + $0x319] sm:$0xff] %vm99, %v97
  %251 = vst.msk [vmem:[%s187 + $0x321] sm:$0xff] %vm99, %v98
  %v252 = vld [vmem:[#allocation2] sm:$0xff]
  %v253 = vld [vmem:[#allocation2 + $0x8] sm:$0xff]
  %v254 = vld [vmem:[#allocation2 + $0x10] sm:$0x3]
  %v255 = vld [vmem:[#allocation2 + $0x18] sm:$0xff]
  %v256 = vld [vmem:[#allocation2 + $0x20] sm:$0xff]
  %v257 = vld [vmem:[#allocation2 + $0x28] sm:$0x3]
  %v258 = vld [vmem:[#allocation2 + $0x30] sm:$0xff]
  %v259 = vld [vmem:[#allocation2 + $0x38] sm:$0xff]
  %v260 = vld [vmem:[#allocation2 + $0x40] sm:$0x3]
  %v261 = vld [vmem:[#allocation2 + $0x48] sm:$0xff]
  %v262 = vld [vmem:[#allocation2 + $0x50] sm:$0xff]
  %v263 = vld [vmem:[#allocation2 + $0x58] sm:$0x3]
  %v264 = vld [vmem:[#allocation2 + $0x60] sm:$0xff]
  %v265 = vld [vmem:[#allocation2 + $0x68] sm:$0xff]
  %v266 = vld [vmem:[#allocation2 + $0x70] sm:$0x3]
  %v267 = vld [vmem:[#allocation2 + $0x78] sm:$0xff]
  %v268 = vld [vmem:[#allocation2 + $0x80] sm:$0xff]
  %v269 = vld [vmem:[#allocation2 + $0x88] sm:$0x3]
  %v270 = vld [vmem:[#allocation2 + $0x90] sm:$0xff]
  %v271 = vld [vmem:[#allocation2 + $0x98] sm:$0xff]
  %v272 = vld [vmem:[#allocation2 + $0xa0] sm:$0x3]
  %v273 = vld [vmem:[#allocation2 + $0xa8] sm:$0xff]
  %v274 = vld [vmem:[#allocation2 + $0xb0] sm:$0xff]
  %v275 = vld [vmem:[#allocation2 + $0xb8] sm:$0x3]
  %v276 = vld [vmem:[#allocation2 + $0xc0] sm:$0xff]
  %v277 = vld [vmem:[#allocation2 + $0xc8] sm:$0xff]
  %v278 = vld [vmem:[#allocation2 + $0xd0] sm:$0x3]
  %v279 = vld [vmem:[#allocation2 + $0xd8] sm:$0xff]
  %v280 = vld [vmem:[#allocation2 + $0xe0] sm:$0xff]
  %v281 = vld [vmem:[#allocation2 + $0xe8] sm:$0x3]
  %v282 = vld [vmem:[#allocation2 + $0xf0] sm:$0xff]
  %v283 = vld [vmem:[#allocation2 + $0xf8] sm:$0xff]
  %v284 = vld [vmem:[#allocation2 + $0x100] sm:$0x3]
  %v285 = vld [vmem:[#allocation2 + $0x108] sm:$0xff]
  %v286 = vld [vmem:[#allocation2 + $0x110] sm:$0xff]
  %v287 = vld [vmem:[#allocation2 + $0x118] sm:$0x3]
  %v288 = vld [vmem:[#allocation2 + $0x120] sm:$0xff]
  %v289 = vld [vmem:[#allocation2 + $0x128] sm:$0xff]
  %v290 = vld [vmem:[#allocation2 + $0x130] sm:$0x3]
  %v291 = vld [vmem:[#allocation2 + $0x138] sm:$0xff]
  %v292 = vld [vmem:[#allocation2 + $0x140] sm:$0xff]
  %v293 = vld [vmem:[#allocation2 + $0x148] sm:$0x3]
  %v294 = vld [vmem:[#allocation2 + $0x150] sm:$0xff]
  %v295 = vld [vmem:[#allocation2 + $0x158] sm:$0xff]
  %v296 = vld [vmem:[#allocation2 + $0x160] sm:$0x3]
  %v297 = vld [vmem:[#allocation2 + $0x168] sm:$0xff]
  %v298 = vld [vmem:[#allocation2 + $0x170] sm:$0xff]
  %v299 = vld [vmem:[#allocation2 + $0x178] sm:$0x3]
  %v300 = vld [vmem:[#allocation2 + $0x180] sm:$0xff]
  %v301 = vld [vmem:[#allocation2 + $0x188] sm:$0xff]
  %v302 = vld [vmem:[#allocation2 + $0x190] sm:$0x3]
  %v303 = vld [vmem:[#allocation2 + $0x198] sm:$0xff]
  %v304 = vld [vmem:[#allocation2 + $0x1a0] sm:$0xff]
  %v305 = vld [vmem:[#allocation2 + $0x1a8] sm:$0x3]
  %v306 = vld [vmem:[#allocation2 + $0x1b0] sm:$0xff]
  %v307 = vld [vmem:[#allocation2 + $0x1b8] sm:$0xff]
  %v308 = vld [vmem:[#allocation2 + $0x1c0] sm:$0x3]
  %v309 = vld [vmem:[#allocation2 + $0x1c8] sm:$0xff]
  %v310 = vld [vmem:[#allocation2 + $0x1d0] sm:$0xff]
  %v311 = vld [vmem:[#allocation2 + $0x1d8] sm:$0x3]
  %v312 = vld [vmem:[#allocation2 + $0x1e0] sm:$0xff]
  %v313 = vld [vmem:[#allocation2 + $0x1e8] sm:$0xff]
  %v314 = vld [vmem:[#allocation2 + $0x1f0] sm:$0x3]
  %v315 = vld [vmem:[#allocation2 + $0x1f8] sm:$0xff]
  %v316 = vld [vmem:[#allocation2 + $0x200] sm:$0xff]
  %v317 = vld [vmem:[#allocation2 + $0x208] sm:$0x3]
  %v318 = vld [vmem:[#allocation2 + $0x210] sm:$0xff]
  %v319 = vld [vmem:[#allocation2 + $0x218] sm:$0xff]
  %v320 = vld [vmem:[#allocation2 + $0x220] sm:$0x3]
  %v321 = vld [vmem:[#allocation2 + $0x228] sm:$0xff]
  %v322 = vld [vmem:[#allocation2 + $0x230] sm:$0xff]
  %v323 = vld [vmem:[#allocation2 + $0x238] sm:$0x3]
  %v324 = vld [vmem:[#allocation2 + $0x240] sm:$0xff]
  %v325 = vld [vmem:[#allocation2 + $0x248] sm:$0xff]
  %v326 = vld [vmem:[#allocation2 + $0x250] sm:$0x3]
  %v327 = vld [vmem:[#allocation2 + $0x258] sm:$0xff]
  %v328 = vld [vmem:[#allocation2 + $0x260] sm:$0xff]
  %v329 = vld [vmem:[#allocation2 + $0x268] sm:$0x3]
  %v330 = vld [vmem:[#allocation2 + $0x270] sm:$0xff]
  %v331 = vld [vmem:[#allocation2 + $0x278] sm:$0xff]
  %v332 = vld [vmem:[#allocation2 + $0x280] sm:$0x3]
  %v333 = vld [vmem:[#allocation2 + $0x288] sm:$0xff]
  %v334 = vld [vmem:[#allocation2 + $0x290] sm:$0xff]
  %v335 = vld [vmem:[#allocation2 + $0x298] sm:$0x3]
  %v336 = vld [vmem:[#allocation2 + $0x2a0] sm:$0xff]
  %v337 = vld [vmem:[#allocation2 + $0x2a8] sm:$0xff]
  %v338 = vld [vmem:[#allocation2 + $0x2b0] sm:$0x3]
  %v339 = vld [vmem:[#allocation2 + $0x2b8] sm:$0xff]
  %v340 = vld [vmem:[#allocation2 + $0x2c0] sm:$0xff]
  %v341 = vld [vmem:[#allocation2 + $0x2c8] sm:$0x3]
  %v342 = vld [vmem:[#allocation2 + $0x2d0] sm:$0xff]
  %v343 = vld [vmem:[#allocation2 + $0x2d8] sm:$0xff]
  %v344 = vld [vmem:[#allocation2 + $0x2e0] sm:$0x3]
  %v345 = vld [vmem:[#allocation2 + $0x2e8] sm:$0xff]
  %v346 = vld [vmem:[#allocation2 + $0x2f0] sm:$0xff]
  %v347 = vld [vmem:[#allocation2 + $0x2f8] sm:$0x3]
  %v348 = vld [vmem:[#allocation2 + $0x300] sm:$0xff]
  %v349 = vld [vmem:[#allocation2 + $0x308] sm:$0xff]
  %v350 = vld [vmem:[#allocation2 + $0x310] sm:$0x3]
  %v351 = vld [vmem:[#allocation2 + $0x318] sm:$0xff]
  %v352 = vld [vmem:[#allocation2 + $0x320] sm:$0xff]
  %v353 = vld [vmem:[#allocation2 + $0x328] sm:$0x3]
  %v354 = vld [vmem:[#allocation2 + $0x330] sm:$0xff]
  %v355 = vld [vmem:[#allocation2 + $0x338] sm:$0xff]
  %v356 = vld [vmem:[#allocation2 + $0x340] sm:$0x3]
  %v357 = vld [vmem:[#allocation2 + $0x348] sm:$0xff]
  %v358 = vld [vmem:[#allocation2 + $0x350] sm:$0xff]
  %v359 = vld [vmem:[#allocation2 + $0x358] sm:$0x3]
  %360 = vst.msk [vmem:[#allocation4] sm:$0xff] %vm99, %v252
  %361 = vst.msk [vmem:[#allocation4 + $0x8] sm:$0xff] %vm99, %v253
  %362 = vst.msk [vmem:[#allocation4 + $0x10] sm:$0xff] %vm99, %v255
  %363 = vst.msk [vmem:[#allocation4 + $0x18] sm:$0xff] %vm99, %v256
  %364 = vst.msk [vmem:[#allocation4 + $0x20] sm:$0xff] %vm99, %v258
  %365 = vst.msk [vmem:[#allocation4 + $0x28] sm:$0xff] %vm99, %v259
  %366 = vst.msk [vmem:[#allocation4 + $0x30] sm:$0xff] %vm99, %v261
  %367 = vst.msk [vmem:[#allocation4 + $0x38] sm:$0xff] %vm99, %v262
  %368 = vst.msk [vmem:[#allocation4 + $0x40] sm:$0xff] %vm99, %v264
  %369 = vst.msk [vmem:[#allocation4 + $0x48] sm:$0xff] %vm99, %v265
  %370 = vst.msk [vmem:[#allocation4 + $0x50] sm:$0xff] %vm99, %v267
  %371 = vst.msk [vmem:[#allocation4 + $0x58] sm:$0xff] %vm99, %v268
  %372 = vst.msk [vmem:[#allocation4 + $0x60] sm:$0xff] %vm99, %v270
  %373 = vst.msk [vmem:[#allocation4 + $0x68] sm:$0xff] %vm99, %v271
  %374 = vst.msk [vmem:[#allocation4 + $0x70] sm:$0xff] %vm99, %v273
  %375 = vst.msk [vmem:[#allocation4 + $0x78] sm:$0xff] %vm99, %v274
  %376 = vst.msk [vmem:[#allocation4 + $0x80] sm:$0xff] %vm99, %v276
  %377 = vst.msk [vmem:[#allocation4 + $0x88] sm:$0xff] %vm99, %v277
  %378 = vst.msk [vmem:[#allocation4 + $0x90] sm:$0xff] %vm99, %v279
  %379 = vst.msk [vmem:[#allocation4 + $0x98] sm:$0xff] %vm99, %v280
  %380 = vst.msk [vmem:[#allocation4 + $0xa0] sm:$0xff] %vm99, %v282
  %381 = vst.msk [vmem:[#allocation4 + $0xa8] sm:$0xff] %vm99, %v283
  %382 = vst.msk [vmem:[#allocation4 + $0xb0] sm:$0xff] %vm99, %v285
  %383 = vst.msk [vmem:[#allocation4 + $0xb8] sm:$0xff] %vm99, %v286
  %384 = vst.msk [vmem:[#allocation4 + $0xc0] sm:$0xff] %vm99, %v288
  %385 = vst.msk [vmem:[#allocation4 + $0xc8] sm:$0xff] %vm99, %v289
  %386 = vst.msk [vmem:[#allocation4 + $0xd0] sm:$0xff] %vm99, %v291
  %387 = vst.msk [vmem:[#allocation4 + $0xd8] sm:$0xff] %vm99, %v292
  %388 = vst.msk [vmem:[#allocation4 + $0xe0] sm:$0xff] %vm99, %v294
  %389 = vst.msk [vmem:[#allocation4 + $0xe8] sm:$0xff] %vm99, %v295
  %390 = vst.msk [vmem:[#allocation4 + $0xf0] sm:$0xff] %vm99, %v297
  %391 = vst.msk [vmem:[#allocation4 + $0xf8] sm:$0xff] %vm99, %v298
  %392 = vst.msk [vmem:[#allocation4 + $0x100] sm:$0xff] %vm99, %v306
  %393 = vst.msk [vmem:[#allocation4 + $0x108] sm:$0xff] %vm99, %v307
  %394 = vst.msk [vmem:[#allocation4 + $0x110] sm:$0xff] %vm99, %v309
  %395 = vst.msk [vmem:[#allocation4 + $0x118] sm:$0xff] %vm99, %v310
  %396 = vst.msk [vmem:[#allocation4 + $0x120] sm:$0xff] %vm99, %v312
  %397 = vst.msk [vmem:[#allocation4 + $0x128] sm:$0xff] %vm99, %v313
  %398 = vst.msk [vmem:[#allocation4 + $0x130] sm:$0xff] %vm99, %v315
  %399 = vst.msk [vmem:[#allocation4 + $0x138] sm:$0xff] %vm99, %v316
  %400 = vst.msk [vmem:[#allocation4 + $0x140] sm:$0xff] %vm99, %v318
  %401 = vst.msk [vmem:[#allocation4 + $0x148] sm:$0xff] %vm99, %v319
  %402 = vst.msk [vmem:[#allocation4 + $0x150] sm:$0xff] %vm99, %v321
  %403 = vst.msk [vmem:[#allocation4 + $0x158] sm:$0xff] %vm99, %v322
  %404 = vst.msk [vmem:[#allocation4 + $0x160] sm:$0xff] %vm99, %v324
  %405 = vst.msk [vmem:[#allocation4 + $0x168] sm:$0xff] %vm99, %v325
  %406 = vst.msk [vmem:[#allocation4 + $0x170] sm:$0xff] %vm99, %v327
  %407 = vst.msk [vmem:[#allocation4 + $0x178] sm:$0xff] %vm99, %v328
  %408 = vst.msk [vmem:[#allocation4 + $0x180] sm:$0xff] %vm99, %v330
  %409 = vst.msk [vmem:[#allocation4 + $0x188] sm:$0xff] %vm99, %v331
  %410 = vst.msk [vmem:[#allocation4 + $0x190] sm:$0xff] %vm99, %v333
  %411 = vst.msk [vmem:[#allocation4 + $0x198] sm:$0xff] %vm99, %v334
  %412 = vst.msk [vmem:[#allocation4 + $0x1a0] sm:$0xff] %vm99, %v336
  %413 = vst.msk [vmem:[#allocation4 + $0x1a8] sm:$0xff] %vm99, %v337
  %414 = vst.msk [vmem:[#allocation4 + $0x1b0] sm:$0xff] %vm99, %v339
  %415 = vst.msk [vmem:[#allocation4 + $0x1b8] sm:$0xff] %vm99, %v340
  %416 = vst.msk [vmem:[#allocation4 + $0x1c0] sm:$0xff] %vm99, %v342
  %417 = vst.msk [vmem:[#allocation4 + $0x1c8] sm:$0xff] %vm99, %v343
  %418 = vst.msk [vmem:[#allocation4 + $0x1d0] sm:$0xff] %vm99, %v345
  %419 = vst.msk [vmem:[#allocation4 + $0x1d8] sm:$0xff] %vm99, %v346
  %420 = vst.msk [vmem:[#allocation4 + $0x1e0] sm:$0xff] %vm99, %v348
  %421 = vst.msk [vmem:[#allocation4 + $0x1e8] sm:$0xff] %vm99, %v349
  %422 = vst.msk [vmem:[#allocation4 + $0x1f0] sm:$0xff] %vm99, %v351
  %423 = vst.msk [vmem:[#allocation4 + $0x1f8] sm:$0xff] %vm99, %v352
  %vm520 = vcmask 1046528
  %v521 = vrot.slane %v252, 1
  %v522 = vrot.slane %v253, 1
  %v523 = vsel %vm520, %v521, %v522
  %v524 = vrot.slane %v254, 1
  %v525 = vsel %vm520, %v522, %v524
  %v526 = vrot.slane %v255, 1
  %v527 = vrot.slane %v256, 1
  %v528 = vsel %vm520, %v526, %v527
  %v529 = vrot.slane %v257, 1
  %v530 = vsel %vm520, %v527, %v529
  %v531 = vrot.slane %v258, 1
  %v532 = vrot.slane %v259, 1
  %v533 = vsel %vm520, %v531, %v532
  %v534 = vrot.slane %v260, 1
  %v535 = vsel %vm520, %v532, %v534
  %v536 = vrot.slane %v261, 1
  %v537 = vrot.slane %v262, 1
  %v538 = vsel %vm520, %v536, %v537
  %v539 = vrot.slane %v263, 1
  %v540 = vsel %vm520, %v537, %v539
  %v541 = vrot.slane %v264, 1
  %v542 = vrot.slane %v265, 1
  %v543 = vsel %vm520, %v541, %v542
  %v544 = vrot.slane %v266, 1
  %v545 = vsel %vm520, %v542, %v544
  %v546 = vrot.slane %v267, 1
  %v547 = vrot.slane %v268, 1
  %v548 = vsel %vm520, %v546, %v547
  %v549 = vrot.slane %v269, 1
  %v550 = vsel %vm520, %v547, %v549
  %v551 = vrot.slane %v270, 1
  %v552 = vrot.slane %v271, 1
  %v553 = vsel %vm520, %v551, %v552
  %v554 = vrot.slane %v272, 1
  %v555 = vsel %vm520, %v552, %v554
  %v556 = vrot.slane %v273, 1
  %v557 = vrot.slane %v274, 1
  %v558 = vsel %vm520, %v556, %v557
  %v559 = vrot.slane %v275, 1
  %v560 = vsel %vm520, %v557, %v559
  %v561 = vrot.slane %v276, 1
  %v562 = vrot.slane %v277, 1
  %v563 = vsel %vm520, %v561, %v562
  %v564 = vrot.slane %v278, 1
  %v565 = vsel %vm520, %v562, %v564
  %v566 = vrot.slane %v279, 1
  %v567 = vrot.slane %v280, 1
  %v568 = vsel %vm520, %v566, %v567
  %v569 = vrot.slane %v281, 1
  %v570 = vsel %vm520, %v567, %v569
  %v571 = vrot.slane %v282, 1
  %v572 = vrot.slane %v283, 1
  %v573 = vsel %vm520, %v571, %v572
  %v574 = vrot.slane %v284, 1
  %v575 = vsel %vm520, %v572, %v574
  %v576 = vrot.slane %v285, 1
  %v577 = vrot.slane %v286, 1
  %v578 = vsel %vm520, %v576, %v577
  %v579 = vrot.slane %v287, 1
  %v580 = vsel %vm520, %v577, %v579
  %v581 = vrot.slane %v288, 1
  %v582 = vrot.slane %v289, 1
  %v583 = vsel %vm520, %v581, %v582
  %v584 = vrot.slane %v290, 1
  %v585 = vsel %vm520, %v582, %v584
  %v586 = vrot.slane %v291, 1
  %v587 = vrot.slane %v292, 1
  %v588 = vsel %vm520, %v586, %v587
  %v589 = vrot.slane %v293, 1
  %v590 = vsel %vm520, %v587, %v589
  %v591 = vrot.slane %v294, 1
  %v592 = vrot.slane %v295, 1
  %v593 = vsel %vm520, %v591, %v592
  %v594 = vrot.slane %v296, 1
  %v595 = vsel %vm520, %v592, %v594
  %v596 = vrot.slane %v297, 1
  %v597 = vrot.slane %v298, 1
  %v598 = vsel %vm520, %v596, %v597
  %v599 = vrot.slane %v299, 1
  %v600 = vsel %vm520, %v597, %v599
  %v601 = vrot.slane %v306, 1
  %v602 = vrot.slane %v307, 1
  %v603 = vsel %vm520, %v601, %v602
  %v604 = vrot.slane %v308, 1
  %v605 = vsel %vm520, %v602, %v604
  %v606 = vrot.slane %v309, 1
  %v607 = vrot.slane %v310, 1
  %v608 = vsel %vm520, %v606, %v607
  %v609 = vrot.slane %v311, 1
  %v610 = vsel %vm520, %v607, %v609
  %v611 = vrot.slane %v312, 1
  %v612 = vrot.slane %v313, 1
  %v613 = vsel %vm520, %v611, %v612
  %v614 = vrot.slane %v314, 1
  %v615 = vsel %vm520, %v612, %v614
  %v616 = vrot.slane %v315, 1
  %v617 = vrot.slane %v316, 1
  %v618 = vsel %vm520, %v616, %v617
  %v619 = vrot.slane %v317, 1
  %v620 = vsel %vm520, %v617, %v619
  %v621 = vrot.slane %v318, 1
  %v622 = vrot.slane %v319, 1
  %v623 = vsel %vm520, %v621, %v622
  %v624 = vrot.slane %v320, 1
  %v625 = vsel %vm520, %v622, %v624
  %v626 = vrot.slane %v321, 1
  %v627 = vrot.slane %v322, 1
  %v628 = vsel %vm520, %v626, %v627
  %v629 = vrot.slane %v323, 1
  %v630 = vsel %vm520, %v627, %v629
  %v631 = vrot.slane %v324, 1
  %v632 = vrot.slane %v325, 1
  %v633 = vsel %vm520, %v631, %v632
  %v634 = vrot.slane %v326, 1
  %v635 = vsel %vm520, %v632, %v634
  %v636 = vrot.slane %v327, 1
  %v637 = vrot.slane %v328, 1
  %v638 = vsel %vm520, %v636, %v637
  %v639 = vrot.slane %v329, 1
  %v640 = vsel %vm520, %v637, %v639
  %v641 = vrot.slane %v330, 1
  %v642 = vrot.slane %v331, 1
  %v643 = vsel %vm520, %v641, %v642
  %v644 = vrot.slane %v332, 1
  %v645 = vsel %vm520, %v642, %v644
  %v646 = vrot.slane %v333, 1
  %v647 = vrot.slane %v334, 1
  %v648 = vsel %vm520, %v646, %v647
  %v649 = vrot.slane %v335, 1
  %v650 = vsel %vm520, %v647, %v649
  %v651 = vrot.slane %v336, 1
  %v652 = vrot.slane %v337, 1
  %v653 = vsel %vm520, %v651, %v652
  %v654 = vrot.slane %v338, 1
  %v655 = vsel %vm520, %v652, %v654
  %v656 = vrot.slane %v339, 1
  %v657 = vrot.slane %v340, 1
  %v658 = vsel %vm520, %v656, %v657
  %v659 = vrot.slane %v341, 1
  %v660 = vsel %vm520, %v657, %v659
  %v661 = vrot.slane %v342, 1
  %v662 = vrot.slane %v343, 1
  %v663 = vsel %vm520, %v661, %v662
  %v664 = vrot.slane %v344, 1
  %v665 = vsel %vm520, %v662, %v664
  %v666 = vrot.slane %v345, 1
  %v667 = vrot.slane %v346, 1
  %v668 = vsel %vm520, %v666, %v667
  %v669 = vrot.slane %v347, 1
  %v670 = vsel %vm520, %v667, %v669
  %v671 = vrot.slane %v348, 1
  %v672 = vrot.slane %v349, 1
  %v673 = vsel %vm520, %v671, %v672
  %v674 = vrot.slane %v350, 1
  %v675 = vsel %vm520, %v672, %v674
  %v676 = vrot.slane %v351, 1
  %v677 = vrot.slane %v352, 1
  %v678 = vsel %vm520, %v676, %v677
  %v679 = vrot.slane %v353, 1
  %v680 = vsel %vm520, %v677, %v679
  %681 = vrot.lane.b32.xlu0 %v523, 4
  %v682 = vpop.permute.xlu0 %681
  %683 = vrot.lane.b32.xlu0 %v525, 4
  %v684 = vpop.permute.xlu0 %683
  %685 = vrot.lane.b32.xlu0 %v528, 4
  %v686 = vpop.permute.xlu0 %685
  %687 = vrot.lane.b32.xlu0 %v530, 4
  %v688 = vpop.permute.xlu0 %687
  %689 = vrot.lane.b32.xlu0 %v533, 4
  %v690 = vpop.permute.xlu0 %689
  %691 = vrot.lane.b32.xlu0 %v535, 4
  %v692 = vpop.permute.xlu0 %691
  %693 = vrot.lane.b32.xlu0 %v538, 4
  %v694 = vpop.permute.xlu0 %693
  %695 = vrot.lane.b32.xlu0 %v540, 4
  %v696 = vpop.permute.xlu0 %695
  %697 = vrot.lane.b32.xlu0 %v543, 4
  %v698 = vpop.permute.xlu0 %697
  %699 = vrot.lane.b32.xlu0 %v545, 4
  %v700 = vpop.permute.xlu0 %699
  %701 = vrot.lane.b32.xlu0 %v548, 4
  %v702 = vpop.permute.xlu0 %701
  %703 = vrot.lane.b32.xlu0 %v550, 4
  %v704 = vpop.permute.xlu0 %703
  %705 = vrot.lane.b32.xlu0 %v553, 4
  %v706 = vpop.permute.xlu0 %705
  %707 = vrot.lane.b32.xlu0 %v555, 4
  %v708 = vpop.permute.xlu0 %707
  %709 = vrot.lane.b32.xlu0 %v558, 4
  %v710 = vpop.permute.xlu0 %709
  %711 = vrot.lane.b32.xlu0 %v560, 4
  %v712 = vpop.permute.xlu0 %711
  %713 = vrot.lane.b32.xlu0 %v563, 4
  %v714 = vpop.permute.xlu0 %713
  %715 = vrot.lane.b32.xlu0 %v565, 4
  %v716 = vpop.permute.xlu0 %715
  %717 = vrot.lane.b32.xlu0 %v568, 4
  %v718 = vpop.permute.xlu0 %717
  %719 = vrot.lane.b32.xlu0 %v570, 4
  %v720 = vpop.permute.xlu0 %719
  %721 = vrot.lane.b32.xlu0 %v573, 4
  %v722 = vpop.permute.xlu0 %721
  %723 = vrot.lane.b32.xlu0 %v575, 4
  %v724 = vpop.permute.xlu0 %723
  %725 = vrot.lane.b32.xlu0 %v578, 4
  %v726 = vpop.permute.xlu0 %725
  %727 = vrot.lane.b32.xlu0 %v580, 4
  %v728 = vpop.permute.xlu0 %727
  %729 = vrot.lane.b32.xlu0 %v583, 4
  %v730 = vpop.permute.xlu0 %729
  %731 = vrot.lane.b32.xlu0 %v585, 4
  %v732 = vpop.permute.xlu0 %731
  %733 = vrot.lane.b32.xlu0 %v588, 4
  %v734 = vpop.permute.xlu0 %733
  %735 = vrot.lane.b32.xlu0 %v590, 4
  %v736 = vpop.permute.xlu0 %735
  %737 = vrot.lane.b32.xlu0 %v593, 4
  %v738 = vpop.permute.xlu0 %737
  %739 = vrot.lane.b32.xlu0 %v595, 4
  %v740 = vpop.permute.xlu0 %739
  %741 = vrot.lane.b32.xlu0 %v598, 4
  %v742 = vpop.permute.xlu0 %741
  %743 = vrot.lane.b32.xlu0 %v600, 4
  %v744 = vpop.permute.xlu0 %743
  %745 = vrot.lane.b32.xlu0 %v603, 4
  %v746 = vpop.permute.xlu0 %745
  %747 = vrot.lane.b32.xlu0 %v605, 4
  %v748 = vpop.permute.xlu0 %747
  %749 = vrot.lane.b32.xlu0 %v608, 4
  %v750 = vpop.permute.xlu0 %749
  %751 = vrot.lane.b32.xlu0 %v610, 4
  %v752 = vpop.permute.xlu0 %751
  %753 = vrot.lane.b32.xlu0 %v613, 4
  %v754 = vpop.permute.xlu0 %753
  %755 = vrot.lane.b32.xlu0 %v615, 4
  %v756 = vpop.permute.xlu0 %755
  %757 = vrot.lane.b32.xlu0 %v618, 4
  %v758 = vpop.permute.xlu0 %757
  %759 = vrot.lane.b32.xlu0 %v620, 4
  %v760 = vpop.permute.xlu0 %759
  %761 = vrot.lane.b32.xlu0 %v623, 4
  %v762 = vpop.permute.xlu0 %761
  %763 = vrot.lane.b32.xlu0 %v625, 4
  %v764 = vpop.permute.xlu0 %763
  %765 = vrot.lane.b32.xlu0 %v628, 4
  %v766 = vpop.permute.xlu0 %765
  %767 = vrot.lane.b32.xlu0 %v630, 4
  %v768 = vpop.permute.xlu0 %767
  %769 = vrot.lane.b32.xlu0 %v633, 4
  %v770 = vpop.permute.xlu0 %769
  %771 = vrot.lane.b32.xlu0 %v635, 4
  %v772 = vpop.permute.xlu0 %771
  %773 = vrot.lane.b32.xlu0 %v638, 4
  %v774 = vpop.permute.xlu0 %773
  %775 = vrot.lane.b32.xlu0 %v640, 4
  %v776 = vpop.permute.xlu0 %775
  %777 = vrot.lane.b32.xlu0 %v643, 4
  %v778 = vpop.permute.xlu0 %777
  %779 = vrot.lane.b32.xlu0 %v645, 4
  %v780 = vpop.permute.xlu0 %779
  %781 = vrot.lane.b32.xlu0 %v648, 4
  %v782 = vpop.permute.xlu0 %781
  %783 = vrot.lane.b32.xlu0 %v650, 4
  %v784 = vpop.permute.xlu0 %783
  %785 = vrot.lane.b32.xlu0 %v653, 4
  %v786 = vpop.permute.xlu0 %785
  %787 = vrot.lane.b32.xlu0 %v655, 4
  %v788 = vpop.permute.xlu0 %787
  %789 = vrot.lane.b32.xlu0 %v658, 4
  %v790 = vpop.permute.xlu0 %789
  %791 = vrot.lane.b32.xlu0 %v660, 4
  %v792 = vpop.permute.xlu0 %791
  %793 = vrot.lane.b32.xlu0 %v663, 4
  %v794 = vpop.permute.xlu0 %793
  %795 = vrot.lane.b32.xlu0 %v665, 4
  %v796 = vpop.permute.xlu0 %795
  %797 = vrot.lane.b32.xlu0 %v668, 4
  %v798 = vpop.permute.xlu0 %797
  %799 = vrot.lane.b32.xlu0 %v670, 4
  %v800 = vpop.permute.xlu0 %799
  %801 = vrot.lane.b32.xlu0 %v673, 4
  %v802 = vpop.permute.xlu0 %801
  %803 = vrot.lane.b32.xlu0 %v675, 4
  %v804 = vpop.permute.xlu0 %803
  %805 = vrot.lane.b32.xlu0 %v678, 4
  %v806 = vpop.permute.xlu0 %805
  %807 = vrot.lane.b32.xlu0 %v680, 4
  %v808 = vpop.permute.xlu0 %807
  %vm873 = vcmask 64544
  %874 = vst.msk [vmem:[#allocation4] sm:$0xff] %vm873, %v682
  %875 = vst.msk [vmem:[#allocation4 + $0x8] sm:$0xff] %vm873, %v684
  %876 = vst.msk [vmem:[#allocation4 + $0x10] sm:$0xff] %vm873, %v686
  %877 = vst.msk [vmem:[#allocation4 + $0x18] sm:$0xff] %vm873, %v688
  %878 = vst.msk [vmem:[#allocation4 + $0x20] sm:$0xff] %vm873, %v690
  %879 = vst.msk [vmem:[#allocation4 + $0x28] sm:$0xff] %vm873, %v692
  %880 = vst.msk [vmem:[#allocation4 + $0x30] sm:$0xff] %vm873, %v694
  %881 = vst.msk [vmem:[#allocation4 + $0x38] sm:$0xff] %vm873, %v696
  %882 = vst.msk [vmem:[#allocation4 + $0x40] sm:$0xff] %vm873, %v698
  %883 = vst.msk [vmem:[#allocation4 + $0x48] sm:$0xff] %vm873, %v700
  %884 = vst.msk [vmem:[#allocation4 + $0x50] sm:$0xff] %vm873, %v702
  %885 = vst.msk [vmem:[#allocation4 + $0x58] sm:$0xff] %vm873, %v704
  %886 = vst.msk [vmem:[#allocation4 + $0x60] sm:$0xff] %vm873, %v706
  %887 = vst.msk [vmem:[#allocation4 + $0x68] sm:$0xff] %vm873, %v708
  %888 = vst.msk [vmem:[#allocation4 + $0x70] sm:$0xff] %vm873, %v710
  %889 = vst.msk [vmem:[#allocation4 + $0x78] sm:$0xff] %vm873, %v712
  %890 = vst.msk [vmem:[#allocation4 + $0x80] sm:$0xff] %vm873, %v714
  %891 = vst.msk [vmem:[#allocation4 + $0x88] sm:$0xff] %vm873, %v716
  %892 = vst.msk [vmem:[#allocation4 + $0x90] sm:$0xff] %vm873, %v718
  %893 = vst.msk [vmem:[#allocation4 + $0x98] sm:$0xff] %vm873, %v720
  %894 = vst.msk [vmem:[#allocation4 + $0xa0] sm:$0xff] %vm873, %v722
  %895 = vst.msk [vmem:[#allocation4 + $0xa8] sm:$0xff] %vm873, %v724
  %896 = vst.msk [vmem:[#allocation4 + $0xb0] sm:$0xff] %vm873, %v726
  %897 = vst.msk [vmem:[#allocation4 + $0xb8] sm:$0xff] %vm873, %v728
  %898 = vst.msk [vmem:[#allocation4 + $0xc0] sm:$0xff] %vm873, %v730
  %899 = vst.msk [vmem:[#allocation4 + $0xc8] sm:$0xff] %vm873, %v732
  %900 = vst.msk [vmem:[#allocation4 + $0xd0] sm:$0xff] %vm873, %v734
  %901 = vst.msk [vmem:[#allocation4 + $0xd8] sm:$0xff] %vm873, %v736
  %902 = vst.msk [vmem:[#allocation4 + $0xe0] sm:$0xff] %vm873, %v738
  %903 = vst.msk [vmem:[#allocation4 + $0xe8] sm:$0xff] %vm873, %v740
  %904 = vst.msk [vmem:[#allocation4 + $0xf0] sm:$0xff] %vm873, %v742
  %905 = vst.msk [vmem:[#allocation4 + $0xf8] sm:$0xff] %vm873, %v744
  %906 = vst.msk [vmem:[#allocation4 + $0x100] sm:$0xff] %vm873, %v746
  %907 = vst.msk [vmem:[#allocation4 + $0x108] sm:$0xff] %vm873, %v748
  %908 = vst.msk [vmem:[#allocation4 + $0x110] sm:$0xff] %vm873, %v750
  %909 = vst.msk [vmem:[#allocation4 + $0x118] sm:$0xff] %vm873, %v752
  %910 = vst.msk [vmem:[#allocation4 + $0x120] sm:$0xff] %vm873, %v754
  %911 = vst.msk [vmem:[#allocation4 + $0x128] sm:$0xff] %vm873, %v756
  %912 = vst.msk [vmem:[#allocation4 + $0x130] sm:$0xff] %vm873, %v758
  %913 = vst.msk [vmem:[#allocation4 + $0x138] sm:$0xff] %vm873, %v760
  %914 = vst.msk [vmem:[#allocation4 + $0x140] sm:$0xff] %vm873, %v762
  %915 = vst.msk [vmem:[#allocation4 + $0x148] sm:$0xff] %vm873, %v764
  %916 = vst.msk [vmem:[#allocation4 + $0x150] sm:$0xff] %vm873, %v766
  %917 = vst.msk [vmem:[#allocation4 + $0x158] sm:$0xff] %vm873, %v768
  %918 = vst.msk [vmem:[#allocation4 + $0x160] sm:$0xff] %vm873, %v770
  %919 = vst.msk [vmem:[#allocation4 + $0x168] sm:$0xff] %vm873, %v772
  %920 = vst.msk [vmem:[#allocation4 + $0x170] sm:$0xff] %vm873, %v774
  %921 = vst.msk [vmem:[#allocation4 + $0x178] sm:$0xff] %vm873, %v776
  %922 = vst.msk [vmem:[#allocation4 + $0x180] sm:$0xff] %vm873, %v778
  %923 = vst.msk [vmem:[#allocation4 + $0x188] sm:$0xff] %vm873, %v780
  %924 = vst.msk [vmem:[#allocation4 + $0x190] sm:$0xff] %vm873, %v782
  %925 = vst.msk [vmem:[#allocation4 + $0x198] sm:$0xff] %vm873, %v784
  %926 = vst.msk [vmem:[#allocation4 + $0x1a0] sm:$0xff] %vm873, %v786
  %927 = vst.msk [vmem:[#allocation4 + $0x1a8] sm:$0xff] %vm873, %v788
  %928 = vst.msk [vmem:[#allocation4 + $0x1b0] sm:$0xff] %vm873, %v790
  %929 = vst.msk [vmem:[#allocation4 + $0x1b8] sm:$0xff] %vm873, %v792
  %930 = vst.msk [vmem:[#allocation4 + $0x1c0] sm:$0xff] %vm873, %v794
  %931 = vst.msk [vmem:[#allocation4 + $0x1c8] sm:$0xff] %vm873, %v796
  %932 = vst.msk [vmem:[#allocation4 + $0x1d0] sm:$0xff] %vm873, %v798
  %933 = vst.msk [vmem:[#allocation4 + $0x1d8] sm:$0xff] %vm873, %v800
  %934 = vst.msk [vmem:[#allocation4 + $0x1e0] sm:$0xff] %vm873, %v802
  %935 = vst.msk [vmem:[#allocation4 + $0x1e8] sm:$0xff] %vm873, %v804
  %936 = vst.msk [vmem:[#allocation4 + $0x1f0] sm:$0xff] %vm873, %v806
  %937 = vst.msk [vmem:[#allocation4 + $0x1f8] sm:$0xff] %vm873, %v808
  %vm938 = vcmask 1045504
  %v939 = vrot.slane %v252, 2
  %v940 = vrot.slane %v253, 2
  %v941 = vsel %vm938, %v939, %v940
  %v942 = vrot.slane %v254, 2
  %v943 = vsel %vm938, %v940, %v942
  %v944 = vrot.slane %v255, 2
  %v945 = vrot.slane %v256, 2
  %v946 = vsel %vm938, %v944, %v945
  %v947 = vrot.slane %v257, 2
  %v948 = vsel %vm938, %v945, %v947
  %v949 = vrot.slane %v258, 2
  %v950 = vrot.slane %v259, 2
  %v951 = vsel %vm938, %v949, %v950
  %v952 = vrot.slane %v260, 2
  %v953 = vsel %vm938, %v950, %v952
  %v954 = vrot.slane %v261, 2
  %v955 = vrot.slane %v262, 2
  %v956 = vsel %vm938, %v954, %v955
  %v957 = vrot.slane %v263, 2
  %v958 = vsel %vm938, %v955, %v957
  %v959 = vrot.slane %v264, 2
  %v960 = vrot.slane %v265, 2
  %v961 = vsel %vm938, %v959, %v960
  %v962 = vrot.slane %v266, 2
  %v963 = vsel %vm938, %v960, %v962
  %v964 = vrot.slane %v267, 2
  %v965 = vrot.slane %v268, 2
  %v966 = vsel %vm938, %v964, %v965
  %v967 = vrot.slane %v269, 2
  %v968 = vsel %vm938, %v965, %v967
  %v969 = vrot.slane %v270, 2
  %v970 = vrot.slane %v271, 2
  %v971 = vsel %vm938, %v969, %v970
  %v972 = vrot.slane %v272, 2
  %v973 = vsel %vm938, %v970, %v972
  %v974 = vrot.slane %v273, 2
  %v975 = vrot.slane %v274, 2
  %v976 = vsel %vm938, %v974, %v975
  %v977 = vrot.slane %v275, 2
  %v978 = vsel %vm938, %v975, %v977
  %v979 = vrot.slane %v276, 2
  %v980 = vrot.slane %v277, 2
  %v981 = vsel %vm938, %v979, %v980
  %v982 = vrot.slane %v278, 2
  %v983 = vsel %vm938, %v980, %v982
  %v984 = vrot.slane %v279, 2
  %v985 = vrot.slane %v280, 2
  %v986 = vsel %vm938, %v984, %v985
  %v987 = vrot.slane %v281, 2
  %v988 = vsel %vm938, %v985, %v987
  %v989 = vrot.slane %v282, 2
  %v990 = vrot.slane %v283, 2
  %v991 = vsel %vm938, %v989, %v990
  %v992 = vrot.slane %v284, 2
  %v993 = vsel %vm938, %v990, %v992
  %v994 = vrot.slane %v285, 2
  %v995 = vrot.slane %v286, 2
  %v996 = vsel %vm938, %v994, %v995
  %v997 = vrot.slane %v287, 2
  %v998 = vsel %vm938, %v995, %v997
  %v999 = vrot.slane %v288, 2
  %v1000 = vrot.slane %v289, 2
  %v1001 = vsel %vm938, %v999, %v1000
  %v1002 = vrot.slane %v290, 2
  %v1003 = vsel %vm938, %v1000, %v1002
  %v1004 = vrot.slane %v291, 2
  %v1005 = vrot.slane %v292, 2
  %v1006 = vsel %vm938, %v1004, %v1005
  %v1007 = vrot.slane %v293, 2
  %v1008 = vsel %vm938, %v1005, %v1007
  %v1009 = vrot.slane %v294, 2
  %v1010 = vrot.slane %v295, 2
  %v1011 = vsel %vm938, %v1009, %v1010
  %v1012 = vrot.slane %v296, 2
  %v1013 = vsel %vm938, %v1010, %v1012
  %v1014 = vrot.slane %v297, 2
  %v1015 = vrot.slane %v298, 2
  %v1016 = vsel %vm938, %v1014, %v1015
  %v1017 = vrot.slane %v299, 2
  %v1018 = vsel %vm938, %v1015, %v1017
  %v1019 = vrot.slane %v306, 2
  %v1020 = vrot.slane %v307, 2
  %v1021 = vsel %vm938, %v1019, %v1020
  %v1022 = vrot.slane %v308, 2
  %v1023 = vsel %vm938, %v1020, %v1022
  %v1024 = vrot.slane %v309, 2
  %v1025 = vrot.slane %v310, 2
  %v1026 = vsel %vm938, %v1024, %v1025
  %v1027 = vrot.slane %v311, 2
  %v1028 = vsel %vm938, %v1025, %v1027
  %v1029 = vrot.slane %v312, 2
  %v1030 = vrot.slane %v313, 2
  %v1031 = vsel %vm938, %v1029, %v1030
  %v1032 = vrot.slane %v314, 2
  %v1033 = vsel %vm938, %v1030, %v1032
  %v1034 = vrot.slane %v315, 2
  %v1035 = vrot.slane %v316, 2
  %v1036 = vsel %vm938, %v1034, %v1035
  %v1037 = vrot.slane %v317, 2
  %v1038 = vsel %vm938, %v1035, %v1037
  %v1039 = vrot.slane %v318, 2
  %v1040 = vrot.slane %v319, 2
  %v1041 = vsel %vm938, %v1039, %v1040
  %v1042 = vrot.slane %v320, 2
  %v1043 = vsel %vm938, %v1040, %v1042
  %v1044 = vrot.slane %v321, 2
  %v1045 = vrot.slane %v322, 2
  %v1046 = vsel %vm938, %v1044, %v1045
  %v1047 = vrot.slane %v323, 2
  %v1048 = vsel %vm938, %v1045, %v1047
  %v1049 = vrot.slane %v324, 2
  %v1050 = vrot.slane %v325, 2
  %v1051 = vsel %vm938, %v1049, %v1050
  %v1052 = vrot.slane %v326, 2
  %v1053 = vsel %vm938, %v1050, %v1052
  %v1054 = vrot.slane %v327, 2
  %v1055 = vrot.slane %v328, 2
  %v1056 = vsel %vm938, %v1054, %v1055
  %v1057 = vrot.slane %v329, 2
  %v1058 = vsel %vm938, %v1055, %v1057
  %v1059 = vrot.slane %v330, 2
  %v1060 = vrot.slane %v331, 2
  %v1061 = vsel %vm938, %v1059, %v1060
  %v1062 = vrot.slane %v332, 2
  %v1063 = vsel %vm938, %v1060, %v1062
  %v1064 = vrot.slane %v333, 2
  %v1065 = vrot.slane %v334, 2
  %v1066 = vsel %vm938, %v1064, %v1065
  %v1067 = vrot.slane %v335, 2
  %v1068 = vsel %vm938, %v1065, %v1067
  %v1069 = vrot.slane %v336, 2
  %v1070 = vrot.slane %v337, 2
  %v1071 = vsel %vm938, %v1069, %v1070
  %v1072 = vrot.slane %v338, 2
  %v1073 = vsel %vm938, %v1070, %v1072
  %v1074 = vrot.slane %v339, 2
  %v1075 = vrot.slane %v340, 2
  %v1076 = vsel %vm938, %v1074, %v1075
  %v1077 = vrot.slane %v341, 2
  %v1078 = vsel %vm938, %v1075, %v1077
  %v1079 = vrot.slane %v342, 2
  %v1080 = vrot.slane %v343, 2
  %v1081 = vsel %vm938, %v1079, %v1080
  %v1082 = vrot.slane %v344, 2
  %v1083 = vsel %vm938, %v1080, %v1082
  %v1084 = vrot.slane %v345, 2
  %v1085 = vrot.slane %v346, 2
  %v1086 = vsel %vm938, %v1084, %v1085
  %v1087 = vrot.slane %v347, 2
  %v1088 = vsel %vm938, %v1085, %v1087
  %v1089 = vrot.slane %v348, 2
  %v1090 = vrot.slane %v349, 2
  %v1091 = vsel %vm938, %v1089, %v1090
  %v1092 = vrot.slane %v350, 2
  %v1093 = vsel %vm938, %v1090, %v1092
  %v1094 = vrot.slane %v351, 2
  %v1095 = vrot.slane %v352, 2
  %v1096 = vsel %vm938, %v1094, %v1095
  %v1097 = vrot.slane %v353, 2
  %v1098 = vsel %vm938, %v1095, %v1097
  %1099 = vrot.lane.b32.xlu0 %v941, 8
  %v1100 = vpop.permute.xlu0 %1099
  %1101 = vrot.lane.b32.xlu0 %v943, 8
  %v1102 = vpop.permute.xlu0 %1101
  %1103 = vrot.lane.b32.xlu0 %v946, 8
  %v1104 = vpop.permute.xlu0 %1103
  %1105 = vrot.lane.b32.xlu0 %v948, 8
  %v1106 = vpop.permute.xlu0 %1105
  %1107 = vrot.lane.b32.xlu0 %v951, 8
  %v1108 = vpop.permute.xlu0 %1107
  %1109 = vrot.lane.b32.xlu0 %v953, 8
  %v1110 = vpop.permute.xlu0 %1109
  %1111 = vrot.lane.b32.xlu0 %v956, 8
  %v1112 = vpop.permute.xlu0 %1111
  %1113 = vrot.lane.b32.xlu0 %v958, 8
  %v1114 = vpop.permute.xlu0 %1113
  %1115 = vrot.lane.b32.xlu0 %v961, 8
  %v1116 = vpop.permute.xlu0 %1115
  %1117 = vrot.lane.b32.xlu0 %v963, 8
  %v1118 = vpop.permute.xlu0 %1117
  %1119 = vrot.lane.b32.xlu0 %v966, 8
  %v1120 = vpop.permute.xlu0 %1119
  %1121 = vrot.lane.b32.xlu0 %v968, 8
  %v1122 = vpop.permute.xlu0 %1121
  %1123 = vrot.lane.b32.xlu0 %v971, 8
  %v1124 = vpop.permute.xlu0 %1123
  %1125 = vrot.lane.b32.xlu0 %v973, 8
  %v1126 = vpop.permute.xlu0 %1125
  %1127 = vrot.lane.b32.xlu0 %v976, 8
  %v1128 = vpop.permute.xlu0 %1127
  %1129 = vrot.lane.b32.xlu0 %v978, 8
  %v1130 = vpop.permute.xlu0 %1129
  %1131 = vrot.lane.b32.xlu0 %v981, 8
  %v1132 = vpop.permute.xlu0 %1131
  %1133 = vrot.lane.b32.xlu0 %v983, 8
  %v1134 = vpop.permute.xlu0 %1133
  %1135 = vrot.lane.b32.xlu0 %v986, 8
  %v1136 = vpop.permute.xlu0 %1135
  %1137 = vrot.lane.b32.xlu0 %v988, 8
  %v1138 = vpop.permute.xlu0 %1137
  %1139 = vrot.lane.b32.xlu0 %v991, 8
  %v1140 = vpop.permute.xlu0 %1139
  %1141 = vrot.lane.b32.xlu0 %v993, 8
  %v1142 = vpop.permute.xlu0 %1141
  %1143 = vrot.lane.b32.xlu0 %v996, 8
  %v1144 = vpop.permute.xlu0 %1143
  %1145 = vrot.lane.b32.xlu0 %v998, 8
  %v1146 = vpop.permute.xlu0 %1145
  %1147 = vrot.lane.b32.xlu0 %v1001, 8
  %v1148 = vpop.permute.xlu0 %1147
  %1149 = vrot.lane.b32.xlu0 %v1003, 8
  %v1150 = vpop.permute.xlu0 %1149
  %1151 = vrot.lane.b32.xlu0 %v1006, 8
  %v1152 = vpop.permute.xlu0 %1151
  %1153 = vrot.lane.b32.xlu0 %v1008, 8
  %v1154 = vpop.permute.xlu0 %1153
  %1155 = vrot.lane.b32.xlu0 %v1011, 8
  %v1156 = vpop.permute.xlu0 %1155
  %1157 = vrot.lane.b32.xlu0 %v1013, 8
  %v1158 = vpop.permute.xlu0 %1157
  %1159 = vrot.lane.b32.xlu0 %v1016, 8
  %v1160 = vpop.permute.xlu0 %1159
  %1161 = vrot.lane.b32.xlu0 %v1018, 8
  %v1162 = vpop.permute.xlu0 %1161
  %1163 = vrot.lane.b32.xlu0 %v1021, 8
  %v1164 = vpop.permute.xlu0 %1163
  %1165 = vrot.lane.b32.xlu0 %v1023, 8
  %v1166 = vpop.permute.xlu0 %1165
  %1167 = vrot.lane.b32.xlu0 %v1026, 8
  %v1168 = vpop.permute.xlu0 %1167
  %1169 = vrot.lane.b32.xlu0 %v1028, 8
  %v1170 = vpop.permute.xlu0 %1169
  %1171 = vrot.lane.b32.xlu0 %v1031, 8
  %v1172 = vpop.permute.xlu0 %1171
  %1173 = vrot.lane.b32.xlu0 %v1033, 8
  %v1174 = vpop.permute.xlu0 %1173
  %1175 = vrot.lane.b32.xlu0 %v1036, 8
  %v1176 = vpop.permute.xlu0 %1175
  %1177 = vrot.lane.b32.xlu0 %v1038, 8
  %v1178 = vpop.permute.xlu0 %1177
  %1179 = vrot.lane.b32.xlu0 %v1041, 8
  %v1180 = vpop.permute.xlu0 %1179
  %1181 = vrot.lane.b32.xlu0 %v1043, 8
  %v1182 = vpop.permute.xlu0 %1181
  %1183 = vrot.lane.b32.xlu0 %v1046, 8
  %v1184 = vpop.permute.xlu0 %1183
  %1185 = vrot.lane.b32.xlu0 %v1048, 8
  %v1186 = vpop.permute.xlu0 %1185
  %1187 = vrot.lane.b32.xlu0 %v1051, 8
  %v1188 = vpop.permute.xlu0 %1187
  %1189 = vrot.lane.b32.xlu0 %v1053, 8
  %v1190 = vpop.permute.xlu0 %1189
  %1191 = vrot.lane.b32.xlu0 %v1056, 8
  %v1192 = vpop.permute.xlu0 %1191
  %1193 = vrot.lane.b32.xlu0 %v1058, 8
  %v1194 = vpop.permute.xlu0 %1193
  %1195 = vrot.lane.b32.xlu0 %v1061, 8
  %v1196 = vpop.permute.xlu0 %1195
  %1197 = vrot.lane.b32.xlu0 %v1063, 8
  %v1198 = vpop.permute.xlu0 %1197
  %1199 = vrot.lane.b32.xlu0 %v1066, 8
  %v1200 = vpop.permute.xlu0 %1199
  %1201 = vrot.lane.b32.xlu0 %v1068, 8
  %v1202 = vpop.permute.xlu0 %1201
  %1203 = vrot.lane.b32.xlu0 %v1071, 8
  %v1204 = vpop.permute.xlu0 %1203
  %1205 = vrot.lane.b32.xlu0 %v1073, 8
  %v1206 = vpop.permute.xlu0 %1205
  %1207 = vrot.lane.b32.xlu0 %v1076, 8
  %v1208 = vpop.permute.xlu0 %1207
  %1209 = vrot.lane.b32.xlu0 %v1078, 8
  %v1210 = vpop.permute.xlu0 %1209
  %1211 = vrot.lane.b32.xlu0 %v1081, 8
  %v1212 = vpop.permute.xlu0 %1211
  %1213 = vrot.lane.b32.xlu0 %v1083, 8
  %v1214 = vpop.permute.xlu0 %1213
  %1215 = vrot.lane.b32.xlu0 %v1086, 8
  %v1216 = vpop.permute.xlu0 %1215
  %1217 = vrot.lane.b32.xlu0 %v1088, 8
  %v1218 = vpop.permute.xlu0 %1217
  %1219 = vrot.lane.b32.xlu0 %v1091, 8
  %v1220 = vpop.permute.xlu0 %1219
  %1221 = vrot.lane.b32.xlu0 %v1093, 8
  %v1222 = vpop.permute.xlu0 %1221
  %1223 = vrot.lane.b32.xlu0 %v1096, 8
  %v1224 = vpop.permute.xlu0 %1223
  %1225 = vrot.lane.b32.xlu0 %v1098, 8
  %v1226 = vpop.permute.xlu0 %1225
  %vm1291 = vcmask 97344
  %1292 = vst.msk [vmem:[#allocation4] sm:$0xff] %vm1291, %v1100
  %1293 = vst.msk [vmem:[#allocation4 + $0x8] sm:$0xff] %vm1291, %v1102
  %1294 = vst.msk [vmem:[#allocation4 + $0x10] sm:$0xff] %vm1291, %v1104
  %1295 = vst.msk [vmem:[#allocation4 + $0x18] sm:$0xff] %vm1291, %v1106
  %1296 = vst.msk [vmem:[#allocation4 + $0x20] sm:$0xff] %vm1291, %v1108
  %1297 = vst.msk [vmem:[#allocation4 + $0x28] sm:$0xff] %vm1291, %v1110
  %1298 = vst.msk [vmem:[#allocation4 + $0x30] sm:$0xff] %vm1291, %v1112
  %1299 = vst.msk [vmem:[#allocation4 + $0x38] sm:$0xff] %vm1291, %v1114
  %1300 = vst.msk [vmem:[#allocation4 + $0x40] sm:$0xff] %vm1291, %v1116
  %1301 = vst.msk [vmem:[#allocation4 + $0x48] sm:$0xff] %vm1291, %v1118
  %1302 = vst.msk [vmem:[#allocation4 + $0x50] sm:$0xff] %vm1291, %v1120
  %1303 = vst.msk [vmem:[#allocation4 + $0x58] sm:$0xff] %vm1291, %v1122
  %1304 = vst.msk [vmem:[#allocation4 + $0x60] sm:$0xff] %vm1291, %v1124
  %1305 = vst.msk [vmem:[#allocation4 + $0x68] sm:$0xff] %vm1291, %v1126
  %1306 = vst.msk [vmem:[#allocation4 + $0x70] sm:$0xff] %vm1291, %v1128
  %1307 = vst.msk [vmem:[#allocation4 + $0x78] sm:$0xff] %vm1291, %v1130
  %1308 = vst.msk [vmem:[#allocation4 + $0x80] sm:$0xff] %vm1291, %v1132
  %1309 = vst.msk [vmem:[#allocation4 + $0x88] sm:$0xff] %vm1291, %v1134
  %1310 = vst.msk [vmem:[#allocation4 + $0x90] sm:$0xff] %vm1291, %v1136
  %1311 = vst.msk [vmem:[#allocation4 + $0x98] sm:$0xff] %vm1291, %v1138
  %1312 = vst.msk [vmem:[#allocation4 + $0xa0] sm:$0xff] %vm1291, %v1140
  %1313 = vst.msk [vmem:[#allocation4 + $0xa8] sm:$0xff] %vm1291, %v1142
  %1314 = vst.msk [vmem:[#allocation4 + $0xb0] sm:$0xff] %vm1291, %v1144
  %1315 = vst.msk [vmem:[#allocation4 + $0xb8] sm:$0xff] %vm1291, %v1146
  %1316 = vst.msk [vmem:[#allocation4 + $0xc0] sm:$0xff] %vm1291, %v1148
  %1317 = vst.msk [vmem:[#allocation4 + $0xc8] sm:$0xff] %vm1291, %v1150
  %1318 = vst.msk [vmem:[#allocation4 + $0xd0] sm:$0xff] %vm1291, %v1152
  %1319 = vst.msk [vmem:[#allocation4 + $0xd8] sm:$0xff] %vm1291, %v1154
  %1320 = vst.msk [vmem:[#allocation4 + $0xe0] sm:$0xff] %vm1291, %v1156
  %1321 = vst.msk [vmem:[#allocation4 + $0xe8] sm:$0xff] %vm1291, %v1158
  %1322 = vst.msk [vmem:[#allocation4 + $0xf0] sm:$0xff] %vm1291, %v1160
  %1323 = vst.msk [vmem:[#allocation4 + $0xf8] sm:$0xff] %vm1291, %v1162
  %1324 = vst.msk [vmem:[#allocation4 + $0x100] sm:$0xff] %vm1291, %v1164
  %1325 = vst.msk [vmem:[#allocation4 + $0x108] sm:$0xff] %vm1291, %v1166
  %1326 = vst.msk [vmem:[#allocation4 + $0x110] sm:$0xff] %vm1291, %v1168
  %1327 = vst.msk [vmem:[#allocation4 + $0x118] sm:$0xff] %vm1291, %v1170
  %1328 = vst.msk [vmem:[#allocation4 + $0x120] sm:$0xff] %vm1291, %v1172
  %1329 = vst.msk [vmem:[#allocation4 + $0x128] sm:$0xff] %vm1291, %v1174
  %1330 = vst.msk [vmem:[#allocation4 + $0x130] sm:$0xff] %vm1291, %v1176
  %1331 = vst.msk [vmem:[#allocation4 + $0x138] sm:$0xff] %vm1291, %v1178
  %1332 = vst.msk [vmem:[#allocation4 + $0x140] sm:$0xff] %vm1291, %v1180
  %1333 = vst.msk [vmem:[#allocation4 + $0x148] sm:$0xff] %vm1291, %v1182
  %1334 = vst.msk [vmem:[#allocation4 + $0x150] sm:$0xff] %vm1291, %v1184
  %1335 = vst.msk [vmem:[#allocation4 + $0x158] sm:$0xff] %vm1291, %v1186
  %1336 = vst.msk [vmem:[#allocation4 + $0x160] sm:$0xff] %vm1291, %v1188
  %1337 = vst.msk [vmem:[#allocation4 + $0x168] sm:$0xff] %vm1291, %v1190
  %1338 = vst.msk [vmem:[#allocation4 + $0x170] sm:$0xff] %vm1291, %v1192
  %1339 = vst.msk [vmem:[#allocation4 + $0x178] sm:$0xff] %vm1291, %v1194
  %1340 = vst.msk [vmem:[#allocation4 + $0x180] sm:$0xff] %vm1291, %v1196
  %1341 = vst.msk [vmem:[#allocation4 + $0x188] sm:$0xff] %vm1291, %v1198
  %1342 = vst.msk [vmem:[#allocation4 + $0x190] sm:$0xff] %vm1291, %v1200
  %1343 = vst.msk [vmem:[#allocation4 + $0x198] sm:$0xff] %vm1291, %v1202
  %1344 = vst.msk [vmem:[#allocation4 + $0x1a0] sm:$0xff] %vm1291, %v1204
  %1345 = vst.msk [vmem:[#allocation4 + $0x1a8] sm:$0xff] %vm1291, %v1206
  %1346 = vst.msk [vmem:[#allocation4 + $0x1b0] sm:$0xff] %vm1291, %v1208
  %1347 = vst.msk [vmem:[#allocation4 + $0x1b8] sm:$0xff] %vm1291, %v1210
  %1348 = vst.msk [vmem:[#allocation4 + $0x1c0] sm:$0xff] %vm1291, %v1212
  %1349 = vst.msk [vmem:[#allocation4 + $0x1c8] sm:$0xff] %vm1291, %v1214
  %1350 = vst.msk [vmem:[#allocation4 + $0x1d0] sm:$0xff] %vm1291, %v1216
  %1351 = vst.msk [vmem:[#allocation4 + $0x1d8] sm:$0xff] %vm1291, %v1218
  %1352 = vst.msk [vmem:[#allocation4 + $0x1e0] sm:$0xff] %vm1291, %v1220
  %1353 = vst.msk [vmem:[#allocation4 + $0x1e8] sm:$0xff] %vm1291, %v1222
  %1354 = vst.msk [vmem:[#allocation4 + $0x1f0] sm:$0xff] %vm1291, %v1224
  %1355 = vst.msk [vmem:[#allocation4 + $0x1f8] sm:$0xff] %vm1291, %v1226
  %1360 = vrot.lane.b32.xlu0 %v255, 12
  %v1361 = vpop.permute.xlu0 %1360
  %1362 = vrot.lane.b32.xlu0 %v256, 12
  %v1363 = vpop.permute.xlu0 %1362
  %1364 = vrot.lane.b32.xlu0 %v258, 12
  %v1365 = vpop.permute.xlu0 %1364
  %1366 = vrot.lane.b32.xlu0 %v259, 12
  %v1367 = vpop.permute.xlu0 %1366
  %1368 = vrot.lane.b32.xlu0 %v261, 12
  %v1369 = vpop.permute.xlu0 %1368
  %1370 = vrot.lane.b32.xlu0 %v262, 12
  %v1371 = vpop.permute.xlu0 %1370
  %1372 = vrot.lane.b32.xlu0 %v264, 12
  %v1373 = vpop.permute.xlu0 %1372
  %1374 = vrot.lane.b32.xlu0 %v265, 12
  %v1375 = vpop.permute.xlu0 %1374
  %1376 = vrot.lane.b32.xlu0 %v267, 12
  %v1377 = vpop.permute.xlu0 %1376
  %1378 = vrot.lane.b32.xlu0 %v268, 12
  %v1379 = vpop.permute.xlu0 %1378
  %1380 = vrot.lane.b32.xlu0 %v270, 12
  %v1381 = vpop.permute.xlu0 %1380
  %1382 = vrot.lane.b32.xlu0 %v271, 12
  %v1383 = vpop.permute.xlu0 %1382
  %1384 = vrot.lane.b32.xlu0 %v273, 12
  %v1385 = vpop.permute.xlu0 %1384
  %1386 = vrot.lane.b32.xlu0 %v274, 12
  %v1387 = vpop.permute.xlu0 %1386
  %1388 = vrot.lane.b32.xlu0 %v276, 12
  %v1389 = vpop.permute.xlu0 %1388
  %1390 = vrot.lane.b32.xlu0 %v277, 12
  %v1391 = vpop.permute.xlu0 %1390
  %1392 = vrot.lane.b32.xlu0 %v279, 12
  %v1393 = vpop.permute.xlu0 %1392
  %1394 = vrot.lane.b32.xlu0 %v280, 12
  %v1395 = vpop.permute.xlu0 %1394
  %1396 = vrot.lane.b32.xlu0 %v282, 12
  %v1397 = vpop.permute.xlu0 %1396
  %1398 = vrot.lane.b32.xlu0 %v283, 12
  %v1399 = vpop.permute.xlu0 %1398
  %1400 = vrot.lane.b32.xlu0 %v285, 12
  %v1401 = vpop.permute.xlu0 %1400
  %1402 = vrot.lane.b32.xlu0 %v286, 12
  %v1403 = vpop.permute.xlu0 %1402
  %1404 = vrot.lane.b32.xlu0 %v288, 12
  %v1405 = vpop.permute.xlu0 %1404
  %1406 = vrot.lane.b32.xlu0 %v289, 12
  %v1407 = vpop.permute.xlu0 %1406
  %1408 = vrot.lane.b32.xlu0 %v291, 12
  %v1409 = vpop.permute.xlu0 %1408
  %1410 = vrot.lane.b32.xlu0 %v292, 12
  %v1411 = vpop.permute.xlu0 %1410
  %1412 = vrot.lane.b32.xlu0 %v294, 12
  %v1413 = vpop.permute.xlu0 %1412
  %1414 = vrot.lane.b32.xlu0 %v295, 12
  %v1415 = vpop.permute.xlu0 %1414
  %1416 = vrot.lane.b32.xlu0 %v297, 12
  %v1417 = vpop.permute.xlu0 %1416
  %1418 = vrot.lane.b32.xlu0 %v298, 12
  %v1419 = vpop.permute.xlu0 %1418
  %1420 = vrot.lane.b32.xlu0 %v300, 12
  %v1421 = vpop.permute.xlu0 %1420
  %1422 = vrot.lane.b32.xlu0 %v301, 12
  %v1423 = vpop.permute.xlu0 %1422
  %1424 = vrot.lane.b32.xlu0 %v309, 12
  %v1425 = vpop.permute.xlu0 %1424
  %1426 = vrot.lane.b32.xlu0 %v310, 12
  %v1427 = vpop.permute.xlu0 %1426
  %1428 = vrot.lane.b32.xlu0 %v312, 12
  %v1429 = vpop.permute.xlu0 %1428
  %1430 = vrot.lane.b32.xlu0 %v313, 12
  %v1431 = vpop.permute.xlu0 %1430
  %1432 = vrot.lane.b32.xlu0 %v315, 12
  %v1433 = vpop.permute.xlu0 %1432
  %1434 = vrot.lane.b32.xlu0 %v316, 12
  %v1435 = vpop.permute.xlu0 %1434
  %1436 = vrot.lane.b32.xlu0 %v318, 12
  %v1437 = vpop.permute.xlu0 %1436
  %1438 = vrot.lane.b32.xlu0 %v319, 12
  %v1439 = vpop.permute.xlu0 %1438
  %1440 = vrot.lane.b32.xlu0 %v321, 12
  %v1441 = vpop.permute.xlu0 %1440
  %1442 = vrot.lane.b32.xlu0 %v322, 12
  %v1443 = vpop.permute.xlu0 %1442
  %1444 = vrot.lane.b32.xlu0 %v324, 12
  %v1445 = vpop.permute.xlu0 %1444
  %1446 = vrot.lane.b32.xlu0 %v325, 12
  %v1447 = vpop.permute.xlu0 %1446
  %1448 = vrot.lane.b32.xlu0 %v327, 12
  %v1449 = vpop.permute.xlu0 %1448
  %1450 = vrot.lane.b32.xlu0 %v328, 12
  %v1451 = vpop.permute.xlu0 %1450
  %1452 = vrot.lane.b32.xlu0 %v330, 12
  %v1453 = vpop.permute.xlu0 %1452
  %1454 = vrot.lane.b32.xlu0 %v331, 12
  %v1455 = vpop.permute.xlu0 %1454
  %1456 = vrot.lane.b32.xlu0 %v333, 12
  %v1457 = vpop.permute.xlu0 %1456
  %1458 = vrot.lane.b32.xlu0 %v334, 12
  %v1459 = vpop.permute.xlu0 %1458
  %1460 = vrot.lane.b32.xlu0 %v336, 12
  %v1461 = vpop.permute.xlu0 %1460
  %1462 = vrot.lane.b32.xlu0 %v337, 12
  %v1463 = vpop.permute.xlu0 %1462
  %1464 = vrot.lane.b32.xlu0 %v339, 12
  %v1465 = vpop.permute.xlu0 %1464
  %1466 = vrot.lane.b32.xlu0 %v340, 12
  %v1467 = vpop.permute.xlu0 %1466
  %1468 = vrot.lane.b32.xlu0 %v342, 12
  %v1469 = vpop.permute.xlu0 %1468
  %1470 = vrot.lane.b32.xlu0 %v343, 12
  %v1471 = vpop.permute.xlu0 %1470
  %1472 = vrot.lane.b32.xlu0 %v345, 12
  %v1473 = vpop.permute.xlu0 %1472
  %1474 = vrot.lane.b32.xlu0 %v346, 12
  %v1475 = vpop.permute.xlu0 %1474
  %1476 = vrot.lane.b32.xlu0 %v348, 12
  %v1477 = vpop.permute.xlu0 %1476
  %1478 = vrot.lane.b32.xlu0 %v349, 12
  %v1479 = vpop.permute.xlu0 %1478
  %1480 = vrot.lane.b32.xlu0 %v351, 12
  %v1481 = vpop.permute.xlu0 %1480
  %1482 = vrot.lane.b32.xlu0 %v352, 12
  %v1483 = vpop.permute.xlu0 %1482
  %1484 = vrot.lane.b32.xlu0 %v354, 12
  %v1485 = vpop.permute.xlu0 %1484
  %1486 = vrot.lane.b32.xlu0 %v355, 12
  %v1487 = vpop.permute.xlu0 %1486
  %vm1552 = vcmask 130144
  %1553 = vst.msk [vmem:[#allocation4] sm:$0xff] %vm1552, %v1361
  %1554 = vst.msk [vmem:[#allocation4 + $0x8] sm:$0xff] %vm1552, %v1363
  %1555 = vst.msk [vmem:[#allocation4 + $0x10] sm:$0xff] %vm1552, %v1365
  %1556 = vst.msk [vmem:[#allocation4 + $0x18] sm:$0xff] %vm1552, %v1367
  %1557 = vst.msk [vmem:[#allocation4 + $0x20] sm:$0xff] %vm1552, %v1369
  %1558 = vst.msk [vmem:[#allocation4 + $0x28] sm:$0xff] %vm1552, %v1371
  %1559 = vst.msk [vmem:[#allocation4 + $0x30] sm:$0xff] %vm1552, %v1373
  %1560 = vst.msk [vmem:[#allocation4 + $0x38] sm:$0xff] %vm1552, %v1375
  %1561 = vst.msk [vmem:[#allocation4 + $0x40] sm:$0xff] %vm1552, %v1377
  %1562 = vst.msk [vmem:[#allocation4 + $0x48] sm:$0xff] %vm1552, %v1379
  %1563 = vst.msk [vmem:[#allocation4 + $0x50] sm:$0xff] %vm1552, %v1381
  %1564 = vst.msk [vmem:[#allocation4 + $0x58] sm:$0xff] %vm1552, %v1383
  %1565 = vst.msk [vmem:[#allocation4 + $0x60] sm:$0xff] %vm1552, %v1385
  %1566 = vst.msk [vmem:[#allocation4 + $0x68] sm:$0xff] %vm1552, %v1387
  %1567 = vst.msk [vmem:[#allocation4 + $0x70] sm:$0xff] %vm1552, %v1389
  %1568 = vst.msk [vmem:[#allocation4 + $0x78] sm:$0xff] %vm1552, %v1391
  %1569 = vst.msk [vmem:[#allocation4 + $0x80] sm:$0xff] %vm1552, %v1393
  %1570 = vst.msk [vmem:[#allocation4 + $0x88] sm:$0xff] %vm1552, %v1395
  %1571 = vst.msk [vmem:[#allocation4 + $0x90] sm:$0xff] %vm1552, %v1397
  %1572 = vst.msk [vmem:[#allocation4 + $0x98] sm:$0xff] %vm1552, %v1399
  %1573 = vst.msk [vmem:[#allocation4 + $0xa0] sm:$0xff] %vm1552, %v1401
  %1574 = vst.msk [vmem:[#allocation4 + $0xa8] sm:$0xff] %vm1552, %v1403
  %1575 = vst.msk [vmem:[#allocation4 + $0xb0] sm:$0xff] %vm1552, %v1405
  %1576 = vst.msk [vmem:[#allocation4 + $0xb8] sm:$0xff] %vm1552, %v1407
  %1577 = vst.msk [vmem:[#allocation4 + $0xc0] sm:$0xff] %vm1552, %v1409
  %1578 = vst.msk [vmem:[#allocation4 + $0xc8] sm:$0xff] %vm1552, %v1411
  %1579 = vst.msk [vmem:[#allocation4 + $0xd0] sm:$0xff] %vm1552, %v1413
  %1580 = vst.msk [vmem:[#allocation4 + $0xd8] sm:$0xff] %vm1552, %v1415
  %1581 = vst.msk [vmem:[#allocation4 + $0xe0] sm:$0xff] %vm1552, %v1417
  %1582 = vst.msk [vmem:[#allocation4 + $0xe8] sm:$0xff] %vm1552, %v1419
  %1583 = vst.msk [vmem:[#allocation4 + $0xf0] sm:$0xff] %vm1552, %v1421
  %1584 = vst.msk [vmem:[#allocation4 + $0xf8] sm:$0xff] %vm1552, %v1423
  %1585 = vst.msk [vmem:[#allocation4 + $0x100] sm:$0xff] %vm1552, %v1425
  %1586 = vst.msk [vmem:[#allocation4 + $0x108] sm:$0xff] %vm1552, %v1427
  %1587 = vst.msk [vmem:[#allocation4 + $0x110] sm:$0xff] %vm1552, %v1429
  %1588 = vst.msk [vmem:[#allocation4 + $0x118] sm:$0xff] %vm1552, %v1431
  %1589 = vst.msk [vmem:[#allocation4 + $0x120] sm:$0xff] %vm1552, %v1433
  %1590 = vst.msk [vmem:[#allocation4 + $0x128] sm:$0xff] %vm1552, %v1435
  %1591 = vst.msk [vmem:[#allocation4 + $0x130] sm:$0xff] %vm1552, %v1437
  %1592 = vst.msk [vmem:[#allocation4 + $0x138] sm:$0xff] %vm1552, %v1439
  %1593 = vst.msk [vmem:[#allocation4 + $0x140] sm:$0xff] %vm1552, %v1441
  %1594 = vst.msk [vmem:[#allocation4 + $0x148] sm:$0xff] %vm1552, %v1443
  %1595 = vst.msk [vmem:[#allocation4 + $0x150] sm:$0xff] %vm1552, %v1445
  %1596 = vst.msk [vmem:[#allocation4 + $0x158] sm:$0xff] %vm1552, %v1447
  %1597 = vst.msk [vmem:[#allocation4 + $0x160] sm:$0xff] %vm1552, %v1449
  %1598 = vst.msk [vmem:[#allocation4 + $0x168] sm:$0xff] %vm1552, %v1451
  %1599 = vst.msk [vmem:[#allocation4 + $0x170] sm:$0xff] %vm1552, %v1453
  %1600 = vst.msk [vmem:[#allocation4 + $0x178] sm:$0xff] %vm1552, %v1455
  %1601 = vst.msk [vmem:[#allocation4 + $0x180] sm:$0xff] %vm1552, %v1457
  %1602 = vst.msk [vmem:[#allocation4 + $0x188] sm:$0xff] %vm1552, %v1459
  %1603 = vst.msk [vmem:[#allocation4 + $0x190] sm:$0xff] %vm1552, %v1461
  %1604 = vst.msk [vmem:[#allocation4 + $0x198] sm:$0xff] %vm1552, %v1463
  %1605 = vst.msk [vmem:[#allocation4 + $0x1a0] sm:$0xff] %vm1552, %v1465
  %1606 = vst.msk [vmem:[#allocation4 + $0x1a8] sm:$0xff] %vm1552, %v1467
  %1607 = vst.msk [vmem:[#allocation4 + $0x1b0] sm:$0xff] %vm1552, %v1469
  %1608 = vst.msk [vmem:[#allocation4 + $0x1b8] sm:$0xff] %vm1552, %v1471
  %1609 = vst.msk [vmem:[#allocation4 + $0x1c0] sm:$0xff] %vm1552, %v1473
  %1610 = vst.msk [vmem:[#allocation4 + $0x1c8] sm:$0xff] %vm1552, %v1475
  %1611 = vst.msk [vmem:[#allocation4 + $0x1d0] sm:$0xff] %vm1552, %v1477
  %1612 = vst.msk [vmem:[#allocation4 + $0x1d8] sm:$0xff] %vm1552, %v1479
  %1613 = vst.msk [vmem:[#allocation4 + $0x1e0] sm:$0xff] %vm1552, %v1481
  %1614 = vst.msk [vmem:[#allocation4 + $0x1e8] sm:$0xff] %vm1552, %v1483
  %1615 = vst.msk [vmem:[#allocation4 + $0x1f0] sm:$0xff] %vm1552, %v1485
  %1616 = vst.msk [vmem:[#allocation4 + $0x1f8] sm:$0xff] %vm1552, %v1487
  %v1619 = vrot.slane %v300, 1
  %v1620 = vrot.slane %v301, 1
  %v1621 = vsel %vm520, %v1619, %v1620
  %v1622 = vrot.slane %v302, 1
  %v1623 = vsel %vm520, %v1620, %v1622
  %v1624 = vrot.slane %v354, 1
  %v1625 = vrot.slane %v355, 1
  %v1626 = vsel %vm520, %v1624, %v1625
  %v1627 = vrot.slane %v356, 1
  %v1628 = vsel %vm520, %v1625, %v1627
  %1629 = vrot.lane.b32.xlu0 %v528, 16
  %v1630 = vpop.permute.xlu0 %1629
  %1631 = vrot.lane.b32.xlu0 %v530, 16
  %v1632 = vpop.permute.xlu0 %1631
  %1633 = vrot.lane.b32.xlu0 %v533, 16
  %v1634 = vpop.permute.xlu0 %1633
  %1635 = vrot.lane.b32.xlu0 %v535, 16
  %v1636 = vpop.permute.xlu0 %1635
  %1637 = vrot.lane.b32.xlu0 %v538, 16
  %v1638 = vpop.permute.xlu0 %1637
  %1639 = vrot.lane.b32.xlu0 %v540, 16
  %v1640 = vpop.permute.xlu0 %1639
  %1641 = vrot.lane.b32.xlu0 %v543, 16
  %v1642 = vpop.permute.xlu0 %1641
  %1643 = vrot.lane.b32.xlu0 %v545, 16
  %v1644 = vpop.permute.xlu0 %1643
  %1645 = vrot.lane.b32.xlu0 %v548, 16
  %v1646 = vpop.permute.xlu0 %1645
  %1647 = vrot.lane.b32.xlu0 %v550, 16
  %v1648 = vpop.permute.xlu0 %1647
  %1649 = vrot.lane.b32.xlu0 %v553, 16
  %v1650 = vpop.permute.xlu0 %1649
  %1651 = vrot.lane.b32.xlu0 %v555, 16
  %v1652 = vpop.permute.xlu0 %1651
  %1653 = vrot.lane.b32.xlu0 %v558, 16
  %v1654 = vpop.permute.xlu0 %1653
  %1655 = vrot.lane.b32.xlu0 %v560, 16
  %v1656 = vpop.permute.xlu0 %1655
  %1657 = vrot.lane.b32.xlu0 %v563, 16
  %v1658 = vpop.permute.xlu0 %1657
  %1659 = vrot.lane.b32.xlu0 %v565, 16
  %v1660 = vpop.permute.xlu0 %1659
  %1661 = vrot.lane.b32.xlu0 %v568, 16
  %v1662 = vpop.permute.xlu0 %1661
  %1663 = vrot.lane.b32.xlu0 %v570, 16
  %v1664 = vpop.permute.xlu0 %1663
  %1665 = vrot.lane.b32.xlu0 %v573, 16
  %v1666 = vpop.permute.xlu0 %1665
  %1667 = vrot.lane.b32.xlu0 %v575, 16
  %v1668 = vpop.permute.xlu0 %1667
  %1669 = vrot.lane.b32.xlu0 %v578, 16
  %v1670 = vpop.permute.xlu0 %1669
  %1671 = vrot.lane.b32.xlu0 %v580, 16
  %v1672 = vpop.permute.xlu0 %1671
  %1673 = vrot.lane.b32.xlu0 %v583, 16
  %v1674 = vpop.permute.xlu0 %1673
  %1675 = vrot.lane.b32.xlu0 %v585, 16
  %v1676 = vpop.permute.xlu0 %1675
  %1677 = vrot.lane.b32.xlu0 %v588, 16
  %v1678 = vpop.permute.xlu0 %1677
  %1679 = vrot.lane.b32.xlu0 %v590, 16
  %v1680 = vpop.permute.xlu0 %1679
  %1681 = vrot.lane.b32.xlu0 %v593, 16
  %v1682 = vpop.permute.xlu0 %1681
  %1683 = vrot.lane.b32.xlu0 %v595, 16
  %v1684 = vpop.permute.xlu0 %1683
  %1685 = vrot.lane.b32.xlu0 %v598, 16
  %v1686 = vpop.permute.xlu0 %1685
  %1687 = vrot.lane.b32.xlu0 %v600, 16
  %v1688 = vpop.permute.xlu0 %1687
  %1689 = vrot.lane.b32.xlu0 %v1621, 16
  %v1690 = vpop.permute.xlu0 %1689
  %1691 = vrot.lane.b32.xlu0 %v1623, 16
  %v1692 = vpop.permute.xlu0 %1691
  %1693 = vrot.lane.b32.xlu0 %v608, 16
  %v1694 = vpop.permute.xlu0 %1693
  %1695 = vrot.lane.b32.xlu0 %v610, 16
  %v1696 = vpop.permute.xlu0 %1695
  %1697 = vrot.lane.b32.xlu0 %v613, 16
  %v1698 = vpop.permute.xlu0 %1697
  %1699 = vrot.lane.b32.xlu0 %v615, 16
  %v1700 = vpop.permute.xlu0 %1699
  %1701 = vrot.lane.b32.xlu0 %v618, 16
  %v1702 = vpop.permute.xlu0 %1701
  %1703 = vrot.lane.b32.xlu0 %v620, 16
  %v1704 = vpop.permute.xlu0 %1703
  %1705 = vrot.lane.b32.xlu0 %v623, 16
  %v1706 = vpop.permute.xlu0 %1705
  %1707 = vrot.lane.b32.xlu0 %v625, 16
  %v1708 = vpop.permute.xlu0 %1707
  %1709 = vrot.lane.b32.xlu0 %v628, 16
  %v1710 = vpop.permute.xlu0 %1709
  %1711 = vrot.lane.b32.xlu0 %v630, 16
  %v1712 = vpop.permute.xlu0 %1711
  %1713 = vrot.lane.b32.xlu0 %v633, 16
  %v1714 = vpop.permute.xlu0 %1713
  %1715 = vrot.lane.b32.xlu0 %v635, 16
  %v1716 = vpop.permute.xlu0 %1715
  %1717 = vrot.lane.b32.xlu0 %v638, 16
  %v1718 = vpop.permute.xlu0 %1717
  %1719 = vrot.lane.b32.xlu0 %v640, 16
  %v1720 = vpop.permute.xlu0 %1719
  %1721 = vrot.lane.b32.xlu0 %v643, 16
  %v1722 = vpop.permute.xlu0 %1721
  %1723 = vrot.lane.b32.xlu0 %v645, 16
  %v1724 = vpop.permute.xlu0 %1723
  %1725 = vrot.lane.b32.xlu0 %v648, 16
  %v1726 = vpop.permute.xlu0 %1725
  %1727 = vrot.lane.b32.xlu0 %v650, 16
  %v1728 = vpop.permute.xlu0 %1727
  %1729 = vrot.lane.b32.xlu0 %v653, 16
  %v1730 = vpop.permute.xlu0 %1729
  %1731 = vrot.lane.b32.xlu0 %v655, 16
  %v1732 = vpop.permute.xlu0 %1731
  %1733 = vrot.lane.b32.xlu0 %v658, 16
  %v1734 = vpop.permute.xlu0 %1733
  %1735 = vrot.lane.b32.xlu0 %v660, 16
  %v1736 = vpop.permute.xlu0 %1735
  %1737 = vrot.lane.b32.xlu0 %v663, 16
  %v1738 = vpop.permute.xlu0 %1737
  %1739 = vrot.lane.b32.xlu0 %v665, 16
  %v1740 = vpop.permute.xlu0 %1739
  %1741 = vrot.lane.b32.xlu0 %v668, 16
  %v1742 = vpop.permute.xlu0 %1741
  %1743 = vrot.lane.b32.xlu0 %v670, 16
  %v1744 = vpop.permute.xlu0 %1743
  %1745 = vrot.lane.b32.xlu0 %v673, 16
  %v1746 = vpop.permute.xlu0 %1745
  %1747 = vrot.lane.b32.xlu0 %v675, 16
  %v1748 = vpop.permute.xlu0 %1747
  %1749 = vrot.lane.b32.xlu0 %v678, 16
  %v1750 = vpop.permute.xlu0 %1749
  %1751 = vrot.lane.b32.xlu0 %v680, 16
  %v1752 = vpop.permute.xlu0 %1751
  %1753 = vrot.lane.b32.xlu0 %v1626, 16
  %v1754 = vpop.permute.xlu0 %1753
  %1755 = vrot.lane.b32.xlu0 %v1628, 16
  %v1756 = vpop.permute.xlu0 %1755
  %vm1821 = vcmask 162944
  %1822 = vst.msk [vmem:[#allocation4] sm:$0xff] %vm1821, %v1630
  %1823 = vst.msk [vmem:[#allocation4 + $0x8] sm:$0xff] %vm1821, %v1632
  %1824 = vst.msk [vmem:[#allocation4 + $0x10] sm:$0xff] %vm1821, %v1634
  %1825 = vst.msk [vmem:[#allocation4 + $0x18] sm:$0xff] %vm1821, %v1636
  %1826 = vst.msk [vmem:[#allocation4 + $0x20] sm:$0xff] %vm1821, %v1638
  %1827 = vst.msk [vmem:[#allocation4 + $0x28] sm:$0xff] %vm1821, %v1640
  %1828 = vst.msk [vmem:[#allocation4 + $0x30] sm:$0xff] %vm1821, %v1642
  %1829 = vst.msk [vmem:[#allocation4 + $0x38] sm:$0xff] %vm1821, %v1644
  %1830 = vst.msk [vmem:[#allocation4 + $0x40] sm:$0xff] %vm1821, %v1646
  %1831 = vst.msk [vmem:[#allocation4 + $0x48] sm:$0xff] %vm1821, %v1648
  %1832 = vst.msk [vmem:[#allocation4 + $0x50] sm:$0xff] %vm1821, %v1650
  %1833 = vst.msk [vmem:[#allocation4 + $0x58] sm:$0xff] %vm1821, %v1652
  %1834 = vst.msk [vmem:[#allocation4 + $0x60] sm:$0xff] %vm1821, %v1654
  %1835 = vst.msk [vmem:[#allocation4 + $0x68] sm:$0xff] %vm1821, %v1656
  %1836 = vst.msk [vmem:[#allocation4 + $0x70] sm:$0xff] %vm1821, %v1658
  %1837 = vst.msk [vmem:[#allocation4 + $0x78] sm:$0xff] %vm1821, %v1660
  %1838 = vst.msk [vmem:[#allocation4 + $0x80] sm:$0xff] %vm1821, %v1662
  %1839 = vst.msk [vmem:[#allocation4 + $0x88] sm:$0xff] %vm1821, %v1664
  %1840 = vst.msk [vmem:[#allocation4 + $0x90] sm:$0xff] %vm1821, %v1666
  %1841 = vst.msk [vmem:[#allocation4 + $0x98] sm:$0xff] %vm1821, %v1668
  %1842 = vst.msk [vmem:[#allocation4 + $0xa0] sm:$0xff] %vm1821, %v1670
  %1843 = vst.msk [vmem:[#allocation4 + $0xa8] sm:$0xff] %vm1821, %v1672
  %1844 = vst.msk [vmem:[#allocation4 + $0xb0] sm:$0xff] %vm1821, %v1674
  %1845 = vst.msk [vmem:[#allocation4 + $0xb8] sm:$0xff] %vm1821, %v1676
  %1846 = vst.msk [vmem:[#allocation4 + $0xc0] sm:$0xff] %vm1821, %v1678
  %1847 = vst.msk [vmem:[#allocation4 + $0xc8] sm:$0xff] %vm1821, %v1680
  %1848 = vst.msk [vmem:[#allocation4 + $0xd0] sm:$0xff] %vm1821, %v1682
  %1849 = vst.msk [vmem:[#allocation4 + $0xd8] sm:$0xff] %vm1821, %v1684
  %1850 = vst.msk [vmem:[#allocation4 + $0xe0] sm:$0xff] %vm1821, %v1686
  %1851 = vst.msk [vmem:[#allocation4 + $0xe8] sm:$0xff] %vm1821, %v1688
  %1852 = vst.msk [vmem:[#allocation4 + $0xf0] sm:$0xff] %vm1821, %v1690
  %1853 = vst.msk [vmem:[#allocation4 + $0xf8] sm:$0xff] %vm1821, %v1692
  %1854 = vst.msk [vmem:[#allocation4 + $0x100] sm:$0xff] %vm1821, %v1694
  %1855 = vst.msk [vmem:[#allocation4 + $0x108] sm:$0xff] %vm1821, %v1696
  %1856 = vst.msk [vmem:[#allocation4 + $0x110] sm:$0xff] %vm1821, %v1698
  %1857 = vst.msk [vmem:[#allocation4 + $0x118] sm:$0xff] %vm1821, %v1700
  %1858 = vst.msk [vmem:[#allocation4 + $0x120] sm:$0xff] %vm1821, %v1702
  %1859 = vst.msk [vmem:[#allocation4 + $0x128] sm:$0xff] %vm1821, %v1704
  %1860 = vst.msk [vmem:[#allocation4 + $0x130] sm:$0xff] %vm1821, %v1706
  %1861 = vst.msk [vmem:[#allocation4 + $0x138] sm:$0xff] %vm1821, %v1708
  %1862 = vst.msk [vmem:[#allocation4 + $0x140] sm:$0xff] %vm1821, %v1710
  %1863 = vst.msk [vmem:[#allocation4 + $0x148] sm:$0xff] %vm1821, %v1712
  %1864 = vst.msk [vmem:[#allocation4 + $0x150] sm:$0xff] %vm1821, %v1714
  %1865 = vst.msk [vmem:[#allocation4 + $0x158] sm:$0xff] %vm1821, %v1716
  %1866 = vst.msk [vmem:[#allocation4 + $0x160] sm:$0xff] %vm1821, %v1718
  %1867 = vst.msk [vmem:[#allocation4 + $0x168] sm:$0xff] %vm1821, %v1720
  %1868 = vst.msk [vmem:[#allocation4 + $0x170] sm:$0xff] %vm1821, %v1722
  %1869 = vst.msk [vmem:[#allocation4 + $0x178] sm:$0xff] %vm1821, %v1724
  %1870 = vst.msk [vmem:[#allocation4 + $0x180] sm:$0xff] %vm1821, %v1726
  %1871 = vst.msk [vmem:[#allocation4 + $0x188] sm:$0xff] %vm1821, %v1728
  %1872 = vst.msk [vmem:[#allocation4 + $0x190] sm:$0xff] %vm1821, %v1730
  %1873 = vst.msk [vmem:[#allocation4 + $0x198] sm:$0xff] %vm1821, %v1732
  %1874 = vst.msk [vmem:[#allocation4 + $0x1a0] sm:$0xff] %vm1821, %v1734
  %1875 = vst.msk [vmem:[#allocation4 + $0x1a8] sm:$0xff] %vm1821, %v1736
  %1876 = vst.msk [vmem:[#allocation4 + $0x1b0] sm:$0xff] %vm1821, %v1738
  %1877 = vst.msk [vmem:[#allocation4 + $0x1b8] sm:$0xff] %vm1821, %v1740
  %1878 = vst.msk [vmem:[#allocation4 + $0x1c0] sm:$0xff] %vm1821, %v1742
  %1879 = vst.msk [vmem:[#allocation4 + $0x1c8] sm:$0xff] %vm1821, %v1744
  %1880 = vst.msk [vmem:[#allocation4 + $0x1d0] sm:$0xff] %vm1821, %v1746
  %1881 = vst.msk [vmem:[#allocation4 + $0x1d8] sm:$0xff] %vm1821, %v1748
  %1882 = vst.msk [vmem:[#allocation4 + $0x1e0] sm:$0xff] %vm1821, %v1750
  %1883 = vst.msk [vmem:[#allocation4 + $0x1e8] sm:$0xff] %vm1821, %v1752
  %1884 = vst.msk [vmem:[#allocation4 + $0x1f0] sm:$0xff] %vm1821, %v1754
  %1885 = vst.msk [vmem:[#allocation4 + $0x1f8] sm:$0xff] %vm1821, %v1756
  %v1886 = vrot.slane %v300, 2
  %v1887 = vrot.slane %v301, 2
  %v1888 = vsel %vm938, %v1886, %v1887
  %v1889 = vrot.slane %v302, 2
  %v1890 = vsel %vm938, %v1887, %v1889
  %v1891 = vrot.slane %v354, 2
  %v1892 = vrot.slane %v355, 2
  %v1893 = vsel %vm938, %v1891, %v1892
  %v1894 = vrot.slane %v356, 2
  %v1895 = vsel %vm938, %v1892, %v1894
  %1896 = vrot.lane.b32.xlu0 %v946, 20
  %v1897 = vpop.permute.xlu0 %1896
  %1898 = vrot.lane.b32.xlu0 %v948, 20
  %v1899 = vpop.permute.xlu0 %1898
  %1900 = vrot.lane.b32.xlu0 %v951, 20
  %v1901 = vpop.permute.xlu0 %1900
  %1902 = vrot.lane.b32.xlu0 %v953, 20
  %v1903 = vpop.permute.xlu0 %1902
  %1904 = vrot.lane.b32.xlu0 %v956, 20
  %v1905 = vpop.permute.xlu0 %1904
  %1906 = vrot.lane.b32.xlu0 %v958, 20
  %v1907 = vpop.permute.xlu0 %1906
  %1908 = vrot.lane.b32.xlu0 %v961, 20
  %v1909 = vpop.permute.xlu0 %1908
  %1910 = vrot.lane.b32.xlu0 %v963, 20
  %v1911 = vpop.permute.xlu0 %1910
  %1912 = vrot.lane.b32.xlu0 %v966, 20
  %v1913 = vpop.permute.xlu0 %1912
  %1914 = vrot.lane.b32.xlu0 %v968, 20
  %v1915 = vpop.permute.xlu0 %1914
  %1916 = vrot.lane.b32.xlu0 %v971, 20
  %v1917 = vpop.permute.xlu0 %1916
  %1918 = vrot.lane.b32.xlu0 %v973, 20
  %v1919 = vpop.permute.xlu0 %1918
  %1920 = vrot.lane.b32.xlu0 %v976, 20
  %v1921 = vpop.permute.xlu0 %1920
  %1922 = vrot.lane.b32.xlu0 %v978, 20
  %v1923 = vpop.permute.xlu0 %1922
  %1924 = vrot.lane.b32.xlu0 %v981, 20
  %v1925 = vpop.permute.xlu0 %1924
  %1926 = vrot.lane.b32.xlu0 %v983, 20
  %v1927 = vpop.permute.xlu0 %1926
  %1928 = vrot.lane.b32.xlu0 %v986, 20
  %v1929 = vpop.permute.xlu0 %1928
  %1930 = vrot.lane.b32.xlu0 %v988, 20
  %v1931 = vpop.permute.xlu0 %1930
  %1932 = vrot.lane.b32.xlu0 %v991, 20
  %v1933 = vpop.permute.xlu0 %1932
  %1934 = vrot.lane.b32.xlu0 %v993, 20
  %v1935 = vpop.permute.xlu0 %1934
  %1936 = vrot.lane.b32.xlu0 %v996, 20
  %v1937 = vpop.permute.xlu0 %1936
  %1938 = vrot.lane.b32.xlu0 %v998, 20
  %v1939 = vpop.permute.xlu0 %1938
  %1940 = vrot.lane.b32.xlu0 %v1001, 20
  %v1941 = vpop.permute.xlu0 %1940
  %1942 = vrot.lane.b32.xlu0 %v1003, 20
  %v1943 = vpop.permute.xlu0 %1942
  %1944 = vrot.lane.b32.xlu0 %v1006, 20
  %v1945 = vpop.permute.xlu0 %1944
  %1946 = vrot.lane.b32.xlu0 %v1008, 20
  %v1947 = vpop.permute.xlu0 %1946
  %1948 = vrot.lane.b32.xlu0 %v1011, 20
  %v1949 = vpop.permute.xlu0 %1948
  %1950 = vrot.lane.b32.xlu0 %v1013, 20
  %v1951 = vpop.permute.xlu0 %1950
  %1952 = vrot.lane.b32.xlu0 %v1016, 20
  %v1953 = vpop.permute.xlu0 %1952
  %1954 = vrot.lane.b32.xlu0 %v1018, 20
  %v1955 = vpop.permute.xlu0 %1954
  %1956 = vrot.lane.b32.xlu0 %v1888, 20
  %v1957 = vpop.permute.xlu0 %1956
  %1958 = vrot.lane.b32.xlu0 %v1890, 20
  %v1959 = vpop.permute.xlu0 %1958
  %1960 = vrot.lane.b32.xlu0 %v1026, 20
  %v1961 = vpop.permute.xlu0 %1960
  %1962 = vrot.lane.b32.xlu0 %v1028, 20
  %v1963 = vpop.permute.xlu0 %1962
  %1964 = vrot.lane.b32.xlu0 %v1031, 20
  %v1965 = vpop.permute.xlu0 %1964
  %1966 = vrot.lane.b32.xlu0 %v1033, 20
  %v1967 = vpop.permute.xlu0 %1966
  %1968 = vrot.lane.b32.xlu0 %v1036, 20
  %v1969 = vpop.permute.xlu0 %1968
  %1970 = vrot.lane.b32.xlu0 %v1038, 20
  %v1971 = vpop.permute.xlu0 %1970
  %1972 = vrot.lane.b32.xlu0 %v1041, 20
  %v1973 = vpop.permute.xlu0 %1972
  %1974 = vrot.lane.b32.xlu0 %v1043, 20
  %v1975 = vpop.permute.xlu0 %1974
  %1976 = vrot.lane.b32.xlu0 %v1046, 20
  %v1977 = vpop.permute.xlu0 %1976
  %1978 = vrot.lane.b32.xlu0 %v1048, 20
  %v1979 = vpop.permute.xlu0 %1978
  %1980 = vrot.lane.b32.xlu0 %v1051, 20
  %v1981 = vpop.permute.xlu0 %1980
  %1982 = vrot.lane.b32.xlu0 %v1053, 20
  %v1983 = vpop.permute.xlu0 %1982
  %1984 = vrot.lane.b32.xlu0 %v1056, 20
  %v1985 = vpop.permute.xlu0 %1984
  %1986 = vrot.lane.b32.xlu0 %v1058, 20
  %v1987 = vpop.permute.xlu0 %1986
  %1988 = vrot.lane.b32.xlu0 %v1061, 20
  %v1989 = vpop.permute.xlu0 %1988
  %1990 = vrot.lane.b32.xlu0 %v1063, 20
  %v1991 = vpop.permute.xlu0 %1990
  %1992 = vrot.lane.b32.xlu0 %v1066, 20
  %v1993 = vpop.permute.xlu0 %1992
  %1994 = vrot.lane.b32.xlu0 %v1068, 20
  %v1995 = vpop.permute.xlu0 %1994
  %1996 = vrot.lane.b32.xlu0 %v1071, 20
  %v1997 = vpop.permute.xlu0 %1996
  %1998 = vrot.lane.b32.xlu0 %v1073, 20
  %v1999 = vpop.permute.xlu0 %1998
  %2000 = vrot.lane.b32.xlu0 %v1076, 20
  %v2001 = vpop.permute.xlu0 %2000
  %2002 = vrot.lane.b32.xlu0 %v1078, 20
  %v2003 = vpop.permute.xlu0 %2002
  %2004 = vrot.lane.b32.xlu0 %v1081, 20
  %v2005 = vpop.permute.xlu0 %2004
  %2006 = vrot.lane.b32.xlu0 %v1083, 20
  %v2007 = vpop.permute.xlu0 %2006
  %2008 = vrot.lane.b32.xlu0 %v1086, 20
  %v2009 = vpop.permute.xlu0 %2008
  %2010 = vrot.lane.b32.xlu0 %v1088, 20
  %v2011 = vpop.permute.xlu0 %2010
  %2012 = vrot.lane.b32.xlu0 %v1091, 20
  %v2013 = vpop.permute.xlu0 %2012
  %2014 = vrot.lane.b32.xlu0 %v1093, 20
  %v2015 = vpop.permute.xlu0 %2014
  %2016 = vrot.lane.b32.xlu0 %v1096, 20
  %v2017 = vpop.permute.xlu0 %2016
  %2018 = vrot.lane.b32.xlu0 %v1098, 20
  %v2019 = vpop.permute.xlu0 %2018
  %2020 = vrot.lane.b32.xlu0 %v1893, 20
  %v2021 = vpop.permute.xlu0 %2020
  %2022 = vrot.lane.b32.xlu0 %v1895, 20
  %v2023 = vpop.permute.xlu0 %2022
  %vm2088 = vcmask 195744
  %2089 = vst.msk [vmem:[#allocation4] sm:$0xff] %vm2088, %v1897
  %2090 = vst.msk [vmem:[#allocation4 + $0x8] sm:$0xff] %vm2088, %v1899
  %2091 = vst.msk [vmem:[#allocation4 + $0x10] sm:$0xff] %vm2088, %v1901
  %2092 = vst.msk [vmem:[#allocation4 + $0x18] sm:$0xff] %vm2088, %v1903
  %2093 = vst.msk [vmem:[#allocation4 + $0x20] sm:$0xff] %vm2088, %v1905
  %2094 = vst.msk [vmem:[#allocation4 + $0x28] sm:$0xff] %vm2088, %v1907
  %2095 = vst.msk [vmem:[#allocation4 + $0x30] sm:$0xff] %vm2088, %v1909
  %2096 = vst.msk [vmem:[#allocation4 + $0x38] sm:$0xff] %vm2088, %v1911
  %2097 = vst.msk [vmem:[#allocation4 + $0x40] sm:$0xff] %vm2088, %v1913
  %2098 = vst.msk [vmem:[#allocation4 + $0x48] sm:$0xff] %vm2088, %v1915
  %2099 = vst.msk [vmem:[#allocation4 + $0x50] sm:$0xff] %vm2088, %v1917
  %2100 = vst.msk [vmem:[#allocation4 + $0x58] sm:$0xff] %vm2088, %v1919
  %2101 = vst.msk [vmem:[#allocation4 + $0x60] sm:$0xff] %vm2088, %v1921
  %2102 = vst.msk [vmem:[#allocation4 + $0x68] sm:$0xff] %vm2088, %v1923
  %2103 = vst.msk [vmem:[#allocation4 + $0x70] sm:$0xff] %vm2088, %v1925
  %2104 = vst.msk [vmem:[#allocation4 + $0x78] sm:$0xff] %vm2088, %v1927
  %2105 = vst.msk [vmem:[#allocation4 + $0x80] sm:$0xff] %vm2088, %v1929
  %2106 = vst.msk [vmem:[#allocation4 + $0x88] sm:$0xff] %vm2088, %v1931
  %2107 = vst.msk [vmem:[#allocation4 + $0x90] sm:$0xff] %vm2088, %v1933
  %2108 = vst.msk [vmem:[#allocation4 + $0x98] sm:$0xff] %vm2088, %v1935
  %2109 = vst.msk [vmem:[#allocation4 + $0xa0] sm:$0xff] %vm2088, %v1937
  %2110 = vst.msk [vmem:[#allocation4 + $0xa8] sm:$0xff] %vm2088, %v1939
  %2111 = vst.msk [vmem:[#allocation4 + $0xb0] sm:$0xff] %vm2088, %v1941
  %2112 = vst.msk [vmem:[#allocation4 + $0xb8] sm:$0xff] %vm2088, %v1943
  %2113 = vst.msk [vmem:[#allocation4 + $0xc0] sm:$0xff] %vm2088, %v1945
  %2114 = vst.msk [vmem:[#allocation4 + $0xc8] sm:$0xff] %vm2088, %v1947
  %2115 = vst.msk [vmem:[#allocation4 + $0xd0] sm:$0xff] %vm2088, %v1949
  %2116 = vst.msk [vmem:[#allocation4 + $0xd8] sm:$0xff] %vm2088, %v1951
  %2117 = vst.msk [vmem:[#allocation4 + $0xe0] sm:$0xff] %vm2088, %v1953
  %2118 = vst.msk [vmem:[#allocation4 + $0xe8] sm:$0xff] %vm2088, %v1955
  %2119 = vst.msk [vmem:[#allocation4 + $0xf0] sm:$0xff] %vm2088, %v1957
  %2120 = vst.msk [vmem:[#allocation4 + $0xf8] sm:$0xff] %vm2088, %v1959
  %2121 = vst.msk [vmem:[#allocation4 + $0x100] sm:$0xff] %vm2088, %v1961
  %2122 = vst.msk [vmem:[#allocation4 + $0x108] sm:$0xff] %vm2088, %v1963
  %2123 = vst.msk [vmem:[#allocation4 + $0x110] sm:$0xff] %vm2088, %v1965
  %2124 = vst.msk [vmem:[#allocation4 + $0x118] sm:$0xff] %vm2088, %v1967
  %2125 = vst.msk [vmem:[#allocation4 + $0x120] sm:$0xff] %vm2088, %v1969
  %2126 = vst.msk [vmem:[#allocation4 + $0x128] sm:$0xff] %vm2088, %v1971
  %2127 = vst.msk [vmem:[#allocation4 + $0x130] sm:$0xff] %vm2088, %v1973
  %2128 = vst.msk [vmem:[#allocation4 + $0x138] sm:$0xff] %vm2088, %v1975
  %2129 = vst.msk [vmem:[#allocation4 + $0x140] sm:$0xff] %vm2088, %v1977
  %2130 = vst.msk [vmem:[#allocation4 + $0x148] sm:$0xff] %vm2088, %v1979
  %2131 = vst.msk [vmem:[#allocation4 + $0x150] sm:$0xff] %vm2088, %v1981
  %2132 = vst.msk [vmem:[#allocation4 + $0x158] sm:$0xff] %vm2088, %v1983
  %2133 = vst.msk [vmem:[#allocation4 + $0x160] sm:$0xff] %vm2088, %v1985
  %2134 = vst.msk [vmem:[#allocation4 + $0x168] sm:$0xff] %vm2088, %v1987
  %2135 = vst.msk [vmem:[#allocation4 + $0x170] sm:$0xff] %vm2088, %v1989
  %2136 = vst.msk [vmem:[#allocation4 + $0x178] sm:$0xff] %vm2088, %v1991
  %2137 = vst.msk [vmem:[#allocation4 + $0x180] sm:$0xff] %vm2088, %v1993
  %2138 = vst.msk [vmem:[#allocation4 + $0x188] sm:$0xff] %vm2088, %v1995
  %2139 = vst.msk [vmem:[#allocation4 + $0x190] sm:$0xff] %vm2088, %v1997
  %2140 = vst.msk [vmem:[#allocation4 + $0x198] sm:$0xff] %vm2088, %v1999
  %2141 = vst.msk [vmem:[#allocation4 + $0x1a0] sm:$0xff] %vm2088, %v2001
  %2142 = vst.msk [vmem:[#allocation4 + $0x1a8] sm:$0xff] %vm2088, %v2003
  %2143 = vst.msk [vmem:[#allocation4 + $0x1b0] sm:$0xff] %vm2088, %v2005
  %2144 = vst.msk [vmem:[#allocation4 + $0x1b8] sm:$0xff] %vm2088, %v2007
  %2145 = vst.msk [vmem:[#allocation4 + $0x1c0] sm:$0xff] %vm2088, %v2009
  %2146 = vst.msk [vmem:[#allocation4 + $0x1c8] sm:$0xff] %vm2088, %v2011
  %2147 = vst.msk [vmem:[#allocation4 + $0x1d0] sm:$0xff] %vm2088, %v2013
  %2148 = vst.msk [vmem:[#allocation4 + $0x1d8] sm:$0xff] %vm2088, %v2015
  %2149 = vst.msk [vmem:[#allocation4 + $0x1e0] sm:$0xff] %vm2088, %v2017
  %2150 = vst.msk [vmem:[#allocation4 + $0x1e8] sm:$0xff] %vm2088, %v2019
  %2151 = vst.msk [vmem:[#allocation4 + $0x1f0] sm:$0xff] %vm2088, %v2021
  %2152 = vst.msk [vmem:[#allocation4 + $0x1f8] sm:$0xff] %vm2088, %v2023
  %2157 = vrot.lane.b32.xlu0 %v258, 24
  %v2158 = vpop.permute.xlu0 %2157
  %2159 = vrot.lane.b32.xlu0 %v259, 24
  %v2160 = vpop.permute.xlu0 %2159
  %2161 = vrot.lane.b32.xlu0 %v261, 24
  %v2162 = vpop.permute.xlu0 %2161
  %2163 = vrot.lane.b32.xlu0 %v262, 24
  %v2164 = vpop.permute.xlu0 %2163
  %2165 = vrot.lane.b32.xlu0 %v264, 24
  %v2166 = vpop.permute.xlu0 %2165
  %2167 = vrot.lane.b32.xlu0 %v265, 24
  %v2168 = vpop.permute.xlu0 %2167
  %2169 = vrot.lane.b32.xlu0 %v267, 24
  %v2170 = vpop.permute.xlu0 %2169
  %2171 = vrot.lane.b32.xlu0 %v268, 24
  %v2172 = vpop.permute.xlu0 %2171
  %2173 = vrot.lane.b32.xlu0 %v270, 24
  %v2174 = vpop.permute.xlu0 %2173
  %2175 = vrot.lane.b32.xlu0 %v271, 24
  %v2176 = vpop.permute.xlu0 %2175
  %2177 = vrot.lane.b32.xlu0 %v273, 24
  %v2178 = vpop.permute.xlu0 %2177
  %2179 = vrot.lane.b32.xlu0 %v274, 24
  %v2180 = vpop.permute.xlu0 %2179
  %2181 = vrot.lane.b32.xlu0 %v276, 24
  %v2182 = vpop.permute.xlu0 %2181
  %2183 = vrot.lane.b32.xlu0 %v277, 24
  %v2184 = vpop.permute.xlu0 %2183
  %2185 = vrot.lane.b32.xlu0 %v279, 24
  %v2186 = vpop.permute.xlu0 %2185
  %2187 = vrot.lane.b32.xlu0 %v280, 24
  %v2188 = vpop.permute.xlu0 %2187
  %2189 = vrot.lane.b32.xlu0 %v282, 24
  %v2190 = vpop.permute.xlu0 %2189
  %2191 = vrot.lane.b32.xlu0 %v283, 24
  %v2192 = vpop.permute.xlu0 %2191
  %2193 = vrot.lane.b32.xlu0 %v285, 24
  %v2194 = vpop.permute.xlu0 %2193
  %2195 = vrot.lane.b32.xlu0 %v286, 24
  %v2196 = vpop.permute.xlu0 %2195
  %2197 = vrot.lane.b32.xlu0 %v288, 24
  %v2198 = vpop.permute.xlu0 %2197
  %2199 = vrot.lane.b32.xlu0 %v289, 24
  %v2200 = vpop.permute.xlu0 %2199
  %2201 = vrot.lane.b32.xlu0 %v291, 24
  %v2202 = vpop.permute.xlu0 %2201
  %2203 = vrot.lane.b32.xlu0 %v292, 24
  %v2204 = vpop.permute.xlu0 %2203
  %2205 = vrot.lane.b32.xlu0 %v294, 24
  %v2206 = vpop.permute.xlu0 %2205
  %2207 = vrot.lane.b32.xlu0 %v295, 24
  %v2208 = vpop.permute.xlu0 %2207
  %2209 = vrot.lane.b32.xlu0 %v297, 24
  %v2210 = vpop.permute.xlu0 %2209
  %2211 = vrot.lane.b32.xlu0 %v298, 24
  %v2212 = vpop.permute.xlu0 %2211
  %2213 = vrot.lane.b32.xlu0 %v300, 24
  %v2214 = vpop.permute.xlu0 %2213
  %2215 = vrot.lane.b32.xlu0 %v301, 24
  %v2216 = vpop.permute.xlu0 %2215
  %2217 = vrot.lane.b32.xlu0 %v303, 24
  %v2218 = vpop.permute.xlu0 %2217
  %2219 = vrot.lane.b32.xlu0 %v304, 24
  %v2220 = vpop.permute.xlu0 %2219
  %2221 = vrot.lane.b32.xlu0 %v312, 24
  %v2222 = vpop.permute.xlu0 %2221
  %2223 = vrot.lane.b32.xlu0 %v313, 24
  %v2224 = vpop.permute.xlu0 %2223
  %2225 = vrot.lane.b32.xlu0 %v315, 24
  %v2226 = vpop.permute.xlu0 %2225
  %2227 = vrot.lane.b32.xlu0 %v316, 24
  %v2228 = vpop.permute.xlu0 %2227
  %2229 = vrot.lane.b32.xlu0 %v318, 24
  %v2230 = vpop.permute.xlu0 %2229
  %2231 = vrot.lane.b32.xlu0 %v319, 24
  %v2232 = vpop.permute.xlu0 %2231
  %2233 = vrot.lane.b32.xlu0 %v321, 24
  %v2234 = vpop.permute.xlu0 %2233
  %2235 = vrot.lane.b32.xlu0 %v322, 24
  %v2236 = vpop.permute.xlu0 %2235
  %2237 = vrot.lane.b32.xlu0 %v324, 24
  %v2238 = vpop.permute.xlu0 %2237
  %2239 = vrot.lane.b32.xlu0 %v325, 24
  %v2240 = vpop.permute.xlu0 %2239
  %2241 = vrot.lane.b32.xlu0 %v327, 24
  %v2242 = vpop.permute.xlu0 %2241
  %2243 = vrot.lane.b32.xlu0 %v328, 24
  %v2244 = vpop.permute.xlu0 %2243
  %2245 = vrot.lane.b32.xlu0 %v330, 24
  %v2246 = vpop.permute.xlu0 %2245
  %2247 = vrot.lane.b32.xlu0 %v331, 24
  %v2248 = vpop.permute.xlu0 %2247
  %2249 = vrot.lane.b32.xlu0 %v333, 24
  %v2250 = vpop.permute.xlu0 %2249
  %2251 = vrot.lane.b32.xlu0 %v334, 24
  %v2252 = vpop.permute.xlu0 %2251
  %2253 = vrot.lane.b32.xlu0 %v336, 24
  %v2254 = vpop.permute.xlu0 %2253
  %2255 = vrot.lane.b32.xlu0 %v337, 24
  %v2256 = vpop.permute.xlu0 %2255
  %2257 = vrot.lane.b32.xlu0 %v339, 24
  %v2258 = vpop.permute.xlu0 %2257
  %2259 = vrot.lane.b32.xlu0 %v340, 24
  %v2260 = vpop.permute.xlu0 %2259
  %2261 = vrot.lane.b32.xlu0 %v342, 24
  %v2262 = vpop.permute.xlu0 %2261
  %2263 = vrot.lane.b32.xlu0 %v343, 24
  %v2264 = vpop.permute.xlu0 %2263
  %2265 = vrot.lane.b32.xlu0 %v345, 24
  %v2266 = vpop.permute.xlu0 %2265
  %2267 = vrot.lane.b32.xlu0 %v346, 24
  %v2268 = vpop.permute.xlu0 %2267
  %2269 = vrot.lane.b32.xlu0 %v348, 24
  %v2270 = vpop.permute.xlu0 %2269
  %2271 = vrot.lane.b32.xlu0 %v349, 24
  %v2272 = vpop.permute.xlu0 %2271
  %2273 = vrot.lane.b32.xlu0 %v351, 24
  %v2274 = vpop.permute.xlu0 %2273
  %2275 = vrot.lane.b32.xlu0 %v352, 24
  %v2276 = vpop.permute.xlu0 %2275
  %2277 = vrot.lane.b32.xlu0 %v354, 24
  %v2278 = vpop.permute.xlu0 %2277
  %2279 = vrot.lane.b32.xlu0 %v355, 24
  %v2280 = vpop.permute.xlu0 %2279
  %2281 = vrot.lane.b32.xlu0 %v357, 24
  %v2282 = vpop.permute.xlu0 %2281
  %2283 = vrot.lane.b32.xlu0 %v358, 24
  %v2284 = vpop.permute.xlu0 %2283
  %vm2349 = vcmask 228544
  %2350 = vst.msk [vmem:[#allocation4] sm:$0xff] %vm2349, %v2158
  %2351 = vst.msk [vmem:[#allocation4 + $0x8] sm:$0xff] %vm2349, %v2160
  %2352 = vst.msk [vmem:[#allocation4 + $0x10] sm:$0xff] %vm2349, %v2162
  %2353 = vst.msk [vmem:[#allocation4 + $0x18] sm:$0xff] %vm2349, %v2164
  %2354 = vst.msk [vmem:[#allocation4 + $0x20] sm:$0xff] %vm2349, %v2166
  %2355 = vst.msk [vmem:[#allocation4 + $0x28] sm:$0xff] %vm2349, %v2168
  %2356 = vst.msk [vmem:[#allocation4 + $0x30] sm:$0xff] %vm2349, %v2170
  %2357 = vst.msk [vmem:[#allocation4 + $0x38] sm:$0xff] %vm2349, %v2172
  %2358 = vst.msk [vmem:[#allocation4 + $0x40] sm:$0xff] %vm2349, %v2174
  %2359 = vst.msk [vmem:[#allocation4 + $0x48] sm:$0xff] %vm2349, %v2176
  %2360 = vst.msk [vmem:[#allocation4 + $0x50] sm:$0xff] %vm2349, %v2178
  %2361 = vst.msk [vmem:[#allocation4 + $0x58] sm:$0xff] %vm2349, %v2180
  %2362 = vst.msk [vmem:[#allocation4 + $0x60] sm:$0xff] %vm2349, %v2182
  %2363 = vst.msk [vmem:[#allocation4 + $0x68] sm:$0xff] %vm2349, %v2184
  %2364 = vst.msk [vmem:[#allocation4 + $0x70] sm:$0xff] %vm2349, %v2186
  %2365 = vst.msk [vmem:[#allocation4 + $0x78] sm:$0xff] %vm2349, %v2188
  %2366 = vst.msk [vmem:[#allocation4 + $0x80] sm:$0xff] %vm2349, %v2190
  %2367 = vst.msk [vmem:[#allocation4 + $0x88] sm:$0xff] %vm2349, %v2192
  %2368 = vst.msk [vmem:[#allocation4 + $0x90] sm:$0xff] %vm2349, %v2194
  %2369 = vst.msk [vmem:[#allocation4 + $0x98] sm:$0xff] %vm2349, %v2196
  %2370 = vst.msk [vmem:[#allocation4 + $0xa0] sm:$0xff] %vm2349, %v2198
  %2371 = vst.msk [vmem:[#allocation4 + $0xa8] sm:$0xff] %vm2349, %v2200
  %2372 = vst.msk [vmem:[#allocation4 + $0xb0] sm:$0xff] %vm2349, %v2202
  %2373 = vst.msk [vmem:[#allocation4 + $0xb8] sm:$0xff] %vm2349, %v2204
  %2374 = vst.msk [vmem:[#allocation4 + $0xc0] sm:$0xff] %vm2349, %v2206
  %2375 = vst.msk [vmem:[#allocation4 + $0xc8] sm:$0xff] %vm2349, %v2208
  %2376 = vst.msk [vmem:[#allocation4 + $0xd0] sm:$0xff] %vm2349, %v2210
  %2377 = vst.msk [vmem:[#allocation4 + $0xd8] sm:$0xff] %vm2349, %v2212
  %2378 = vst.msk [vmem:[#allocation4 + $0xe0] sm:$0xff] %vm2349, %v2214
  %2379 = vst.msk [vmem:[#allocation4 + $0xe8] sm:$0xff] %vm2349, %v2216
  %2380 = vst.msk [vmem:[#allocation4 + $0xf0] sm:$0xff] %vm2349, %v2218
  %2381 = vst.msk [vmem:[#allocation4 + $0xf8] sm:$0xff] %vm2349, %v2220
  %2382 = vst.msk [vmem:[#allocation4 + $0x100] sm:$0xff] %vm2349, %v2222
  %2383 = vst.msk [vmem:[#allocation4 + $0x108] sm:$0xff] %vm2349, %v2224
  %2384 = vst.msk [vmem:[#allocation4 + $0x110] sm:$0xff] %vm2349, %v2226
  %2385 = vst.msk [vmem:[#allocation4 + $0x118] sm:$0xff] %vm2349, %v2228
  %2386 = vst.msk [vmem:[#allocation4 + $0x120] sm:$0xff] %vm2349, %v2230
  %2387 = vst.msk [vmem:[#allocation4 + $0x128] sm:$0xff] %vm2349, %v2232
  %2388 = vst.msk [vmem:[#allocation4 + $0x130] sm:$0xff] %vm2349, %v2234
  %2389 = vst.msk [vmem:[#allocation4 + $0x138] sm:$0xff] %vm2349, %v2236
  %2390 = vst.msk [vmem:[#allocation4 + $0x140] sm:$0xff] %vm2349, %v2238
  %2391 = vst.msk [vmem:[#allocation4 + $0x148] sm:$0xff] %vm2349, %v2240
  %2392 = vst.msk [vmem:[#allocation4 + $0x150] sm:$0xff] %vm2349, %v2242
  %2393 = vst.msk [vmem:[#allocation4 + $0x158] sm:$0xff] %vm2349, %v2244
  %2394 = vst.msk [vmem:[#allocation4 + $0x160] sm:$0xff] %vm2349, %v2246
  %2395 = vst.msk [vmem:[#allocation4 + $0x168] sm:$0xff] %vm2349, %v2248
  %2396 = vst.msk [vmem:[#allocation4 + $0x170] sm:$0xff] %vm2349, %v2250
  %2397 = vst.msk [vmem:[#allocation4 + $0x178] sm:$0xff] %vm2349, %v2252
  %2398 = vst.msk [vmem:[#allocation4 + $0x180] sm:$0xff] %vm2349, %v2254
  %2399 = vst.msk [vmem:[#allocation4 + $0x188] sm:$0xff] %vm2349, %v2256
  %2400 = vst.msk [vmem:[#allocation4 + $0x190] sm:$0xff] %vm2349, %v2258
  %2401 = vst.msk [vmem:[#allocation4 + $0x198] sm:$0xff] %vm2349, %v2260
  %2402 = vst.msk [vmem:[#allocation4 + $0x1a0] sm:$0xff] %vm2349, %v2262
  %2403 = vst.msk [vmem:[#allocation4 + $0x1a8] sm:$0xff] %vm2349, %v2264
  %2404 = vst.msk [vmem:[#allocation4 + $0x1b0] sm:$0xff] %vm2349, %v2266
  %2405 = vst.msk [vmem:[#allocation4 + $0x1b8] sm:$0xff] %vm2349, %v2268
  %2406 = vst.msk [vmem:[#allocation4 + $0x1c0] sm:$0xff] %vm2349, %v2270
  %2407 = vst.msk [vmem:[#allocation4 + $0x1c8] sm:$0xff] %vm2349, %v2272
  %2408 = vst.msk [vmem:[#allocation4 + $0x1d0] sm:$0xff] %vm2349, %v2274
  %2409 = vst.msk [vmem:[#allocation4 + $0x1d8] sm:$0xff] %vm2349, %v2276
  %2410 = vst.msk [vmem:[#allocation4 + $0x1e0] sm:$0xff] %vm2349, %v2278
  %2411 = vst.msk [vmem:[#allocation4 + $0x1e8] sm:$0xff] %vm2349, %v2280
  %2412 = vst.msk [vmem:[#allocation4 + $0x1f0] sm:$0xff] %vm2349, %v2282
  %2413 = vst.msk [vmem:[#allocation4 + $0x1f8] sm:$0xff] %vm2349, %v2284
  %v2416 = vrot.slane %v303, 1
  %v2417 = vrot.slane %v304, 1
  %v2418 = vsel %vm520, %v2416, %v2417
  %v2419 = vrot.slane %v305, 1
  %v2420 = vsel %vm520, %v2417, %v2419
  %v2421 = vrot.slane %v357, 1
  %v2422 = vrot.slane %v358, 1
  %v2423 = vsel %vm520, %v2421, %v2422
  %v2424 = vrot.slane %v359, 1
  %v2425 = vsel %vm520, %v2422, %v2424
  %2426 = vrot.lane.b32.xlu0 %v533, 28
  %v2427 = vpop.permute.xlu0 %2426
  %2428 = vrot.lane.b32.xlu0 %v535, 28
  %v2429 = vpop.permute.xlu0 %2428
  %2430 = vrot.lane.b32.xlu0 %v538, 28
  %v2431 = vpop.permute.xlu0 %2430
  %2432 = vrot.lane.b32.xlu0 %v540, 28
  %v2433 = vpop.permute.xlu0 %2432
  %2434 = vrot.lane.b32.xlu0 %v543, 28
  %v2435 = vpop.permute.xlu0 %2434
  %2436 = vrot.lane.b32.xlu0 %v545, 28
  %v2437 = vpop.permute.xlu0 %2436
  %2438 = vrot.lane.b32.xlu0 %v548, 28
  %v2439 = vpop.permute.xlu0 %2438
  %2440 = vrot.lane.b32.xlu0 %v550, 28
  %v2441 = vpop.permute.xlu0 %2440
  %2442 = vrot.lane.b32.xlu0 %v553, 28
  %v2443 = vpop.permute.xlu0 %2442
  %2444 = vrot.lane.b32.xlu0 %v555, 28
  %v2445 = vpop.permute.xlu0 %2444
  %2446 = vrot.lane.b32.xlu0 %v558, 28
  %v2447 = vpop.permute.xlu0 %2446
  %2448 = vrot.lane.b32.xlu0 %v560, 28
  %v2449 = vpop.permute.xlu0 %2448
  %2450 = vrot.lane.b32.xlu0 %v563, 28
  %v2451 = vpop.permute.xlu0 %2450
  %2452 = vrot.lane.b32.xlu0 %v565, 28
  %v2453 = vpop.permute.xlu0 %2452
  %2454 = vrot.lane.b32.xlu0 %v568, 28
  %v2455 = vpop.permute.xlu0 %2454
  %2456 = vrot.lane.b32.xlu0 %v570, 28
  %v2457 = vpop.permute.xlu0 %2456
  %2458 = vrot.lane.b32.xlu0 %v573, 28
  %v2459 = vpop.permute.xlu0 %2458
  %2460 = vrot.lane.b32.xlu0 %v575, 28
  %v2461 = vpop.permute.xlu0 %2460
  %2462 = vrot.lane.b32.xlu0 %v578, 28
  %v2463 = vpop.permute.xlu0 %2462
  %2464 = vrot.lane.b32.xlu0 %v580, 28
  %v2465 = vpop.permute.xlu0 %2464
  %2466 = vrot.lane.b32.xlu0 %v583, 28
  %v2467 = vpop.permute.xlu0 %2466
  %2468 = vrot.lane.b32.xlu0 %v585, 28
  %v2469 = vpop.permute.xlu0 %2468
  %2470 = vrot.lane.b32.xlu0 %v588, 28
  %v2471 = vpop.permute.xlu0 %2470
  %2472 = vrot.lane.b32.xlu0 %v590, 28
  %v2473 = vpop.permute.xlu0 %2472
  %2474 = vrot.lane.b32.xlu0 %v593, 28
  %v2475 = vpop.permute.xlu0 %2474
  %2476 = vrot.lane.b32.xlu0 %v595, 28
  %v2477 = vpop.permute.xlu0 %2476
  %2478 = vrot.lane.b32.xlu0 %v598, 28
  %v2479 = vpop.permute.xlu0 %2478
  %2480 = vrot.lane.b32.xlu0 %v600, 28
  %v2481 = vpop.permute.xlu0 %2480
  %2482 = vrot.lane.b32.xlu0 %v1621, 28
  %v2483 = vpop.permute.xlu0 %2482
  %2484 = vrot.lane.b32.xlu0 %v1623, 28
  %v2485 = vpop.permute.xlu0 %2484
  %2486 = vrot.lane.b32.xlu0 %v2418, 28
  %v2487 = vpop.permute.xlu0 %2486
  %2488 = vrot.lane.b32.xlu0 %v2420, 28
  %v2489 = vpop.permute.xlu0 %2488
  %2490 = vrot.lane.b32.xlu0 %v613, 28
  %v2491 = vpop.permute.xlu0 %2490
  %2492 = vrot.lane.b32.xlu0 %v615, 28
  %v2493 = vpop.permute.xlu0 %2492
  %2494 = vrot.lane.b32.xlu0 %v618, 28
  %v2495 = vpop.permute.xlu0 %2494
  %2496 = vrot.lane.b32.xlu0 %v620, 28
  %v2497 = vpop.permute.xlu0 %2496
  %2498 = vrot.lane.b32.xlu0 %v623, 28
  %v2499 = vpop.permute.xlu0 %2498
  %2500 = vrot.lane.b32.xlu0 %v625, 28
  %v2501 = vpop.permute.xlu0 %2500
  %2502 = vrot.lane.b32.xlu0 %v628, 28
  %v2503 = vpop.permute.xlu0 %2502
  %2504 = vrot.lane.b32.xlu0 %v630, 28
  %v2505 = vpop.permute.xlu0 %2504
  %2506 = vrot.lane.b32.xlu0 %v633, 28
  %v2507 = vpop.permute.xlu0 %2506
  %2508 = vrot.lane.b32.xlu0 %v635, 28
  %v2509 = vpop.permute.xlu0 %2508
  %2510 = vrot.lane.b32.xlu0 %v638, 28
  %v2511 = vpop.permute.xlu0 %2510
  %2512 = vrot.lane.b32.xlu0 %v640, 28
  %v2513 = vpop.permute.xlu0 %2512
  %2514 = vrot.lane.b32.xlu0 %v643, 28
  %v2515 = vpop.permute.xlu0 %2514
  %2516 = vrot.lane.b32.xlu0 %v645, 28
  %v2517 = vpop.permute.xlu0 %2516
  %2518 = vrot.lane.b32.xlu0 %v648, 28
  %v2519 = vpop.permute.xlu0 %2518
  %2520 = vrot.lane.b32.xlu0 %v650, 28
  %v2521 = vpop.permute.xlu0 %2520
  %2522 = vrot.lane.b32.xlu0 %v653, 28
  %v2523 = vpop.permute.xlu0 %2522
  %2524 = vrot.lane.b32.xlu0 %v655, 28
  %v2525 = vpop.permute.xlu0 %2524
  %2526 = vrot.lane.b32.xlu0 %v658, 28
  %v2527 = vpop.permute.xlu0 %2526
  %2528 = vrot.lane.b32.xlu0 %v660, 28
  %v2529 = vpop.permute.xlu0 %2528
  %2530 = vrot.lane.b32.xlu0 %v663, 28
  %v2531 = vpop.permute.xlu0 %2530
  %2532 = vrot.lane.b32.xlu0 %v665, 28
  %v2533 = vpop.permute.xlu0 %2532
  %2534 = vrot.lane.b32.xlu0 %v668, 28
  %v2535 = vpop.permute.xlu0 %2534
  %2536 = vrot.lane.b32.xlu0 %v670, 28
  %v2537 = vpop.permute.xlu0 %2536
  %2538 = vrot.lane.b32.xlu0 %v673, 28
  %v2539 = vpop.permute.xlu0 %2538
  %2540 = vrot.lane.b32.xlu0 %v675, 28
  %v2541 = vpop.permute.xlu0 %2540
  %2542 = vrot.lane.b32.xlu0 %v678, 28
  %v2543 = vpop.permute.xlu0 %2542
  %2544 = vrot.lane.b32.xlu0 %v680, 28
  %v2545 = vpop.permute.xlu0 %2544
  %2546 = vrot.lane.b32.xlu0 %v1626, 28
  %v2547 = vpop.permute.xlu0 %2546
  %2548 = vrot.lane.b32.xlu0 %v1628, 28
  %v2549 = vpop.permute.xlu0 %2548
  %2550 = vrot.lane.b32.xlu0 %v2423, 28
  %v2551 = vpop.permute.xlu0 %2550
  %2552 = vrot.lane.b32.xlu0 %v2425, 28
  %v2553 = vpop.permute.xlu0 %2552
  %vm2618 = vcmask 261344
  %2619 = vst.msk [vmem:[#allocation4] sm:$0xff] %vm2618, %v2427
  %2620 = vst.msk [vmem:[#allocation4 + $0x8] sm:$0xff] %vm2618, %v2429
  %2621 = vst.msk [vmem:[#allocation4 + $0x10] sm:$0xff] %vm2618, %v2431
  %2622 = vst.msk [vmem:[#allocation4 + $0x18] sm:$0xff] %vm2618, %v2433
  %2623 = vst.msk [vmem:[#allocation4 + $0x20] sm:$0xff] %vm2618, %v2435
  %2624 = vst.msk [vmem:[#allocation4 + $0x28] sm:$0xff] %vm2618, %v2437
  %2625 = vst.msk [vmem:[#allocation4 + $0x30] sm:$0xff] %vm2618, %v2439
  %2626 = vst.msk [vmem:[#allocation4 + $0x38] sm:$0xff] %vm2618, %v2441
  %2627 = vst.msk [vmem:[#allocation4 + $0x40] sm:$0xff] %vm2618, %v2443
  %2628 = vst.msk [vmem:[#allocation4 + $0x48] sm:$0xff] %vm2618, %v2445
  %2629 = vst.msk [vmem:[#allocation4 + $0x50] sm:$0xff] %vm2618, %v2447
  %2630 = vst.msk [vmem:[#allocation4 + $0x58] sm:$0xff] %vm2618, %v2449
  %2631 = vst.msk [vmem:[#allocation4 + $0x60] sm:$0xff] %vm2618, %v2451
  %2632 = vst.msk [vmem:[#allocation4 + $0x68] sm:$0xff] %vm2618, %v2453
  %2633 = vst.msk [vmem:[#allocation4 + $0x70] sm:$0xff] %vm2618, %v2455
  %2634 = vst.msk [vmem:[#allocation4 + $0x78] sm:$0xff] %vm2618, %v2457
  %2635 = vst.msk [vmem:[#allocation4 + $0x80] sm:$0xff] %vm2618, %v2459
  %2636 = vst.msk [vmem:[#allocation4 + $0x88] sm:$0xff] %vm2618, %v2461
  %2637 = vst.msk [vmem:[#allocation4 + $0x90] sm:$0xff] %vm2618, %v2463
  %2638 = vst.msk [vmem:[#allocation4 + $0x98] sm:$0xff] %vm2618, %v2465
  %2639 = vst.msk [vmem:[#allocation4 + $0xa0] sm:$0xff] %vm2618, %v2467
  %2640 = vst.msk [vmem:[#allocation4 + $0xa8] sm:$0xff] %vm2618, %v2469
  %2641 = vst.msk [vmem:[#allocation4 + $0xb0] sm:$0xff] %vm2618, %v2471
  %2642 = vst.msk [vmem:[#allocation4 + $0xb8] sm:$0xff] %vm2618, %v2473
  %2643 = vst.msk [vmem:[#allocation4 + $0xc0] sm:$0xff] %vm2618, %v2475
  %2644 = vst.msk [vmem:[#allocation4 + $0xc8] sm:$0xff] %vm2618, %v2477
  %2645 = vst.msk [vmem:[#allocation4 + $0xd0] sm:$0xff] %vm2618, %v2479
  %2646 = vst.msk [vmem:[#allocation4 + $0xd8] sm:$0xff] %vm2618, %v2481
  %2647 = vst.msk [vmem:[#allocation4 + $0xe0] sm:$0xff] %vm2618, %v2483
  %2648 = vst.msk [vmem:[#allocation4 + $0xe8] sm:$0xff] %vm2618, %v2485
  %2649 = vst.msk [vmem:[#allocation4 + $0xf0] sm:$0xff] %vm2618, %v2487
  %2650 = vst.msk [vmem:[#allocation4 + $0xf8] sm:$0xff] %vm2618, %v2489
  %2651 = vst.msk [vmem:[#allocation4 + $0x100] sm:$0xff] %vm2618, %v2491
  %2652 = vst.msk [vmem:[#allocation4 + $0x108] sm:$0xff] %vm2618, %v2493
  %2653 = vst.msk [vmem:[#allocation4 + $0x110] sm:$0xff] %vm2618, %v2495
  %2654 = vst.msk [vmem:[#allocation4 + $0x118] sm:$0xff] %vm2618, %v2497
  %2655 = vst.msk [vmem:[#allocation4 + $0x120] sm:$0xff] %vm2618, %v2499
  %2656 = vst.msk [vmem:[#allocation4 + $0x128] sm:$0xff] %vm2618, %v2501
  %2657 = vst.msk [vmem:[#allocation4 + $0x130] sm:$0xff] %vm2618, %v2503
  %2658 = vst.msk [vmem:[#allocation4 + $0x138] sm:$0xff] %vm2618, %v2505
  %2659 = vst.msk [vmem:[#allocation4 + $0x140] sm:$0xff] %vm2618, %v2507
  %2660 = vst.msk [vmem:[#allocation4 + $0x148] sm:$0xff] %vm2618, %v2509
  %2661 = vst.msk [vmem:[#allocation4 + $0x150] sm:$0xff] %vm2618, %v2511
  %2662 = vst.msk [vmem:[#allocation4 + $0x158] sm:$0xff] %vm2618, %v2513
  %2663 = vst.msk [vmem:[#allocation4 + $0x160] sm:$0xff] %vm2618, %v2515
  %2664 = vst.msk [vmem:[#allocation4 + $0x168] sm:$0xff] %vm2618, %v2517
  %2665 = vst.msk [vmem:[#allocation4 + $0x170] sm:$0xff] %vm2618, %v2519
  %2666 = vst.msk [vmem:[#allocation4 + $0x178] sm:$0xff] %vm2618, %v2521
  %2667 = vst.msk [vmem:[#allocation4 + $0x180] sm:$0xff] %vm2618, %v2523
  %2668 = vst.msk [vmem:[#allocation4 + $0x188] sm:$0xff] %vm2618, %v2525
  %2669 = vst.msk [vmem:[#allocation4 + $0x190] sm:$0xff] %vm2618, %v2527
  %2670 = vst.msk [vmem:[#allocation4 + $0x198] sm:$0xff] %vm2618, %v2529
  %2671 = vst.msk [vmem:[#allocation4 + $0x1a0] sm:$0xff] %vm2618, %v2531
  %2672 = vst.msk [vmem:[#allocation4 + $0x1a8] sm:$0xff] %vm2618, %v2533
  %2673 = vst.msk [vmem:[#allocation4 + $0x1b0] sm:$0xff] %vm2618, %v2535
  %2674 = vst.msk [vmem:[#allocation4 + $0x1b8] sm:$0xff] %vm2618, %v2537
  %2675 = vst.msk [vmem:[#allocation4 + $0x1c0] sm:$0xff] %vm2618, %v2539
  %2676 = vst.msk [vmem:[#allocation4 + $0x1c8] sm:$0xff] %vm2618, %v2541
  %2677 = vst.msk [vmem:[#allocation4 + $0x1d0] sm:$0xff] %vm2618, %v2543
  %2678 = vst.msk [vmem:[#allocation4 + $0x1d8] sm:$0xff] %vm2618, %v2545
  %2679 = vst.msk [vmem:[#allocation4 + $0x1e0] sm:$0xff] %vm2618, %v2547
  %2680 = vst.msk [vmem:[#allocation4 + $0x1e8] sm:$0xff] %vm2618, %v2549
  %2681 = vst.msk [vmem:[#allocation4 + $0x1f0] sm:$0xff] %vm2618, %v2551
  %2682 = vst.msk [vmem:[#allocation4 + $0x1f8] sm:$0xff] %vm2618, %v2553
  %v2683 = vrot.slane %v303, 2
  %v2684 = vrot.slane %v304, 2
  %v2685 = vsel %vm938, %v2683, %v2684
  %v2686 = vrot.slane %v305, 2
  %v2687 = vsel %vm938, %v2684, %v2686
  %v2688 = vrot.slane %v357, 2
  %v2689 = vrot.slane %v358, 2
  %v2690 = vsel %vm938, %v2688, %v2689
  %v2691 = vrot.slane %v359, 2
  %v2692 = vsel %vm938, %v2689, %v2691
  %2693 = vrot.lane.b32.xlu0 %v951, 32
  %v2694 = vpop.permute.xlu0 %2693
  %2695 = vrot.lane.b32.xlu0 %v953, 32
  %v2696 = vpop.permute.xlu0 %2695
  %2697 = vrot.lane.b32.xlu0 %v956, 32
  %v2698 = vpop.permute.xlu0 %2697
  %2699 = vrot.lane.b32.xlu0 %v958, 32
  %v2700 = vpop.permute.xlu0 %2699
  %2701 = vrot.lane.b32.xlu0 %v961, 32
  %v2702 = vpop.permute.xlu0 %2701
  %2703 = vrot.lane.b32.xlu0 %v963, 32
  %v2704 = vpop.permute.xlu0 %2703
  %2705 = vrot.lane.b32.xlu0 %v966, 32
  %v2706 = vpop.permute.xlu0 %2705
  %2707 = vrot.lane.b32.xlu0 %v968, 32
  %v2708 = vpop.permute.xlu0 %2707
  %2709 = vrot.lane.b32.xlu0 %v971, 32
  %v2710 = vpop.permute.xlu0 %2709
  %2711 = vrot.lane.b32.xlu0 %v973, 32
  %v2712 = vpop.permute.xlu0 %2711
  %2713 = vrot.lane.b32.xlu0 %v976, 32
  %v2714 = vpop.permute.xlu0 %2713
  %2715 = vrot.lane.b32.xlu0 %v978, 32
  %v2716 = vpop.permute.xlu0 %2715
  %2717 = vrot.lane.b32.xlu0 %v981, 32
  %v2718 = vpop.permute.xlu0 %2717
  %2719 = vrot.lane.b32.xlu0 %v983, 32
  %v2720 = vpop.permute.xlu0 %2719
  %2721 = vrot.lane.b32.xlu0 %v986, 32
  %v2722 = vpop.permute.xlu0 %2721
  %2723 = vrot.lane.b32.xlu0 %v988, 32
  %v2724 = vpop.permute.xlu0 %2723
  %2725 = vrot.lane.b32.xlu0 %v991, 32
  %v2726 = vpop.permute.xlu0 %2725
  %2727 = vrot.lane.b32.xlu0 %v993, 32
  %v2728 = vpop.permute.xlu0 %2727
  %2729 = vrot.lane.b32.xlu0 %v996, 32
  %v2730 = vpop.permute.xlu0 %2729
  %2731 = vrot.lane.b32.xlu0 %v998, 32
  %v2732 = vpop.permute.xlu0 %2731
  %2733 = vrot.lane.b32.xlu0 %v1001, 32
  %v2734 = vpop.permute.xlu0 %2733
  %2735 = vrot.lane.b32.xlu0 %v1003, 32
  %v2736 = vpop.permute.xlu0 %2735
  %2737 = vrot.lane.b32.xlu0 %v1006, 32
  %v2738 = vpop.permute.xlu0 %2737
  %2739 = vrot.lane.b32.xlu0 %v1008, 32
  %v2740 = vpop.permute.xlu0 %2739
  %2741 = vrot.lane.b32.xlu0 %v1011, 32
  %v2742 = vpop.permute.xlu0 %2741
  %2743 = vrot.lane.b32.xlu0 %v1013, 32
  %v2744 = vpop.permute.xlu0 %2743
  %2745 = vrot.lane.b32.xlu0 %v1016, 32
  %v2746 = vpop.permute.xlu0 %2745
  %2747 = vrot.lane.b32.xlu0 %v1018, 32
  %v2748 = vpop.permute.xlu0 %2747
  %2749 = vrot.lane.b32.xlu0 %v1888, 32
  %v2750 = vpop.permute.xlu0 %2749
  %2751 = vrot.lane.b32.xlu0 %v1890, 32
  %v2752 = vpop.permute.xlu0 %2751
  %2753 = vrot.lane.b32.xlu0 %v2685, 32
  %v2754 = vpop.permute.xlu0 %2753
  %2755 = vrot.lane.b32.xlu0 %v2687, 32
  %v2756 = vpop.permute.xlu0 %2755
  %2757 = vrot.lane.b32.xlu0 %v1031, 32
  %v2758 = vpop.permute.xlu0 %2757
  %2759 = vrot.lane.b32.xlu0 %v1033, 32
  %v2760 = vpop.permute.xlu0 %2759
  %2761 = vrot.lane.b32.xlu0 %v1036, 32
  %v2762 = vpop.permute.xlu0 %2761
  %2763 = vrot.lane.b32.xlu0 %v1038, 32
  %v2764 = vpop.permute.xlu0 %2763
  %2765 = vrot.lane.b32.xlu0 %v1041, 32
  %v2766 = vpop.permute.xlu0 %2765
  %2767 = vrot.lane.b32.xlu0 %v1043, 32
  %v2768 = vpop.permute.xlu0 %2767
  %2769 = vrot.lane.b32.xlu0 %v1046, 32
  %v2770 = vpop.permute.xlu0 %2769
  %2771 = vrot.lane.b32.xlu0 %v1048, 32
  %v2772 = vpop.permute.xlu0 %2771
  %2773 = vrot.lane.b32.xlu0 %v1051, 32
  %v2774 = vpop.permute.xlu0 %2773
  %2775 = vrot.lane.b32.xlu0 %v1053, 32
  %v2776 = vpop.permute.xlu0 %2775
  %2777 = vrot.lane.b32.xlu0 %v1056, 32
  %v2778 = vpop.permute.xlu0 %2777
  %2779 = vrot.lane.b32.xlu0 %v1058, 32
  %v2780 = vpop.permute.xlu0 %2779
  %2781 = vrot.lane.b32.xlu0 %v1061, 32
  %v2782 = vpop.permute.xlu0 %2781
  %2783 = vrot.lane.b32.xlu0 %v1063, 32
  %v2784 = vpop.permute.xlu0 %2783
  %2785 = vrot.lane.b32.xlu0 %v1066, 32
  %v2786 = vpop.permute.xlu0 %2785
  %2787 = vrot.lane.b32.xlu0 %v1068, 32
  %v2788 = vpop.permute.xlu0 %2787
  %2789 = vrot.lane.b32.xlu0 %v1071, 32
  %v2790 = vpop.permute.xlu0 %2789
  %2791 = vrot.lane.b32.xlu0 %v1073, 32
  %v2792 = vpop.permute.xlu0 %2791
  %2793 = vrot.lane.b32.xlu0 %v1076, 32
  %v2794 = vpop.permute.xlu0 %2793
  %2795 = vrot.lane.b32.xlu0 %v1078, 32
  %v2796 = vpop.permute.xlu0 %2795
  %2797 = vrot.lane.b32.xlu0 %v1081, 32
  %v2798 = vpop.permute.xlu0 %2797
  %2799 = vrot.lane.b32.xlu0 %v1083, 32
  %v2800 = vpop.permute.xlu0 %2799
  %2801 = vrot.lane.b32.xlu0 %v1086, 32
  %v2802 = vpop.permute.xlu0 %2801
  %2803 = vrot.lane.b32.xlu0 %v1088, 32
  %v2804 = vpop.permute.xlu0 %2803
  %2805 = vrot.lane.b32.xlu0 %v1091, 32
  %v2806 = vpop.permute.xlu0 %2805
  %2807 = vrot.lane.b32.xlu0 %v1093, 32
  %v2808 = vpop.permute.xlu0 %2807
  %2809 = vrot.lane.b32.xlu0 %v1096, 32
  %v2810 = vpop.permute.xlu0 %2809
  %2811 = vrot.lane.b32.xlu0 %v1098, 32
  %v2812 = vpop.permute.xlu0 %2811
  %2813 = vrot.lane.b32.xlu0 %v1893, 32
  %v2814 = vpop.permute.xlu0 %2813
  %2815 = vrot.lane.b32.xlu0 %v1895, 32
  %v2816 = vpop.permute.xlu0 %2815
  %2817 = vrot.lane.b32.xlu0 %v2690, 32
  %v2818 = vpop.permute.xlu0 %2817
  %2819 = vrot.lane.b32.xlu0 %v2692, 32
  %v2820 = vpop.permute.xlu0 %2819
  %vm2885 = vcmask 294144
  %2886 = vst.msk [vmem:[#allocation4] sm:$0xff] %vm2885, %v2694
  %2887 = vst.msk [vmem:[#allocation4 + $0x8] sm:$0xff] %vm2885, %v2696
  %2888 = vst.msk [vmem:[#allocation4 + $0x10] sm:$0xff] %vm2885, %v2698
  %2889 = vst.msk [vmem:[#allocation4 + $0x18] sm:$0xff] %vm2885, %v2700
  %2890 = vst.msk [vmem:[#allocation4 + $0x20] sm:$0xff] %vm2885, %v2702
  %2891 = vst.msk [vmem:[#allocation4 + $0x28] sm:$0xff] %vm2885, %v2704
  %2892 = vst.msk [vmem:[#allocation4 + $0x30] sm:$0xff] %vm2885, %v2706
  %2893 = vst.msk [vmem:[#allocation4 + $0x38] sm:$0xff] %vm2885, %v2708
  %2894 = vst.msk [vmem:[#allocation4 + $0x40] sm:$0xff] %vm2885, %v2710
  %2895 = vst.msk [vmem:[#allocation4 + $0x48] sm:$0xff] %vm2885, %v2712
  %2896 = vst.msk [vmem:[#allocation4 + $0x50] sm:$0xff] %vm2885, %v2714
  %2897 = vst.msk [vmem:[#allocation4 + $0x58] sm:$0xff] %vm2885, %v2716
  %2898 = vst.msk [vmem:[#allocation4 + $0x60] sm:$0xff] %vm2885, %v2718
  %2899 = vst.msk [vmem:[#allocation4 + $0x68] sm:$0xff] %vm2885, %v2720
  %2900 = vst.msk [vmem:[#allocation4 + $0x70] sm:$0xff] %vm2885, %v2722
  %2901 = vst.msk [vmem:[#allocation4 + $0x78] sm:$0xff] %vm2885, %v2724
  %2902 = vst.msk [vmem:[#allocation4 + $0x80] sm:$0xff] %vm2885, %v2726
  %2903 = vst.msk [vmem:[#allocation4 + $0x88] sm:$0xff] %vm2885, %v2728
  %2904 = vst.msk [vmem:[#allocation4 + $0x90] sm:$0xff] %vm2885, %v2730
  %2905 = vst.msk [vmem:[#allocation4 + $0x98] sm:$0xff] %vm2885, %v2732
  %2906 = vst.msk [vmem:[#allocation4 + $0xa0] sm:$0xff] %vm2885, %v2734
  %2907 = vst.msk [vmem:[#allocation4 + $0xa8] sm:$0xff] %vm2885, %v2736
  %2908 = vst.msk [vmem:[#allocation4 + $0xb0] sm:$0xff] %vm2885, %v2738
  %2909 = vst.msk [vmem:[#allocation4 + $0xb8] sm:$0xff] %vm2885, %v2740
  %2910 = vst.msk [vmem:[#allocation4 + $0xc0] sm:$0xff] %vm2885, %v2742
  %2911 = vst.msk [vmem:[#allocation4 + $0xc8] sm:$0xff] %vm2885, %v2744
  %2912 = vst.msk [vmem:[#allocation4 + $0xd0] sm:$0xff] %vm2885, %v2746
  %2913 = vst.msk [vmem:[#allocation4 + $0xd8] sm:$0xff] %vm2885, %v2748
  %2914 = vst.msk [vmem:[#allocation4 + $0xe0] sm:$0xff] %vm2885, %v2750
  %2915 = vst.msk [vmem:[#allocation4 + $0xe8] sm:$0xff] %vm2885, %v2752
  %2916 = vst.msk [vmem:[#allocation4 + $0xf0] sm:$0xff] %vm2885, %v2754
  %2917 = vst.msk [vmem:[#allocation4 + $0xf8] sm:$0xff] %vm2885, %v2756
  %2918 = vst.msk [vmem:[#allocation4 + $0x100] sm:$0xff] %vm2885, %v2758
  %2919 = vst.msk [vmem:[#allocation4 + $0x108] sm:$0xff] %vm2885, %v2760
  %2920 = vst.msk [vmem:[#allocation4 + $0x110] sm:$0xff] %vm2885, %v2762
  %2921 = vst.msk [vmem:[#allocation4 + $0x118] sm:$0xff] %vm2885, %v2764
  %2922 = vst.msk [vmem:[#allocation4 + $0x120] sm:$0xff] %vm2885, %v2766
  %2923 = vst.msk [vmem:[#allocation4 + $0x128] sm:$0xff] %vm2885, %v2768
  %2924 = vst.msk [vmem:[#allocation4 + $0x130] sm:$0xff] %vm2885, %v2770
  %2925 = vst.msk [vmem:[#allocation4 + $0x138] sm:$0xff] %vm2885, %v2772
  %2926 = vst.msk [vmem:[#allocation4 + $0x140] sm:$0xff] %vm2885, %v2774
  %2927 = vst.msk [vmem:[#allocation4 + $0x148] sm:$0xff] %vm2885, %v2776
  %2928 = vst.msk [vmem:[#allocation4 + $0x150] sm:$0xff] %vm2885, %v2778
  %2929 = vst.msk [vmem:[#allocation4 + $0x158] sm:$0xff] %vm2885, %v2780
  %2930 = vst.msk [vmem:[#allocation4 + $0x160] sm:$0xff] %vm2885, %v2782
  %2931 = vst.msk [vmem:[#allocation4 + $0x168] sm:$0xff] %vm2885, %v2784
  %2932 = vst.msk [vmem:[#allocation4 + $0x170] sm:$0xff] %vm2885, %v2786
  %2933 = vst.msk [vmem:[#allocation4 + $0x178] sm:$0xff] %vm2885, %v2788
  %2934 = vst.msk [vmem:[#allocation4 + $0x180] sm:$0xff] %vm2885, %v2790
  %2935 = vst.msk [vmem:[#allocation4 + $0x188] sm:$0xff] %vm2885, %v2792
  %2936 = vst.msk [vmem:[#allocation4 + $0x190] sm:$0xff] %vm2885, %v2794
  %2937 = vst.msk [vmem:[#allocation4 + $0x198] sm:$0xff] %vm2885, %v2796
  %2938 = vst.msk [vmem:[#allocation4 + $0x1a0] sm:$0xff] %vm2885, %v2798
  %2939 = vst.msk [vmem:[#allocation4 + $0x1a8] sm:$0xff] %vm2885, %v2800
  %2940 = vst.msk [vmem:[#allocation4 + $0x1b0] sm:$0xff] %vm2885, %v2802
  %2941 = vst.msk [vmem:[#allocation4 + $0x1b8] sm:$0xff] %vm2885, %v2804
  %2942 = vst.msk [vmem:[#allocation4 + $0x1c0] sm:$0xff] %vm2885, %v2806
  %2943 = vst.msk [vmem:[#allocation4 + $0x1c8] sm:$0xff] %vm2885, %v2808
  %2944 = vst.msk [vmem:[#allocation4 + $0x1d0] sm:$0xff] %vm2885, %v2810
  %2945 = vst.msk [vmem:[#allocation4 + $0x1d8] sm:$0xff] %vm2885, %v2812
  %2946 = vst.msk [vmem:[#allocation4 + $0x1e0] sm:$0xff] %vm2885, %v2814
  %2947 = vst.msk [vmem:[#allocation4 + $0x1e8] sm:$0xff] %vm2885, %v2816
  %2948 = vst.msk [vmem:[#allocation4 + $0x1f0] sm:$0xff] %vm2885, %v2818
  %2949 = vst.msk [vmem:[#allocation4 + $0x1f8] sm:$0xff] %vm2885, %v2820
  %v2950 = vld [vmem:[#allocation4] sm:$0xff]
  %v2951 = vld [vmem:[#allocation4 + $0x8] sm:$0xff]
  %v2952 = vld [vmem:[#allocation4 + $0x10] sm:$0xff]
  %v2953 = vld [vmem:[#allocation4 + $0x18] sm:$0xff]
  %v2954 = vld [vmem:[#allocation4 + $0x20] sm:$0xff]
  %v2955 = vld [vmem:[#allocation4 + $0x28] sm:$0xff]
  %v2956 = vld [vmem:[#allocation4 + $0x30] sm:$0xff]
  %v2957 = vld [vmem:[#allocation4 + $0x38] sm:$0xff]
  %v2958 = vld [vmem:[#allocation4 + $0x40] sm:$0xff]
  %v2959 = vld [vmem:[#allocation4 + $0x48] sm:$0xff]
  %v2960 = vld [vmem:[#allocation4 + $0x50] sm:$0xff]
  %v2961 = vld [vmem:[#allocation4 + $0x58] sm:$0xff]
  %v2962 = vld [vmem:[#allocation4 + $0x60] sm:$0xff]
  %v2963 = vld [vmem:[#allocation4 + $0x68] sm:$0xff]
  %v2964 = vld [vmem:[#allocation4 + $0x70] sm:$0xff]
  %v2965 = vld [vmem:[#allocation4 + $0x78] sm:$0xff]
  %v2966 = vld [vmem:[#allocation4 + $0x80] sm:$0xff]
  %v2967 = vld [vmem:[#allocation4 + $0x88] sm:$0xff]
  %v2968 = vld [vmem:[#allocation4 + $0x90] sm:$0xff]
  %v2969 = vld [vmem:[#allocation4 + $0x98] sm:$0xff]
  %v2970 = vld [vmem:[#allocation4 + $0xa0] sm:$0xff]
  %v2971 = vld [vmem:[#allocation4 + $0xa8] sm:$0xff]
  %v2972 = vld [vmem:[#allocation4 + $0xb0] sm:$0xff]
  %v2973 = vld [vmem:[#allocation4 + $0xb8] sm:$0xff]
  %v2974 = vld [vmem:[#allocation4 + $0xc0] sm:$0xff]
  %v2975 = vld [vmem:[#allocation4 + $0xc8] sm:$0xff]
  %v2976 = vld [vmem:[#allocation4 + $0xd0] sm:$0xff]
  %v2977 = vld [vmem:[#allocation4 + $0xd8] sm:$0xff]
  %v2978 = vld [vmem:[#allocation4 + $0xe0] sm:$0xff]
  %v2979 = vld [vmem:[#allocation4 + $0xe8] sm:$0xff]
  %v2980 = vld [vmem:[#allocation4 + $0xf0] sm:$0xff]
  %v2981 = vld [vmem:[#allocation4 + $0xf8] sm:$0xff]
  %v2982 = vld [vmem:[#allocation4 + $0x100] sm:$0xff]
  %v2983 = vld [vmem:[#allocation4 + $0x108] sm:$0xff]
  %v2984 = vld [vmem:[#allocation4 + $0x110] sm:$0xff]
  %v2985 = vld [vmem:[#allocation4 + $0x118] sm:$0xff]
  %v2986 = vld [vmem:[#allocation4 + $0x120] sm:$0xff]
  %v2987 = vld [vmem:[#allocation4 + $0x128] sm:$0xff]
  %v2988 = vld [vmem:[#allocation4 + $0x130] sm:$0xff]
  %v2989 = vld [vmem:[#allocation4 + $0x138] sm:$0xff]
  %v2990 = vld [vmem:[#allocation4 + $0x140] sm:$0xff]
  %v2991 = vld [vmem:[#allocation4 + $0x148] sm:$0xff]
  %v2992 = vld [vmem:[#allocation4 + $0x150] sm:$0xff]
  %v2993 = vld [vmem:[#allocation4 + $0x158] sm:$0xff]
  %v2994 = vld [vmem:[#allocation4 + $0x160] sm:$0xff]
  %v2995 = vld [vmem:[#allocation4 + $0x168] sm:$0xff]
  %v2996 = vld [vmem:[#allocation4 + $0x170] sm:$0xff]
  %v2997 = vld [vmem:[#allocation4 + $0x178] sm:$0xff]
  %v2998 = vld [vmem:[#allocation4 + $0x180] sm:$0xff]
  %v2999 = vld [vmem:[#allocation4 + $0x188] sm:$0xff]
  %v3000 = vld [vmem:[#allocation4 + $0x190] sm:$0xff]
  %v3001 = vld [vmem:[#allocation4 + $0x198] sm:$0xff]
  %v3002 = vld [vmem:[#allocation4 + $0x1a0] sm:$0xff]
  %v3003 = vld [vmem:[#allocation4 + $0x1a8] sm:$0xff]
  %v3004 = vld [vmem:[#allocation4 + $0x1b0] sm:$0xff]
  %v3005 = vld [vmem:[#allocation4 + $0x1b8] sm:$0xff]
  %v3006 = vld [vmem:[#allocation4 + $0x1c0] sm:$0xff]
  %v3007 = vld [vmem:[#allocation4 + $0x1c8] sm:$0xff]
  %v3008 = vld [vmem:[#allocation4 + $0x1d0] sm:$0xff]
  %v3009 = vld [vmem:[#allocation4 + $0x1d8] sm:$0xff]
  %v3010 = vld [vmem:[#allocation4 + $0x1e0] sm:$0xff]
  %v3011 = vld [vmem:[#allocation4 + $0x1e8] sm:$0xff]
  %v3012 = vld [vmem:[#allocation4 + $0x1f0] sm:$0xff]
  %v3013 = vld [vmem:[#allocation4 + $0x1f8] sm:$0xff]
  %v3014 = vld [vmem:[%s1] sm:$0xff]
  %v3015 = vld [vmem:[%s1 + $0x8] sm:$0xff]
  %v3016 = vld [vmem:[%s1 + $0x10] sm:$0xff]
  %v3017 = vld [vmem:[%s1 + $0x18] sm:$0xff]
  %v3018 = vld [vmem:[%s1 + $0x20] sm:$0xf]
  %v3019 = vld [vmem:[%s2] sm:$0x1]
  %v3021 = vlaneseq
  %v3022 = vshrl.u32 %v3021, 7
  %v3023 = vsub.s32 0, %v3022
  %v3024 = vrot.slane %v3019, %v3023
  %vm3026 = vcmask 293888
  %v3028 = vsel %vm3026, %v2950, 0
  %v3031 = vsel %vm3026, %v2951, 0
  %v3034 = vsel %vm3026, %v2952, 0
  %v3037 = vsel %vm3026, %v2953, 0
  %v3040 = vsel %vm3026, %v2954, 0
  %v3043 = vsel %vm3026, %v2955, 0
  %v3046 = vsel %vm3026, %v2956, 0
  %v3049 = vsel %vm3026, %v2957, 0
  %v3052 = vsel %vm3026, %v2958, 0
  %v3055 = vsel %vm3026, %v2959, 0
  %v3058 = vsel %vm3026, %v2960, 0
  %v3061 = vsel %vm3026, %v2961, 0
  %v3064 = vsel %vm3026, %v2962, 0
  %v3067 = vsel %vm3026, %v2963, 0
  %v3070 = vsel %vm3026, %v2964, 0
  %v3073 = vsel %vm3026, %v2965, 0
  %v3076 = vsel %vm3026, %v2966, 0
  %v3079 = vsel %vm3026, %v2967, 0
  %v3082 = vsel %vm3026, %v2968, 0
  %v3085 = vsel %vm3026, %v2969, 0
  %v3088 = vsel %vm3026, %v2970, 0
  %v3091 = vsel %vm3026, %v2971, 0
  %v3094 = vsel %vm3026, %v2972, 0
  %v3097 = vsel %vm3026, %v2973, 0
  %v3100 = vsel %vm3026, %v2974, 0
  %v3103 = vsel %vm3026, %v2975, 0
  %v3106 = vsel %vm3026, %v2976, 0
  %v3109 = vsel %vm3026, %v2977, 0
  %v3112 = vsel %vm3026, %v2978, 0
  %v3115 = vsel %vm3026, %v2979, 0
  %v3118 = vsel %vm3026, %v2980, 0
  %v3121 = vsel %vm3026, %v2981, 0
  %v3124 = vsel %vm3026, %v2982, 0
  %v3127 = vsel %vm3026, %v2983, 0
  %v3130 = vsel %vm3026, %v2984, 0
  %v3133 = vsel %vm3026, %v2985, 0
  %v3136 = vsel %vm3026, %v2986, 0
  %v3139 = vsel %vm3026, %v2987, 0
  %v3142 = vsel %vm3026, %v2988, 0
  %v3145 = vsel %vm3026, %v2989, 0
  %v3148 = vsel %vm3026, %v2990, 0
  %v3151 = vsel %vm3026, %v2991, 0
  %v3154 = vsel %vm3026, %v2992, 0
  %v3157 = vsel %vm3026, %v2993, 0
  %v3160 = vsel %vm3026, %v2994, 0
  %v3163 = vsel %vm3026, %v2995, 0
  %v3166 = vsel %vm3026, %v2996, 0
  %v3169 = vsel %vm3026, %v2997, 0
  %v3172 = vsel %vm3026, %v2998, 0
  %v3175 = vsel %vm3026, %v2999, 0
  %v3178 = vsel %vm3026, %v3000, 0
  %v3181 = vsel %vm3026, %v3001, 0
  %v3184 = vsel %vm3026, %v3002, 0
  %v3187 = vsel %vm3026, %v3003, 0
  %v3190 = vsel %vm3026, %v3004, 0
  %v3193 = vsel %vm3026, %v3005, 0
  %v3196 = vsel %vm3026, %v3006, 0
  %v3199 = vsel %vm3026, %v3007, 0
  %v3202 = vsel %vm3026, %v3008, 0
  %v3205 = vsel %vm3026, %v3009, 0
  %v3208 = vsel %vm3026, %v3010, 0
  %v3211 = vsel %vm3026, %v3011, 0
  %v3214 = vsel %vm3026, %v3012, 0
  %v3217 = vsel %vm3026, %v3013, 0
  %vm3219 = vcmask 1043456
  %v3221 = vsel %vm3219, %v3018, 0
  %3223 = vmatprep.subr.mxu0 0.0
  %3224 = vmatpush1.msra.mxu0 0.0
  %3225 = vmatprep.subr.mxu0 0.0
  %3226 = vmatpush1.msra.mxu0 0.0
  %3227 = vmatprep.subr.mxu0 0.0
  %3228 = vmatpush1.msra.mxu0 0.0
  %3229 = vmatprep.subr.mxu0 0.0
  %3230 = vmatpush1.msra.mxu0 0.0
  %3231 = vmatprep.subr.mxu0 0.0
  %3232 = vmatpush1.msra.mxu0 0.0
  %3233 = vmatprep.subr.mxu0 0.0
  %3234 = vmatpush1.msra.mxu0 0.0
  %3235 = vmatprep.subr.mxu0 0.0
  %3236 = vmatpush1.msra.mxu0 0.0
  %3237 = vmatprep.subr.mxu0 0.0
  %3238 = vmatpush1.msra.mxu0 0.0
  %3239 = vmatprep.subr.mxu0 0.0
  %3240 = vmatpush1.msra.mxu0 0.0
  %3241 = vmatprep.subr.mxu0 0.0
  %3242 = vmatpush1.msra.mxu0 0.0
  %3243 = vmatprep.subr.mxu0 0.0
  %3244 = vmatpush1.msra.mxu0 0.0
  %3245 = vmatprep.subr.mxu0 0.0
  %3246 = vmatpush1.msra.mxu0 %v3221
  %3247 = vmatprep.subr.mxu0 0.0
  %3248 = vmatpush1.msra.mxu0 %v3017
  %3249 = vmatprep.subr.mxu0 0.0
  %3250 = vmatpush1.msra.mxu0 %v3016
  %3251 = vmatprep.subr.mxu0 0.0
  %3252 = vmatpush1.msra.mxu0 %v3015
  %3253 = vmatprep.subr.mxu0 0.0
  %3254 = vmatpush1.msra.mxu0 %v3014
  %3255 = vmatprep.subr.mxu0 0.0
  %3256 = vmatpush2.msra.mxu0 0.0
  %3257 = vmatprep.subr.mxu0 0.0
  %3258 = vmatpush2.msra.mxu0 0.0
  %3259 = vmatprep.subr.mxu0 0.0
  %3260 = vmatpush2.msra.mxu0 0.0
  %3261 = vmatprep.subr.mxu0 0.0
  %3262 = vmatpush2.msra.mxu0 0.0
  %3263 = vmatprep.subr.mxu0 0.0
  %3264 = vmatpush2.msra.mxu0 0.0
  %3265 = vmatprep.subr.mxu0 0.0
  %3266 = vmatpush2.msra.mxu0 0.0
  %3267 = vmatprep.subr.mxu0 0.0
  %3268 = vmatpush2.msra.mxu0 0.0
  %3269 = vmatprep.subr.mxu0 0.0
  %3270 = vmatpush2.msra.mxu0 0.0
  %3271 = vmatprep.subr.mxu0 0.0
  %3272 = vmatpush2.msra.mxu0 0.0
  %3273 = vmatprep.subr.mxu0 0.0
  %3274 = vmatpush2.msra.mxu0 0.0
  %3275 = vmatprep.subr.mxu0 0.0
  %3276 = vmatpush2.msra.mxu0 0.0
  %3277 = vmatprep.subr.mxu0 0.0
  %3278 = vmatpush2.msra.mxu0 0.0
  %3279 = vmatprep.subr.mxu0 0.0
  %3280 = vmatpush2.msra.mxu0 0.0
  %3281 = vmatprep.subr.mxu0 0.0
  %3282 = vmatpush2.msra.mxu0 0.0
  %3283 = vmatprep.subr.mxu0 0.0
  %3284 = vmatpush2.msra.mxu0 0.0
  %3285 = vmatprep.subr.mxu0 0.0
  %3286 = vmatpush2.msra.mxu0 0.0
  %3287 = vmatprep.mubr.f32.mxu0 0.0
  %3288 = vmatmul.mubr.f32.gmra.mxu0 %v3028
  %v3289 = vpop.f32.mrf.mxu0
  %v3290 = vadd.f32 %v3024, %v3289
  %v3291 = vpop.f32.mrf.mxu0
  %3292 = vmatprep.mubr.f32.mxu0 0.0
  %3293 = vmatmul.mubr.f32.gmra.mxu0 %v3031
  %v3294 = vpop.f32.mrf.mxu0
  %v3295 = vadd.f32 %v3024, %v3294
  %v3296 = vpop.f32.mrf.mxu0
  %3297 = vmatprep.mubr.f32.mxu0 0.0
  %3298 = vmatmul.mubr.f32.gmra.mxu0 %v3034
  %v3299 = vpop.f32.mrf.mxu0
  %v3300 = vadd.f32 %v3024, %v3299
  %v3301 = vpop.f32.mrf.mxu0
  %3302 = vmatprep.mubr.f32.mxu0 0.0
  %3303 = vmatmul.mubr.f32.gmra.mxu0 %v3037
  %v3304 = vpop.f32.mrf.mxu0
  %v3305 = vadd.f32 %v3024, %v3304
  %v3306 = vpop.f32.mrf.mxu0
  %3307 = vmatprep.mubr.f32.mxu0 0.0
  %3308 = vmatmul.mubr.f32.gmra.mxu0 %v3040
  %v3309 = vpop.f32.mrf.mxu0
  %v3310 = vadd.f32 %v3024, %v3309
  %v3311 = vpop.f32.mrf.mxu0
  %3312 = vmatprep.mubr.f32.mxu0 0.0
  %3313 = vmatmul.mubr.f32.gmra.mxu0 %v3043
  %v3314 = vpop.f32.mrf.mxu0
  %v3315 = vadd.f32 %v3024, %v3314
  %v3316 = vpop.f32.mrf.mxu0
  %3317 = vmatprep.mubr.f32.mxu0 0.0
  %3318 = vmatmul.mubr.f32.gmra.mxu0 %v3046
  %v3319 = vpop.f32.mrf.mxu0
  %v3320 = vadd.f32 %v3024, %v3319
  %v3321 = vpop.f32.mrf.mxu0
  %3322 = vmatprep.mubr.f32.mxu0 0.0
  %3323 = vmatmul.mubr.f32.gmra.mxu0 %v3049
  %v3324 = vpop.f32.mrf.mxu0
  %v3325 = vadd.f32 %v3024, %v3324
  %v3326 = vpop.f32.mrf.mxu0
  %3327 = vmatprep.mubr.f32.mxu0 0.0
  %3328 = vmatmul.mubr.f32.gmra.mxu0 %v3052
  %v3329 = vpop.f32.mrf.mxu0
  %v3330 = vadd.f32 %v3024, %v3329
  %v3331 = vpop.f32.mrf.mxu0
  %3332 = vmatprep.mubr.f32.mxu0 0.0
  %3333 = vmatmul.mubr.f32.gmra.mxu0 %v3055
  %v3334 = vpop.f32.mrf.mxu0
  %v3335 = vadd.f32 %v3024, %v3334
  %v3336 = vpop.f32.mrf.mxu0
  %3337 = vmatprep.mubr.f32.mxu0 0.0
  %3338 = vmatmul.mubr.f32.gmra.mxu0 %v3058
  %v3339 = vpop.f32.mrf.mxu0
  %v3340 = vadd.f32 %v3024, %v3339
  %v3341 = vpop.f32.mrf.mxu0
  %3342 = vmatprep.mubr.f32.mxu0 0.0
  %3343 = vmatmul.mubr.f32.gmra.mxu0 %v3061
  %v3344 = vpop.f32.mrf.mxu0
  %v3345 = vadd.f32 %v3024, %v3344
  %v3346 = vpop.f32.mrf.mxu0
  %3347 = vmatprep.mubr.f32.mxu0 0.0
  %3348 = vmatmul.mubr.f32.gmra.mxu0 %v3064
  %v3349 = vpop.f32.mrf.mxu0
  %v3350 = vadd.f32 %v3024, %v3349
  %v3351 = vpop.f32.mrf.mxu0
  %3352 = vmatprep.mubr.f32.mxu0 0.0
  %3353 = vmatmul.mubr.f32.gmra.mxu0 %v3067
  %v3354 = vpop.f32.mrf.mxu0
  %v3355 = vadd.f32 %v3024, %v3354
  %v3356 = vpop.f32.mrf.mxu0
  %3357 = vmatprep.mubr.f32.mxu0 0.0
  %3358 = vmatmul.mubr.f32.gmra.mxu0 %v3070
  %v3359 = vpop.f32.mrf.mxu0
  %v3360 = vadd.f32 %v3024, %v3359
  %v3361 = vpop.f32.mrf.mxu0
  %3362 = vmatprep.mubr.f32.mxu0 0.0
  %3363 = vmatmul.mubr.f32.gmra.mxu0 %v3073
  %v3364 = vpop.f32.mrf.mxu0
  %v3365 = vadd.f32 %v3024, %v3364
  %v3366 = vpop.f32.mrf.mxu0
  %3367 = vmatprep.mubr.f32.mxu0 0.0
  %3368 = vmatmul.mubr.f32.gmra.mxu0 %v3076
  %v3369 = vpop.f32.mrf.mxu0
  %v3370 = vadd.f32 %v3024, %v3369
  %v3371 = vpop.f32.mrf.mxu0
  %3372 = vmatprep.mubr.f32.mxu0 0.0
  %3373 = vmatmul.mubr.f32.gmra.mxu0 %v3079
  %v3374 = vpop.f32.mrf.mxu0
  %v3375 = vadd.f32 %v3024, %v3374
  %v3376 = vpop.f32.mrf.mxu0
  %3377 = vmatprep.mubr.f32.mxu0 0.0
  %3378 = vmatmul.mubr.f32.gmra.mxu0 %v3082
  %v3379 = vpop.f32.mrf.mxu0
  %v3380 = vadd.f32 %v3024, %v3379
  %v3381 = vpop.f32.mrf.mxu0
  %3382 = vmatprep.mubr.f32.mxu0 0.0
  %3383 = vmatmul.mubr.f32.gmra.mxu0 %v3085
  %v3384 = vpop.f32.mrf.mxu0
  %v3385 = vadd.f32 %v3024, %v3384
  %v3386 = vpop.f32.mrf.mxu0
  %3387 = vmatprep.mubr.f32.mxu0 0.0
  %3388 = vmatmul.mubr.f32.gmra.mxu0 %v3088
  %v3389 = vpop.f32.mrf.mxu0
  %v3390 = vadd.f32 %v3024, %v3389
  %v3391 = vpop.f32.mrf.mxu0
  %3392 = vmatprep.mubr.f32.mxu0 0.0
  %3393 = vmatmul.mubr.f32.gmra.mxu0 %v3091
  %v3394 = vpop.f32.mrf.mxu0
  %v3395 = vadd.f32 %v3024, %v3394
  %v3396 = vpop.f32.mrf.mxu0
  %3397 = vmatprep.mubr.f32.mxu0 0.0
  %3398 = vmatmul.mubr.f32.gmra.mxu0 %v3094
  %v3399 = vpop.f32.mrf.mxu0
  %v3400 = vadd.f32 %v3024, %v3399
  %v3401 = vpop.f32.mrf.mxu0
  %3402 = vmatprep.mubr.f32.mxu0 0.0
  %3403 = vmatmul.mubr.f32.gmra.mxu0 %v3097
  %v3404 = vpop.f32.mrf.mxu0
  %v3405 = vadd.f32 %v3024, %v3404
  %v3406 = vpop.f32.mrf.mxu0
  %3407 = vmatprep.mubr.f32.mxu0 0.0
  %3408 = vmatmul.mubr.f32.gmra.mxu0 %v3100
  %v3409 = vpop.f32.mrf.mxu0
  %v3410 = vadd.f32 %v3024, %v3409
  %v3411 = vpop.f32.mrf.mxu0
  %3412 = vmatprep.mubr.f32.mxu0 0.0
  %3413 = vmatmul.mubr.f32.gmra.mxu0 %v3103
  %v3414 = vpop.f32.mrf.mxu0
  %v3415 = vadd.f32 %v3024, %v3414
  %v3416 = vpop.f32.mrf.mxu0
  %3417 = vmatprep.mubr.f32.mxu0 0.0
  %3418 = vmatmul.mubr.f32.gmra.mxu0 %v3106
  %v3419 = vpop.f32.mrf.mxu0
  %v3420 = vadd.f32 %v3024, %v3419
  %v3421 = vpop.f32.mrf.mxu0
  %3422 = vmatprep.mubr.f32.mxu0 0.0
  %3423 = vmatmul.mubr.f32.gmra.mxu0 %v3109
  %v3424 = vpop.f32.mrf.mxu0
  %v3425 = vadd.f32 %v3024, %v3424
  %v3426 = vpop.f32.mrf.mxu0
  %3427 = vmatprep.mubr.f32.mxu0 0.0
  %3428 = vmatmul.mubr.f32.gmra.mxu0 %v3112
  %v3429 = vpop.f32.mrf.mxu0
  %v3430 = vadd.f32 %v3024, %v3429
  %v3431 = vpop.f32.mrf.mxu0
  %3432 = vmatprep.mubr.f32.mxu0 0.0
  %3433 = vmatmul.mubr.f32.gmra.mxu0 %v3115
  %v3434 = vpop.f32.mrf.mxu0
  %v3435 = vadd.f32 %v3024, %v3434
  %v3436 = vpop.f32.mrf.mxu0
  %3437 = vmatprep.mubr.f32.mxu0 0.0
  %3438 = vmatmul.mubr.f32.gmra.mxu0 %v3118
  %v3439 = vpop.f32.mrf.mxu0
  %v3440 = vadd.f32 %v3024, %v3439
  %v3441 = vpop.f32.mrf.mxu0
  %3442 = vmatprep.mubr.f32.mxu0 0.0
  %3443 = vmatmul.mubr.f32.gmra.mxu0 %v3121
  %v3444 = vpop.f32.mrf.mxu0
  %v3445 = vadd.f32 %v3024, %v3444
  %v3446 = vpop.f32.mrf.mxu0
  %3447 = vmatprep.mubr.f32.mxu0 0.0
  %3448 = vmatmul.mubr.f32.gmra.mxu0 %v3124
  %v3449 = vpop.f32.mrf.mxu0
  %v3450 = vadd.f32 %v3024, %v3449
  %v3451 = vpop.f32.mrf.mxu0
  %3452 = vmatprep.mubr.f32.mxu0 0.0
  %3453 = vmatmul.mubr.f32.gmra.mxu0 %v3127
  %v3454 = vpop.f32.mrf.mxu0
  %v3455 = vadd.f32 %v3024, %v3454
  %v3456 = vpop.f32.mrf.mxu0
  %3457 = vmatprep.mubr.f32.mxu0 0.0
  %3458 = vmatmul.mubr.f32.gmra.mxu0 %v3130
  %v3459 = vpop.f32.mrf.mxu0
  %v3460 = vadd.f32 %v3024, %v3459
  %v3461 = vpop.f32.mrf.mxu0
  %3462 = vmatprep.mubr.f32.mxu0 0.0
  %3463 = vmatmul.mubr.f32.gmra.mxu0 %v3133
  %v3464 = vpop.f32.mrf.mxu0
  %v3465 = vadd.f32 %v3024, %v3464
  %v3466 = vpop.f32.mrf.mxu0
  %3467 = vmatprep.mubr.f32.mxu0 0.0
  %3468 = vmatmul.mubr.f32.gmra.mxu0 %v3136
  %v3469 = vpop.f32.mrf.mxu0
  %v3470 = vadd.f32 %v3024, %v3469
  %v3471 = vpop.f32.mrf.mxu0
  %3472 = vmatprep.mubr.f32.mxu0 0.0
  %3473 = vmatmul.mubr.f32.gmra.mxu0 %v3139
  %v3474 = vpop.f32.mrf.mxu0
  %v3475 = vadd.f32 %v3024, %v3474
  %v3476 = vpop.f32.mrf.mxu0
  %3477 = vmatprep.mubr.f32.mxu0 0.0
  %3478 = vmatmul.mubr.f32.gmra.mxu0 %v3142
  %v3479 = vpop.f32.mrf.mxu0
  %v3480 = vadd.f32 %v3024, %v3479
  %v3481 = vpop.f32.mrf.mxu0
  %3482 = vmatprep.mubr.f32.mxu0 0.0
  %3483 = vmatmul.mubr.f32.gmra.mxu0 %v3145
  %v3484 = vpop.f32.mrf.mxu0
  %v3485 = vadd.f32 %v3024, %v3484
  %v3486 = vpop.f32.mrf.mxu0
  %3487 = vmatprep.mubr.f32.mxu0 0.0
  %3488 = vmatmul.mubr.f32.gmra.mxu0 %v3148
  %v3489 = vpop.f32.mrf.mxu0
  %v3490 = vadd.f32 %v3024, %v3489
  %v3491 = vpop.f32.mrf.mxu0
  %3492 = vmatprep.mubr.f32.mxu0 0.0
  %3493 = vmatmul.mubr.f32.gmra.mxu0 %v3151
  %v3494 = vpop.f32.mrf.mxu0
  %v3495 = vadd.f32 %v3024, %v3494
  %v3496 = vpop.f32.mrf.mxu0
  %3497 = vmatprep.mubr.f32.mxu0 0.0
  %3498 = vmatmul.mubr.f32.gmra.mxu0 %v3154
  %v3499 = vpop.f32.mrf.mxu0
  %v3500 = vadd.f32 %v3024, %v3499
  %v3501 = vpop.f32.mrf.mxu0
  %3502 = vmatprep.mubr.f32.mxu0 0.0
  %3503 = vmatmul.mubr.f32.gmra.mxu0 %v3157
  %v3504 = vpop.f32.mrf.mxu0
  %v3505 = vadd.f32 %v3024, %v3504
  %v3506 = vpop.f32.mrf.mxu0
  %3507 = vmatprep.mubr.f32.mxu0 0.0
  %3508 = vmatmul.mubr.f32.gmra.mxu0 %v3160
  %v3509 = vpop.f32.mrf.mxu0
  %v3510 = vadd.f32 %v3024, %v3509
  %v3511 = vpop.f32.mrf.mxu0
  %3512 = vmatprep.mubr.f32.mxu0 0.0
  %3513 = vmatmul.mubr.f32.gmra.mxu0 %v3163
  %v3514 = vpop.f32.mrf.mxu0
  %v3515 = vadd.f32 %v3024, %v3514
  %v3516 = vpop.f32.mrf.mxu0
  %3517 = vmatprep.mubr.f32.mxu0 0.0
  %3518 = vmatmul.mubr.f32.gmra.mxu0 %v3166
  %v3519 = vpop.f32.mrf.mxu0
  %v3520 = vadd.f32 %v3024, %v3519
  %v3521 = vpop.f32.mrf.mxu0
  %3522 = vmatprep.mubr.f32.mxu0 0.0
  %3523 = vmatmul.mubr.f32.gmra.mxu0 %v3169
  %v3524 = vpop.f32.mrf.mxu0
  %v3525 = vadd.f32 %v3024, %v3524
  %v3526 = vpop.f32.mrf.mxu0
  %3527 = vmatprep.mubr.f32.mxu0 0.0
  %3528 = vmatmul.mubr.f32.gmra.mxu0 %v3172
  %v3529 = vpop.f32.mrf.mxu0
  %v3530 = vadd.f32 %v3024, %v3529
  %v3531 = vpop.f32.mrf.mxu0
  %3532 = vmatprep.mubr.f32.mxu0 0.0
  %3533 = vmatmul.mubr.f32.gmra.mxu0 %v3175
  %v3534 = vpop.f32.mrf.mxu0
  %v3535 = vadd.f32 %v3024, %v3534
  %v3536 = vpop.f32.mrf.mxu0
  %3537 = vmatprep.mubr.f32.mxu0 0.0
  %3538 = vmatmul.mubr.f32.gmra.mxu0 %v3178
  %v3539 = vpop.f32.mrf.mxu0
  %v3540 = vadd.f32 %v3024, %v3539
  %v3541 = vpop.f32.mrf.mxu0
  %3542 = vmatprep.mubr.f32.mxu0 0.0
  %3543 = vmatmul.mubr.f32.gmra.mxu0 %v3181
  %v3544 = vpop.f32.mrf.mxu0
  %v3545 = vadd.f32 %v3024, %v3544
  %v3546 = vpop.f32.mrf.mxu0
  %3547 = vmatprep.mubr.f32.mxu0 0.0
  %3548 = vmatmul.mubr.f32.gmra.mxu0 %v3184
  %v3549 = vpop.f32.mrf.mxu0
  %v3550 = vadd.f32 %v3024, %v3549
  %v3551 = vpop.f32.mrf.mxu0
  %3552 = vmatprep.mubr.f32.mxu0 0.0
  %3553 = vmatmul.mubr.f32.gmra.mxu0 %v3187
  %v3554 = vpop.f32.mrf.mxu0
  %v3555 = vadd.f32 %v3024, %v3554
  %v3556 = vpop.f32.mrf.mxu0
  %3557 = vmatprep.mubr.f32.mxu0 0.0
  %3558 = vmatmul.mubr.f32.gmra.mxu0 %v3190
  %v3559 = vpop.f32.mrf.mxu0
  %v3560 = vadd.f32 %v3024, %v3559
  %v3561 = vpop.f32.mrf.mxu0
  %3562 = vmatprep.mubr.f32.mxu0 0.0
  %3563 = vmatmul.mubr.f32.gmra.mxu0 %v3193
  %v3564 = vpop.f32.mrf.mxu0
  %v3565 = vadd.f32 %v3024, %v3564
  %v3566 = vpop.f32.mrf.mxu0
  %3567 = vmatprep.mubr.f32.mxu0 0.0
  %3568 = vmatmul.mubr.f32.gmra.mxu0 %v3196
  %v3569 = vpop.f32.mrf.mxu0
  %v3570 = vadd.f32 %v3024, %v3569
  %v3571 = vpop.f32.mrf.mxu0
  %3572 = vmatprep.mubr.f32.mxu0 0.0
  %3573 = vmatmul.mubr.f32.gmra.mxu0 %v3199
  %v3574 = vpop.f32.mrf.mxu0
  %v3575 = vadd.f32 %v3024, %v3574
  %v3576 = vpop.f32.mrf.mxu0
  %3577 = vmatprep.mubr.f32.mxu0 0.0
  %3578 = vmatmul.mubr.f32.gmra.mxu0 %v3202
  %v3579 = vpop.f32.mrf.mxu0
  %v3580 = vadd.f32 %v3024, %v3579
  %v3581 = vpop.f32.mrf.mxu0
  %3582 = vmatprep.mubr.f32.mxu0 0.0
  %3583 = vmatmul.mubr.f32.gmra.mxu0 %v3205
  %v3584 = vpop.f32.mrf.mxu0
  %v3585 = vadd.f32 %v3024, %v3584
  %v3586 = vpop.f32.mrf.mxu0
  %3587 = vmatprep.mubr.f32.mxu0 0.0
  %3588 = vmatmul.mubr.f32.gmra.mxu0 %v3208
  %v3589 = vpop.f32.mrf.mxu0
  %v3590 = vadd.f32 %v3024, %v3589
  %v3591 = vpop.f32.mrf.mxu0
  %3592 = vmatprep.mubr.f32.mxu0 0.0
  %3593 = vmatmul.mubr.f32.gmra.mxu0 %v3211
  %v3594 = vpop.f32.mrf.mxu0
  %v3595 = vadd.f32 %v3024, %v3594
  %v3596 = vpop.f32.mrf.mxu0
  %3597 = vmatprep.mubr.f32.mxu0 0.0
  %3598 = vmatmul.mubr.f32.gmra.mxu0 %v3214
  %v3599 = vpop.f32.mrf.mxu0
  %v3600 = vadd.f32 %v3024, %v3599
  %v3601 = vpop.f32.mrf.mxu0
  %3602 = vmatprep.mubr.f32.mxu0 0.0
  %3603 = vmatmul.mubr.f32.gmra.mxu0 %v3217
  %v3604 = vpop.f32.mrf.mxu0
  %v3605 = vadd.f32 %v3024, %v3604
  %v3606 = vpop.f32.mrf.mxu0
  %3607 = vdwg.mxu0
  %v3608 = vld [vmem:[%s3] sm:$0x1]
  %v3609 = vld [vmem:[%s4] sm:$0x1]
  %vm3610 = vcmask 64512
  %v3611 = vsel %vm3610, %v3290, 0.0
  %v3612 = vsel %vm3610, %v3295, 0.0
  %v3613 = vadd.f32 %v3611, %v3612
  %v3614 = vsel %vm3610, %v3300, 0.0
  %v3615 = vadd.f32 %v3613, %v3614
  %v3616 = vsel %vm3610, %v3305, 0.0
  %v3617 = vadd.f32 %v3615, %v3616
  %v3618 = vsel %vm3610, %v3310, 0.0
  %v3619 = vadd.f32 %v3617, %v3618
  %v3620 = vsel %vm3610, %v3315, 0.0
  %v3621 = vadd.f32 %v3619, %v3620
  %v3622 = vsel %vm3610, %v3320, 0.0
  %v3623 = vadd.f32 %v3621, %v3622
  %v3624 = vsel %vm3610, %v3325, 0.0
  %v3625 = vadd.f32 %v3623, %v3624
  %v3626 = vsel %vm3610, %v3330, 0.0
  %v3627 = vadd.f32 %v3625, %v3626
  %v3628 = vsel %vm3610, %v3335, 0.0
  %v3629 = vadd.f32 %v3627, %v3628
  %v3630 = vsel %vm3610, %v3340, 0.0
  %v3631 = vadd.f32 %v3629, %v3630
  %v3632 = vsel %vm3610, %v3345, 0.0
  %v3633 = vadd.f32 %v3631, %v3632
  %v3634 = vsel %vm3610, %v3350, 0.0
  %v3635 = vadd.f32 %v3633, %v3634
  %v3636 = vsel %vm3610, %v3355, 0.0
  %v3637 = vadd.f32 %v3635, %v3636
  %v3638 = vsel %vm3610, %v3360, 0.0
  %v3639 = vadd.f32 %v3637, %v3638
  %v3640 = vsel %vm3610, %v3365, 0.0
  %v3641 = vadd.f32 %v3639, %v3640
  %v3642 = vsel %vm3610, %v3370, 0.0
  %v3643 = vadd.f32 %v3641, %v3642
  %v3644 = vsel %vm3610, %v3375, 0.0
  %v3645 = vadd.f32 %v3643, %v3644
  %v3646 = vsel %vm3610, %v3380, 0.0
  %v3647 = vadd.f32 %v3645, %v3646
  %v3648 = vsel %vm3610, %v3385, 0.0
  %v3649 = vadd.f32 %v3647, %v3648
  %v3650 = vsel %vm3610, %v3390, 0.0
  %v3651 = vadd.f32 %v3649, %v3650
  %v3652 = vsel %vm3610, %v3395, 0.0
  %v3653 = vadd.f32 %v3651, %v3652
  %v3654 = vsel %vm3610, %v3400, 0.0
  %v3655 = vadd.f32 %v3653, %v3654
  %v3656 = vsel %vm3610, %v3405, 0.0
  %v3657 = vadd.f32 %v3655, %v3656
  %v3658 = vsel %vm3610, %v3410, 0.0
  %v3659 = vadd.f32 %v3657, %v3658
  %v3660 = vsel %vm3610, %v3415, 0.0
  %v3661 = vadd.f32 %v3659, %v3660
  %v3662 = vsel %vm3610, %v3420, 0.0
  %v3663 = vadd.f32 %v3661, %v3662
  %v3664 = vsel %vm3610, %v3425, 0.0
  %v3665 = vadd.f32 %v3663, %v3664
  %v3666 = vsel %vm3610, %v3430, 0.0
  %v3667 = vadd.f32 %v3665, %v3666
  %v3668 = vsel %vm3610, %v3435, 0.0
  %v3669 = vadd.f32 %v3667, %v3668
  %v3670 = vsel %vm3610, %v3440, 0.0
  %v3671 = vadd.f32 %v3669, %v3670
  %v3672 = vsel %vm3610, %v3445, 0.0
  %v3673 = vadd.f32 %v3671, %v3672
  %v3674 = vsel %vm3610, %v3450, 0.0
  %v3675 = vadd.f32 %v3673, %v3674
  %v3676 = vsel %vm3610, %v3455, 0.0
  %v3677 = vadd.f32 %v3675, %v3676
  %v3678 = vsel %vm3610, %v3460, 0.0
  %v3679 = vadd.f32 %v3677, %v3678
  %v3680 = vsel %vm3610, %v3465, 0.0
  %v3681 = vadd.f32 %v3679, %v3680
  %v3682 = vsel %vm3610, %v3470, 0.0
  %v3683 = vadd.f32 %v3681, %v3682
  %v3684 = vsel %vm3610, %v3475, 0.0
  %v3685 = vadd.f32 %v3683, %v3684
  %v3686 = vsel %vm3610, %v3480, 0.0
  %v3687 = vadd.f32 %v3685, %v3686
  %v3688 = vsel %vm3610, %v3485, 0.0
  %v3689 = vadd.f32 %v3687, %v3688
  %v3690 = vsel %vm3610, %v3490, 0.0
  %v3691 = vadd.f32 %v3689, %v3690
  %v3692 = vsel %vm3610, %v3495, 0.0
  %v3693 = vadd.f32 %v3691, %v3692
  %v3694 = vsel %vm3610, %v3500, 0.0
  %v3695 = vadd.f32 %v3693, %v3694
  %v3696 = vsel %vm3610, %v3505, 0.0
  %v3697 = vadd.f32 %v3695, %v3696
  %v3698 = vsel %vm3610, %v3510, 0.0
  %v3699 = vadd.f32 %v3697, %v3698
  %v3700 = vsel %vm3610, %v3515, 0.0
  %v3701 = vadd.f32 %v3699, %v3700
  %v3702 = vsel %vm3610, %v3520, 0.0
  %v3703 = vadd.f32 %v3701, %v3702
  %v3704 = vsel %vm3610, %v3525, 0.0
  %v3705 = vadd.f32 %v3703, %v3704
  %v3706 = vsel %vm3610, %v3530, 0.0
  %v3707 = vadd.f32 %v3705, %v3706
  %v3708 = vsel %vm3610, %v3535, 0.0
  %v3709 = vadd.f32 %v3707, %v3708
  %v3710 = vsel %vm3610, %v3540, 0.0
  %v3711 = vadd.f32 %v3709, %v3710
  %v3712 = vsel %vm3610, %v3545, 0.0
  %v3713 = vadd.f32 %v3711, %v3712
  %v3714 = vsel %vm3610, %v3550, 0.0
  %v3715 = vadd.f32 %v3713, %v3714
  %v3716 = vsel %vm3610, %v3555, 0.0
  %v3717 = vadd.f32 %v3715, %v3716
  %v3718 = vsel %vm3610, %v3560, 0.0
  %v3719 = vadd.f32 %v3717, %v3718
  %v3720 = vsel %vm3610, %v3565, 0.0
  %v3721 = vadd.f32 %v3719, %v3720
  %v3722 = vsel %vm3610, %v3570, 0.0
  %v3723 = vadd.f32 %v3721, %v3722
  %v3724 = vsel %vm3610, %v3575, 0.0
  %v3725 = vadd.f32 %v3723, %v3724
  %v3726 = vsel %vm3610, %v3580, 0.0
  %v3727 = vadd.f32 %v3725, %v3726
  %v3728 = vsel %vm3610, %v3585, 0.0
  %v3729 = vadd.f32 %v3727, %v3728
  %v3730 = vsel %vm3610, %v3590, 0.0
  %v3731 = vadd.f32 %v3729, %v3730
  %v3732 = vsel %vm3610, %v3595, 0.0
  %v3733 = vadd.f32 %v3731, %v3732
  %v3734 = vsel %vm3610, %v3600, 0.0
  %v3735 = vadd.f32 %v3733, %v3734
  %v3736 = vsel %vm3610, %v3605, 0.0
  %v3737 = vadd.f32 %v3735, %v3736
  %v3738 = vrot.slane %v3737, 4
  %v3739 = vadd.f32 %v3737, %v3738
  %v3740 = vrot.slane %v3739, 2
  %v3741 = vadd.f32 %v3739, %v3740
  %v3742 = vrot.slane %v3741, 1
  %v3743 = vadd.f32 %v3741, %v3742
  %v3744 = vmul.f32 %v3743, 0.001953125
  %v3745 = vmul.f32 %v3290, %v3290
  %v3746 = vmul.f32 %v3295, %v3295
  %v3747 = vmul.f32 %v3300, %v3300
  %v3748 = vmul.f32 %v3305, %v3305
  %v3749 = vmul.f32 %v3310, %v3310
  %v3750 = vmul.f32 %v3315, %v3315
  %v3751 = vmul.f32 %v3320, %v3320
  %v3752 = vmul.f32 %v3325, %v3325
  %v3753 = vmul.f32 %v3330, %v3330
  %v3754 = vmul.f32 %v3335, %v3335
  %v3755 = vmul.f32 %v3340, %v3340
  %v3756 = vmul.f32 %v3345, %v3345
  %v3757 = vmul.f32 %v3350, %v3350
  %v3758 = vmul.f32 %v3355, %v3355
  %v3759 = vmul.f32 %v3360, %v3360
  %v3760 = vmul.f32 %v3365, %v3365
  %v3761 = vmul.f32 %v3370, %v3370
  %v3762 = vmul.f32 %v3375, %v3375
  %v3763 = vmul.f32 %v3380, %v3380
  %v3764 = vmul.f32 %v3385, %v3385
  %v3765 = vmul.f32 %v3390, %v3390
  %v3766 = vmul.f32 %v3395, %v3395
  %v3767 = vmul.f32 %v3400, %v3400
  %v3768 = vmul.f32 %v3405, %v3405
  %v3769 = vmul.f32 %v3410, %v3410
  %v3770 = vmul.f32 %v3415, %v3415
  %v3771 = vmul.f32 %v3420, %v3420
  %v3772 = vmul.f32 %v3425, %v3425
  %v3773 = vmul.f32 %v3430, %v3430
  %v3774 = vmul.f32 %v3435, %v3435
  %v3775 = vmul.f32 %v3440, %v3440
  %v3776 = vmul.f32 %v3445, %v3445
  %v3777 = vmul.f32 %v3450, %v3450
  %v3778 = vmul.f32 %v3455, %v3455
  %v3779 = vmul.f32 %v3460, %v3460
  %v3780 = vmul.f32 %v3465, %v3465
  %v3781 = vmul.f32 %v3470, %v3470
  %v3782 = vmul.f32 %v3475, %v3475
  %v3783 = vmul.f32 %v3480, %v3480
  %v3784 = vmul.f32 %v3485, %v3485
  %v3785 = vmul.f32 %v3490, %v3490
  %v3786 = vmul.f32 %v3495, %v3495
  %v3787 = vmul.f32 %v3500, %v3500
  %v3788 = vmul.f32 %v3505, %v3505
  %v3789 = vmul.f32 %v3510, %v3510
  %v3790 = vmul.f32 %v3515, %v3515
  %v3791 = vmul.f32 %v3520, %v3520
  %v3792 = vmul.f32 %v3525, %v3525
  %v3793 = vmul.f32 %v3530, %v3530
  %v3794 = vmul.f32 %v3535, %v3535
  %v3795 = vmul.f32 %v3540, %v3540
  %v3796 = vmul.f32 %v3545, %v3545
  %v3797 = vmul.f32 %v3550, %v3550
  %v3798 = vmul.f32 %v3555, %v3555
  %v3799 = vmul.f32 %v3560, %v3560
  %v3800 = vmul.f32 %v3565, %v3565
  %v3801 = vmul.f32 %v3570, %v3570
  %v3802 = vmul.f32 %v3575, %v3575
  %v3803 = vmul.f32 %v3580, %v3580
  %v3804 = vmul.f32 %v3585, %v3585
  %v3805 = vmul.f32 %v3590, %v3590
  %v3806 = vmul.f32 %v3595, %v3595
  %v3807 = vmul.f32 %v3600, %v3600
  %v3808 = vmul.f32 %v3605, %v3605
  %v3809 = vsel %vm3610, %v3745, 0.0
  %v3810 = vsel %vm3610, %v3746, 0.0
  %v3811 = vadd.f32 %v3809, %v3810
  %v3812 = vsel %vm3610, %v3747, 0.0
  %v3813 = vadd.f32 %v3811, %v3812
  %v3814 = vsel %vm3610, %v3748, 0.0
  %v3815 = vadd.f32 %v3813, %v3814
  %v3816 = vsel %vm3610, %v3749, 0.0
  %v3817 = vadd.f32 %v3815, %v3816
  %v3818 = vsel %vm3610, %v3750, 0.0
  %v3819 = vadd.f32 %v3817, %v3818
  %v3820 = vsel %vm3610, %v3751, 0.0
  %v3821 = vadd.f32 %v3819, %v3820
  %v3822 = vsel %vm3610, %v3752, 0.0
  %v3823 = vadd.f32 %v3821, %v3822
  %v3824 = vsel %vm3610, %v3753, 0.0
  %v3825 = vadd.f32 %v3823, %v3824
  %v3826 = vsel %vm3610, %v3754, 0.0
  %v3827 = vadd.f32 %v3825, %v3826
  %v3828 = vsel %vm3610, %v3755, 0.0
  %v3829 = vadd.f32 %v3827, %v3828
  %v3830 = vsel %vm3610, %v3756, 0.0
  %v3831 = vadd.f32 %v3829, %v3830
  %v3832 = vsel %vm3610, %v3757, 0.0
  %v3833 = vadd.f32 %v3831, %v3832
  %v3834 = vsel %vm3610, %v3758, 0.0
  %v3835 = vadd.f32 %v3833, %v3834
  %v3836 = vsel %vm3610, %v3759, 0.0
  %v3837 = vadd.f32 %v3835, %v3836
  %v3838 = vsel %vm3610, %v3760, 0.0
  %v3839 = vadd.f32 %v3837, %v3838
  %v3840 = vsel %vm3610, %v3761, 0.0
  %v3841 = vadd.f32 %v3839, %v3840
  %v3842 = vsel %vm3610, %v3762, 0.0
  %v3843 = vadd.f32 %v3841, %v3842
  %v3844 = vsel %vm3610, %v3763, 0.0
  %v3845 = vadd.f32 %v3843, %v3844
  %v3846 = vsel %vm3610, %v3764, 0.0
  %v3847 = vadd.f32 %v3845, %v3846
  %v3848 = vsel %vm3610, %v3765, 0.0
  %v3849 = vadd.f32 %v3847, %v3848
  %v3850 = vsel %vm3610, %v3766, 0.0
  %v3851 = vadd.f32 %v3849, %v3850
  %v3852 = vsel %vm3610, %v3767, 0.0
  %v3853 = vadd.f32 %v3851, %v3852
  %v3854 = vsel %vm3610, %v3768, 0.0
  %v3855 = vadd.f32 %v3853, %v3854
  %v3856 = vsel %vm3610, %v3769, 0.0
  %v3857 = vadd.f32 %v3855, %v3856
  %v3858 = vsel %vm3610, %v3770, 0.0
  %v3859 = vadd.f32 %v3857, %v3858
  %v3860 = vsel %vm3610, %v3771, 0.0
  %v3861 = vadd.f32 %v3859, %v3860
  %v3862 = vsel %vm3610, %v3772, 0.0
  %v3863 = vadd.f32 %v3861, %v3862
  %v3864 = vsel %vm3610, %v3773, 0.0
  %v3865 = vadd.f32 %v3863, %v3864
  %v3866 = vsel %vm3610, %v3774, 0.0
  %v3867 = vadd.f32 %v3865, %v3866
  %v3868 = vsel %vm3610, %v3775, 0.0
  %v3869 = vadd.f32 %v3867, %v3868
  %v3870 = vsel %vm3610, %v3776, 0.0
  %v3871 = vadd.f32 %v3869, %v3870
  %v3872 = vsel %vm3610, %v3777, 0.0
  %v3873 = vadd.f32 %v3871, %v3872
  %v3874 = vsel %vm3610, %v3778, 0.0
  %v3875 = vadd.f32 %v3873, %v3874
  %v3876 = vsel %vm3610, %v3779, 0.0
  %v3877 = vadd.f32 %v3875, %v3876
  %v3878 = vsel %vm3610, %v3780, 0.0
  %v3879 = vadd.f32 %v3877, %v3878
  %v3880 = vsel %vm3610, %v3781, 0.0
  %v3881 = vadd.f32 %v3879, %v3880
  %v3882 = vsel %vm3610, %v3782, 0.0
  %v3883 = vadd.f32 %v3881, %v3882
  %v3884 = vsel %vm3610, %v3783, 0.0
  %v3885 = vadd.f32 %v3883, %v3884
  %v3886 = vsel %vm3610, %v3784, 0.0
  %v3887 = vadd.f32 %v3885, %v3886
  %v3888 = vsel %vm3610, %v3785, 0.0
  %v3889 = vadd.f32 %v3887, %v3888
  %v3890 = vsel %vm3610, %v3786, 0.0
  %v3891 = vadd.f32 %v3889, %v3890
  %v3892 = vsel %vm3610, %v3787, 0.0
  %v3893 = vadd.f32 %v3891, %v3892
  %v3894 = vsel %vm3610, %v3788, 0.0
  %v3895 = vadd.f32 %v3893, %v3894
  %v3896 = vsel %vm3610, %v3789, 0.0
  %v3897 = vadd.f32 %v3895, %v3896
  %v3898 = vsel %vm3610, %v3790, 0.0
  %v3899 = vadd.f32 %v3897, %v3898
  %v3900 = vsel %vm3610, %v3791, 0.0
  %v3901 = vadd.f32 %v3899, %v3900
  %v3902 = vsel %vm3610, %v3792, 0.0
  %v3903 = vadd.f32 %v3901, %v3902
  %v3904 = vsel %vm3610, %v3793, 0.0
  %v3905 = vadd.f32 %v3903, %v3904
  %v3906 = vsel %vm3610, %v3794, 0.0
  %v3907 = vadd.f32 %v3905, %v3906
  %v3908 = vsel %vm3610, %v3795, 0.0
  %v3909 = vadd.f32 %v3907, %v3908
  %v3910 = vsel %vm3610, %v3796, 0.0
  %v3911 = vadd.f32 %v3909, %v3910
  %v3912 = vsel %vm3610, %v3797, 0.0
  %v3913 = vadd.f32 %v3911, %v3912
  %v3914 = vsel %vm3610, %v3798, 0.0
  %v3915 = vadd.f32 %v3913, %v3914
  %v3916 = vsel %vm3610, %v3799, 0.0
  %v3917 = vadd.f32 %v3915, %v3916
  %v3918 = vsel %vm3610, %v3800, 0.0
  %v3919 = vadd.f32 %v3917, %v3918
  %v3920 = vsel %vm3610, %v3801, 0.0
  %v3921 = vadd.f32 %v3919, %v3920
  %v3922 = vsel %vm3610, %v3802, 0.0
  %v3923 = vadd.f32 %v3921, %v3922
  %v3924 = vsel %vm3610, %v3803, 0.0
  %v3925 = vadd.f32 %v3923, %v3924
  %v3926 = vsel %vm3610, %v3804, 0.0
  %v3927 = vadd.f32 %v3925, %v3926
  %v3928 = vsel %vm3610, %v3805, 0.0
  %v3929 = vadd.f32 %v3927, %v3928
  %v3930 = vsel %vm3610, %v3806, 0.0
  %v3931 = vadd.f32 %v3929, %v3930
  %v3932 = vsel %vm3610, %v3807, 0.0
  %v3933 = vadd.f32 %v3931, %v3932
  %v3934 = vsel %vm3610, %v3808, 0.0
  %v3935 = vadd.f32 %v3933, %v3934
  %v3936 = vrot.slane %v3935, 4
  %v3937 = vadd.f32 %v3935, %v3936
  %v3938 = vrot.slane %v3937, 2
  %v3939 = vadd.f32 %v3937, %v3938
  %v3940 = vrot.slane %v3939, 1
  %v3941 = vadd.f32 %v3939, %v3940
  %v3942 = vmul.f32 %v3941, 0.001953125
  %v3943 = vmul.f32 %v3744, %v3744
  %v3944 = vsub.f32 %v3942, %v3943
  %v3945 = vadd.f32 %v3944, 1e-05
  %v3946 = vrsqrt.pop %v3945
  %v3947 = vmul.f32 %v3608, %v3946
  %v3948 = vmul.f32 %v3744, %v3947
  %v3949 = vsub.f32 %v3609, %v3948
  %v3951 = vlaneseq
  %v3952 = vshrl.u32 %v3951, 7
  %v3953 = vsub.s32 0, %v3952
  %v3954 = vrot.slane %v3947, %v3953
  %v3956 = vmul.f32 %v3290, %v3954
  %v3957 = vmul.f32 %v3295, %v3954
  %v3958 = vmul.f32 %v3300, %v3954
  %v3959 = vmul.f32 %v3305, %v3954
  %v3960 = vmul.f32 %v3310, %v3954
  %v3961 = vmul.f32 %v3315, %v3954
  %v3962 = vmul.f32 %v3320, %v3954
  %v3963 = vmul.f32 %v3325, %v3954
  %v3964 = vmul.f32 %v3330, %v3954
  %v3965 = vmul.f32 %v3335, %v3954
  %v3966 = vmul.f32 %v3340, %v3954
  %v3967 = vmul.f32 %v3345, %v3954
  %v3968 = vmul.f32 %v3350, %v3954
  %v3969 = vmul.f32 %v3355, %v3954
  %v3970 = vmul.f32 %v3360, %v3954
  %v3971 = vmul.f32 %v3365, %v3954
  %v3972 = vmul.f32 %v3370, %v3954
  %v3973 = vmul.f32 %v3375, %v3954
  %v3974 = vmul.f32 %v3380, %v3954
  %v3975 = vmul.f32 %v3385, %v3954
  %v3976 = vmul.f32 %v3390, %v3954
  %v3977 = vmul.f32 %v3395, %v3954
  %v3978 = vmul.f32 %v3400, %v3954
  %v3979 = vmul.f32 %v3405, %v3954
  %v3980 = vmul.f32 %v3410, %v3954
  %v3981 = vmul.f32 %v3415, %v3954
  %v3982 = vmul.f32 %v3420, %v3954
  %v3983 = vmul.f32 %v3425, %v3954
  %v3984 = vmul.f32 %v3430, %v3954
  %v3985 = vmul.f32 %v3435, %v3954
  %v3986 = vmul.f32 %v3440, %v3954
  %v3987 = vmul.f32 %v3445, %v3954
  %v3988 = vmul.f32 %v3450, %v3954
  %v3989 = vmul.f32 %v3455, %v3954
  %v3990 = vmul.f32 %v3460, %v3954
  %v3991 = vmul.f32 %v3465, %v3954
  %v3992 = vmul.f32 %v3470, %v3954
  %v3993 = vmul.f32 %v3475, %v3954
  %v3994 = vmul.f32 %v3480, %v3954
  %v3995 = vmul.f32 %v3485, %v3954
  %v3996 = vmul.f32 %v3490, %v3954
  %v3997 = vmul.f32 %v3495, %v3954
  %v3998 = vmul.f32 %v3500, %v3954
  %v3999 = vmul.f32 %v3505, %v3954
  %v4000 = vmul.f32 %v3510, %v3954
  %v4001 = vmul.f32 %v3515, %v3954
  %v4002 = vmul.f32 %v3520, %v3954
  %v4003 = vmul.f32 %v3525, %v3954
  %v4004 = vmul.f32 %v3530, %v3954
  %v4005 = vmul.f32 %v3535, %v3954
  %v4006 = vmul.f32 %v3540, %v3954
  %v4007 = vmul.f32 %v3545, %v3954
  %v4008 = vmul.f32 %v3550, %v3954
  %v4009 = vmul.f32 %v3555, %v3954
  %v4010 = vmul.f32 %v3560, %v3954
  %v4011 = vmul.f32 %v3565, %v3954
  %v4012 = vmul.f32 %v3570, %v3954
  %v4013 = vmul.f32 %v3575, %v3954
  %v4014 = vmul.f32 %v3580, %v3954
  %v4015 = vmul.f32 %v3585, %v3954
  %v4016 = vmul.f32 %v3590, %v3954
  %v4017 = vmul.f32 %v3595, %v3954
  %v4018 = vmul.f32 %v3600, %v3954
  %v4019 = vmul.f32 %v3605, %v3954
  %v4021 = vlaneseq
  %v4022 = vshrl.u32 %v4021, 7
  %v4023 = vsub.s32 0, %v4022
  %v4024 = vrot.slane %v3949, %v4023
  %v4026 = vadd.f32 %v3956, %v4024
  %v4027 = vadd.f32 %v3957, %v4024
  %v4028 = vadd.f32 %v3958, %v4024
  %v4029 = vadd.f32 %v3959, %v4024
  %v4030 = vadd.f32 %v3960, %v4024
  %v4031 = vadd.f32 %v3961, %v4024
  %v4032 = vadd.f32 %v3962, %v4024
  %v4033 = vadd.f32 %v3963, %v4024
  %v4034 = vadd.f32 %v3964, %v4024
  %v4035 = vadd.f32 %v3965, %v4024
  %v4036 = vadd.f32 %v3966, %v4024
  %v4037 = vadd.f32 %v3967, %v4024
  %v4038 = vadd.f32 %v3968, %v4024
  %v4039 = vadd.f32 %v3969, %v4024
  %v4040 = vadd.f32 %v3970, %v4024
  %v4041 = vadd.f32 %v3971, %v4024
  %v4042 = vadd.f32 %v3972, %v4024
  %v4043 = vadd.f32 %v3973, %v4024
  %v4044 = vadd.f32 %v3974, %v4024
  %v4045 = vadd.f32 %v3975, %v4024
  %v4046 = vadd.f32 %v3976, %v4024
  %v4047 = vadd.f32 %v3977, %v4024
  %v4048 = vadd.f32 %v3978, %v4024
  %v4049 = vadd.f32 %v3979, %v4024
  %v4050 = vadd.f32 %v3980, %v4024
  %v4051 = vadd.f32 %v3981, %v4024
  %v4052 = vadd.f32 %v3982, %v4024
  %v4053 = vadd.f32 %v3983, %v4024
  %v4054 = vadd.f32 %v3984, %v4024
  %v4055 = vadd.f32 %v3985, %v4024
  %v4056 = vadd.f32 %v3986, %v4024
  %v4057 = vadd.f32 %v3987, %v4024
  %v4058 = vadd.f32 %v3988, %v4024
  %v4059 = vadd.f32 %v3989, %v4024
  %v4060 = vadd.f32 %v3990, %v4024
  %v4061 = vadd.f32 %v3991, %v4024
  %v4062 = vadd.f32 %v3992, %v4024
  %v4063 = vadd.f32 %v3993, %v4024
  %v4064 = vadd.f32 %v3994, %v4024
  %v4065 = vadd.f32 %v3995, %v4024
  %v4066 = vadd.f32 %v3996, %v4024
  %v4067 = vadd.f32 %v3997, %v4024
  %v4068 = vadd.f32 %v3998, %v4024
  %v4069 = vadd.f32 %v3999, %v4024
  %v4070 = vadd.f32 %v4000, %v4024
  %v4071 = vadd.f32 %v4001, %v4024
  %v4072 = vadd.f32 %v4002, %v4024
  %v4073 = vadd.f32 %v4003, %v4024
  %v4074 = vadd.f32 %v4004, %v4024
  %v4075 = vadd.f32 %v4005, %v4024
  %v4076 = vadd.f32 %v4006, %v4024
  %v4077 = vadd.f32 %v4007, %v4024
  %v4078 = vadd.f32 %v4008, %v4024
  %v4079 = vadd.f32 %v4009, %v4024
  %v4080 = vadd.f32 %v4010, %v4024
  %v4081 = vadd.f32 %v4011, %v4024
  %v4082 = vadd.f32 %v4012, %v4024
  %v4083 = vadd.f32 %v4013, %v4024
  %v4084 = vadd.f32 %v4014, %v4024
  %v4085 = vadd.f32 %v4015, %v4024
  %v4086 = vadd.f32 %v4016, %v4024
  %v4087 = vadd.f32 %v4017, %v4024
  %v4088 = vadd.f32 %v4018, %v4024
  %v4089 = vadd.f32 %v4019, %v4024
  %v4090 = vmax.f32 %v4026, 0.0
  %v4091 = vmax.f32 %v4027, 0.0
  %v4092 = vmax.f32 %v4028, 0.0
  %v4093 = vmax.f32 %v4029, 0.0
  %v4094 = vmax.f32 %v4030, 0.0
  %v4095 = vmax.f32 %v4031, 0.0
  %v4096 = vmax.f32 %v4032, 0.0
  %v4097 = vmax.f32 %v4033, 0.0
  %v4098 = vmax.f32 %v4034, 0.0
  %v4099 = vmax.f32 %v4035, 0.0
  %v4100 = vmax.f32 %v4036, 0.0
  %v4101 = vmax.f32 %v4037, 0.0
  %v4102 = vmax.f32 %v4038, 0.0
  %v4103 = vmax.f32 %v4039, 0.0
  %v4104 = vmax.f32 %v4040, 0.0
  %v4105 = vmax.f32 %v4041, 0.0
  %v4106 = vmax.f32 %v4042, 0.0
  %v4107 = vmax.f32 %v4043, 0.0
  %v4108 = vmax.f32 %v4044, 0.0
  %v4109 = vmax.f32 %v4045, 0.0
  %v4110 = vmax.f32 %v4046, 0.0
  %v4111 = vmax.f32 %v4047, 0.0
  %v4112 = vmax.f32 %v4048, 0.0
  %v4113 = vmax.f32 %v4049, 0.0
  %v4114 = vmax.f32 %v4050, 0.0
  %v4115 = vmax.f32 %v4051, 0.0
  %v4116 = vmax.f32 %v4052, 0.0
  %v4117 = vmax.f32 %v4053, 0.0
  %v4118 = vmax.f32 %v4054, 0.0
  %v4119 = vmax.f32 %v4055, 0.0
  %v4120 = vmax.f32 %v4056, 0.0
  %v4121 = vmax.f32 %v4057, 0.0
  %v4122 = vmax.f32 %v4058, 0.0
  %v4123 = vmax.f32 %v4059, 0.0
  %v4124 = vmax.f32 %v4060, 0.0
  %v4125 = vmax.f32 %v4061, 0.0
  %v4126 = vmax.f32 %v4062, 0.0
  %v4127 = vmax.f32 %v4063, 0.0
  %v4128 = vmax.f32 %v4064, 0.0
  %v4129 = vmax.f32 %v4065, 0.0
  %v4130 = vmax.f32 %v4066, 0.0
  %v4131 = vmax.f32 %v4067, 0.0
  %v4132 = vmax.f32 %v4068, 0.0
  %v4133 = vmax.f32 %v4069, 0.0
  %v4134 = vmax.f32 %v4070, 0.0
  %v4135 = vmax.f32 %v4071, 0.0
  %v4136 = vmax.f32 %v4072, 0.0
  %v4137 = vmax.f32 %v4073, 0.0
  %v4138 = vmax.f32 %v4074, 0.0
  %v4139 = vmax.f32 %v4075, 0.0
  %v4140 = vmax.f32 %v4076, 0.0
  %v4141 = vmax.f32 %v4077, 0.0
  %v4142 = vmax.f32 %v4078, 0.0
  %v4143 = vmax.f32 %v4079, 0.0
  %v4144 = vmax.f32 %v4080, 0.0
  %v4145 = vmax.f32 %v4081, 0.0
  %v4146 = vmax.f32 %v4082, 0.0
  %v4147 = vmax.f32 %v4083, 0.0
  %v4148 = vmax.f32 %v4084, 0.0
  %v4149 = vmax.f32 %v4085, 0.0
  %v4150 = vmax.f32 %v4086, 0.0
  %v4151 = vmax.f32 %v4087, 0.0
  %v4152 = vmax.f32 %v4088, 0.0
  %v4153 = vmax.f32 %v4089, 0.0
  %4154 = vst.msk [vmem:[#allocation3] sm:$0xff] %vm3610, 0.0
  %4155 = vst.msk [vmem:[#allocation3 + $0x8] sm:$0xff] %vm3610, 0.0
  %vm4156 = vcmask 58368
  %4157 = vst.msk [vmem:[#allocation3 + $0x10] sm:$0x3] %vm4156, 0.0
  %4158 = vst.msk [vmem:[#allocation3 + $0x1b0] sm:$0xff] %vm3610, 0.0
  %4159 = vst.msk [vmem:[#allocation3 + $0x1b8] sm:$0xff] %vm3610, 0.0
  %4160 = vst.msk [vmem:[#allocation3 + $0x1c0] sm:$0x3] %vm4156, 0.0
  %s4161 = scalar_lea.vmem [#allocation3], 408
  %4162 = vst.msk [vmem:[%s4161] sm:$0xff] %vm3610, 0.0
  %4163 = vst.msk [vmem:[%s4161 + $0x8] sm:$0xff] %vm3610, 0.0
  %4164 = vst.msk [vmem:[%s4161 + $0x10] sm:$0x3] %vm4156, 0.0
  %4165 = vst.msk [vmem:[%s4161 + $0x1b0] sm:$0xff] %vm3610, 0.0
  %4166 = vst.msk [vmem:[%s4161 + $0x1b8] sm:$0xff] %vm3610, 0.0
  %4167 = vst.msk [vmem:[%s4161 + $0x1c0] sm:$0x3] %vm4156, 0.0
  %vm4168 = vcmask 57344
  %4169 = vst.msk [vmem:[#allocation3] sm:$0x1] %vm4168, 0.0
  %4170 = vst.msk [vmem:[#allocation3 + $0x18] sm:$0x1] %vm4168, 0.0
  %4171 = vst.msk [vmem:[#allocation3 + $0x30] sm:$0x1] %vm4168, 0.0
  %4172 = vst.msk [vmem:[#allocation3 + $0x48] sm:$0x1] %vm4168, 0.0
  %4173 = vst.msk [vmem:[#allocation3 + $0x60] sm:$0x1] %vm4168, 0.0
  %4174 = vst.msk [vmem:[#allocation3 + $0x78] sm:$0x1] %vm4168, 0.0
  %4175 = vst.msk [vmem:[#allocation3 + $0x90] sm:$0x1] %vm4168, 0.0
  %4176 = vst.msk [vmem:[#allocation3 + $0xa8] sm:$0x1] %vm4168, 0.0
  %4177 = vst.msk [vmem:[#allocation3 + $0xc0] sm:$0x1] %vm4168, 0.0
  %4178 = vst.msk [vmem:[#allocation3 + $0xd8] sm:$0x1] %vm4168, 0.0
  %4179 = vst.msk [vmem:[#allocation3 + $0xf0] sm:$0x1] %vm4168, 0.0
  %4180 = vst.msk [vmem:[#allocation3 + $0x108] sm:$0x1] %vm4168, 0.0
  %4181 = vst.msk [vmem:[#allocation3 + $0x120] sm:$0x1] %vm4168, 0.0
  %4182 = vst.msk [vmem:[#allocation3 + $0x138] sm:$0x1] %vm4168, 0.0
  %4183 = vst.msk [vmem:[#allocation3 + $0x150] sm:$0x1] %vm4168, 0.0
  %4184 = vst.msk [vmem:[#allocation3 + $0x168] sm:$0x1] %vm4168, 0.0
  %4185 = vst.msk [vmem:[#allocation3 + $0x180] sm:$0x1] %vm4168, 0.0
  %4186 = vst.msk [vmem:[#allocation3 + $0x198] sm:$0x1] %vm4168, 0.0
  %4187 = vst.msk [vmem:[#allocation3 + $0x1b0] sm:$0x1] %vm4168, 0.0
  %4188 = vst.msk [vmem:[#allocation3 + $0x1c8] sm:$0x1] %vm4168, 0.0
  %4189 = vst.msk [vmem:[#allocation3 + $0x1e0] sm:$0x1] %vm4168, 0.0
  %4190 = vst.msk [vmem:[#allocation3 + $0x1f8] sm:$0x1] %vm4168, 0.0
  %4191 = vst.msk [vmem:[#allocation3 + $0x210] sm:$0x1] %vm4168, 0.0
  %4192 = vst.msk [vmem:[#allocation3 + $0x228] sm:$0x1] %vm4168, 0.0
  %4193 = vst.msk [vmem:[#allocation3 + $0x240] sm:$0x1] %vm4168, 0.0
  %4194 = vst.msk [vmem:[#allocation3 + $0x258] sm:$0x1] %vm4168, 0.0
  %4195 = vst.msk [vmem:[#allocation3 + $0x270] sm:$0x1] %vm4168, 0.0
  %4196 = vst.msk [vmem:[#allocation3 + $0x288] sm:$0x1] %vm4168, 0.0
  %4197 = vst.msk [vmem:[#allocation3 + $0x2a0] sm:$0x1] %vm4168, 0.0
  %4198 = vst.msk [vmem:[#allocation3 + $0x2b8] sm:$0x1] %vm4168, 0.0
  %4199 = vst.msk [vmem:[#allocation3 + $0x2d0] sm:$0x1] %vm4168, 0.0
  %4200 = vst.msk [vmem:[#allocation3 + $0x2e8] sm:$0x1] %vm4168, 0.0
  %4201 = vst.msk [vmem:[#allocation3 + $0x300] sm:$0x1] %vm4168, 0.0
  %4202 = vst.msk [vmem:[#allocation3 + $0x318] sm:$0x1] %vm4168, 0.0
  %4203 = vst.msk [vmem:[#allocation3 + $0x330] sm:$0x1] %vm4168, 0.0
  %4204 = vst.msk [vmem:[#allocation3 + $0x348] sm:$0x1] %vm4168, 0.0
  %4205 = vst.msk [vmem:[#allocation3 + $0x11] sm:$0x1] %vm4168, 0.0
  %4206 = vst.msk [vmem:[#allocation3 + $0x29] sm:$0x1] %vm4168, 0.0
  %4207 = vst.msk [vmem:[#allocation3 + $0x41] sm:$0x1] %vm4168, 0.0
  %4208 = vst.msk [vmem:[#allocation3 + $0x59] sm:$0x1] %vm4168, 0.0
  %4209 = vst.msk [vmem:[#allocation3 + $0x71] sm:$0x1] %vm4168, 0.0
  %4210 = vst.msk [vmem:[#allocation3 + $0x89] sm:$0x1] %vm4168, 0.0
  %4211 = vst.msk [vmem:[#allocation3 + $0xa1] sm:$0x1] %vm4168, 0.0
  %4212 = vst.msk [vmem:[#allocation3 + $0xb9] sm:$0x1] %vm4168, 0.0
  %4213 = vst.msk [vmem:[#allocation3 + $0xd1] sm:$0x1] %vm4168, 0.0
  %4214 = vst.msk [vmem:[#allocation3 + $0xe9] sm:$0x1] %vm4168, 0.0
  %4215 = vst.msk [vmem:[#allocation3 + $0x101] sm:$0x1] %vm4168, 0.0
  %4216 = vst.msk [vmem:[#allocation3 + $0x119] sm:$0x1] %vm4168, 0.0
  %4217 = vst.msk [vmem:[#allocation3 + $0x131] sm:$0x1] %vm4168, 0.0
  %4218 = vst.msk [vmem:[#allocation3 + $0x149] sm:$0x1] %vm4168, 0.0
  %4219 = vst.msk [vmem:[#allocation3 + $0x161] sm:$0x1] %vm4168, 0.0
  %4220 = vst.msk [vmem:[#allocation3 + $0x179] sm:$0x1] %vm4168, 0.0
  %4221 = vst.msk [vmem:[#allocation3 + $0x191] sm:$0x1] %vm4168, 0.0
  %4222 = vst.msk [vmem:[#allocation3 + $0x1a9] sm:$0x1] %vm4168, 0.0
  %4223 = vst.msk [vmem:[#allocation3 + $0x1c1] sm:$0x1] %vm4168, 0.0
  %4224 = vst.msk [vmem:[#allocation3 + $0x1d9] sm:$0x1] %vm4168, 0.0
  %4225 = vst.msk [vmem:[#allocation3 + $0x1f1] sm:$0x1] %vm4168, 0.0
  %4226 = vst.msk [vmem:[#allocation3 + $0x209] sm:$0x1] %vm4168, 0.0
  %4227 = vst.msk [vmem:[#allocation3 + $0x221] sm:$0x1] %vm4168, 0.0
  %4228 = vst.msk [vmem:[#allocation3 + $0x239] sm:$0x1] %vm4168, 0.0
  %4229 = vst.msk [vmem:[#allocation3 + $0x251] sm:$0x1] %vm4168, 0.0
  %4230 = vst.msk [vmem:[#allocation3 + $0x269] sm:$0x1] %vm4168, 0.0
  %4231 = vst.msk [vmem:[#allocation3 + $0x281] sm:$0x1] %vm4168, 0.0
  %4232 = vst.msk [vmem:[#allocation3 + $0x299] sm:$0x1] %vm4168, 0.0
  %4233 = vst.msk [vmem:[#allocation3 + $0x2b1] sm:$0x1] %vm4168, 0.0
  %4234 = vst.msk [vmem:[#allocation3 + $0x2c9] sm:$0x1] %vm4168, 0.0
  %4235 = vst.msk [vmem:[#allocation3 + $0x2e1] sm:$0x1] %vm4168, 0.0
  %4236 = vst.msk [vmem:[#allocation3 + $0x2f9] sm:$0x1] %vm4168, 0.0
  %4237 = vst.msk [vmem:[#allocation3 + $0x311] sm:$0x1] %vm4168, 0.0
  %4238 = vst.msk [vmem:[#allocation3 + $0x329] sm:$0x1] %vm4168, 0.0
  %4239 = vst.msk [vmem:[#allocation3 + $0x341] sm:$0x1] %vm4168, 0.0
  %4240 = vst.msk [vmem:[#allocation3 + $0x359] sm:$0x1] %vm4168, 0.0
  %s4241 = scalar_lea.vmem [#allocation3], 24
  %4242 = vst.msk [vmem:[%s4241 + $0x1] sm:$0xff] %vm3610, %v4090
  %4243 = vst.msk [vmem:[%s4241 + $0x9] sm:$0xff] %vm3610, %v4091
  %4244 = vst.msk [vmem:[%s4241 + $0x19] sm:$0xff] %vm3610, %v4092
  %4245 = vst.msk [vmem:[%s4241 + $0x21] sm:$0xff] %vm3610, %v4093
  %4246 = vst.msk [vmem:[%s4241 + $0x31] sm:$0xff] %vm3610, %v4094
  %4247 = vst.msk [vmem:[%s4241 + $0x39] sm:$0xff] %vm3610, %v4095
  %4248 = vst.msk [vmem:[%s4241 + $0x49] sm:$0xff] %vm3610, %v4096
  %4249 = vst.msk [vmem:[%s4241 + $0x51] sm:$0xff] %vm3610, %v4097
  %4250 = vst.msk [vmem:[%s4241 + $0x61] sm:$0xff] %vm3610, %v4098
  %4251 = vst.msk [vmem:[%s4241 + $0x69] sm:$0xff] %vm3610, %v4099
  %4252 = vst.msk [vmem:[%s4241 + $0x79] sm:$0xff] %vm3610, %v4100
  %4253 = vst.msk [vmem:[%s4241 + $0x81] sm:$0xff] %vm3610, %v4101
  %4254 = vst.msk [vmem:[%s4241 + $0x91] sm:$0xff] %vm3610, %v4102
  %4255 = vst.msk [vmem:[%s4241 + $0x99] sm:$0xff] %vm3610, %v4103
  %4256 = vst.msk [vmem:[%s4241 + $0xa9] sm:$0xff] %vm3610, %v4104
  %4257 = vst.msk [vmem:[%s4241 + $0xb1] sm:$0xff] %vm3610, %v4105
  %4258 = vst.msk [vmem:[%s4241 + $0xc1] sm:$0xff] %vm3610, %v4106
  %4259 = vst.msk [vmem:[%s4241 + $0xc9] sm:$0xff] %vm3610, %v4107
  %4260 = vst.msk [vmem:[%s4241 + $0xd9] sm:$0xff] %vm3610, %v4108
  %4261 = vst.msk [vmem:[%s4241 + $0xe1] sm:$0xff] %vm3610, %v4109
  %4262 = vst.msk [vmem:[%s4241 + $0xf1] sm:$0xff] %vm3610, %v4110
  %4263 = vst.msk [vmem:[%s4241 + $0xf9] sm:$0xff] %vm3610, %v4111
  %4264 = vst.msk [vmem:[%s4241 + $0x109] sm:$0xff] %vm3610, %v4112
  %4265 = vst.msk [vmem:[%s4241 + $0x111] sm:$0xff] %vm3610, %v4113
  %4266 = vst.msk [vmem:[%s4241 + $0x121] sm:$0xff] %vm3610, %v4114
  %4267 = vst.msk [vmem:[%s4241 + $0x129] sm:$0xff] %vm3610, %v4115
  %4268 = vst.msk [vmem:[%s4241 + $0x139] sm:$0xff] %vm3610, %v4116
  %4269 = vst.msk [vmem:[%s4241 + $0x141] sm:$0xff] %vm3610, %v4117
  %4270 = vst.msk [vmem:[%s4241 + $0x151] sm:$0xff] %vm3610, %v4118
  %4271 = vst.msk [vmem:[%s4241 + $0x159] sm:$0xff] %vm3610, %v4119
  %4272 = vst.msk [vmem:[%s4241 + $0x169] sm:$0xff] %vm3610, %v4120
  %4273 = vst.msk [vmem:[%s4241 + $0x171] sm:$0xff] %vm3610, %v4121
  %4274 = vst.msk [vmem:[%s4241 + $0x1b1] sm:$0xff] %vm3610, %v4122
  %4275 = vst.msk [vmem:[%s4241 + $0x1b9] sm:$0xff] %vm3610, %v4123
  %4276 = vst.msk [vmem:[%s4241 + $0x1c9] sm:$0xff] %vm3610, %v4124
  %4277 = vst.msk [vmem:[%s4241 + $0x1d1] sm:$0xff] %vm3610, %v4125
  %4278 = vst.msk [vmem:[%s4241 + $0x1e1] sm:$0xff] %vm3610, %v4126
  %4279 = vst.msk [vmem:[%s4241 + $0x1e9] sm:$0xff] %vm3610, %v4127
  %4280 = vst.msk [vmem:[%s4241 + $0x1f9] sm:$0xff] %vm3610, %v4128
  %4281 = vst.msk [vmem:[%s4241 + $0x201] sm:$0xff] %vm3610, %v4129
  %4282 = vst.msk [vmem:[%s4241 + $0x211] sm:$0xff] %vm3610, %v4130
  %4283 = vst.msk [vmem:[%s4241 + $0x219] sm:$0xff] %vm3610, %v4131
  %4284 = vst.msk [vmem:[%s4241 + $0x229] sm:$0xff] %vm3610, %v4132
  %4285 = vst.msk [vmem:[%s4241 + $0x231] sm:$0xff] %vm3610, %v4133
  %4286 = vst.msk [vmem:[%s4241 + $0x241] sm:$0xff] %vm3610, %v4134
  %4287 = vst.msk [vmem:[%s4241 + $0x249] sm:$0xff] %vm3610, %v4135
  %4288 = vst.msk [vmem:[%s4241 + $0x259] sm:$0xff] %vm3610, %v4136
  %4289 = vst.msk [vmem:[%s4241 + $0x261] sm:$0xff] %vm3610, %v4137
  %4290 = vst.msk [vmem:[%s4241 + $0x271] sm:$0xff] %vm3610, %v4138
  %4291 = vst.msk [vmem:[%s4241 + $0x279] sm:$0xff] %vm3610, %v4139
  %4292 = vst.msk [vmem:[%s4241 + $0x289] sm:$0xff] %vm3610, %v4140
  %4293 = vst.msk [vmem:[%s4241 + $0x291] sm:$0xff] %vm3610, %v4141
  %4294 = vst.msk [vmem:[%s4241 + $0x2a1] sm:$0xff] %vm3610, %v4142
  %4295 = vst.msk [vmem:[%s4241 + $0x2a9] sm:$0xff] %vm3610, %v4143
  %4296 = vst.msk [vmem:[%s4241 + $0x2b9] sm:$0xff] %vm3610, %v4144
  %4297 = vst.msk [vmem:[%s4241 + $0x2c1] sm:$0xff] %vm3610, %v4145
  %4298 = vst.msk [vmem:[%s4241 + $0x2d1] sm:$0xff] %vm3610, %v4146
  %4299 = vst.msk [vmem:[%s4241 + $0x2d9] sm:$0xff] %vm3610, %v4147
  %4300 = vst.msk [vmem:[%s4241 + $0x2e9] sm:$0xff] %vm3610, %v4148
  %4301 = vst.msk [vmem:[%s4241 + $0x2f1] sm:$0xff] %vm3610, %v4149
  %4302 = vst.msk [vmem:[%s4241 + $0x301] sm:$0xff] %vm3610, %v4150
  %4303 = vst.msk [vmem:[%s4241 + $0x309] sm:$0xff] %vm3610, %v4151
  %4304 = vst.msk [vmem:[%s4241 + $0x319] sm:$0xff] %vm3610, %v4152
  %4305 = vst.msk [vmem:[%s4241 + $0x321] sm:$0xff] %vm3610, %v4153
  %v4306 = vld [vmem:[#allocation3] sm:$0xff]
  %v4307 = vld [vmem:[#allocation3 + $0x8] sm:$0xff]
  %v4308 = vld [vmem:[#allocation3 + $0x10] sm:$0x3]
  %v4309 = vld [vmem:[#allocation3 + $0x18] sm:$0xff]
  %v4310 = vld [vmem:[#allocation3 + $0x20] sm:$0xff]
  %v4311 = vld [vmem:[#allocation3 + $0x28] sm:$0x3]
  %v4312 = vld [vmem:[#allocation3 + $0x30] sm:$0xff]
  %v4313 = vld [vmem:[#allocation3 + $0x38] sm:$0xff]
  %v4314 = vld [vmem:[#allocation3 + $0x40] sm:$0x3]
  %v4315 = vld [vmem:[#allocation3 + $0x48] sm:$0xff]
  %v4316 = vld [vmem:[#allocation3 + $0x50] sm:$0xff]
  %v4317 = vld [vmem:[#allocation3 + $0x58] sm:$0x3]
  %v4318 = vld [vmem:[#allocation3 + $0x60] sm:$0xff]
  %v4319 = vld [vmem:[#allocation3 + $0x68] sm:$0xff]
  %v4320 = vld [vmem:[#allocation3 + $0x70] sm:$0x3]
  %v4321 = vld [vmem:[#allocation3 + $0x78] sm:$0xff]
  %v4322 = vld [vmem:[#allocation3 + $0x80] sm:$0xff]
  %v4323 = vld [vmem:[#allocation3 + $0x88] sm:$0x3]
  %v4324 = vld [vmem:[#allocation3 + $0x90] sm:$0xff]
  %v4325 = vld [vmem:[#allocation3 + $0x98] sm:$0xff]
  %v4326 = vld [vmem:[#allocation3 + $0xa0] sm:$0x3]
  %v4327 = vld [vmem:[#allocation3 + $0xa8] sm:$0xff]
  %v4328 = vld [vmem:[#allocation3 + $0xb0] sm:$0xff]
  %v4329 = vld [vmem:[#allocation3 + $0xb8] sm:$0x3]
  %v4330 = vld [vmem:[#allocation3 + $0xc0] sm:$0xff]
  %v4331 = vld [vmem:[#allocation3 + $0xc8] sm:$0xff]
  %v4332 = vld [vmem:[#allocation3 + $0xd0] sm:$0x3]
  %v4333 = vld [vmem:[#allocation3 + $0xd8] sm:$0xff]
  %v4334 = vld [vmem:[#allocation3 + $0xe0] sm:$0xff]
  %v4335 = vld [vmem:[#allocation3 + $0xe8] sm:$0x3]
  %v4336 = vld [vmem:[#allocation3 + $0xf0] sm:$0xff]
  %v4337 = vld [vmem:[#allocation3 + $0xf8] sm:$0xff]
  %v4338 = vld [vmem:[#allocation3 + $0x100] sm:$0x3]
  %v4339 = vld [vmem:[#allocation3 + $0x108] sm:$0xff]
  %v4340 = vld [vmem:[#allocation3 + $0x110] sm:$0xff]
  %v4341 = vld [vmem:[#allocation3 + $0x118] sm:$0x3]
  %v4342 = vld [vmem:[#allocation3 + $0x120] sm:$0xff]
  %v4343 = vld [vmem:[#allocation3 + $0x128] sm:$0xff]
  %v4344 = vld [vmem:[#allocation3 + $0x130] sm:$0x3]
  %v4345 = vld [vmem:[#allocation3 + $0x138] sm:$0xff]
  %v4346 = vld [vmem:[#allocation3 + $0x140] sm:$0xff]
  %v4347 = vld [vmem:[#allocation3 + $0x148] sm:$0x3]
  %v4348 = vld [vmem:[#allocation3 + $0x150] sm:$0xff]
  %v4349 = vld [vmem:[#allocation3 + $0x158] sm:$0xff]
  %v4350 = vld [vmem:[#allocation3 + $0x160] sm:$0x3]
  %v4351 = vld [vmem:[#allocation3 + $0x168] sm:$0xff]
  %v4352 = vld [vmem:[#allocation3 + $0x170] sm:$0xff]
  %v4353 = vld [vmem:[#allocation3 + $0x178] sm:$0x3]
  %v4354 = vld [vmem:[#allocation3 + $0x180] sm:$0xff]
  %v4355 = vld [vmem:[#allocation3 + $0x188] sm:$0xff]
  %v4356 = vld [vmem:[#allocation3 + $0x190] sm:$0x3]
  %v4357 = vld [vmem:[#allocation3 + $0x198] sm:$0xff]
  %v4358 = vld [vmem:[#allocation3 + $0x1a0] sm:$0xff]
  %v4359 = vld [vmem:[#allocation3 + $0x1a8] sm:$0x3]
  %v4360 = vld [vmem:[#allocation3 + $0x1b0] sm:$0xff]
  %v4361 = vld [vmem:[#allocation3 + $0x1b8] sm:$0xff]
  %v4362 = vld [vmem:[#allocation3 + $0x1c0] sm:$0x3]
  %v4363 = vld [vmem:[#allocation3 + $0x1c8] sm:$0xff]
  %v4364 = vld [vmem:[#allocation3 + $0x1d0] sm:$0xff]
  %v4365 = vld [vmem:[#allocation3 + $0x1d8] sm:$0x3]
  %v4366 = vld [vmem:[#allocation3 + $0x1e0] sm:$0xff]
  %v4367 = vld [vmem:[#allocation3 + $0x1e8] sm:$0xff]
  %v4368 = vld [vmem:[#allocation3 + $0x1f0] sm:$0x3]
  %v4369 = vld [vmem:[#allocation3 + $0x1f8] sm:$0xff]
  %v4370 = vld [vmem:[#allocation3 + $0x200] sm:$0xff]
  %v4371 = vld [vmem:[#allocation3 + $0x208] sm:$0x3]
  %v4372 = vld [vmem:[#allocation3 + $0x210] sm:$0xff]
  %v4373 = vld [vmem:[#allocation3 + $0x218] sm:$0xff]
  %v4374 = vld [vmem:[#allocation3 + $0x220] sm:$0x3]
  %v4375 = vld [vmem:[#allocation3 + $0x228] sm:$0xff]
  %v4376 = vld [vmem:[#allocation3 + $0x230] sm:$0xff]
  %v4377 = vld [vmem:[#allocation3 + $0x238] sm:$0x3]
  %v4378 = vld [vmem:[#allocation3 + $0x240] sm:$0xff]
  %v4379 = vld [vmem:[#allocation3 + $0x248] sm:$0xff]
  %v4380 = vld [vmem:[#allocation3 + $0x250] sm:$0x3]
  %v4381 = vld [vmem:[#allocation3 + $0x258] sm:$0xff]
  %v4382 = vld [vmem:[#allocation3 + $0x260] sm:$0xff]
  %v4383 = vld [vmem:[#allocation3 + $0x268] sm:$0x3]
  %v4384 = vld [vmem:[#allocation3 + $0x270] sm:$0xff]
  %v4385 = vld [vmem:[#allocation3 + $0x278] sm:$0xff]
  %v4386 = vld [vmem:[#allocation3 + $0x280] sm:$0x3]
  %v4387 = vld [vmem:[#allocation3 + $0x288] sm:$0xff]
  %v4388 = vld [vmem:[#allocation3 + $0x290] sm:$0xff]
  %v4389 = vld [vmem:[#allocation3 + $0x298] sm:$0x3]
  %v4390 = vld [vmem:[#allocation3 + $0x2a0] sm:$0xff]
  %v4391 = vld [vmem:[#allocation3 + $0x2a8] sm:$0xff]
  %v4392 = vld [vmem:[#allocation3 + $0x2b0] sm:$0x3]
  %v4393 = vld [vmem:[#allocation3 + $0x2b8] sm:$0xff]
  %v4394 = vld [vmem:[#allocation3 + $0x2c0] sm:$0xff]
  %v4395 = vld [vmem:[#allocation3 + $0x2c8] sm:$0x3]
  %v4396 = vld [vmem:[#allocation3 + $0x2d0] sm:$0xff]
  %v4397 = vld [vmem:[#allocation3 + $0x2d8] sm:$0xff]
  %v4398 = vld [vmem:[#allocation3 + $0x2e0] sm:$0x3]
  %v4399 = vld [vmem:[#allocation3 + $0x2e8] sm:$0xff]
  %v4400 = vld [vmem:[#allocation3 + $0x2f0] sm:$0xff]
  %v4401 = vld [vmem:[#allocation3 + $0x2f8] sm:$0x3]
  %v4402 = vld [vmem:[#allocation3 + $0x300] sm:$0xff]
  %v4403 = vld [vmem:[#allocation3 + $0x308] sm:$0xff]
  %v4404 = vld [vmem:[#allocation3 + $0x310] sm:$0x3]
  %v4405 = vld [vmem:[#allocation3 + $0x318] sm:$0xff]
  %v4406 = vld [vmem:[#allocation3 + $0x320] sm:$0xff]
  %v4407 = vld [vmem:[#allocation3 + $0x328] sm:$0x3]
  %v4408 = vld [vmem:[#allocation3 + $0x330] sm:$0xff]
  %v4409 = vld [vmem:[#allocation3 + $0x338] sm:$0xff]
  %v4410 = vld [vmem:[#allocation3 + $0x340] sm:$0x3]
  %v4411 = vld [vmem:[#allocation3 + $0x348] sm:$0xff]
  %v4412 = vld [vmem:[#allocation3 + $0x350] sm:$0xff]
  %v4413 = vld [vmem:[#allocation3 + $0x358] sm:$0x3]
  %4414 = vst.msk [vmem:[#allocation5] sm:$0xff] %vm3610, %v4306
  %4415 = vst.msk [vmem:[#allocation5 + $0x8] sm:$0xff] %vm3610, %v4307
  %4416 = vst.msk [vmem:[#allocation5 + $0x10] sm:$0xff] %vm3610, %v4309
  %4417 = vst.msk [vmem:[#allocation5 + $0x18] sm:$0xff] %vm3610, %v4310
  %4418 = vst.msk [vmem:[#allocation5 + $0x20] sm:$0xff] %vm3610, %v4312
  %4419 = vst.msk [vmem:[#allocation5 + $0x28] sm:$0xff] %vm3610, %v4313
  %4420 = vst.msk [vmem:[#allocation5 + $0x30] sm:$0xff] %vm3610, %v4315
  %4421 = vst.msk [vmem:[#allocation5 + $0x38] sm:$0xff] %vm3610, %v4316
  %4422 = vst.msk [vmem:[#allocation5 + $0x40] sm:$0xff] %vm3610, %v4318
  %4423 = vst.msk [vmem:[#allocation5 + $0x48] sm:$0xff] %vm3610, %v4319
  %4424 = vst.msk [vmem:[#allocation5 + $0x50] sm:$0xff] %vm3610, %v4321
  %4425 = vst.msk [vmem:[#allocation5 + $0x58] sm:$0xff] %vm3610, %v4322
  %4426 = vst.msk [vmem:[#allocation5 + $0x60] sm:$0xff] %vm3610, %v4324
  %4427 = vst.msk [vmem:[#allocation5 + $0x68] sm:$0xff] %vm3610, %v4325
  %4428 = vst.msk [vmem:[#allocation5 + $0x70] sm:$0xff] %vm3610, %v4327
  %4429 = vst.msk [vmem:[#allocation5 + $0x78] sm:$0xff] %vm3610, %v4328
  %4430 = vst.msk [vmem:[#allocation5 + $0x80] sm:$0xff] %vm3610, %v4330
  %4431 = vst.msk [vmem:[#allocation5 + $0x88] sm:$0xff] %vm3610, %v4331
  %4432 = vst.msk [vmem:[#allocation5 + $0x90] sm:$0xff] %vm3610, %v4333
  %4433 = vst.msk [vmem:[#allocation5 + $0x98] sm:$0xff] %vm3610, %v4334
  %4434 = vst.msk [vmem:[#allocation5 + $0xa0] sm:$0xff] %vm3610, %v4336
  %4435 = vst.msk [vmem:[#allocation5 + $0xa8] sm:$0xff] %vm3610, %v4337
  %4436 = vst.msk [vmem:[#allocation5 + $0xb0] sm:$0xff] %vm3610, %v4339
  %4437 = vst.msk [vmem:[#allocation5 + $0xb8] sm:$0xff] %vm3610, %v4340
  %4438 = vst.msk [vmem:[#allocation5 + $0xc0] sm:$0xff] %vm3610, %v4342
  %4439 = vst.msk [vmem:[#allocation5 + $0xc8] sm:$0xff] %vm3610, %v4343
  %4440 = vst.msk [vmem:[#allocation5 + $0xd0] sm:$0xff] %vm3610, %v4345
  %4441 = vst.msk [vmem:[#allocation5 + $0xd8] sm:$0xff] %vm3610, %v4346
  %4442 = vst.msk [vmem:[#allocation5 + $0xe0] sm:$0xff] %vm3610, %v4348
  %4443 = vst.msk [vmem:[#allocation5 + $0xe8] sm:$0xff] %vm3610, %v4349
  %4444 = vst.msk [vmem:[#allocation5 + $0xf0] sm:$0xff] %vm3610, %v4351
  %4445 = vst.msk [vmem:[#allocation5 + $0xf8] sm:$0xff] %vm3610, %v4352
  %4446 = vst.msk [vmem:[#allocation5 + $0x100] sm:$0xff] %vm3610, %v4360
  %4447 = vst.msk [vmem:[#allocation5 + $0x108] sm:$0xff] %vm3610, %v4361
  %4448 = vst.msk [vmem:[#allocation5 + $0x110] sm:$0xff] %vm3610, %v4363
  %4449 = vst.msk [vmem:[#allocation5 + $0x118] sm:$0xff] %vm3610, %v4364
  %4450 = vst.msk [vmem:[#allocation5 + $0x120] sm:$0xff] %vm3610, %v4366
  %4451 = vst.msk [vmem:[#allocation5 + $0x128] sm:$0xff] %vm3610, %v4367
  %4452 = vst.msk [vmem:[#allocation5 + $0x130] sm:$0xff] %vm3610, %v4369
  %4453 = vst.msk [vmem:[#allocation5 + $0x138] sm:$0xff] %vm3610, %v4370
  %4454 = vst.msk [vmem:[#allocation5 + $0x140] sm:$0xff] %vm3610, %v4372
  %4455 = vst.msk [vmem:[#allocation5 + $0x148] sm:$0xff] %vm3610, %v4373
  %4456 = vst.msk [vmem:[#allocation5 + $0x150] sm:$0xff] %vm3610, %v4375
  %4457 = vst.msk [vmem:[#allocation5 + $0x158] sm:$0xff] %vm3610, %v4376
  %4458 = vst.msk [vmem:[#allocation5 + $0x160] sm:$0xff] %vm3610, %v4378
  %4459 = vst.msk [vmem:[#allocation5 + $0x168] sm:$0xff] %vm3610, %v4379
  %4460 = vst.msk [vmem:[#allocation5 + $0x170] sm:$0xff] %vm3610, %v4381
  %4461 = vst.msk [vmem:[#allocation5 + $0x178] sm:$0xff] %vm3610, %v4382
  %4462 = vst.msk [vmem:[#allocation5 + $0x180] sm:$0xff] %vm3610, %v4384
  %4463 = vst.msk [vmem:[#allocation5 + $0x188] sm:$0xff] %vm3610, %v4385
  %4464 = vst.msk [vmem:[#allocation5 + $0x190] sm:$0xff] %vm3610, %v4387
  %4465 = vst.msk [vmem:[#allocation5 + $0x198] sm:$0xff] %vm3610, %v4388
  %4466 = vst.msk [vmem:[#allocation5 + $0x1a0] sm:$0xff] %vm3610, %v4390
  %4467 = vst.msk [vmem:[#allocation5 + $0x1a8] sm:$0xff] %vm3610, %v4391
  %4468 = vst.msk [vmem:[#allocation5 + $0x1b0] sm:$0xff] %vm3610, %v4393
  %4469 = vst.msk [vmem:[#allocation5 + $0x1b8] sm:$0xff] %vm3610, %v4394
  %4470 = vst.msk [vmem:[#allocation5 + $0x1c0] sm:$0xff] %vm3610, %v4396
  %4471 = vst.msk [vmem:[#allocation5 + $0x1c8] sm:$0xff] %vm3610, %v4397
  %4472 = vst.msk [vmem:[#allocation5 + $0x1d0] sm:$0xff] %vm3610, %v4399
  %4473 = vst.msk [vmem:[#allocation5 + $0x1d8] sm:$0xff] %vm3610, %v4400
  %4474 = vst.msk [vmem:[#allocation5 + $0x1e0] sm:$0xff] %vm3610, %v4402
  %4475 = vst.msk [vmem:[#allocation5 + $0x1e8] sm:$0xff] %vm3610, %v4403
  %4476 = vst.msk [vmem:[#allocation5 + $0x1f0] sm:$0xff] %vm3610, %v4405
  %4477 = vst.msk [vmem:[#allocation5 + $0x1f8] sm:$0xff] %vm3610, %v4406
  %v4574 = vrot.slane %v4306, 1
  %v4575 = vrot.slane %v4307, 1
  %v4576 = vsel %vm520, %v4574, %v4575
  %v4577 = vrot.slane %v4308, 1
  %v4578 = vsel %vm520, %v4575, %v4577
  %v4579 = vrot.slane %v4309, 1
  %v4580 = vrot.slane %v4310, 1
  %v4581 = vsel %vm520, %v4579, %v4580
  %v4582 = vrot.slane %v4311, 1
  %v4583 = vsel %vm520, %v4580, %v4582
  %v4584 = vrot.slane %v4312, 1
  %v4585 = vrot.slane %v4313, 1
  %v4586 = vsel %vm520, %v4584, %v4585
  %v4587 = vrot.slane %v4314, 1
  %v4588 = vsel %vm520, %v4585, %v4587
  %v4589 = vrot.slane %v4315, 1
  %v4590 = vrot.slane %v4316, 1
  %v4591 = vsel %vm520, %v4589, %v4590
  %v4592 = vrot.slane %v4317, 1
  %v4593 = vsel %vm520, %v4590, %v4592
  %v4594 = vrot.slane %v4318, 1
  %v4595 = vrot.slane %v4319, 1
  %v4596 = vsel %vm520, %v4594, %v4595
  %v4597 = vrot.slane %v4320, 1
  %v4598 = vsel %vm520, %v4595, %v4597
  %v4599 = vrot.slane %v4321, 1
  %v4600 = vrot.slane %v4322, 1
  %v4601 = vsel %vm520, %v4599, %v4600
  %v4602 = vrot.slane %v4323, 1
  %v4603 = vsel %vm520, %v4600, %v4602
  %v4604 = vrot.slane %v4324, 1
  %v4605 = vrot.slane %v4325, 1
  %v4606 = vsel %vm520, %v4604, %v4605
  %v4607 = vrot.slane %v4326, 1
  %v4608 = vsel %vm520, %v4605, %v4607
  %v4609 = vrot.slane %v4327, 1
  %v4610 = vrot.slane %v4328, 1
  %v4611 = vsel %vm520, %v4609, %v4610
  %v4612 = vrot.slane %v4329, 1
  %v4613 = vsel %vm520, %v4610, %v4612
  %v4614 = vrot.slane %v4330, 1
  %v4615 = vrot.slane %v4331, 1
  %v4616 = vsel %vm520, %v4614, %v4615
  %v4617 = vrot.slane %v4332, 1
  %v4618 = vsel %vm520, %v4615, %v4617
  %v4619 = vrot.slane %v4333, 1
  %v4620 = vrot.slane %v4334, 1
  %v4621 = vsel %vm520, %v4619, %v4620
  %v4622 = vrot.slane %v4335, 1
  %v4623 = vsel %vm520, %v4620, %v4622
  %v4624 = vrot.slane %v4336, 1
  %v4625 = vrot.slane %v4337, 1
  %v4626 = vsel %vm520, %v4624, %v4625
  %v4627 = vrot.slane %v4338, 1
  %v4628 = vsel %vm520, %v4625, %v4627
  %v4629 = vrot.slane %v4339, 1
  %v4630 = vrot.slane %v4340, 1
  %v4631 = vsel %vm520, %v4629, %v4630
  %v4632 = vrot.slane %v4341, 1
  %v4633 = vsel %vm520, %v4630, %v4632
  %v4634 = vrot.slane %v4342, 1
  %v4635 = vrot.slane %v4343, 1
  %v4636 = vsel %vm520, %v4634, %v4635
  %v4637 = vrot.slane %v4344, 1
  %v4638 = vsel %vm520, %v4635, %v4637
  %v4639 = vrot.slane %v4345, 1
  %v4640 = vrot.slane %v4346, 1
  %v4641 = vsel %vm520, %v4639, %v4640
  %v4642 = vrot.slane %v4347, 1
  %v4643 = vsel %vm520, %v4640, %v4642
  %v4644 = vrot.slane %v4348, 1
  %v4645 = vrot.slane %v4349, 1
  %v4646 = vsel %vm520, %v4644, %v4645
  %v4647 = vrot.slane %v4350, 1
  %v4648 = vsel %vm520, %v4645, %v4647
  %v4649 = vrot.slane %v4351, 1
  %v4650 = vrot.slane %v4352, 1
  %v4651 = vsel %vm520, %v4649, %v4650
  %v4652 = vrot.slane %v4353, 1
  %v4653 = vsel %vm520, %v4650, %v4652
  %v4654 = vrot.slane %v4360, 1
  %v4655 = vrot.slane %v4361, 1
  %v4656 = vsel %vm520, %v4654, %v4655
  %v4657 = vrot.slane %v4362, 1
  %v4658 = vsel %vm520, %v4655, %v4657
  %v4659 = vrot.slane %v4363, 1
  %v4660 = vrot.slane %v4364, 1
  %v4661 = vsel %vm520, %v4659, %v4660
  %v4662 = vrot.slane %v4365, 1
  %v4663 = vsel %vm520, %v4660, %v4662
  %v4664 = vrot.slane %v4366, 1
  %v4665 = vrot.slane %v4367, 1
  %v4666 = vsel %vm520, %v4664, %v4665
  %v4667 = vrot.slane %v4368, 1
  %v4668 = vsel %vm520, %v4665, %v4667
  %v4669 = vrot.slane %v4369, 1
  %v4670 = vrot.slane %v4370, 1
  %v4671 = vsel %vm520, %v4669, %v4670
  %v4672 = vrot.slane %v4371, 1
  %v4673 = vsel %vm520, %v4670, %v4672
  %v4674 = vrot.slane %v4372, 1
  %v4675 = vrot.slane %v4373, 1
  %v4676 = vsel %vm520, %v4674, %v4675
  %v4677 = vrot.slane %v4374, 1
  %v4678 = vsel %vm520, %v4675, %v4677
  %v4679 = vrot.slane %v4375, 1
  %v4680 = vrot.slane %v4376, 1
  %v4681 = vsel %vm520, %v4679, %v4680
  %v4682 = vrot.slane %v4377, 1
  %v4683 = vsel %vm520, %v4680, %v4682
  %v4684 = vrot.slane %v4378, 1
  %v4685 = vrot.slane %v4379, 1
  %v4686 = vsel %vm520, %v4684, %v4685
  %v4687 = vrot.slane %v4380, 1
  %v4688 = vsel %vm520, %v4685, %v4687
  %v4689 = vrot.slane %v4381, 1
  %v4690 = vrot.slane %v4382, 1
  %v4691 = vsel %vm520, %v4689, %v4690
  %v4692 = vrot.slane %v4383, 1
  %v4693 = vsel %vm520, %v4690, %v4692
  %v4694 = vrot.slane %v4384, 1
  %v4695 = vrot.slane %v4385, 1
  %v4696 = vsel %vm520, %v4694, %v4695
  %v4697 = vrot.slane %v4386, 1
  %v4698 = vsel %vm520, %v4695, %v4697
  %v4699 = vrot.slane %v4387, 1
  %v4700 = vrot.slane %v4388, 1
  %v4701 = vsel %vm520, %v4699, %v4700
  %v4702 = vrot.slane %v4389, 1
  %v4703 = vsel %vm520, %v4700, %v4702
  %v4704 = vrot.slane %v4390, 1
  %v4705 = vrot.slane %v4391, 1
  %v4706 = vsel %vm520, %v4704, %v4705
  %v4707 = vrot.slane %v4392, 1
  %v4708 = vsel %vm520, %v4705, %v4707
  %v4709 = vrot.slane %v4393, 1
  %v4710 = vrot.slane %v4394, 1
  %v4711 = vsel %vm520, %v4709, %v4710
  %v4712 = vrot.slane %v4395, 1
  %v4713 = vsel %vm520, %v4710, %v4712
  %v4714 = vrot.slane %v4396, 1
  %v4715 = vrot.slane %v4397, 1
  %v4716 = vsel %vm520, %v4714, %v4715
  %v4717 = vrot.slane %v4398, 1
  %v4718 = vsel %vm520, %v4715, %v4717
  %v4719 = vrot.slane %v4399, 1
  %v4720 = vrot.slane %v4400, 1
  %v4721 = vsel %vm520, %v4719, %v4720
  %v4722 = vrot.slane %v4401, 1
  %v4723 = vsel %vm520, %v4720, %v4722
  %v4724 = vrot.slane %v4402, 1
  %v4725 = vrot.slane %v4403, 1
  %v4726 = vsel %vm520, %v4724, %v4725
  %v4727 = vrot.slane %v4404, 1
  %v4728 = vsel %vm520, %v4725, %v4727
  %v4729 = vrot.slane %v4405, 1
  %v4730 = vrot.slane %v4406, 1
  %v4731 = vsel %vm520, %v4729, %v4730
  %v4732 = vrot.slane %v4407, 1
  %v4733 = vsel %vm520, %v4730, %v4732
  %4734 = vrot.lane.b32.xlu0 %v4576, 8
  %v4735 = vpop.permute.xlu0 %4734
  %4736 = vrot.lane.b32.xlu0 %v4578, 8
  %v4737 = vpop.permute.xlu0 %4736
  %4738 = vrot.lane.b32.xlu0 %v4581, 8
  %v4739 = vpop.permute.xlu0 %4738
  %4740 = vrot.lane.b32.xlu0 %v4583, 8
  %v4741 = vpop.permute.xlu0 %4740
  %4742 = vrot.lane.b32.xlu0 %v4586, 8
  %v4743 = vpop.permute.xlu0 %4742
  %4744 = vrot.lane.b32.xlu0 %v4588, 8
  %v4745 = vpop.permute.xlu0 %4744
  %4746 = vrot.lane.b32.xlu0 %v4591, 8
  %v4747 = vpop.permute.xlu0 %4746
  %4748 = vrot.lane.b32.xlu0 %v4593, 8
  %v4749 = vpop.permute.xlu0 %4748
  %4750 = vrot.lane.b32.xlu0 %v4596, 8
  %v4751 = vpop.permute.xlu0 %4750
  %4752 = vrot.lane.b32.xlu0 %v4598, 8
  %v4753 = vpop.permute.xlu0 %4752
  %4754 = vrot.lane.b32.xlu0 %v4601, 8
  %v4755 = vpop.permute.xlu0 %4754
  %4756 = vrot.lane.b32.xlu0 %v4603, 8
  %v4757 = vpop.permute.xlu0 %4756
  %4758 = vrot.lane.b32.xlu0 %v4606, 8
  %v4759 = vpop.permute.xlu0 %4758
  %4760 = vrot.lane.b32.xlu0 %v4608, 8
  %v4761 = vpop.permute.xlu0 %4760
  %4762 = vrot.lane.b32.xlu0 %v4611, 8
  %v4763 = vpop.permute.xlu0 %4762
  %4764 = vrot.lane.b32.xlu0 %v4613, 8
  %v4765 = vpop.permute.xlu0 %4764
  %4766 = vrot.lane.b32.xlu0 %v4616, 8
  %v4767 = vpop.permute.xlu0 %4766
  %4768 = vrot.lane.b32.xlu0 %v4618, 8
  %v4769 = vpop.permute.xlu0 %4768
  %4770 = vrot.lane.b32.xlu0 %v4621, 8
  %v4771 = vpop.permute.xlu0 %4770
  %4772 = vrot.lane.b32.xlu0 %v4623, 8
  %v4773 = vpop.permute.xlu0 %4772
  %4774 = vrot.lane.b32.xlu0 %v4626, 8
  %v4775 = vpop.permute.xlu0 %4774
  %4776 = vrot.lane.b32.xlu0 %v4628, 8
  %v4777 = vpop.permute.xlu0 %4776
  %4778 = vrot.lane.b32.xlu0 %v4631, 8
  %v4779 = vpop.permute.xlu0 %4778
  %4780 = vrot.lane.b32.xlu0 %v4633, 8
  %v4781 = vpop.permute.xlu0 %4780
  %4782 = vrot.lane.b32.xlu0 %v4636, 8
  %v4783 = vpop.permute.xlu0 %4782
  %4784 = vrot.lane.b32.xlu0 %v4638, 8
  %v4785 = vpop.permute.xlu0 %4784
  %4786 = vrot.lane.b32.xlu0 %v4641, 8
  %v4787 = vpop.permute.xlu0 %4786
  %4788 = vrot.lane.b32.xlu0 %v4643, 8
  %v4789 = vpop.permute.xlu0 %4788
  %4790 = vrot.lane.b32.xlu0 %v4646, 8
  %v4791 = vpop.permute.xlu0 %4790
  %4792 = vrot.lane.b32.xlu0 %v4648, 8
  %v4793 = vpop.permute.xlu0 %4792
  %4794 = vrot.lane.b32.xlu0 %v4651, 8
  %v4795 = vpop.permute.xlu0 %4794
  %4796 = vrot.lane.b32.xlu0 %v4653, 8
  %v4797 = vpop.permute.xlu0 %4796
  %4798 = vrot.lane.b32.xlu0 %v4656, 8
  %v4799 = vpop.permute.xlu0 %4798
  %4800 = vrot.lane.b32.xlu0 %v4658, 8
  %v4801 = vpop.permute.xlu0 %4800
  %4802 = vrot.lane.b32.xlu0 %v4661, 8
  %v4803 = vpop.permute.xlu0 %4802
  %4804 = vrot.lane.b32.xlu0 %v4663, 8
  %v4805 = vpop.permute.xlu0 %4804
  %4806 = vrot.lane.b32.xlu0 %v4666, 8
  %v4807 = vpop.permute.xlu0 %4806
  %4808 = vrot.lane.b32.xlu0 %v4668, 8
  %v4809 = vpop.permute.xlu0 %4808
  %4810 = vrot.lane.b32.xlu0 %v4671, 8
  %v4811 = vpop.permute.xlu0 %4810
  %4812 = vrot.lane.b32.xlu0 %v4673, 8
  %v4813 = vpop.permute.xlu0 %4812
  %4814 = vrot.lane.b32.xlu0 %v4676, 8
  %v4815 = vpop.permute.xlu0 %4814
  %4816 = vrot.lane.b32.xlu0 %v4678, 8
  %v4817 = vpop.permute.xlu0 %4816
  %4818 = vrot.lane.b32.xlu0 %v4681, 8
  %v4819 = vpop.permute.xlu0 %4818
  %4820 = vrot.lane.b32.xlu0 %v4683, 8
  %v4821 = vpop.permute.xlu0 %4820
  %4822 = vrot.lane.b32.xlu0 %v4686, 8
  %v4823 = vpop.permute.xlu0 %4822
  %4824 = vrot.lane.b32.xlu0 %v4688, 8
  %v4825 = vpop.permute.xlu0 %4824
  %4826 = vrot.lane.b32.xlu0 %v4691, 8
  %v4827 = vpop.permute.xlu0 %4826
  %4828 = vrot.lane.b32.xlu0 %v4693, 8
  %v4829 = vpop.permute.xlu0 %4828
  %4830 = vrot.lane.b32.xlu0 %v4696, 8
  %v4831 = vpop.permute.xlu0 %4830
  %4832 = vrot.lane.b32.xlu0 %v4698, 8
  %v4833 = vpop.permute.xlu0 %4832
  %4834 = vrot.lane.b32.xlu0 %v4701, 8
  %v4835 = vpop.permute.xlu0 %4834
  %4836 = vrot.lane.b32.xlu0 %v4703, 8
  %v4837 = vpop.permute.xlu0 %4836
  %4838 = vrot.lane.b32.xlu0 %v4706, 8
  %v4839 = vpop.permute.xlu0 %4838
  %4840 = vrot.lane.b32.xlu0 %v4708, 8
  %v4841 = vpop.permute.xlu0 %4840
  %4842 = vrot.lane.b32.xlu0 %v4711, 8
  %v4843 = vpop.permute.xlu0 %4842
  %4844 = vrot.lane.b32.xlu0 %v4713, 8
  %v4845 = vpop.permute.xlu0 %4844
  %4846 = vrot.lane.b32.xlu0 %v4716, 8
  %v4847 = vpop.permute.xlu0 %4846
  %4848 = vrot.lane.b32.xlu0 %v4718, 8
  %v4849 = vpop.permute.xlu0 %4848
  %4850 = vrot.lane.b32.xlu0 %v4721, 8
  %v4851 = vpop.permute.xlu0 %4850
  %4852 = vrot.lane.b32.xlu0 %v4723, 8
  %v4853 = vpop.permute.xlu0 %4852
  %4854 = vrot.lane.b32.xlu0 %v4726, 8
  %v4855 = vpop.permute.xlu0 %4854
  %4856 = vrot.lane.b32.xlu0 %v4728, 8
  %v4857 = vpop.permute.xlu0 %4856
  %4858 = vrot.lane.b32.xlu0 %v4731, 8
  %v4859 = vpop.permute.xlu0 %4858
  %4860 = vrot.lane.b32.xlu0 %v4733, 8
  %v4861 = vpop.permute.xlu0 %4860
  %vm4926 = vcmask 130112
  %4927 = vst.msk [vmem:[#allocation5] sm:$0xff] %vm4926, %v4735
  %4928 = vst.msk [vmem:[#allocation5 + $0x8] sm:$0xff] %vm4926, %v4737
  %4929 = vst.msk [vmem:[#allocation5 + $0x10] sm:$0xff] %vm4926, %v4739
  %4930 = vst.msk [vmem:[#allocation5 + $0x18] sm:$0xff] %vm4926, %v4741
  %4931 = vst.msk [vmem:[#allocation5 + $0x20] sm:$0xff] %vm4926, %v4743
  %4932 = vst.msk [vmem:[#allocation5 + $0x28] sm:$0xff] %vm4926, %v4745
  %4933 = vst.msk [vmem:[#allocation5 + $0x30] sm:$0xff] %vm4926, %v4747
  %4934 = vst.msk [vmem:[#allocation5 + $0x38] sm:$0xff] %vm4926, %v4749
  %4935 = vst.msk [vmem:[#allocation5 + $0x40] sm:$0xff] %vm4926, %v4751
  %4936 = vst.msk [vmem:[#allocation5 + $0x48] sm:$0xff] %vm4926, %v4753
  %4937 = vst.msk [vmem:[#allocation5 + $0x50] sm:$0xff] %vm4926, %v4755
  %4938 = vst.msk [vmem:[#allocation5 + $0x58] sm:$0xff] %vm4926, %v4757
  %4939 = vst.msk [vmem:[#allocation5 + $0x60] sm:$0xff] %vm4926, %v4759
  %4940 = vst.msk [vmem:[#allocation5 + $0x68] sm:$0xff] %vm4926, %v4761
  %4941 = vst.msk [vmem:[#allocation5 + $0x70] sm:$0xff] %vm4926, %v4763
  %4942 = vst.msk [vmem:[#allocation5 + $0x78] sm:$0xff] %vm4926, %v4765
  %4943 = vst.msk [vmem:[#allocation5 + $0x80] sm:$0xff] %vm4926, %v4767
  %4944 = vst.msk [vmem:[#allocation5 + $0x88] sm:$0xff] %vm4926, %v4769
  %4945 = vst.msk [vmem:[#allocation5 + $0x90] sm:$0xff] %vm4926, %v4771
  %4946 = vst.msk [vmem:[#allocation5 + $0x98] sm:$0xff] %vm4926, %v4773
  %4947 = vst.msk [vmem:[#allocation5 + $0xa0] sm:$0xff] %vm4926, %v4775
  %4948 = vst.msk [vmem:[#allocation5 + $0xa8] sm:$0xff] %vm4926, %v4777
  %4949 = vst.msk [vmem:[#allocation5 + $0xb0] sm:$0xff] %vm4926, %v4779
  %4950 = vst.msk [vmem:[#allocation5 + $0xb8] sm:$0xff] %vm4926, %v4781
  %4951 = vst.msk [vmem:[#allocation5 + $0xc0] sm:$0xff] %vm4926, %v4783
  %4952 = vst.msk [vmem:[#allocation5 + $0xc8] sm:$0xff] %vm4926, %v4785
  %4953 = vst.msk [vmem:[#allocation5 + $0xd0] sm:$0xff] %vm4926, %v4787
  %4954 = vst.msk [vmem:[#allocation5 + $0xd8] sm:$0xff] %vm4926, %v4789
  %4955 = vst.msk [vmem:[#allocation5 + $0xe0] sm:$0xff] %vm4926, %v4791
  %4956 = vst.msk [vmem:[#allocation5 + $0xe8] sm:$0xff] %vm4926, %v4793
  %4957 = vst.msk [vmem:[#allocation5 + $0xf0] sm:$0xff] %vm4926, %v4795
  %4958 = vst.msk [vmem:[#allocation5 + $0xf8] sm:$0xff] %vm4926, %v4797
  %4959 = vst.msk [vmem:[#allocation5 + $0x100] sm:$0xff] %vm4926, %v4799
  %4960 = vst.msk [vmem:[#allocation5 + $0x108] sm:$0xff] %vm4926, %v4801
  %4961 = vst.msk [vmem:[#allocation5 + $0x110] sm:$0xff] %vm4926, %v4803
  %4962 = vst.msk [vmem:[#allocation5 + $0x118] sm:$0xff] %vm4926, %v4805
  %4963 = vst.msk [vmem:[#allocation5 + $0x120] sm:$0xff] %vm4926, %v4807
  %4964 = vst.msk [vmem:[#allocation5 + $0x128] sm:$0xff] %vm4926, %v4809
  %4965 = vst.msk [vmem:[#allocation5 + $0x130] sm:$0xff] %vm4926, %v4811
  %4966 = vst.msk [vmem:[#allocation5 + $0x138] sm:$0xff] %vm4926, %v4813
  %4967 = vst.msk [vmem:[#allocation5 + $0x140] sm:$0xff] %vm4926, %v4815
  %4968 = vst.msk [vmem:[#allocation5 + $0x148] sm:$0xff] %vm4926, %v4817
  %4969 = vst.msk [vmem:[#allocation5 + $0x150] sm:$0xff] %vm4926, %v4819
  %4970 = vst.msk [vmem:[#allocation5 + $0x158] sm:$0xff] %vm4926, %v4821
  %4971 = vst.msk [vmem:[#allocation5 + $0x160] sm:$0xff] %vm4926, %v4823
  %4972 = vst.msk [vmem:[#allocation5 + $0x168] sm:$0xff] %vm4926, %v4825
  %4973 = vst.msk [vmem:[#allocation5 + $0x170] sm:$0xff] %vm4926, %v4827
  %4974 = vst.msk [vmem:[#allocation5 + $0x178] sm:$0xff] %vm4926, %v4829
  %4975 = vst.msk [vmem:[#allocation5 + $0x180] sm:$0xff] %vm4926, %v4831
  %4976 = vst.msk [vmem:[#allocation5 + $0x188] sm:$0xff] %vm4926, %v4833
  %4977 = vst.msk [vmem:[#allocation5 + $0x190] sm:$0xff] %vm4926, %v4835
  %4978 = vst.msk [vmem:[#allocation5 + $0x198] sm:$0xff] %vm4926, %v4837
  %4979 = vst.msk [vmem:[#allocation5 + $0x1a0] sm:$0xff] %vm4926, %v4839
  %4980 = vst.msk [vmem:[#allocation5 + $0x1a8] sm:$0xff] %vm4926, %v4841
  %4981 = vst.msk [vmem:[#allocation5 + $0x1b0] sm:$0xff] %vm4926, %v4843
  %4982 = vst.msk [vmem:[#allocation5 + $0x1b8] sm:$0xff] %vm4926, %v4845
  %4983 = vst.msk [vmem:[#allocation5 + $0x1c0] sm:$0xff] %vm4926, %v4847
  %4984 = vst.msk [vmem:[#allocation5 + $0x1c8] sm:$0xff] %vm4926, %v4849
  %4985 = vst.msk [vmem:[#allocation5 + $0x1d0] sm:$0xff] %vm4926, %v4851
  %4986 = vst.msk [vmem:[#allocation5 + $0x1d8] sm:$0xff] %vm4926, %v4853
  %4987 = vst.msk [vmem:[#allocation5 + $0x1e0] sm:$0xff] %vm4926, %v4855
  %4988 = vst.msk [vmem:[#allocation5 + $0x1e8] sm:$0xff] %vm4926, %v4857
  %4989 = vst.msk [vmem:[#allocation5 + $0x1f0] sm:$0xff] %vm4926, %v4859
  %4990 = vst.msk [vmem:[#allocation5 + $0x1f8] sm:$0xff] %vm4926, %v4861
  %v4991 = vrot.slane %v4306, 2
  %v4992 = vrot.slane %v4307, 2
  %v4993 = vsel %vm938, %v4991, %v4992
  %v4994 = vrot.slane %v4308, 2
  %v4995 = vsel %vm938, %v4992, %v4994
  %v4996 = vrot.slane %v4309, 2
  %v4997 = vrot.slane %v4310, 2
  %v4998 = vsel %vm938, %v4996, %v4997
  %v4999 = vrot.slane %v4311, 2
  %v5000 = vsel %vm938, %v4997, %v4999
  %v5001 = vrot.slane %v4312, 2
  %v5002 = vrot.slane %v4313, 2
  %v5003 = vsel %vm938, %v5001, %v5002
  %v5004 = vrot.slane %v4314, 2
  %v5005 = vsel %vm938, %v5002, %v5004
  %v5006 = vrot.slane %v4315, 2
  %v5007 = vrot.slane %v4316, 2
  %v5008 = vsel %vm938, %v5006, %v5007
  %v5009 = vrot.slane %v4317, 2
  %v5010 = vsel %vm938, %v5007, %v5009
  %v5011 = vrot.slane %v4318, 2
  %v5012 = vrot.slane %v4319, 2
  %v5013 = vsel %vm938, %v5011, %v5012
  %v5014 = vrot.slane %v4320, 2
  %v5015 = vsel %vm938, %v5012, %v5014
  %v5016 = vrot.slane %v4321, 2
  %v5017 = vrot.slane %v4322, 2
  %v5018 = vsel %vm938, %v5016, %v5017
  %v5019 = vrot.slane %v4323, 2
  %v5020 = vsel %vm938, %v5017, %v5019
  %v5021 = vrot.slane %v4324, 2
  %v5022 = vrot.slane %v4325, 2
  %v5023 = vsel %vm938, %v5021, %v5022
  %v5024 = vrot.slane %v4326, 2
  %v5025 = vsel %vm938, %v5022, %v5024
  %v5026 = vrot.slane %v4327, 2
  %v5027 = vrot.slane %v4328, 2
  %v5028 = vsel %vm938, %v5026, %v5027
  %v5029 = vrot.slane %v4329, 2
  %v5030 = vsel %vm938, %v5027, %v5029
  %v5031 = vrot.slane %v4330, 2
  %v5032 = vrot.slane %v4331, 2
  %v5033 = vsel %vm938, %v5031, %v5032
  %v5034 = vrot.slane %v4332, 2
  %v5035 = vsel %vm938, %v5032, %v5034
  %v5036 = vrot.slane %v4333, 2
  %v5037 = vrot.slane %v4334, 2
  %v5038 = vsel %vm938, %v5036, %v5037
  %v5039 = vrot.slane %v4335, 2
  %v5040 = vsel %vm938, %v5037, %v5039
  %v5041 = vrot.slane %v4336, 2
  %v5042 = vrot.slane %v4337, 2
  %v5043 = vsel %vm938, %v5041, %v5042
  %v5044 = vrot.slane %v4338, 2
  %v5045 = vsel %vm938, %v5042, %v5044
  %v5046 = vrot.slane %v4339, 2
  %v5047 = vrot.slane %v4340, 2
  %v5048 = vsel %vm938, %v5046, %v5047
  %v5049 = vrot.slane %v4341, 2
  %v5050 = vsel %vm938, %v5047, %v5049
  %v5051 = vrot.slane %v4342, 2
  %v5052 = vrot.slane %v4343, 2
  %v5053 = vsel %vm938, %v5051, %v5052
  %v5054 = vrot.slane %v4344, 2
  %v5055 = vsel %vm938, %v5052, %v5054
  %v5056 = vrot.slane %v4345, 2
  %v5057 = vrot.slane %v4346, 2
  %v5058 = vsel %vm938, %v5056, %v5057
  %v5059 = vrot.slane %v4347, 2
  %v5060 = vsel %vm938, %v5057, %v5059
  %v5061 = vrot.slane %v4348, 2
  %v5062 = vrot.slane %v4349, 2
  %v5063 = vsel %vm938, %v5061, %v5062
  %v5064 = vrot.slane %v4350, 2
  %v5065 = vsel %vm938, %v5062, %v5064
  %v5066 = vrot.slane %v4351, 2
  %v5067 = vrot.slane %v4352, 2
  %v5068 = vsel %vm938, %v5066, %v5067
  %v5069 = vrot.slane %v4353, 2
  %v5070 = vsel %vm938, %v5067, %v5069
  %v5071 = vrot.slane %v4360, 2
  %v5072 = vrot.slane %v4361, 2
  %v5073 = vsel %vm938, %v5071, %v5072
  %v5074 = vrot.slane %v4362, 2
  %v5075 = vsel %vm938, %v5072, %v5074
  %v5076 = vrot.slane %v4363, 2
  %v5077 = vrot.slane %v4364, 2
  %v5078 = vsel %vm938, %v5076, %v5077
  %v5079 = vrot.slane %v4365, 2
  %v5080 = vsel %vm938, %v5077, %v5079
  %v5081 = vrot.slane %v4366, 2
  %v5082 = vrot.slane %v4367, 2
  %v5083 = vsel %vm938, %v5081, %v5082
  %v5084 = vrot.slane %v4368, 2
  %v5085 = vsel %vm938, %v5082, %v5084
  %v5086 = vrot.slane %v4369, 2
  %v5087 = vrot.slane %v4370, 2
  %v5088 = vsel %vm938, %v5086, %v5087
  %v5089 = vrot.slane %v4371, 2
  %v5090 = vsel %vm938, %v5087, %v5089
  %v5091 = vrot.slane %v4372, 2
  %v5092 = vrot.slane %v4373, 2
  %v5093 = vsel %vm938, %v5091, %v5092
  %v5094 = vrot.slane %v4374, 2
  %v5095 = vsel %vm938, %v5092, %v5094
  %v5096 = vrot.slane %v4375, 2
  %v5097 = vrot.slane %v4376, 2
  %v5098 = vsel %vm938, %v5096, %v5097
  %v5099 = vrot.slane %v4377, 2
  %v5100 = vsel %vm938, %v5097, %v5099
  %v5101 = vrot.slane %v4378, 2
  %v5102 = vrot.slane %v4379, 2
  %v5103 = vsel %vm938, %v5101, %v5102
  %v5104 = vrot.slane %v4380, 2
  %v5105 = vsel %vm938, %v5102, %v5104
  %v5106 = vrot.slane %v4381, 2
  %v5107 = vrot.slane %v4382, 2
  %v5108 = vsel %vm938, %v5106, %v5107
  %v5109 = vrot.slane %v4383, 2
  %v5110 = vsel %vm938, %v5107, %v5109
  %v5111 = vrot.slane %v4384, 2
  %v5112 = vrot.slane %v4385, 2
  %v5113 = vsel %vm938, %v5111, %v5112
  %v5114 = vrot.slane %v4386, 2
  %v5115 = vsel %vm938, %v5112, %v5114
  %v5116 = vrot.slane %v4387, 2
  %v5117 = vrot.slane %v4388, 2
  %v5118 = vsel %vm938, %v5116, %v5117
  %v5119 = vrot.slane %v4389, 2
  %v5120 = vsel %vm938, %v5117, %v5119
  %v5121 = vrot.slane %v4390, 2
  %v5122 = vrot.slane %v4391, 2
  %v5123 = vsel %vm938, %v5121, %v5122
  %v5124 = vrot.slane %v4392, 2
  %v5125 = vsel %vm938, %v5122, %v5124
  %v5126 = vrot.slane %v4393, 2
  %v5127 = vrot.slane %v4394, 2
  %v5128 = vsel %vm938, %v5126, %v5127
  %v5129 = vrot.slane %v4395, 2
  %v5130 = vsel %vm938, %v5127, %v5129
  %v5131 = vrot.slane %v4396, 2
  %v5132 = vrot.slane %v4397, 2
  %v5133 = vsel %vm938, %v5131, %v5132
  %v5134 = vrot.slane %v4398, 2
  %v5135 = vsel %vm938, %v5132, %v5134
  %v5136 = vrot.slane %v4399, 2
  %v5137 = vrot.slane %v4400, 2
  %v5138 = vsel %vm938, %v5136, %v5137
  %v5139 = vrot.slane %v4401, 2
  %v5140 = vsel %vm938, %v5137, %v5139
  %v5141 = vrot.slane %v4402, 2
  %v5142 = vrot.slane %v4403, 2
  %v5143 = vsel %vm938, %v5141, %v5142
  %v5144 = vrot.slane %v4404, 2
  %v5145 = vsel %vm938, %v5142, %v5144
  %v5146 = vrot.slane %v4405, 2
  %v5147 = vrot.slane %v4406, 2
  %v5148 = vsel %vm938, %v5146, %v5147
  %v5149 = vrot.slane %v4407, 2
  %v5150 = vsel %vm938, %v5147, %v5149
  %5151 = vrot.lane.b32.xlu0 %v4993, 16
  %v5152 = vpop.permute.xlu0 %5151
  %5153 = vrot.lane.b32.xlu0 %v4995, 16
  %v5154 = vpop.permute.xlu0 %5153
  %5155 = vrot.lane.b32.xlu0 %v4998, 16
  %v5156 = vpop.permute.xlu0 %5155
  %5157 = vrot.lane.b32.xlu0 %v5000, 16
  %v5158 = vpop.permute.xlu0 %5157
  %5159 = vrot.lane.b32.xlu0 %v5003, 16
  %v5160 = vpop.permute.xlu0 %5159
  %5161 = vrot.lane.b32.xlu0 %v5005, 16
  %v5162 = vpop.permute.xlu0 %5161
  %5163 = vrot.lane.b32.xlu0 %v5008, 16
  %v5164 = vpop.permute.xlu0 %5163
  %5165 = vrot.lane.b32.xlu0 %v5010, 16
  %v5166 = vpop.permute.xlu0 %5165
  %5167 = vrot.lane.b32.xlu0 %v5013, 16
  %v5168 = vpop.permute.xlu0 %5167
  %5169 = vrot.lane.b32.xlu0 %v5015, 16
  %v5170 = vpop.permute.xlu0 %5169
  %5171 = vrot.lane.b32.xlu0 %v5018, 16
  %v5172 = vpop.permute.xlu0 %5171
  %5173 = vrot.lane.b32.xlu0 %v5020, 16
  %v5174 = vpop.permute.xlu0 %5173
  %5175 = vrot.lane.b32.xlu0 %v5023, 16
  %v5176 = vpop.permute.xlu0 %5175
  %5177 = vrot.lane.b32.xlu0 %v5025, 16
  %v5178 = vpop.permute.xlu0 %5177
  %5179 = vrot.lane.b32.xlu0 %v5028, 16
  %v5180 = vpop.permute.xlu0 %5179
  %5181 = vrot.lane.b32.xlu0 %v5030, 16
  %v5182 = vpop.permute.xlu0 %5181
  %5183 = vrot.lane.b32.xlu0 %v5033, 16
  %v5184 = vpop.permute.xlu0 %5183
  %5185 = vrot.lane.b32.xlu0 %v5035, 16
  %v5186 = vpop.permute.xlu0 %5185
  %5187 = vrot.lane.b32.xlu0 %v5038, 16
  %v5188 = vpop.permute.xlu0 %5187
  %5189 = vrot.lane.b32.xlu0 %v5040, 16
  %v5190 = vpop.permute.xlu0 %5189
  %5191 = vrot.lane.b32.xlu0 %v5043, 16
  %v5192 = vpop.permute.xlu0 %5191
  %5193 = vrot.lane.b32.xlu0 %v5045, 16
  %v5194 = vpop.permute.xlu0 %5193
  %5195 = vrot.lane.b32.xlu0 %v5048, 16
  %v5196 = vpop.permute.xlu0 %5195
  %5197 = vrot.lane.b32.xlu0 %v5050, 16
  %v5198 = vpop.permute.xlu0 %5197
  %5199 = vrot.lane.b32.xlu0 %v5053, 16
  %v5200 = vpop.permute.xlu0 %5199
  %5201 = vrot.lane.b32.xlu0 %v5055, 16
  %v5202 = vpop.permute.xlu0 %5201
  %5203 = vrot.lane.b32.xlu0 %v5058, 16
  %v5204 = vpop.permute.xlu0 %5203
  %5205 = vrot.lane.b32.xlu0 %v5060, 16
  %v5206 = vpop.permute.xlu0 %5205
  %5207 = vrot.lane.b32.xlu0 %v5063, 16
  %v5208 = vpop.permute.xlu0 %5207
  %5209 = vrot.lane.b32.xlu0 %v5065, 16
  %v5210 = vpop.permute.xlu0 %5209
  %5211 = vrot.lane.b32.xlu0 %v5068, 16
  %v5212 = vpop.permute.xlu0 %5211
  %5213 = vrot.lane.b32.xlu0 %v5070, 16
  %v5214 = vpop.permute.xlu0 %5213
  %5215 = vrot.lane.b32.xlu0 %v5073, 16
  %v5216 = vpop.permute.xlu0 %5215
  %5217 = vrot.lane.b32.xlu0 %v5075, 16
  %v5218 = vpop.permute.xlu0 %5217
  %5219 = vrot.lane.b32.xlu0 %v5078, 16
  %v5220 = vpop.permute.xlu0 %5219
  %5221 = vrot.lane.b32.xlu0 %v5080, 16
  %v5222 = vpop.permute.xlu0 %5221
  %5223 = vrot.lane.b32.xlu0 %v5083, 16
  %v5224 = vpop.permute.xlu0 %5223
  %5225 = vrot.lane.b32.xlu0 %v5085, 16
  %v5226 = vpop.permute.xlu0 %5225
  %5227 = vrot.lane.b32.xlu0 %v5088, 16
  %v5228 = vpop.permute.xlu0 %5227
  %5229 = vrot.lane.b32.xlu0 %v5090, 16
  %v5230 = vpop.permute.xlu0 %5229
  %5231 = vrot.lane.b32.xlu0 %v5093, 16
  %v5232 = vpop.permute.xlu0 %5231
  %5233 = vrot.lane.b32.xlu0 %v5095, 16
  %v5234 = vpop.permute.xlu0 %5233
  %5235 = vrot.lane.b32.xlu0 %v5098, 16
  %v5236 = vpop.permute.xlu0 %5235
  %5237 = vrot.lane.b32.xlu0 %v5100, 16
  %v5238 = vpop.permute.xlu0 %5237
  %5239 = vrot.lane.b32.xlu0 %v5103, 16
  %v5240 = vpop.permute.xlu0 %5239
  %5241 = vrot.lane.b32.xlu0 %v5105, 16
  %v5242 = vpop.permute.xlu0 %5241
  %5243 = vrot.lane.b32.xlu0 %v5108, 16
  %v5244 = vpop.permute.xlu0 %5243
  %5245 = vrot.lane.b32.xlu0 %v5110, 16
  %v5246 = vpop.permute.xlu0 %5245
  %5247 = vrot.lane.b32.xlu0 %v5113, 16
  %v5248 = vpop.permute.xlu0 %5247
  %5249 = vrot.lane.b32.xlu0 %v5115, 16
  %v5250 = vpop.permute.xlu0 %5249
  %5251 = vrot.lane.b32.xlu0 %v5118, 16
  %v5252 = vpop.permute.xlu0 %5251
  %5253 = vrot.lane.b32.xlu0 %v5120, 16
  %v5254 = vpop.permute.xlu0 %5253
  %5255 = vrot.lane.b32.xlu0 %v5123, 16
  %v5256 = vpop.permute.xlu0 %5255
  %5257 = vrot.lane.b32.xlu0 %v5125, 16
  %v5258 = vpop.permute.xlu0 %5257
  %5259 = vrot.lane.b32.xlu0 %v5128, 16
  %v5260 = vpop.permute.xlu0 %5259
  %5261 = vrot.lane.b32.xlu0 %v5130, 16
  %v5262 = vpop.permute.xlu0 %5261
  %5263 = vrot.lane.b32.xlu0 %v5133, 16
  %v5264 = vpop.permute.xlu0 %5263
  %5265 = vrot.lane.b32.xlu0 %v5135, 16
  %v5266 = vpop.permute.xlu0 %5265
  %5267 = vrot.lane.b32.xlu0 %v5138, 16
  %v5268 = vpop.permute.xlu0 %5267
  %5269 = vrot.lane.b32.xlu0 %v5140, 16
  %v5270 = vpop.permute.xlu0 %5269
  %5271 = vrot.lane.b32.xlu0 %v5143, 16
  %v5272 = vpop.permute.xlu0 %5271
  %5273 = vrot.lane.b32.xlu0 %v5145, 16
  %v5274 = vpop.permute.xlu0 %5273
  %5275 = vrot.lane.b32.xlu0 %v5148, 16
  %v5276 = vpop.permute.xlu0 %5275
  %5277 = vrot.lane.b32.xlu0 %v5150, 16
  %v5278 = vpop.permute.xlu0 %5277
  %vm5343 = vcmask 195712
  %5344 = vst.msk [vmem:[#allocation5] sm:$0xff] %vm5343, %v5152
  %5345 = vst.msk [vmem:[#allocation5 + $0x8] sm:$0xff] %vm5343, %v5154
  %5346 = vst.msk [vmem:[#allocation5 + $0x10] sm:$0xff] %vm5343, %v5156
  %5347 = vst.msk [vmem:[#allocation5 + $0x18] sm:$0xff] %vm5343, %v5158
  %5348 = vst.msk [vmem:[#allocation5 + $0x20] sm:$0xff] %vm5343, %v5160
  %5349 = vst.msk [vmem:[#allocation5 + $0x28] sm:$0xff] %vm5343, %v5162
  %5350 = vst.msk [vmem:[#allocation5 + $0x30] sm:$0xff] %vm5343, %v5164
  %5351 = vst.msk [vmem:[#allocation5 + $0x38] sm:$0xff] %vm5343, %v5166
  %5352 = vst.msk [vmem:[#allocation5 + $0x40] sm:$0xff] %vm5343, %v5168
  %5353 = vst.msk [vmem:[#allocation5 + $0x48] sm:$0xff] %vm5343, %v5170
  %5354 = vst.msk [vmem:[#allocation5 + $0x50] sm:$0xff] %vm5343, %v5172
  %5355 = vst.msk [vmem:[#allocation5 + $0x58] sm:$0xff] %vm5343, %v5174
  %5356 = vst.msk [vmem:[#allocation5 + $0x60] sm:$0xff] %vm5343, %v5176
  %5357 = vst.msk [vmem:[#allocation5 + $0x68] sm:$0xff] %vm5343, %v5178
  %5358 = vst.msk [vmem:[#allocation5 + $0x70] sm:$0xff] %vm5343, %v5180
  %5359 = vst.msk [vmem:[#allocation5 + $0x78] sm:$0xff] %vm5343, %v5182
  %5360 = vst.msk [vmem:[#allocation5 + $0x80] sm:$0xff] %vm5343, %v5184
  %5361 = vst.msk [vmem:[#allocation5 + $0x88] sm:$0xff] %vm5343, %v5186
  %5362 = vst.msk [vmem:[#allocation5 + $0x90] sm:$0xff] %vm5343, %v5188
  %5363 = vst.msk [vmem:[#allocation5 + $0x98] sm:$0xff] %vm5343, %v5190
  %5364 = vst.msk [vmem:[#allocation5 + $0xa0] sm:$0xff] %vm5343, %v5192
  %5365 = vst.msk [vmem:[#allocation5 + $0xa8] sm:$0xff] %vm5343, %v5194
  %5366 = vst.msk [vmem:[#allocation5 + $0xb0] sm:$0xff] %vm5343, %v5196
  %5367 = vst.msk [vmem:[#allocation5 + $0xb8] sm:$0xff] %vm5343, %v5198
  %5368 = vst.msk [vmem:[#allocation5 + $0xc0] sm:$0xff] %vm5343, %v5200
  %5369 = vst.msk [vmem:[#allocation5 + $0xc8] sm:$0xff] %vm5343, %v5202
  %5370 = vst.msk [vmem:[#allocation5 + $0xd0] sm:$0xff] %vm5343, %v5204
  %5371 = vst.msk [vmem:[#allocation5 + $0xd8] sm:$0xff] %vm5343, %v5206
  %5372 = vst.msk [vmem:[#allocation5 + $0xe0] sm:$0xff] %vm5343, %v5208
  %5373 = vst.msk [vmem:[#allocation5 + $0xe8] sm:$0xff] %vm5343, %v5210
  %5374 = vst.msk [vmem:[#allocation5 + $0xf0] sm:$0xff] %vm5343, %v5212
  %5375 = vst.msk [vmem:[#allocation5 + $0xf8] sm:$0xff] %vm5343, %v5214
  %5376 = vst.msk [vmem:[#allocation5 + $0x100] sm:$0xff] %vm5343, %v5216
  %5377 = vst.msk [vmem:[#allocation5 + $0x108] sm:$0xff] %vm5343, %v5218
  %5378 = vst.msk [vmem:[#allocation5 + $0x110] sm:$0xff] %vm5343, %v5220
  %5379 = vst.msk [vmem:[#allocation5 + $0x118] sm:$0xff] %vm5343, %v5222
  %5380 = vst.msk [vmem:[#allocation5 + $0x120] sm:$0xff] %vm5343, %v5224
  %5381 = vst.msk [vmem:[#allocation5 + $0x128] sm:$0xff] %vm5343, %v5226
  %5382 = vst.msk [vmem:[#allocation5 + $0x130] sm:$0xff] %vm5343, %v5228
  %5383 = vst.msk [vmem:[#allocation5 + $0x138] sm:$0xff] %vm5343, %v5230
  %5384 = vst.msk [vmem:[#allocation5 + $0x140] sm:$0xff] %vm5343, %v5232
  %5385 = vst.msk [vmem:[#allocation5 + $0x148] sm:$0xff] %vm5343, %v5234
  %5386 = vst.msk [vmem:[#allocation5 + $0x150] sm:$0xff] %vm5343, %v5236
  %5387 = vst.msk [vmem:[#allocation5 + $0x158] sm:$0xff] %vm5343, %v5238
  %5388 = vst.msk [vmem:[#allocation5 + $0x160] sm:$0xff] %vm5343, %v5240
  %5389 = vst.msk [vmem:[#allocation5 + $0x168] sm:$0xff] %vm5343, %v5242
  %5390 = vst.msk [vmem:[#allocation5 + $0x170] sm:$0xff] %vm5343, %v5244
  %5391 = vst.msk [vmem:[#allocation5 + $0x178] sm:$0xff] %vm5343, %v5246
  %5392 = vst.msk [vmem:[#allocation5 + $0x180] sm:$0xff] %vm5343, %v5248
  %5393 = vst.msk [vmem:[#allocation5 + $0x188] sm:$0xff] %vm5343, %v5250
  %5394 = vst.msk [vmem:[#allocation5 + $0x190] sm:$0xff] %vm5343, %v5252
  %5395 = vst.msk [vmem:[#allocation5 + $0x198] sm:$0xff] %vm5343, %v5254
  %5396 = vst.msk [vmem:[#allocation5 + $0x1a0] sm:$0xff] %vm5343, %v5256
  %5397 = vst.msk [vmem:[#allocation5 + $0x1a8] sm:$0xff] %vm5343, %v5258
  %5398 = vst.msk [vmem:[#allocation5 + $0x1b0] sm:$0xff] %vm5343, %v5260
  %5399 = vst.msk [vmem:[#allocation5 + $0x1b8] sm:$0xff] %vm5343, %v5262
  %5400 = vst.msk [vmem:[#allocation5 + $0x1c0] sm:$0xff] %vm5343, %v5264
  %5401 = vst.msk [vmem:[#allocation5 + $0x1c8] sm:$0xff] %vm5343, %v5266
  %5402 = vst.msk [vmem:[#allocation5 + $0x1d0] sm:$0xff] %vm5343, %v5268
  %5403 = vst.msk [vmem:[#allocation5 + $0x1d8] sm:$0xff] %vm5343, %v5270
  %5404 = vst.msk [vmem:[#allocation5 + $0x1e0] sm:$0xff] %vm5343, %v5272
  %5405 = vst.msk [vmem:[#allocation5 + $0x1e8] sm:$0xff] %vm5343, %v5274
  %5406 = vst.msk [vmem:[#allocation5 + $0x1f0] sm:$0xff] %vm5343, %v5276
  %5407 = vst.msk [vmem:[#allocation5 + $0x1f8] sm:$0xff] %vm5343, %v5278
  %5412 = vrot.lane.b32.xlu0 %v4309, 24
  %v5413 = vpop.permute.xlu0 %5412
  %5414 = vrot.lane.b32.xlu0 %v4310, 24
  %v5415 = vpop.permute.xlu0 %5414
  %5416 = vrot.lane.b32.xlu0 %v4312, 24
  %v5417 = vpop.permute.xlu0 %5416
  %5418 = vrot.lane.b32.xlu0 %v4313, 24
  %v5419 = vpop.permute.xlu0 %5418
  %5420 = vrot.lane.b32.xlu0 %v4315, 24
  %v5421 = vpop.permute.xlu0 %5420
  %5422 = vrot.lane.b32.xlu0 %v4316, 24
  %v5423 = vpop.permute.xlu0 %5422
  %5424 = vrot.lane.b32.xlu0 %v4318, 24
  %v5425 = vpop.permute.xlu0 %5424
  %5426 = vrot.lane.b32.xlu0 %v4319, 24
  %v5427 = vpop.permute.xlu0 %5426
  %5428 = vrot.lane.b32.xlu0 %v4321, 24
  %v5429 = vpop.permute.xlu0 %5428
  %5430 = vrot.lane.b32.xlu0 %v4322, 24
  %v5431 = vpop.permute.xlu0 %5430
  %5432 = vrot.lane.b32.xlu0 %v4324, 24
  %v5433 = vpop.permute.xlu0 %5432
  %5434 = vrot.lane.b32.xlu0 %v4325, 24
  %v5435 = vpop.permute.xlu0 %5434
  %5436 = vrot.lane.b32.xlu0 %v4327, 24
  %v5437 = vpop.permute.xlu0 %5436
  %5438 = vrot.lane.b32.xlu0 %v4328, 24
  %v5439 = vpop.permute.xlu0 %5438
  %5440 = vrot.lane.b32.xlu0 %v4330, 24
  %v5441 = vpop.permute.xlu0 %5440
  %5442 = vrot.lane.b32.xlu0 %v4331, 24
  %v5443 = vpop.permute.xlu0 %5442
  %5444 = vrot.lane.b32.xlu0 %v4333, 24
  %v5445 = vpop.permute.xlu0 %5444
  %5446 = vrot.lane.b32.xlu0 %v4334, 24
  %v5447 = vpop.permute.xlu0 %5446
  %5448 = vrot.lane.b32.xlu0 %v4336, 24
  %v5449 = vpop.permute.xlu0 %5448
  %5450 = vrot.lane.b32.xlu0 %v4337, 24
  %v5451 = vpop.permute.xlu0 %5450
  %5452 = vrot.lane.b32.xlu0 %v4339, 24
  %v5453 = vpop.permute.xlu0 %5452
  %5454 = vrot.lane.b32.xlu0 %v4340, 24
  %v5455 = vpop.permute.xlu0 %5454
  %5456 = vrot.lane.b32.xlu0 %v4342, 24
  %v5457 = vpop.permute.xlu0 %5456
  %5458 = vrot.lane.b32.xlu0 %v4343, 24
  %v5459 = vpop.permute.xlu0 %5458
  %5460 = vrot.lane.b32.xlu0 %v4345, 24
  %v5461 = vpop.permute.xlu0 %5460
  %5462 = vrot.lane.b32.xlu0 %v4346, 24
  %v5463 = vpop.permute.xlu0 %5462
  %5464 = vrot.lane.b32.xlu0 %v4348, 24
  %v5465 = vpop.permute.xlu0 %5464
  %5466 = vrot.lane.b32.xlu0 %v4349, 24
  %v5467 = vpop.permute.xlu0 %5466
  %5468 = vrot.lane.b32.xlu0 %v4351, 24
  %v5469 = vpop.permute.xlu0 %5468
  %5470 = vrot.lane.b32.xlu0 %v4352, 24
  %v5471 = vpop.permute.xlu0 %5470
  %5472 = vrot.lane.b32.xlu0 %v4354, 24
  %v5473 = vpop.permute.xlu0 %5472
  %5474 = vrot.lane.b32.xlu0 %v4355, 24
  %v5475 = vpop.permute.xlu0 %5474
  %5476 = vrot.lane.b32.xlu0 %v4363, 24
  %v5477 = vpop.permute.xlu0 %5476
  %5478 = vrot.lane.b32.xlu0 %v4364, 24
  %v5479 = vpop.permute.xlu0 %5478
  %5480 = vrot.lane.b32.xlu0 %v4366, 24
  %v5481 = vpop.permute.xlu0 %5480
  %5482 = vrot.lane.b32.xlu0 %v4367, 24
  %v5483 = vpop.permute.xlu0 %5482
  %5484 = vrot.lane.b32.xlu0 %v4369, 24
  %v5485 = vpop.permute.xlu0 %5484
  %5486 = vrot.lane.b32.xlu0 %v4370, 24
  %v5487 = vpop.permute.xlu0 %5486
  %5488 = vrot.lane.b32.xlu0 %v4372, 24
  %v5489 = vpop.permute.xlu0 %5488
  %5490 = vrot.lane.b32.xlu0 %v4373, 24
  %v5491 = vpop.permute.xlu0 %5490
  %5492 = vrot.lane.b32.xlu0 %v4375, 24
  %v5493 = vpop.permute.xlu0 %5492
  %5494 = vrot.lane.b32.xlu0 %v4376, 24
  %v5495 = vpop.permute.xlu0 %5494
  %5496 = vrot.lane.b32.xlu0 %v4378, 24
  %v5497 = vpop.permute.xlu0 %5496
  %5498 = vrot.lane.b32.xlu0 %v4379, 24
  %v5499 = vpop.permute.xlu0 %5498
  %5500 = vrot.lane.b32.xlu0 %v4381, 24
  %v5501 = vpop.permute.xlu0 %5500
  %5502 = vrot.lane.b32.xlu0 %v4382, 24
  %v5503 = vpop.permute.xlu0 %5502
  %5504 = vrot.lane.b32.xlu0 %v4384, 24
  %v5505 = vpop.permute.xlu0 %5504
  %5506 = vrot.lane.b32.xlu0 %v4385, 24
  %v5507 = vpop.permute.xlu0 %5506
  %5508 = vrot.lane.b32.xlu0 %v4387, 24
  %v5509 = vpop.permute.xlu0 %5508
  %5510 = vrot.lane.b32.xlu0 %v4388, 24
  %v5511 = vpop.permute.xlu0 %5510
  %5512 = vrot.lane.b32.xlu0 %v4390, 24
  %v5513 = vpop.permute.xlu0 %5512
  %5514 = vrot.lane.b32.xlu0 %v4391, 24
  %v5515 = vpop.permute.xlu0 %5514
  %5516 = vrot.lane.b32.xlu0 %v4393, 24
  %v5517 = vpop.permute.xlu0 %5516
  %5518 = vrot.lane.b32.xlu0 %v4394, 24
  %v5519 = vpop.permute.xlu0 %5518
  %5520 = vrot.lane.b32.xlu0 %v4396, 24
  %v5521 = vpop.permute.xlu0 %5520
  %5522 = vrot.lane.b32.xlu0 %v4397, 24
  %v5523 = vpop.permute.xlu0 %5522
  %5524 = vrot.lane.b32.xlu0 %v4399, 24
  %v5525 = vpop.permute.xlu0 %5524
  %5526 = vrot.lane.b32.xlu0 %v4400, 24
  %v5527 = vpop.permute.xlu0 %5526
  %5528 = vrot.lane.b32.xlu0 %v4402, 24
  %v5529 = vpop.permute.xlu0 %5528
  %5530 = vrot.lane.b32.xlu0 %v4403, 24
  %v5531 = vpop.permute.xlu0 %5530
  %5532 = vrot.lane.b32.xlu0 %v4405, 24
  %v5533 = vpop.permute.xlu0 %5532
  %5534 = vrot.lane.b32.xlu0 %v4406, 24
  %v5535 = vpop.permute.xlu0 %5534
  %5536 = vrot.lane.b32.xlu0 %v4408, 24
  %v5537 = vpop.permute.xlu0 %5536
  %5538 = vrot.lane.b32.xlu0 %v4409, 24
  %v5539 = vpop.permute.xlu0 %5538
  %vm5604 = vcmask 261312
  %5605 = vst.msk [vmem:[#allocation5] sm:$0xff] %vm5604, %v5413
  %5606 = vst.msk [vmem:[#allocation5 + $0x8] sm:$0xff] %vm5604, %v5415
  %5607 = vst.msk [vmem:[#allocation5 + $0x10] sm:$0xff] %vm5604, %v5417
  %5608 = vst.msk [vmem:[#allocation5 + $0x18] sm:$0xff] %vm5604, %v5419
  %5609 = vst.msk [vmem:[#allocation5 + $0x20] sm:$0xff] %vm5604, %v5421
  %5610 = vst.msk [vmem:[#allocation5 + $0x28] sm:$0xff] %vm5604, %v5423
  %5611 = vst.msk [vmem:[#allocation5 + $0x30] sm:$0xff] %vm5604, %v5425
  %5612 = vst.msk [vmem:[#allocation5 + $0x38] sm:$0xff] %vm5604, %v5427
  %5613 = vst.msk [vmem:[#allocation5 + $0x40] sm:$0xff] %vm5604, %v5429
  %5614 = vst.msk [vmem:[#allocation5 + $0x48] sm:$0xff] %vm5604, %v5431
  %5615 = vst.msk [vmem:[#allocation5 + $0x50] sm:$0xff] %vm5604, %v5433
  %5616 = vst.msk [vmem:[#allocation5 + $0x58] sm:$0xff] %vm5604, %v5435
  %5617 = vst.msk [vmem:[#allocation5 + $0x60] sm:$0xff] %vm5604, %v5437
  %5618 = vst.msk [vmem:[#allocation5 + $0x68] sm:$0xff] %vm5604, %v5439
  %5619 = vst.msk [vmem:[#allocation5 + $0x70] sm:$0xff] %vm5604, %v5441
  %5620 = vst.msk [vmem:[#allocation5 + $0x78] sm:$0xff] %vm5604, %v5443
  %5621 = vst.msk [vmem:[#allocation5 + $0x80] sm:$0xff] %vm5604, %v5445
  %5622 = vst.msk [vmem:[#allocation5 + $0x88] sm:$0xff] %vm5604, %v5447
  %5623 = vst.msk [vmem:[#allocation5 + $0x90] sm:$0xff] %vm5604, %v5449
  %5624 = vst.msk [vmem:[#allocation5 + $0x98] sm:$0xff] %vm5604, %v5451
  %5625 = vst.msk [vmem:[#allocation5 + $0xa0] sm:$0xff] %vm5604, %v5453
  %5626 = vst.msk [vmem:[#allocation5 + $0xa8] sm:$0xff] %vm5604, %v5455
  %5627 = vst.msk [vmem:[#allocation5 + $0xb0] sm:$0xff] %vm5604, %v5457
  %5628 = vst.msk [vmem:[#allocation5 + $0xb8] sm:$0xff] %vm5604, %v5459
  %5629 = vst.msk [vmem:[#allocation5 + $0xc0] sm:$0xff] %vm5604, %v5461
  %5630 = vst.msk [vmem:[#allocation5 + $0xc8] sm:$0xff] %vm5604, %v5463
  %5631 = vst.msk [vmem:[#allocation5 + $0xd0] sm:$0xff] %vm5604, %v5465
  %5632 = vst.msk [vmem:[#allocation5 + $0xd8] sm:$0xff] %vm5604, %v5467
  %5633 = vst.msk [vmem:[#allocation5 + $0xe0] sm:$0xff] %vm5604, %v5469
  %5634 = vst.msk [vmem:[#allocation5 + $0xe8] sm:$0xff] %vm5604, %v5471
  %5635 = vst.msk [vmem:[#allocation5 + $0xf0] sm:$0xff] %vm5604, %v5473
  %5636 = vst.msk [vmem:[#allocation5 + $0xf8] sm:$0xff] %vm5604, %v5475
  %5637 = vst.msk [vmem:[#allocation5 + $0x100] sm:$0xff] %vm5604, %v5477
  %5638 = vst.msk [vmem:[#allocation5 + $0x108] sm:$0xff] %vm5604, %v5479
  %5639 = vst.msk [vmem:[#allocation5 + $0x110] sm:$0xff] %vm5604, %v5481
  %5640 = vst.msk [vmem:[#allocation5 + $0x118] sm:$0xff] %vm5604, %v5483
  %5641 = vst.msk [vmem:[#allocation5 + $0x120] sm:$0xff] %vm5604, %v5485
  %5642 = vst.msk [vmem:[#allocation5 + $0x128] sm:$0xff] %vm5604, %v5487
  %5643 = vst.msk [vmem:[#allocation5 + $0x130] sm:$0xff] %vm5604, %v5489
  %5644 = vst.msk [vmem:[#allocation5 + $0x138] sm:$0xff] %vm5604, %v5491
  %5645 = vst.msk [vmem:[#allocation5 + $0x140] sm:$0xff] %vm5604, %v5493
  %5646 = vst.msk [vmem:[#allocation5 + $0x148] sm:$0xff] %vm5604, %v5495
  %5647 = vst.msk [vmem:[#allocation5 + $0x150] sm:$0xff] %vm5604, %v5497
  %5648 = vst.msk [vmem:[#allocation5 + $0x158] sm:$0xff] %vm5604, %v5499
  %5649 = vst.msk [vmem:[#allocation5 + $0x160] sm:$0xff] %vm5604, %v5501
  %5650 = vst.msk [vmem:[#allocation5 + $0x168] sm:$0xff] %vm5604, %v5503
  %5651 = vst.msk [vmem:[#allocation5 + $0x170] sm:$0xff] %vm5604, %v5505
  %5652 = vst.msk [vmem:[#allocation5 + $0x178] sm:$0xff] %vm5604, %v5507
  %5653 = vst.msk [vmem:[#allocation5 + $0x180] sm:$0xff] %vm5604, %v5509
  %5654 = vst.msk [vmem:[#allocation5 + $0x188] sm:$0xff] %vm5604, %v5511
  %5655 = vst.msk [vmem:[#allocation5 + $0x190] sm:$0xff] %vm5604, %v5513
  %5656 = vst.msk [vmem:[#allocation5 + $0x198] sm:$0xff] %vm5604, %v5515
  %5657 = vst.msk [vmem:[#allocation5 + $0x1a0] sm:$0xff] %vm5604, %v5517
  %5658 = vst.msk [vmem:[#allocation5 + $0x1a8] sm:$0xff] %vm5604, %v5519
  %5659 = vst.msk [vmem:[#allocation5 + $0x1b0] sm:$0xff] %vm5604, %v5521
  %5660 = vst.msk [vmem:[#allocation5 + $0x1b8] sm:$0xff] %vm5604, %v5523
  %5661 = vst.msk [vmem:[#allocation5 + $0x1c0] sm:$0xff] %vm5604, %v5525
  %5662 = vst.msk [vmem:[#allocation5 + $0x1c8] sm:$0xff] %vm5604, %v5527
  %5663 = vst.msk [vmem:[#allocation5 + $0x1d0] sm:$0xff] %vm5604, %v5529
  %5664 = vst.msk [vmem:[#allocation5 + $0x1d8] sm:$0xff] %vm5604, %v5531
  %5665 = vst.msk [vmem:[#allocation5 + $0x1e0] sm:$0xff] %vm5604, %v5533
  %5666 = vst.msk [vmem:[#allocation5 + $0x1e8] sm:$0xff] %vm5604, %v5535
  %5667 = vst.msk [vmem:[#allocation5 + $0x1f0] sm:$0xff] %vm5604, %v5537
  %5668 = vst.msk [vmem:[#allocation5 + $0x1f8] sm:$0xff] %vm5604, %v5539
  %v5671 = vrot.slane %v4354, 1
  %v5672 = vrot.slane %v4355, 1
  %v5673 = vsel %vm520, %v5671, %v5672
  %v5674 = vrot.slane %v4356, 1
  %v5675 = vsel %vm520, %v5672, %v5674
  %v5676 = vrot.slane %v4408, 1
  %v5677 = vrot.slane %v4409, 1
  %v5678 = vsel %vm520, %v5676, %v5677
  %v5679 = vrot.slane %v4410, 1
  %v5680 = vsel %vm520, %v5677, %v5679
  %5681 = vrot.lane.b32.xlu0 %v4581, 32
  %v5682 = vpop.permute.xlu0 %5681
  %5683 = vrot.lane.b32.xlu0 %v4583, 32
  %v5684 = vpop.permute.xlu0 %5683
  %5685 = vrot.lane.b32.xlu0 %v4586, 32
  %v5686 = vpop.permute.xlu0 %5685
  %5687 = vrot.lane.b32.xlu0 %v4588, 32
  %v5688 = vpop.permute.xlu0 %5687
  %5689 = vrot.lane.b32.xlu0 %v4591, 32
  %v5690 = vpop.permute.xlu0 %5689
  %5691 = vrot.lane.b32.xlu0 %v4593, 32
  %v5692 = vpop.permute.xlu0 %5691
  %5693 = vrot.lane.b32.xlu0 %v4596, 32
  %v5694 = vpop.permute.xlu0 %5693
  %5695 = vrot.lane.b32.xlu0 %v4598, 32
  %v5696 = vpop.permute.xlu0 %5695
  %5697 = vrot.lane.b32.xlu0 %v4601, 32
  %v5698 = vpop.permute.xlu0 %5697
  %5699 = vrot.lane.b32.xlu0 %v4603, 32
  %v5700 = vpop.permute.xlu0 %5699
  %5701 = vrot.lane.b32.xlu0 %v4606, 32
  %v5702 = vpop.permute.xlu0 %5701
  %5703 = vrot.lane.b32.xlu0 %v4608, 32
  %v5704 = vpop.permute.xlu0 %5703
  %5705 = vrot.lane.b32.xlu0 %v4611, 32
  %v5706 = vpop.permute.xlu0 %5705
  %5707 = vrot.lane.b32.xlu0 %v4613, 32
  %v5708 = vpop.permute.xlu0 %5707
  %5709 = vrot.lane.b32.xlu0 %v4616, 32
  %v5710 = vpop.permute.xlu0 %5709
  %5711 = vrot.lane.b32.xlu0 %v4618, 32
  %v5712 = vpop.permute.xlu0 %5711
  %5713 = vrot.lane.b32.xlu0 %v4621, 32
  %v5714 = vpop.permute.xlu0 %5713
  %5715 = vrot.lane.b32.xlu0 %v4623, 32
  %v5716 = vpop.permute.xlu0 %5715
  %5717 = vrot.lane.b32.xlu0 %v4626, 32
  %v5718 = vpop.permute.xlu0 %5717
  %5719 = vrot.lane.b32.xlu0 %v4628, 32
  %v5720 = vpop.permute.xlu0 %5719
  %5721 = vrot.lane.b32.xlu0 %v4631, 32
  %v5722 = vpop.permute.xlu0 %5721
  %5723 = vrot.lane.b32.xlu0 %v4633, 32
  %v5724 = vpop.permute.xlu0 %5723
  %5725 = vrot.lane.b32.xlu0 %v4636, 32
  %v5726 = vpop.permute.xlu0 %5725
  %5727 = vrot.lane.b32.xlu0 %v4638, 32
  %v5728 = vpop.permute.xlu0 %5727
  %5729 = vrot.lane.b32.xlu0 %v4641, 32
  %v5730 = vpop.permute.xlu0 %5729
  %5731 = vrot.lane.b32.xlu0 %v4643, 32
  %v5732 = vpop.permute.xlu0 %5731
  %5733 = vrot.lane.b32.xlu0 %v4646, 32
  %v5734 = vpop.permute.xlu0 %5733
  %5735 = vrot.lane.b32.xlu0 %v4648, 32
  %v5736 = vpop.permute.xlu0 %5735
  %5737 = vrot.lane.b32.xlu0 %v4651, 32
  %v5738 = vpop.permute.xlu0 %5737
  %5739 = vrot.lane.b32.xlu0 %v4653, 32
  %v5740 = vpop.permute.xlu0 %5739
  %5741 = vrot.lane.b32.xlu0 %v5673, 32
  %v5742 = vpop.permute.xlu0 %5741
  %5743 = vrot.lane.b32.xlu0 %v5675, 32
  %v5744 = vpop.permute.xlu0 %5743
  %5745 = vrot.lane.b32.xlu0 %v4661, 32
  %v5746 = vpop.permute.xlu0 %5745
  %5747 = vrot.lane.b32.xlu0 %v4663, 32
  %v5748 = vpop.permute.xlu0 %5747
  %5749 = vrot.lane.b32.xlu0 %v4666, 32
  %v5750 = vpop.permute.xlu0 %5749
  %5751 = vrot.lane.b32.xlu0 %v4668, 32
  %v5752 = vpop.permute.xlu0 %5751
  %5753 = vrot.lane.b32.xlu0 %v4671, 32
  %v5754 = vpop.permute.xlu0 %5753
  %5755 = vrot.lane.b32.xlu0 %v4673, 32
  %v5756 = vpop.permute.xlu0 %5755
  %5757 = vrot.lane.b32.xlu0 %v4676, 32
  %v5758 = vpop.permute.xlu0 %5757
  %5759 = vrot.lane.b32.xlu0 %v4678, 32
  %v5760 = vpop.permute.xlu0 %5759
  %5761 = vrot.lane.b32.xlu0 %v4681, 32
  %v5762 = vpop.permute.xlu0 %5761
  %5763 = vrot.lane.b32.xlu0 %v4683, 32
  %v5764 = vpop.permute.xlu0 %5763
  %5765 = vrot.lane.b32.xlu0 %v4686, 32
  %v5766 = vpop.permute.xlu0 %5765
  %5767 = vrot.lane.b32.xlu0 %v4688, 32
  %v5768 = vpop.permute.xlu0 %5767
  %5769 = vrot.lane.b32.xlu0 %v4691, 32
  %v5770 = vpop.permute.xlu0 %5769
  %5771 = vrot.lane.b32.xlu0 %v4693, 32
  %v5772 = vpop.permute.xlu0 %5771
  %5773 = vrot.lane.b32.xlu0 %v4696, 32
  %v5774 = vpop.permute.xlu0 %5773
  %5775 = vrot.lane.b32.xlu0 %v4698, 32
  %v5776 = vpop.permute.xlu0 %5775
  %5777 = vrot.lane.b32.xlu0 %v4701, 32
  %v5778 = vpop.permute.xlu0 %5777
  %5779 = vrot.lane.b32.xlu0 %v4703, 32
  %v5780 = vpop.permute.xlu0 %5779
  %5781 = vrot.lane.b32.xlu0 %v4706, 32
  %v5782 = vpop.permute.xlu0 %5781
  %5783 = vrot.lane.b32.xlu0 %v4708, 32
  %v5784 = vpop.permute.xlu0 %5783
  %5785 = vrot.lane.b32.xlu0 %v4711, 32
  %v5786 = vpop.permute.xlu0 %5785
  %5787 = vrot.lane.b32.xlu0 %v4713, 32
  %v5788 = vpop.permute.xlu0 %5787
  %5789 = vrot.lane.b32.xlu0 %v4716, 32
  %v5790 = vpop.permute.xlu0 %5789
  %5791 = vrot.lane.b32.xlu0 %v4718, 32
  %v5792 = vpop.permute.xlu0 %5791
  %5793 = vrot.lane.b32.xlu0 %v4721, 32
  %v5794 = vpop.permute.xlu0 %5793
  %5795 = vrot.lane.b32.xlu0 %v4723, 32
  %v5796 = vpop.permute.xlu0 %5795
  %5797 = vrot.lane.b32.xlu0 %v4726, 32
  %v5798 = vpop.permute.xlu0 %5797
  %5799 = vrot.lane.b32.xlu0 %v4728, 32
  %v5800 = vpop.permute.xlu0 %5799
  %5801 = vrot.lane.b32.xlu0 %v4731, 32
  %v5802 = vpop.permute.xlu0 %5801
  %5803 = vrot.lane.b32.xlu0 %v4733, 32
  %v5804 = vpop.permute.xlu0 %5803
  %5805 = vrot.lane.b32.xlu0 %v5678, 32
  %v5806 = vpop.permute.xlu0 %5805
  %5807 = vrot.lane.b32.xlu0 %v5680, 32
  %v5808 = vpop.permute.xlu0 %5807
  %vm5873 = vcmask 326912
  %5874 = vst.msk [vmem:[#allocation5] sm:$0xff] %vm5873, %v5682
  %5875 = vst.msk [vmem:[#allocation5 + $0x8] sm:$0xff] %vm5873, %v5684
  %5876 = vst.msk [vmem:[#allocation5 + $0x10] sm:$0xff] %vm5873, %v5686
  %5877 = vst.msk [vmem:[#allocation5 + $0x18] sm:$0xff] %vm5873, %v5688
  %5878 = vst.msk [vmem:[#allocation5 + $0x20] sm:$0xff] %vm5873, %v5690
  %5879 = vst.msk [vmem:[#allocation5 + $0x28] sm:$0xff] %vm5873, %v5692
  %5880 = vst.msk [vmem:[#allocation5 + $0x30] sm:$0xff] %vm5873, %v5694
  %5881 = vst.msk [vmem:[#allocation5 + $0x38] sm:$0xff] %vm5873, %v5696
  %5882 = vst.msk [vmem:[#allocation5 + $0x40] sm:$0xff] %vm5873, %v5698
  %5883 = vst.msk [vmem:[#allocation5 + $0x48] sm:$0xff] %vm5873, %v5700
  %5884 = vst.msk [vmem:[#allocation5 + $0x50] sm:$0xff] %vm5873, %v5702
  %5885 = vst.msk [vmem:[#allocation5 + $0x58] sm:$0xff] %vm5873, %v5704
  %5886 = vst.msk [vmem:[#allocation5 + $0x60] sm:$0xff] %vm5873, %v5706
  %5887 = vst.msk [vmem:[#allocation5 + $0x68] sm:$0xff] %vm5873, %v5708
  %5888 = vst.msk [vmem:[#allocation5 + $0x70] sm:$0xff] %vm5873, %v5710
  %5889 = vst.msk [vmem:[#allocation5 + $0x78] sm:$0xff] %vm5873, %v5712
  %5890 = vst.msk [vmem:[#allocation5 + $0x80] sm:$0xff] %vm5873, %v5714
  %5891 = vst.msk [vmem:[#allocation5 + $0x88] sm:$0xff] %vm5873, %v5716
  %5892 = vst.msk [vmem:[#allocation5 + $0x90] sm:$0xff] %vm5873, %v5718
  %5893 = vst.msk [vmem:[#allocation5 + $0x98] sm:$0xff] %vm5873, %v5720
  %5894 = vst.msk [vmem:[#allocation5 + $0xa0] sm:$0xff] %vm5873, %v5722
  %5895 = vst.msk [vmem:[#allocation5 + $0xa8] sm:$0xff] %vm5873, %v5724
  %5896 = vst.msk [vmem:[#allocation5 + $0xb0] sm:$0xff] %vm5873, %v5726
  %5897 = vst.msk [vmem:[#allocation5 + $0xb8] sm:$0xff] %vm5873, %v5728
  %5898 = vst.msk [vmem:[#allocation5 + $0xc0] sm:$0xff] %vm5873, %v5730
  %5899 = vst.msk [vmem:[#allocation5 + $0xc8] sm:$0xff] %vm5873, %v5732
  %5900 = vst.msk [vmem:[#allocation5 + $0xd0] sm:$0xff] %vm5873, %v5734
  %5901 = vst.msk [vmem:[#allocation5 + $0xd8] sm:$0xff] %vm5873, %v5736
  %5902 = vst.msk [vmem:[#allocation5 + $0xe0] sm:$0xff] %vm5873, %v5738
  %5903 = vst.msk [vmem:[#allocation5 + $0xe8] sm:$0xff] %vm5873, %v5740
  %5904 = vst.msk [vmem:[#allocation5 + $0xf0] sm:$0xff] %vm5873, %v5742
  %5905 = vst.msk [vmem:[#allocation5 + $0xf8] sm:$0xff] %vm5873, %v5744
  %5906 = vst.msk [vmem:[#allocation5 + $0x100] sm:$0xff] %vm5873, %v5746
  %5907 = vst.msk [vmem:[#allocation5 + $0x108] sm:$0xff] %vm5873, %v5748
  %5908 = vst.msk [vmem:[#allocation5 + $0x110] sm:$0xff] %vm5873, %v5750
  %5909 = vst.msk [vmem:[#allocation5 + $0x118] sm:$0xff] %vm5873, %v5752
  %5910 = vst.msk [vmem:[#allocation5 + $0x120] sm:$0xff] %vm5873, %v5754
  %5911 = vst.msk [vmem:[#allocation5 + $0x128] sm:$0xff] %vm5873, %v5756
  %5912 = vst.msk [vmem:[#allocation5 + $0x130] sm:$0xff] %vm5873, %v5758
  %5913 = vst.msk [vmem:[#allocation5 + $0x138] sm:$0xff] %vm5873, %v5760
  %5914 = vst.msk [vmem:[#allocation5 + $0x140] sm:$0xff] %vm5873, %v5762
  %5915 = vst.msk [vmem:[#allocation5 + $0x148] sm:$0xff] %vm5873, %v5764
  %5916 = vst.msk [vmem:[#allocation5 + $0x150] sm:$0xff] %vm5873, %v5766
  %5917 = vst.msk [vmem:[#allocation5 + $0x158] sm:$0xff] %vm5873, %v5768
  %5918 = vst.msk [vmem:[#allocation5 + $0x160] sm:$0xff] %vm5873, %v5770
  %5919 = vst.msk [vmem:[#allocation5 + $0x168] sm:$0xff] %vm5873, %v5772
  %5920 = vst.msk [vmem:[#allocation5 + $0x170] sm:$0xff] %vm5873, %v5774
  %5921 = vst.msk [vmem:[#allocation5 + $0x178] sm:$0xff] %vm5873, %v5776
  %5922 = vst.msk [vmem:[#allocation5 + $0x180] sm:$0xff] %vm5873, %v5778
  %5923 = vst.msk [vmem:[#allocation5 + $0x188] sm:$0xff] %vm5873, %v5780
  %5924 = vst.msk [vmem:[#allocation5 + $0x190] sm:$0xff] %vm5873, %v5782
  %5925 = vst.msk [vmem:[#allocation5 + $0x198] sm:$0xff] %vm5873, %v5784
  %5926 = vst.msk [vmem:[#allocation5 + $0x1a0] sm:$0xff] %vm5873, %v5786
  %5927 = vst.msk [vmem:[#allocation5 + $0x1a8] sm:$0xff] %vm5873, %v5788
  %5928 = vst.msk [vmem:[#allocation5 + $0x1b0] sm:$0xff] %vm5873, %v5790
  %5929 = vst.msk [vmem:[#allocation5 + $0x1b8] sm:$0xff] %vm5873, %v5792
  %5930 = vst.msk [vmem:[#allocation5 + $0x1c0] sm:$0xff] %vm5873, %v5794
  %5931 = vst.msk [vmem:[#allocation5 + $0x1c8] sm:$0xff] %vm5873, %v5796
  %5932 = vst.msk [vmem:[#allocation5 + $0x1d0] sm:$0xff] %vm5873, %v5798
  %5933 = vst.msk [vmem:[#allocation5 + $0x1d8] sm:$0xff] %vm5873, %v5800
  %5934 = vst.msk [vmem:[#allocation5 + $0x1e0] sm:$0xff] %vm5873, %v5802
  %5935 = vst.msk [vmem:[#allocation5 + $0x1e8] sm:$0xff] %vm5873, %v5804
  %5936 = vst.msk [vmem:[#allocation5 + $0x1f0] sm:$0xff] %vm5873, %v5806
  %5937 = vst.msk [vmem:[#allocation5 + $0x1f8] sm:$0xff] %vm5873, %v5808
  %v5938 = vrot.slane %v4354, 2
  %v5939 = vrot.slane %v4355, 2
  %v5940 = vsel %vm938, %v5938, %v5939
  %v5941 = vrot.slane %v4356, 2
  %v5942 = vsel %vm938, %v5939, %v5941
  %v5943 = vrot.slane %v4408, 2
  %v5944 = vrot.slane %v4409, 2
  %v5945 = vsel %vm938, %v5943, %v5944
  %v5946 = vrot.slane %v4410, 2
  %v5947 = vsel %vm938, %v5944, %v5946
  %5948 = vrot.lane.b32.xlu0 %v4998, 40
  %v5949 = vpop.permute.xlu0 %5948
  %5950 = vrot.lane.b32.xlu0 %v5000, 40
  %v5951 = vpop.permute.xlu0 %5950
  %5952 = vrot.lane.b32.xlu0 %v5003, 40
  %v5953 = vpop.permute.xlu0 %5952
  %5954 = vrot.lane.b32.xlu0 %v5005, 40
  %v5955 = vpop.permute.xlu0 %5954
  %5956 = vrot.lane.b32.xlu0 %v5008, 40
  %v5957 = vpop.permute.xlu0 %5956
  %5958 = vrot.lane.b32.xlu0 %v5010, 40
  %v5959 = vpop.permute.xlu0 %5958
  %5960 = vrot.lane.b32.xlu0 %v5013, 40
  %v5961 = vpop.permute.xlu0 %5960
  %5962 = vrot.lane.b32.xlu0 %v5015, 40
  %v5963 = vpop.permute.xlu0 %5962
  %5964 = vrot.lane.b32.xlu0 %v5018, 40
  %v5965 = vpop.permute.xlu0 %5964
  %5966 = vrot.lane.b32.xlu0 %v5020, 40
  %v5967 = vpop.permute.xlu0 %5966
  %5968 = vrot.lane.b32.xlu0 %v5023, 40
  %v5969 = vpop.permute.xlu0 %5968
  %5970 = vrot.lane.b32.xlu0 %v5025, 40
  %v5971 = vpop.permute.xlu0 %5970
  %5972 = vrot.lane.b32.xlu0 %v5028, 40
  %v5973 = vpop.permute.xlu0 %5972
  %5974 = vrot.lane.b32.xlu0 %v5030, 40
  %v5975 = vpop.permute.xlu0 %5974
  %5976 = vrot.lane.b32.xlu0 %v5033, 40
  %v5977 = vpop.permute.xlu0 %5976
  %5978 = vrot.lane.b32.xlu0 %v5035, 40
  %v5979 = vpop.permute.xlu0 %5978
  %5980 = vrot.lane.b32.xlu0 %v5038, 40
  %v5981 = vpop.permute.xlu0 %5980
  %5982 = vrot.lane.b32.xlu0 %v5040, 40
  %v5983 = vpop.permute.xlu0 %5982
  %5984 = vrot.lane.b32.xlu0 %v5043, 40
  %v5985 = vpop.permute.xlu0 %5984
  %5986 = vrot.lane.b32.xlu0 %v5045, 40
  %v5987 = vpop.permute.xlu0 %5986
  %5988 = vrot.lane.b32.xlu0 %v5048, 40
  %v5989 = vpop.permute.xlu0 %5988
  %5990 = vrot.lane.b32.xlu0 %v5050, 40
  %v5991 = vpop.permute.xlu0 %5990
  %5992 = vrot.lane.b32.xlu0 %v5053, 40
  %v5993 = vpop.permute.xlu0 %5992
  %5994 = vrot.lane.b32.xlu0 %v5055, 40
  %v5995 = vpop.permute.xlu0 %5994
  %5996 = vrot.lane.b32.xlu0 %v5058, 40
  %v5997 = vpop.permute.xlu0 %5996
  %5998 = vrot.lane.b32.xlu0 %v5060, 40
  %v5999 = vpop.permute.xlu0 %5998
  %6000 = vrot.lane.b32.xlu0 %v5063, 40
  %v6001 = vpop.permute.xlu0 %6000
  %6002 = vrot.lane.b32.xlu0 %v5065, 40
  %v6003 = vpop.permute.xlu0 %6002
  %6004 = vrot.lane.b32.xlu0 %v5068, 40
  %v6005 = vpop.permute.xlu0 %6004
  %6006 = vrot.lane.b32.xlu0 %v5070, 40
  %v6007 = vpop.permute.xlu0 %6006
  %6008 = vrot.lane.b32.xlu0 %v5940, 40
  %v6009 = vpop.permute.xlu0 %6008
  %6010 = vrot.lane.b32.xlu0 %v5942, 40
  %v6011 = vpop.permute.xlu0 %6010
  %6012 = vrot.lane.b32.xlu0 %v5078, 40
  %v6013 = vpop.permute.xlu0 %6012
  %6014 = vrot.lane.b32.xlu0 %v5080, 40
  %v6015 = vpop.permute.xlu0 %6014
  %6016 = vrot.lane.b32.xlu0 %v5083, 40
  %v6017 = vpop.permute.xlu0 %6016
  %6018 = vrot.lane.b32.xlu0 %v5085, 40
  %v6019 = vpop.permute.xlu0 %6018
  %6020 = vrot.lane.b32.xlu0 %v5088, 40
  %v6021 = vpop.permute.xlu0 %6020
  %6022 = vrot.lane.b32.xlu0 %v5090, 40
  %v6023 = vpop.permute.xlu0 %6022
  %6024 = vrot.lane.b32.xlu0 %v5093, 40
  %v6025 = vpop.permute.xlu0 %6024
  %6026 = vrot.lane.b32.xlu0 %v5095, 40
  %v6027 = vpop.permute.xlu0 %6026
  %6028 = vrot.lane.b32.xlu0 %v5098, 40
  %v6029 = vpop.permute.xlu0 %6028
  %6030 = vrot.lane.b32.xlu0 %v5100, 40
  %v6031 = vpop.permute.xlu0 %6030
  %6032 = vrot.lane.b32.xlu0 %v5103, 40
  %v6033 = vpop.permute.xlu0 %6032
  %6034 = vrot.lane.b32.xlu0 %v5105, 40
  %v6035 = vpop.permute.xlu0 %6034
  %6036 = vrot.lane.b32.xlu0 %v5108, 40
  %v6037 = vpop.permute.xlu0 %6036
  %6038 = vrot.lane.b32.xlu0 %v5110, 40
  %v6039 = vpop.permute.xlu0 %6038
  %6040 = vrot.lane.b32.xlu0 %v5113, 40
  %v6041 = vpop.permute.xlu0 %6040
  %6042 = vrot.lane.b32.xlu0 %v5115, 40
  %v6043 = vpop.permute.xlu0 %6042
  %6044 = vrot.lane.b32.xlu0 %v5118, 40
  %v6045 = vpop.permute.xlu0 %6044
  %6046 = vrot.lane.b32.xlu0 %v5120, 40
  %v6047 = vpop.permute.xlu0 %6046
  %6048 = vrot.lane.b32.xlu0 %v5123, 40
  %v6049 = vpop.permute.xlu0 %6048
  %6050 = vrot.lane.b32.xlu0 %v5125, 40
  %v6051 = vpop.permute.xlu0 %6050
  %6052 = vrot.lane.b32.xlu0 %v5128, 40
  %v6053 = vpop.permute.xlu0 %6052
  %6054 = vrot.lane.b32.xlu0 %v5130, 40
  %v6055 = vpop.permute.xlu0 %6054
  %6056 = vrot.lane.b32.xlu0 %v5133, 40
  %v6057 = vpop.permute.xlu0 %6056
  %6058 = vrot.lane.b32.xlu0 %v5135, 40
  %v6059 = vpop.permute.xlu0 %6058
  %6060 = vrot.lane.b32.xlu0 %v5138, 40
  %v6061 = vpop.permute.xlu0 %6060
  %6062 = vrot.lane.b32.xlu0 %v5140, 40
  %v6063 = vpop.permute.xlu0 %6062
  %6064 = vrot.lane.b32.xlu0 %v5143, 40
  %v6065 = vpop.permute.xlu0 %6064
  %6066 = vrot.lane.b32.xlu0 %v5145, 40
  %v6067 = vpop.permute.xlu0 %6066
  %6068 = vrot.lane.b32.xlu0 %v5148, 40
  %v6069 = vpop.permute.xlu0 %6068
  %6070 = vrot.lane.b32.xlu0 %v5150, 40
  %v6071 = vpop.permute.xlu0 %6070
  %6072 = vrot.lane.b32.xlu0 %v5945, 40
  %v6073 = vpop.permute.xlu0 %6072
  %6074 = vrot.lane.b32.xlu0 %v5947, 40
  %v6075 = vpop.permute.xlu0 %6074
  %vm6140 = vcmask 392512
  %6141 = vst.msk [vmem:[#allocation5] sm:$0xff] %vm6140, %v5949
  %6142 = vst.msk [vmem:[#allocation5 + $0x8] sm:$0xff] %vm6140, %v5951
  %6143 = vst.msk [vmem:[#allocation5 + $0x10] sm:$0xff] %vm6140, %v5953
  %6144 = vst.msk [vmem:[#allocation5 + $0x18] sm:$0xff] %vm6140, %v5955
  %6145 = vst.msk [vmem:[#allocation5 + $0x20] sm:$0xff] %vm6140, %v5957
  %6146 = vst.msk [vmem:[#allocation5 + $0x28] sm:$0xff] %vm6140, %v5959
  %6147 = vst.msk [vmem:[#allocation5 + $0x30] sm:$0xff] %vm6140, %v5961
  %6148 = vst.msk [vmem:[#allocation5 + $0x38] sm:$0xff] %vm6140, %v5963
  %6149 = vst.msk [vmem:[#allocation5 + $0x40] sm:$0xff] %vm6140, %v5965
  %6150 = vst.msk [vmem:[#allocation5 + $0x48] sm:$0xff] %vm6140, %v5967
  %6151 = vst.msk [vmem:[#allocation5 + $0x50] sm:$0xff] %vm6140, %v5969
  %6152 = vst.msk [vmem:[#allocation5 + $0x58] sm:$0xff] %vm6140, %v5971
  %6153 = vst.msk [vmem:[#allocation5 + $0x60] sm:$0xff] %vm6140, %v5973
  %6154 = vst.msk [vmem:[#allocation5 + $0x68] sm:$0xff] %vm6140, %v5975
  %6155 = vst.msk [vmem:[#allocation5 + $0x70] sm:$0xff] %vm6140, %v5977
  %6156 = vst.msk [vmem:[#allocation5 + $0x78] sm:$0xff] %vm6140, %v5979
  %6157 = vst.msk [vmem:[#allocation5 + $0x80] sm:$0xff] %vm6140, %v5981
  %6158 = vst.msk [vmem:[#allocation5 + $0x88] sm:$0xff] %vm6140, %v5983
  %6159 = vst.msk [vmem:[#allocation5 + $0x90] sm:$0xff] %vm6140, %v5985
  %6160 = vst.msk [vmem:[#allocation5 + $0x98] sm:$0xff] %vm6140, %v5987
  %6161 = vst.msk [vmem:[#allocation5 + $0xa0] sm:$0xff] %vm6140, %v5989
  %6162 = vst.msk [vmem:[#allocation5 + $0xa8] sm:$0xff] %vm6140, %v5991
  %6163 = vst.msk [vmem:[#allocation5 + $0xb0] sm:$0xff] %vm6140, %v5993
  %6164 = vst.msk [vmem:[#allocation5 + $0xb8] sm:$0xff] %vm6140, %v5995
  %6165 = vst.msk [vmem:[#allocation5 + $0xc0] sm:$0xff] %vm6140, %v5997
  %6166 = vst.msk [vmem:[#allocation5 + $0xc8] sm:$0xff] %vm6140, %v5999
  %6167 = vst.msk [vmem:[#allocation5 + $0xd0] sm:$0xff] %vm6140, %v6001
  %6168 = vst.msk [vmem:[#allocation5 + $0xd8] sm:$0xff] %vm6140, %v6003
  %6169 = vst.msk [vmem:[#allocation5 + $0xe0] sm:$0xff] %vm6140, %v6005
  %6170 = vst.msk [vmem:[#allocation5 + $0xe8] sm:$0xff] %vm6140, %v6007
  %6171 = vst.msk [vmem:[#allocation5 + $0xf0] sm:$0xff] %vm6140, %v6009
  %6172 = vst.msk [vmem:[#allocation5 + $0xf8] sm:$0xff] %vm6140, %v6011
  %6173 = vst.msk [vmem:[#allocation5 + $0x100] sm:$0xff] %vm6140, %v6013
  %6174 = vst.msk [vmem:[#allocation5 + $0x108] sm:$0xff] %vm6140, %v6015
  %6175 = vst.msk [vmem:[#allocation5 + $0x110] sm:$0xff] %vm6140, %v6017
  %6176 = vst.msk [vmem:[#allocation5 + $0x118] sm:$0xff] %vm6140, %v6019
  %6177 = vst.msk [vmem:[#allocation5 + $0x120] sm:$0xff] %vm6140, %v6021
  %6178 = vst.msk [vmem:[#allocation5 + $0x128] sm:$0xff] %vm6140, %v6023
  %6179 = vst.msk [vmem:[#allocation5 + $0x130] sm:$0xff] %vm6140, %v6025
  %6180 = vst.msk [vmem:[#allocation5 + $0x138] sm:$0xff] %vm6140, %v6027
  %6181 = vst.msk [vmem:[#allocation5 + $0x140] sm:$0xff] %vm6140, %v6029
  %6182 = vst.msk [vmem:[#allocation5 + $0x148] sm:$0xff] %vm6140, %v6031
  %6183 = vst.msk [vmem:[#allocation5 + $0x150] sm:$0xff] %vm6140, %v6033
  %6184 = vst.msk [vmem:[#allocation5 + $0x158] sm:$0xff] %vm6140, %v6035
  %6185 = vst.msk [vmem:[#allocation5 + $0x160] sm:$0xff] %vm6140, %v6037
  %6186 = vst.msk [vmem:[#allocation5 + $0x168] sm:$0xff] %vm6140, %v6039
  %6187 = vst.msk [vmem:[#allocation5 + $0x170] sm:$0xff] %vm6140, %v6041
  %6188 = vst.msk [vmem:[#allocation5 + $0x178] sm:$0xff] %vm6140, %v6043
  %6189 = vst.msk [vmem:[#allocation5 + $0x180] sm:$0xff] %vm6140, %v6045
  %6190 = vst.msk [vmem:[#allocation5 + $0x188] sm:$0xff] %vm6140, %v6047
  %6191 = vst.msk [vmem:[#allocation5 + $0x190] sm:$0xff] %vm6140, %v6049
  %6192 = vst.msk [vmem:[#allocation5 + $0x198] sm:$0xff] %vm6140, %v6051
  %6193 = vst.msk [vmem:[#allocation5 + $0x1a0] sm:$0xff] %vm6140, %v6053
  %6194 = vst.msk [vmem:[#allocation5 + $0x1a8] sm:$0xff] %vm6140, %v6055
  %6195 = vst.msk [vmem:[#allocation5 + $0x1b0] sm:$0xff] %vm6140, %v6057
  %6196 = vst.msk [vmem:[#allocation5 + $0x1b8] sm:$0xff] %vm6140, %v6059
  %6197 = vst.msk [vmem:[#allocation5 + $0x1c0] sm:$0xff] %vm6140, %v6061
  %6198 = vst.msk [vmem:[#allocation5 + $0x1c8] sm:$0xff] %vm6140, %v6063
  %6199 = vst.msk [vmem:[#allocation5 + $0x1d0] sm:$0xff] %vm6140, %v6065
  %6200 = vst.msk [vmem:[#allocation5 + $0x1d8] sm:$0xff] %vm6140, %v6067
  %6201 = vst.msk [vmem:[#allocation5 + $0x1e0] sm:$0xff] %vm6140, %v6069
  %6202 = vst.msk [vmem:[#allocation5 + $0x1e8] sm:$0xff] %vm6140, %v6071
  %6203 = vst.msk [vmem:[#allocation5 + $0x1f0] sm:$0xff] %vm6140, %v6073
  %6204 = vst.msk [vmem:[#allocation5 + $0x1f8] sm:$0xff] %vm6140, %v6075
  %6209 = vrot.lane.b32.xlu0 %v4312, 48
  %v6210 = vpop.permute.xlu0 %6209
  %6211 = vrot.lane.b32.xlu0 %v4313, 48
  %v6212 = vpop.permute.xlu0 %6211
  %6213 = vrot.lane.b32.xlu0 %v4315, 48
  %v6214 = vpop.permute.xlu0 %6213
  %6215 = vrot.lane.b32.xlu0 %v4316, 48
  %v6216 = vpop.permute.xlu0 %6215
  %6217 = vrot.lane.b32.xlu0 %v4318, 48
  %v6218 = vpop.permute.xlu0 %6217
  %6219 = vrot.lane.b32.xlu0 %v4319, 48
  %v6220 = vpop.permute.xlu0 %6219
  %6221 = vrot.lane.b32.xlu0 %v4321, 48
  %v6222 = vpop.permute.xlu0 %6221
  %6223 = vrot.lane.b32.xlu0 %v4322, 48
  %v6224 = vpop.permute.xlu0 %6223
  %6225 = vrot.lane.b32.xlu0 %v4324, 48
  %v6226 = vpop.permute.xlu0 %6225
  %6227 = vrot.lane.b32.xlu0 %v4325, 48
  %v6228 = vpop.permute.xlu0 %6227
  %6229 = vrot.lane.b32.xlu0 %v4327, 48
  %v6230 = vpop.permute.xlu0 %6229
  %6231 = vrot.lane.b32.xlu0 %v4328, 48
  %v6232 = vpop.permute.xlu0 %6231
  %6233 = vrot.lane.b32.xlu0 %v4330, 48
  %v6234 = vpop.permute.xlu0 %6233
  %6235 = vrot.lane.b32.xlu0 %v4331, 48
  %v6236 = vpop.permute.xlu0 %6235
  %6237 = vrot.lane.b32.xlu0 %v4333, 48
  %v6238 = vpop.permute.xlu0 %6237
  %6239 = vrot.lane.b32.xlu0 %v4334, 48
  %v6240 = vpop.permute.xlu0 %6239
  %6241 = vrot.lane.b32.xlu0 %v4336, 48
  %v6242 = vpop.permute.xlu0 %6241
  %6243 = vrot.lane.b32.xlu0 %v4337, 48
  %v6244 = vpop.permute.xlu0 %6243
  %6245 = vrot.lane.b32.xlu0 %v4339, 48
  %v6246 = vpop.permute.xlu0 %6245
  %6247 = vrot.lane.b32.xlu0 %v4340, 48
  %v6248 = vpop.permute.xlu0 %6247
  %6249 = vrot.lane.b32.xlu0 %v4342, 48
  %v6250 = vpop.permute.xlu0 %6249
  %6251 = vrot.lane.b32.xlu0 %v4343, 48
  %v6252 = vpop.permute.xlu0 %6251
  %6253 = vrot.lane.b32.xlu0 %v4345, 48
  %v6254 = vpop.permute.xlu0 %6253
  %6255 = vrot.lane.b32.xlu0 %v4346, 48
  %v6256 = vpop.permute.xlu0 %6255
  %6257 = vrot.lane.b32.xlu0 %v4348, 48
  %v6258 = vpop.permute.xlu0 %6257
  %6259 = vrot.lane.b32.xlu0 %v4349, 48
  %v6260 = vpop.permute.xlu0 %6259
  %6261 = vrot.lane.b32.xlu0 %v4351, 48
  %v6262 = vpop.permute.xlu0 %6261
  %6263 = vrot.lane.b32.xlu0 %v4352, 48
  %v6264 = vpop.permute.xlu0 %6263
  %6265 = vrot.lane.b32.xlu0 %v4354, 48
  %v6266 = vpop.permute.xlu0 %6265
  %6267 = vrot.lane.b32.xlu0 %v4355, 48
  %v6268 = vpop.permute.xlu0 %6267
  %6269 = vrot.lane.b32.xlu0 %v4357, 48
  %v6270 = vpop.permute.xlu0 %6269
  %6271 = vrot.lane.b32.xlu0 %v4358, 48
  %v6272 = vpop.permute.xlu0 %6271
  %6273 = vrot.lane.b32.xlu0 %v4366, 48
  %v6274 = vpop.permute.xlu0 %6273
  %6275 = vrot.lane.b32.xlu0 %v4367, 48
  %v6276 = vpop.permute.xlu0 %6275
  %6277 = vrot.lane.b32.xlu0 %v4369, 48
  %v6278 = vpop.permute.xlu0 %6277
  %6279 = vrot.lane.b32.xlu0 %v4370, 48
  %v6280 = vpop.permute.xlu0 %6279
  %6281 = vrot.lane.b32.xlu0 %v4372, 48
  %v6282 = vpop.permute.xlu0 %6281
  %6283 = vrot.lane.b32.xlu0 %v4373, 48
  %v6284 = vpop.permute.xlu0 %6283
  %6285 = vrot.lane.b32.xlu0 %v4375, 48
  %v6286 = vpop.permute.xlu0 %6285
  %6287 = vrot.lane.b32.xlu0 %v4376, 48
  %v6288 = vpop.permute.xlu0 %6287
  %6289 = vrot.lane.b32.xlu0 %v4378, 48
  %v6290 = vpop.permute.xlu0 %6289
  %6291 = vrot.lane.b32.xlu0 %v4379, 48
  %v6292 = vpop.permute.xlu0 %6291
  %6293 = vrot.lane.b32.xlu0 %v4381, 48
  %v6294 = vpop.permute.xlu0 %6293
  %6295 = vrot.lane.b32.xlu0 %v4382, 48
  %v6296 = vpop.permute.xlu0 %6295
  %6297 = vrot.lane.b32.xlu0 %v4384, 48
  %v6298 = vpop.permute.xlu0 %6297
  %6299 = vrot.lane.b32.xlu0 %v4385, 48
  %v6300 = vpop.permute.xlu0 %6299
  %6301 = vrot.lane.b32.xlu0 %v4387, 48
  %v6302 = vpop.permute.xlu0 %6301
  %6303 = vrot.lane.b32.xlu0 %v4388, 48
  %v6304 = vpop.permute.xlu0 %6303
  %6305 = vrot.lane.b32.xlu0 %v4390, 48
  %v6306 = vpop.permute.xlu0 %6305
  %6307 = vrot.lane.b32.xlu0 %v4391, 48
  %v6308 = vpop.permute.xlu0 %6307
  %6309 = vrot.lane.b32.xlu0 %v4393, 48
  %v6310 = vpop.permute.xlu0 %6309
  %6311 = vrot.lane.b32.xlu0 %v4394, 48
  %v6312 = vpop.permute.xlu0 %6311
  %6313 = vrot.lane.b32.xlu0 %v4396, 48
  %v6314 = vpop.permute.xlu0 %6313
  %6315 = vrot.lane.b32.xlu0 %v4397, 48
  %v6316 = vpop.permute.xlu0 %6315
  %6317 = vrot.lane.b32.xlu0 %v4399, 48
  %v6318 = vpop.permute.xlu0 %6317
  %6319 = vrot.lane.b32.xlu0 %v4400, 48
  %v6320 = vpop.permute.xlu0 %6319
  %6321 = vrot.lane.b32.xlu0 %v4402, 48
  %v6322 = vpop.permute.xlu0 %6321
  %6323 = vrot.lane.b32.xlu0 %v4403, 48
  %v6324 = vpop.permute.xlu0 %6323
  %6325 = vrot.lane.b32.xlu0 %v4405, 48
  %v6326 = vpop.permute.xlu0 %6325
  %6327 = vrot.lane.b32.xlu0 %v4406, 48
  %v6328 = vpop.permute.xlu0 %6327
  %6329 = vrot.lane.b32.xlu0 %v4408, 48
  %v6330 = vpop.permute.xlu0 %6329
  %6331 = vrot.lane.b32.xlu0 %v4409, 48
  %v6332 = vpop.permute.xlu0 %6331
  %6333 = vrot.lane.b32.xlu0 %v4411, 48
  %v6334 = vpop.permute.xlu0 %6333
  %6335 = vrot.lane.b32.xlu0 %v4412, 48
  %v6336 = vpop.permute.xlu0 %6335
  %vm6401 = vcmask 458112
  %6402 = vst.msk [vmem:[#allocation5] sm:$0xff] %vm6401, %v6210
  %6403 = vst.msk [vmem:[#allocation5 + $0x8] sm:$0xff] %vm6401, %v6212
  %6404 = vst.msk [vmem:[#allocation5 + $0x10] sm:$0xff] %vm6401, %v6214
  %6405 = vst.msk [vmem:[#allocation5 + $0x18] sm:$0xff] %vm6401, %v6216
  %6406 = vst.msk [vmem:[#allocation5 + $0x20] sm:$0xff] %vm6401, %v6218
  %6407 = vst.msk [vmem:[#allocation5 + $0x28] sm:$0xff] %vm6401, %v6220
  %6408 = vst.msk [vmem:[#allocation5 + $0x30] sm:$0xff] %vm6401, %v6222
  %6409 = vst.msk [vmem:[#allocation5 + $0x38] sm:$0xff] %vm6401, %v6224
  %6410 = vst.msk [vmem:[#allocation5 + $0x40] sm:$0xff] %vm6401, %v6226
  %6411 = vst.msk [vmem:[#allocation5 + $0x48] sm:$0xff] %vm6401, %v6228
  %6412 = vst.msk [vmem:[#allocation5 + $0x50] sm:$0xff] %vm6401, %v6230
  %6413 = vst.msk [vmem:[#allocation5 + $0x58] sm:$0xff] %vm6401, %v6232
  %6414 = vst.msk [vmem:[#allocation5 + $0x60] sm:$0xff] %vm6401, %v6234
  %6415 = vst.msk [vmem:[#allocation5 + $0x68] sm:$0xff] %vm6401, %v6236
  %6416 = vst.msk [vmem:[#allocation5 + $0x70] sm:$0xff] %vm6401, %v6238
  %6417 = vst.msk [vmem:[#allocation5 + $0x78] sm:$0xff] %vm6401, %v6240
  %6418 = vst.msk [vmem:[#allocation5 + $0x80] sm:$0xff] %vm6401, %v6242
  %6419 = vst.msk [vmem:[#allocation5 + $0x88] sm:$0xff] %vm6401, %v6244
  %6420 = vst.msk [vmem:[#allocation5 + $0x90] sm:$0xff] %vm6401, %v6246
  %6421 = vst.msk [vmem:[#allocation5 + $0x98] sm:$0xff] %vm6401, %v6248
  %6422 = vst.msk [vmem:[#allocation5 + $0xa0] sm:$0xff] %vm6401, %v6250
  %6423 = vst.msk [vmem:[#allocation5 + $0xa8] sm:$0xff] %vm6401, %v6252
  %6424 = vst.msk [vmem:[#allocation5 + $0xb0] sm:$0xff] %vm6401, %v6254
  %6425 = vst.msk [vmem:[#allocation5 + $0xb8] sm:$0xff] %vm6401, %v6256
  %6426 = vst.msk [vmem:[#allocation5 + $0xc0] sm:$0xff] %vm6401, %v6258
  %6427 = vst.msk [vmem:[#allocation5 + $0xc8] sm:$0xff] %vm6401, %v6260
  %6428 = vst.msk [vmem:[#allocation5 + $0xd0] sm:$0xff] %vm6401, %v6262
  %6429 = vst.msk [vmem:[#allocation5 + $0xd8] sm:$0xff] %vm6401, %v6264
  %6430 = vst.msk [vmem:[#allocation5 + $0xe0] sm:$0xff] %vm6401, %v6266
  %6431 = vst.msk [vmem:[#allocation5 + $0xe8] sm:$0xff] %vm6401, %v6268
  %6432 = vst.msk [vmem:[#allocation5 + $0xf0] sm:$0xff] %vm6401, %v6270
  %6433 = vst.msk [vmem:[#allocation5 + $0xf8] sm:$0xff] %vm6401, %v6272
  %6434 = vst.msk [vmem:[#allocation5 + $0x100] sm:$0xff] %vm6401, %v6274
  %6435 = vst.msk [vmem:[#allocation5 + $0x108] sm:$0xff] %vm6401, %v6276
  %6436 = vst.msk [vmem:[#allocation5 + $0x110] sm:$0xff] %vm6401, %v6278
  %6437 = vst.msk [vmem:[#allocation5 + $0x118] sm:$0xff] %vm6401, %v6280
  %6438 = vst.msk [vmem:[#allocation5 + $0x120] sm:$0xff] %vm6401, %v6282
  %6439 = vst.msk [vmem:[#allocation5 + $0x128] sm:$0xff] %vm6401, %v6284
  %6440 = vst.msk [vmem:[#allocation5 + $0x130] sm:$0xff] %vm6401, %v6286
  %6441 = vst.msk [vmem:[#allocation5 + $0x138] sm:$0xff] %vm6401, %v6288
  %6442 = vst.msk [vmem:[#allocation5 + $0x140] sm:$0xff] %vm6401, %v6290
  %6443 = vst.msk [vmem:[#allocation5 + $0x148] sm:$0xff] %vm6401, %v6292
  %6444 = vst.msk [vmem:[#allocation5 + $0x150] sm:$0xff] %vm6401, %v6294
  %6445 = vst.msk [vmem:[#allocation5 + $0x158] sm:$0xff] %vm6401, %v6296
  %6446 = vst.msk [vmem:[#allocation5 + $0x160] sm:$0xff] %vm6401, %v6298
  %6447 = vst.msk [vmem:[#allocation5 + $0x168] sm:$0xff] %vm6401, %v6300
  %6448 = vst.msk [vmem:[#allocation5 + $0x170] sm:$0xff] %vm6401, %v6302
  %6449 = vst.msk [vmem:[#allocation5 + $0x178] sm:$0xff] %vm6401, %v6304
  %6450 = vst.msk [vmem:[#allocation5 + $0x180] sm:$0xff] %vm6401, %v6306
  %6451 = vst.msk [vmem:[#allocation5 + $0x188] sm:$0xff] %vm6401, %v6308
  %6452 = vst.msk [vmem:[#allocation5 + $0x190] sm:$0xff] %vm6401, %v6310
  %6453 = vst.msk [vmem:[#allocation5 + $0x198] sm:$0xff] %vm6401, %v6312
  %6454 = vst.msk [vmem:[#allocation5 + $0x1a0] sm:$0xff] %vm6401, %v6314
  %6455 = vst.msk [vmem:[#allocation5 + $0x1a8] sm:$0xff] %vm6401, %v6316
  %6456 = vst.msk [vmem:[#allocation5 + $0x1b0] sm:$0xff] %vm6401, %v6318
  %6457 = vst.msk [vmem:[#allocation5 + $0x1b8] sm:$0xff] %vm6401, %v6320
  %6458 = vst.msk [vmem:[#allocation5 + $0x1c0] sm:$0xff] %vm6401, %v6322
  %6459 = vst.msk [vmem:[#allocation5 + $0x1c8] sm:$0xff] %vm6401, %v6324
  %6460 = vst.msk [vmem:[#allocation5 + $0x1d0] sm:$0xff] %vm6401, %v6326
  %6461 = vst.msk [vmem:[#allocation5 + $0x1d8] sm:$0xff] %vm6401, %v6328
  %6462 = vst.msk [vmem:[#allocation5 + $0x1e0] sm:$0xff] %vm6401, %v6330
  %6463 = vst.msk [vmem:[#allocation5 + $0x1e8] sm:$0xff] %vm6401, %v6332
  %6464 = vst.msk [vmem:[#allocation5 + $0x1f0] sm:$0xff] %vm6401, %v6334
  %6465 = vst.msk [vmem:[#allocation5 + $0x1f8] sm:$0xff] %vm6401, %v6336
  %v6468 = vrot.slane %v4357, 1
  %v6469 = vrot.slane %v4358, 1
  %v6470 = vsel %vm520, %v6468, %v6469
  %v6471 = vrot.slane %v4359, 1
  %v6472 = vsel %vm520, %v6469, %v6471
  %v6473 = vrot.slane %v4411, 1
  %v6474 = vrot.slane %v4412, 1
  %v6475 = vsel %vm520, %v6473, %v6474
  %v6476 = vrot.slane %v4413, 1
  %v6477 = vsel %vm520, %v6474, %v6476
  %6478 = vrot.lane.b32.xlu0 %v4586, 56
  %v6479 = vpop.permute.xlu0 %6478
  %6480 = vrot.lane.b32.xlu0 %v4588, 56
  %v6481 = vpop.permute.xlu0 %6480
  %6482 = vrot.lane.b32.xlu0 %v4591, 56
  %v6483 = vpop.permute.xlu0 %6482
  %6484 = vrot.lane.b32.xlu0 %v4593, 56
  %v6485 = vpop.permute.xlu0 %6484
  %6486 = vrot.lane.b32.xlu0 %v4596, 56
  %v6487 = vpop.permute.xlu0 %6486
  %6488 = vrot.lane.b32.xlu0 %v4598, 56
  %v6489 = vpop.permute.xlu0 %6488
  %6490 = vrot.lane.b32.xlu0 %v4601, 56
  %v6491 = vpop.permute.xlu0 %6490
  %6492 = vrot.lane.b32.xlu0 %v4603, 56
  %v6493 = vpop.permute.xlu0 %6492
  %6494 = vrot.lane.b32.xlu0 %v4606, 56
  %v6495 = vpop.permute.xlu0 %6494
  %6496 = vrot.lane.b32.xlu0 %v4608, 56
  %v6497 = vpop.permute.xlu0 %6496
  %6498 = vrot.lane.b32.xlu0 %v4611, 56
  %v6499 = vpop.permute.xlu0 %6498
  %6500 = vrot.lane.b32.xlu0 %v4613, 56
  %v6501 = vpop.permute.xlu0 %6500
  %6502 = vrot.lane.b32.xlu0 %v4616, 56
  %v6503 = vpop.permute.xlu0 %6502
  %6504 = vrot.lane.b32.xlu0 %v4618, 56
  %v6505 = vpop.permute.xlu0 %6504
  %6506 = vrot.lane.b32.xlu0 %v4621, 56
  %v6507 = vpop.permute.xlu0 %6506
  %6508 = vrot.lane.b32.xlu0 %v4623, 56
  %v6509 = vpop.permute.xlu0 %6508
  %6510 = vrot.lane.b32.xlu0 %v4626, 56
  %v6511 = vpop.permute.xlu0 %6510
  %6512 = vrot.lane.b32.xlu0 %v4628, 56
  %v6513 = vpop.permute.xlu0 %6512
  %6514 = vrot.lane.b32.xlu0 %v4631, 56
  %v6515 = vpop.permute.xlu0 %6514
  %6516 = vrot.lane.b32.xlu0 %v4633, 56
  %v6517 = vpop.permute.xlu0 %6516
  %6518 = vrot.lane.b32.xlu0 %v4636, 56
  %v6519 = vpop.permute.xlu0 %6518
  %6520 = vrot.lane.b32.xlu0 %v4638, 56
  %v6521 = vpop.permute.xlu0 %6520
  %6522 = vrot.lane.b32.xlu0 %v4641, 56
  %v6523 = vpop.permute.xlu0 %6522
  %6524 = vrot.lane.b32.xlu0 %v4643, 56
  %v6525 = vpop.permute.xlu0 %6524
  %6526 = vrot.lane.b32.xlu0 %v4646, 56
  %v6527 = vpop.permute.xlu0 %6526
  %6528 = vrot.lane.b32.xlu0 %v4648, 56
  %v6529 = vpop.permute.xlu0 %6528
  %6530 = vrot.lane.b32.xlu0 %v4651, 56
  %v6531 = vpop.permute.xlu0 %6530
  %6532 = vrot.lane.b32.xlu0 %v4653, 56
  %v6533 = vpop.permute.xlu0 %6532
  %6534 = vrot.lane.b32.xlu0 %v5673, 56
  %v6535 = vpop.permute.xlu0 %6534
  %6536 = vrot.lane.b32.xlu0 %v5675, 56
  %v6537 = vpop.permute.xlu0 %6536
  %6538 = vrot.lane.b32.xlu0 %v6470, 56
  %v6539 = vpop.permute.xlu0 %6538
  %6540 = vrot.lane.b32.xlu0 %v6472, 56
  %v6541 = vpop.permute.xlu0 %6540
  %6542 = vrot.lane.b32.xlu0 %v4666, 56
  %v6543 = vpop.permute.xlu0 %6542
  %6544 = vrot.lane.b32.xlu0 %v4668, 56
  %v6545 = vpop.permute.xlu0 %6544
  %6546 = vrot.lane.b32.xlu0 %v4671, 56
  %v6547 = vpop.permute.xlu0 %6546
  %6548 = vrot.lane.b32.xlu0 %v4673, 56
  %v6549 = vpop.permute.xlu0 %6548
  %6550 = vrot.lane.b32.xlu0 %v4676, 56
  %v6551 = vpop.permute.xlu0 %6550
  %6552 = vrot.lane.b32.xlu0 %v4678, 56
  %v6553 = vpop.permute.xlu0 %6552
  %6554 = vrot.lane.b32.xlu0 %v4681, 56
  %v6555 = vpop.permute.xlu0 %6554
  %6556 = vrot.lane.b32.xlu0 %v4683, 56
  %v6557 = vpop.permute.xlu0 %6556
  %6558 = vrot.lane.b32.xlu0 %v4686, 56
  %v6559 = vpop.permute.xlu0 %6558
  %6560 = vrot.lane.b32.xlu0 %v4688, 56
  %v6561 = vpop.permute.xlu0 %6560
  %6562 = vrot.lane.b32.xlu0 %v4691, 56
  %v6563 = vpop.permute.xlu0 %6562
  %6564 = vrot.lane.b32.xlu0 %v4693, 56
  %v6565 = vpop.permute.xlu0 %6564
  %6566 = vrot.lane.b32.xlu0 %v4696, 56
  %v6567 = vpop.permute.xlu0 %6566
  %6568 = vrot.lane.b32.xlu0 %v4698, 56
  %v6569 = vpop.permute.xlu0 %6568
  %6570 = vrot.lane.b32.xlu0 %v4701, 56
  %v6571 = vpop.permute.xlu0 %6570
  %6572 = vrot.lane.b32.xlu0 %v4703, 56
  %v6573 = vpop.permute.xlu0 %6572
  %6574 = vrot.lane.b32.xlu0 %v4706, 56
  %v6575 = vpop.permute.xlu0 %6574
  %6576 = vrot.lane.b32.xlu0 %v4708, 56
  %v6577 = vpop.permute.xlu0 %6576
  %6578 = vrot.lane.b32.xlu0 %v4711, 56
  %v6579 = vpop.permute.xlu0 %6578
  %6580 = vrot.lane.b32.xlu0 %v4713, 56
  %v6581 = vpop.permute.xlu0 %6580
  %6582 = vrot.lane.b32.xlu0 %v4716, 56
  %v6583 = vpop.permute.xlu0 %6582
  %6584 = vrot.lane.b32.xlu0 %v4718, 56
  %v6585 = vpop.permute.xlu0 %6584
  %6586 = vrot.lane.b32.xlu0 %v4721, 56
  %v6587 = vpop.permute.xlu0 %6586
  %6588 = vrot.lane.b32.xlu0 %v4723, 56
  %v6589 = vpop.permute.xlu0 %6588
  %6590 = vrot.lane.b32.xlu0 %v4726, 56
  %v6591 = vpop.permute.xlu0 %6590
  %6592 = vrot.lane.b32.xlu0 %v4728, 56
  %v6593 = vpop.permute.xlu0 %6592
  %6594 = vrot.lane.b32.xlu0 %v4731, 56
  %v6595 = vpop.permute.xlu0 %6594
  %6596 = vrot.lane.b32.xlu0 %v4733, 56
  %v6597 = vpop.permute.xlu0 %6596
  %6598 = vrot.lane.b32.xlu0 %v5678, 56
  %v6599 = vpop.permute.xlu0 %6598
  %6600 = vrot.lane.b32.xlu0 %v5680, 56
  %v6601 = vpop.permute.xlu0 %6600
  %6602 = vrot.lane.b32.xlu0 %v6475, 56
  %v6603 = vpop.permute.xlu0 %6602
  %6604 = vrot.lane.b32.xlu0 %v6477, 56
  %v6605 = vpop.permute.xlu0 %6604
  %vm6670 = vcmask 523712
  %6671 = vst.msk [vmem:[#allocation5] sm:$0xff] %vm6670, %v6479
  %6672 = vst.msk [vmem:[#allocation5 + $0x8] sm:$0xff] %vm6670, %v6481
  %6673 = vst.msk [vmem:[#allocation5 + $0x10] sm:$0xff] %vm6670, %v6483
  %6674 = vst.msk [vmem:[#allocation5 + $0x18] sm:$0xff] %vm6670, %v6485
  %6675 = vst.msk [vmem:[#allocation5 + $0x20] sm:$0xff] %vm6670, %v6487
  %6676 = vst.msk [vmem:[#allocation5 + $0x28] sm:$0xff] %vm6670, %v6489
  %6677 = vst.msk [vmem:[#allocation5 + $0x30] sm:$0xff] %vm6670, %v6491
  %6678 = vst.msk [vmem:[#allocation5 + $0x38] sm:$0xff] %vm6670, %v6493
  %6679 = vst.msk [vmem:[#allocation5 + $0x40] sm:$0xff] %vm6670, %v6495
  %6680 = vst.msk [vmem:[#allocation5 + $0x48] sm:$0xff] %vm6670, %v6497
  %6681 = vst.msk [vmem:[#allocation5 + $0x50] sm:$0xff] %vm6670, %v6499
  %6682 = vst.msk [vmem:[#allocation5 + $0x58] sm:$0xff] %vm6670, %v6501
  %6683 = vst.msk [vmem:[#allocation5 + $0x60] sm:$0xff] %vm6670, %v6503
  %6684 = vst.msk [vmem:[#allocation5 + $0x68] sm:$0xff] %vm6670, %v6505
  %6685 = vst.msk [vmem:[#allocation5 + $0x70] sm:$0xff] %vm6670, %v6507
  %6686 = vst.msk [vmem:[#allocation5 + $0x78] sm:$0xff] %vm6670, %v6509
  %6687 = vst.msk [vmem:[#allocation5 + $0x80] sm:$0xff] %vm6670, %v6511
  %6688 = vst.msk [vmem:[#allocation5 + $0x88] sm:$0xff] %vm6670, %v6513
  %6689 = vst.msk [vmem:[#allocation5 + $0x90] sm:$0xff] %vm6670, %v6515
  %6690 = vst.msk [vmem:[#allocation5 + $0x98] sm:$0xff] %vm6670, %v6517
  %6691 = vst.msk [vmem:[#allocation5 + $0xa0] sm:$0xff] %vm6670, %v6519
  %6692 = vst.msk [vmem:[#allocation5 + $0xa8] sm:$0xff] %vm6670, %v6521
  %6693 = vst.msk [vmem:[#allocation5 + $0xb0] sm:$0xff] %vm6670, %v6523
  %6694 = vst.msk [vmem:[#allocation5 + $0xb8] sm:$0xff] %vm6670, %v6525
  %6695 = vst.msk [vmem:[#allocation5 + $0xc0] sm:$0xff] %vm6670, %v6527
  %6696 = vst.msk [vmem:[#allocation5 + $0xc8] sm:$0xff] %vm6670, %v6529
  %6697 = vst.msk [vmem:[#allocation5 + $0xd0] sm:$0xff] %vm6670, %v6531
  %6698 = vst.msk [vmem:[#allocation5 + $0xd8] sm:$0xff] %vm6670, %v6533
  %6699 = vst.msk [vmem:[#allocation5 + $0xe0] sm:$0xff] %vm6670, %v6535
  %6700 = vst.msk [vmem:[#allocation5 + $0xe8] sm:$0xff] %vm6670, %v6537
  %6701 = vst.msk [vmem:[#allocation5 + $0xf0] sm:$0xff] %vm6670, %v6539
  %6702 = vst.msk [vmem:[#allocation5 + $0xf8] sm:$0xff] %vm6670, %v6541
  %6703 = vst.msk [vmem:[#allocation5 + $0x100] sm:$0xff] %vm6670, %v6543
  %6704 = vst.msk [vmem:[#allocation5 + $0x108] sm:$0xff] %vm6670, %v6545
  %6705 = vst.msk [vmem:[#allocation5 + $0x110] sm:$0xff] %vm6670, %v6547
  %6706 = vst.msk [vmem:[#allocation5 + $0x118] sm:$0xff] %vm6670, %v6549
  %6707 = vst.msk [vmem:[#allocation5 + $0x120] sm:$0xff] %vm6670, %v6551
  %6708 = vst.msk [vmem:[#allocation5 + $0x128] sm:$0xff] %vm6670, %v6553
  %6709 = vst.msk [vmem:[#allocation5 + $0x130] sm:$0xff] %vm6670, %v6555
  %6710 = vst.msk [vmem:[#allocation5 + $0x138] sm:$0xff] %vm6670, %v6557
  %6711 = vst.msk [vmem:[#allocation5 + $0x140] sm:$0xff] %vm6670, %v6559
  %6712 = vst.msk [vmem:[#allocation5 + $0x148] sm:$0xff] %vm6670, %v6561
  %6713 = vst.msk [vmem:[#allocation5 + $0x150] sm:$0xff] %vm6670, %v6563
  %6714 = vst.msk [vmem:[#allocation5 + $0x158] sm:$0xff] %vm6670, %v6565
  %6715 = vst.msk [vmem:[#allocation5 + $0x160] sm:$0xff] %vm6670, %v6567
  %6716 = vst.msk [vmem:[#allocation5 + $0x168] sm:$0xff] %vm6670, %v6569
  %6717 = vst.msk [vmem:[#allocation5 + $0x170] sm:$0xff] %vm6670, %v6571
  %6718 = vst.msk [vmem:[#allocation5 + $0x178] sm:$0xff] %vm6670, %v6573
  %6719 = vst.msk [vmem:[#allocation5 + $0x180] sm:$0xff] %vm6670, %v6575
  %6720 = vst.msk [vmem:[#allocation5 + $0x188] sm:$0xff] %vm6670, %v6577
  %6721 = vst.msk [vmem:[#allocation5 + $0x190] sm:$0xff] %vm6670, %v6579
  %6722 = vst.msk [vmem:[#allocation5 + $0x198] sm:$0xff] %vm6670, %v6581
  %6723 = vst.msk [vmem:[#allocation5 + $0x1a0] sm:$0xff] %vm6670, %v6583
  %6724 = vst.msk [vmem:[#allocation5 + $0x1a8] sm:$0xff] %vm6670, %v6585
  %6725 = vst.msk [vmem:[#allocation5 + $0x1b0] sm:$0xff] %vm6670, %v6587
  %6726 = vst.msk [vmem:[#allocation5 + $0x1b8] sm:$0xff] %vm6670, %v6589
  %6727 = vst.msk [vmem:[#allocation5 + $0x1c0] sm:$0xff] %vm6670, %v6591
  %6728 = vst.msk [vmem:[#allocation5 + $0x1c8] sm:$0xff] %vm6670, %v6593
  %6729 = vst.msk [vmem:[#allocation5 + $0x1d0] sm:$0xff] %vm6670, %v6595
  %6730 = vst.msk [vmem:[#allocation5 + $0x1d8] sm:$0xff] %vm6670, %v6597
  %6731 = vst.msk [vmem:[#allocation5 + $0x1e0] sm:$0xff] %vm6670, %v6599
  %6732 = vst.msk [vmem:[#allocation5 + $0x1e8] sm:$0xff] %vm6670, %v6601
  %6733 = vst.msk [vmem:[#allocation5 + $0x1f0] sm:$0xff] %vm6670, %v6603
  %6734 = vst.msk [vmem:[#allocation5 + $0x1f8] sm:$0xff] %vm6670, %v6605
  %v6735 = vrot.slane %v4357, 2
  %v6736 = vrot.slane %v4358, 2
  %v6737 = vsel %vm938, %v6735, %v6736
  %v6738 = vrot.slane %v4359, 2
  %v6739 = vsel %vm938, %v6736, %v6738
  %v6740 = vrot.slane %v4411, 2
  %v6741 = vrot.slane %v4412, 2
  %v6742 = vsel %vm938, %v6740, %v6741
  %v6743 = vrot.slane %v4413, 2
  %v6744 = vsel %vm938, %v6741, %v6743
  %6745 = vrot.lane.b32.xlu0 %v5003, 64
  %v6746 = vpop.permute.xlu0 %6745
  %6747 = vrot.lane.b32.xlu0 %v5005, 64
  %v6748 = vpop.permute.xlu0 %6747
  %6749 = vrot.lane.b32.xlu0 %v5008, 64
  %v6750 = vpop.permute.xlu0 %6749
  %6751 = vrot.lane.b32.xlu0 %v5010, 64
  %v6752 = vpop.permute.xlu0 %6751
  %6753 = vrot.lane.b32.xlu0 %v5013, 64
  %v6754 = vpop.permute.xlu0 %6753
  %6755 = vrot.lane.b32.xlu0 %v5015, 64
  %v6756 = vpop.permute.xlu0 %6755
  %6757 = vrot.lane.b32.xlu0 %v5018, 64
  %v6758 = vpop.permute.xlu0 %6757
  %6759 = vrot.lane.b32.xlu0 %v5020, 64
  %v6760 = vpop.permute.xlu0 %6759
  %6761 = vrot.lane.b32.xlu0 %v5023, 64
  %v6762 = vpop.permute.xlu0 %6761
  %6763 = vrot.lane.b32.xlu0 %v5025, 64
  %v6764 = vpop.permute.xlu0 %6763
  %6765 = vrot.lane.b32.xlu0 %v5028, 64
  %v6766 = vpop.permute.xlu0 %6765
  %6767 = vrot.lane.b32.xlu0 %v5030, 64
  %v6768 = vpop.permute.xlu0 %6767
  %6769 = vrot.lane.b32.xlu0 %v5033, 64
  %v6770 = vpop.permute.xlu0 %6769
  %6771 = vrot.lane.b32.xlu0 %v5035, 64
  %v6772 = vpop.permute.xlu0 %6771
  %6773 = vrot.lane.b32.xlu0 %v5038, 64
  %v6774 = vpop.permute.xlu0 %6773
  %6775 = vrot.lane.b32.xlu0 %v5040, 64
  %v6776 = vpop.permute.xlu0 %6775
  %6777 = vrot.lane.b32.xlu0 %v5043, 64
  %v6778 = vpop.permute.xlu0 %6777
  %6779 = vrot.lane.b32.xlu0 %v5045, 64
  %v6780 = vpop.permute.xlu0 %6779
  %6781 = vrot.lane.b32.xlu0 %v5048, 64
  %v6782 = vpop.permute.xlu0 %6781
  %6783 = vrot.lane.b32.xlu0 %v5050, 64
  %v6784 = vpop.permute.xlu0 %6783
  %6785 = vrot.lane.b32.xlu0 %v5053, 64
  %v6786 = vpop.permute.xlu0 %6785
  %6787 = vrot.lane.b32.xlu0 %v5055, 64
  %v6788 = vpop.permute.xlu0 %6787
  %6789 = vrot.lane.b32.xlu0 %v5058, 64
  %v6790 = vpop.permute.xlu0 %6789
  %6791 = vrot.lane.b32.xlu0 %v5060, 64
  %v6792 = vpop.permute.xlu0 %6791
  %6793 = vrot.lane.b32.xlu0 %v5063, 64
  %v6794 = vpop.permute.xlu0 %6793
  %6795 = vrot.lane.b32.xlu0 %v5065, 64
  %v6796 = vpop.permute.xlu0 %6795
  %6797 = vrot.lane.b32.xlu0 %v5068, 64
  %v6798 = vpop.permute.xlu0 %6797
  %6799 = vrot.lane.b32.xlu0 %v5070, 64
  %v6800 = vpop.permute.xlu0 %6799
  %6801 = vrot.lane.b32.xlu0 %v5940, 64
  %v6802 = vpop.permute.xlu0 %6801
  %6803 = vrot.lane.b32.xlu0 %v5942, 64
  %v6804 = vpop.permute.xlu0 %6803
  %6805 = vrot.lane.b32.xlu0 %v6737, 64
  %v6806 = vpop.permute.xlu0 %6805
  %6807 = vrot.lane.b32.xlu0 %v6739, 64
  %v6808 = vpop.permute.xlu0 %6807
  %6809 = vrot.lane.b32.xlu0 %v5083, 64
  %v6810 = vpop.permute.xlu0 %6809
  %6811 = vrot.lane.b32.xlu0 %v5085, 64
  %v6812 = vpop.permute.xlu0 %6811
  %6813 = vrot.lane.b32.xlu0 %v5088, 64
  %v6814 = vpop.permute.xlu0 %6813
  %6815 = vrot.lane.b32.xlu0 %v5090, 64
  %v6816 = vpop.permute.xlu0 %6815
  %6817 = vrot.lane.b32.xlu0 %v5093, 64
  %v6818 = vpop.permute.xlu0 %6817
  %6819 = vrot.lane.b32.xlu0 %v5095, 64
  %v6820 = vpop.permute.xlu0 %6819
  %6821 = vrot.lane.b32.xlu0 %v5098, 64
  %v6822 = vpop.permute.xlu0 %6821
  %6823 = vrot.lane.b32.xlu0 %v5100, 64
  %v6824 = vpop.permute.xlu0 %6823
  %6825 = vrot.lane.b32.xlu0 %v5103, 64
  %v6826 = vpop.permute.xlu0 %6825
  %6827 = vrot.lane.b32.xlu0 %v5105, 64
  %v6828 = vpop.permute.xlu0 %6827
  %6829 = vrot.lane.b32.xlu0 %v5108, 64
  %v6830 = vpop.permute.xlu0 %6829
  %6831 = vrot.lane.b32.xlu0 %v5110, 64
  %v6832 = vpop.permute.xlu0 %6831
  %6833 = vrot.lane.b32.xlu0 %v5113, 64
  %v6834 = vpop.permute.xlu0 %6833
  %6835 = vrot.lane.b32.xlu0 %v5115, 64
  %v6836 = vpop.permute.xlu0 %6835
  %6837 = vrot.lane.b32.xlu0 %v5118, 64
  %v6838 = vpop.permute.xlu0 %6837
  %6839 = vrot.lane.b32.xlu0 %v5120, 64
  %v6840 = vpop.permute.xlu0 %6839
  %6841 = vrot.lane.b32.xlu0 %v5123, 64
  %v6842 = vpop.permute.xlu0 %6841
  %6843 = vrot.lane.b32.xlu0 %v5125, 64
  %v6844 = vpop.permute.xlu0 %6843
  %6845 = vrot.lane.b32.xlu0 %v5128, 64
  %v6846 = vpop.permute.xlu0 %6845
  %6847 = vrot.lane.b32.xlu0 %v5130, 64
  %v6848 = vpop.permute.xlu0 %6847
  %6849 = vrot.lane.b32.xlu0 %v5133, 64
  %v6850 = vpop.permute.xlu0 %6849
  %6851 = vrot.lane.b32.xlu0 %v5135, 64
  %v6852 = vpop.permute.xlu0 %6851
  %6853 = vrot.lane.b32.xlu0 %v5138, 64
  %v6854 = vpop.permute.xlu0 %6853
  %6855 = vrot.lane.b32.xlu0 %v5140, 64
  %v6856 = vpop.permute.xlu0 %6855
  %6857 = vrot.lane.b32.xlu0 %v5143, 64
  %v6858 = vpop.permute.xlu0 %6857
  %6859 = vrot.lane.b32.xlu0 %v5145, 64
  %v6860 = vpop.permute.xlu0 %6859
  %6861 = vrot.lane.b32.xlu0 %v5148, 64
  %v6862 = vpop.permute.xlu0 %6861
  %6863 = vrot.lane.b32.xlu0 %v5150, 64
  %v6864 = vpop.permute.xlu0 %6863
  %6865 = vrot.lane.b32.xlu0 %v5945, 64
  %v6866 = vpop.permute.xlu0 %6865
  %6867 = vrot.lane.b32.xlu0 %v5947, 64
  %v6868 = vpop.permute.xlu0 %6867
  %6869 = vrot.lane.b32.xlu0 %v6742, 64
  %v6870 = vpop.permute.xlu0 %6869
  %6871 = vrot.lane.b32.xlu0 %v6744, 64
  %v6872 = vpop.permute.xlu0 %6871
  %vm6937 = vcmask 589312
  %6938 = vst.msk [vmem:[#allocation5] sm:$0xff] %vm6937, %v6746
  %6939 = vst.msk [vmem:[#allocation5 + $0x8] sm:$0xff] %vm6937, %v6748
  %6940 = vst.msk [vmem:[#allocation5 + $0x10] sm:$0xff] %vm6937, %v6750
  %6941 = vst.msk [vmem:[#allocation5 + $0x18] sm:$0xff] %vm6937, %v6752
  %6942 = vst.msk [vmem:[#allocation5 + $0x20] sm:$0xff] %vm6937, %v6754
  %6943 = vst.msk [vmem:[#allocation5 + $0x28] sm:$0xff] %vm6937, %v6756
  %6944 = vst.msk [vmem:[#allocation5 + $0x30] sm:$0xff] %vm6937, %v6758
  %6945 = vst.msk [vmem:[#allocation5 + $0x38] sm:$0xff] %vm6937, %v6760
  %6946 = vst.msk [vmem:[#allocation5 + $0x40] sm:$0xff] %vm6937, %v6762
  %6947 = vst.msk [vmem:[#allocation5 + $0x48] sm:$0xff] %vm6937, %v6764
  %6948 = vst.msk [vmem:[#allocation5 + $0x50] sm:$0xff] %vm6937, %v6766
  %6949 = vst.msk [vmem:[#allocation5 + $0x58] sm:$0xff] %vm6937, %v6768
  %6950 = vst.msk [vmem:[#allocation5 + $0x60] sm:$0xff] %vm6937, %v6770
  %6951 = vst.msk [vmem:[#allocation5 + $0x68] sm:$0xff] %vm6937, %v6772
  %6952 = vst.msk [vmem:[#allocation5 + $0x70] sm:$0xff] %vm6937, %v6774
  %6953 = vst.msk [vmem:[#allocation5 + $0x78] sm:$0xff] %vm6937, %v6776
  %6954 = vst.msk [vmem:[#allocation5 + $0x80] sm:$0xff] %vm6937, %v6778
  %6955 = vst.msk [vmem:[#allocation5 + $0x88] sm:$0xff] %vm6937, %v6780
  %6956 = vst.msk [vmem:[#allocation5 + $0x90] sm:$0xff] %vm6937, %v6782
  %6957 = vst.msk [vmem:[#allocation5 + $0x98] sm:$0xff] %vm6937, %v6784
  %6958 = vst.msk [vmem:[#allocation5 + $0xa0] sm:$0xff] %vm6937, %v6786
  %6959 = vst.msk [vmem:[#allocation5 + $0xa8] sm:$0xff] %vm6937, %v6788
  %6960 = vst.msk [vmem:[#allocation5 + $0xb0] sm:$0xff] %vm6937, %v6790
  %6961 = vst.msk [vmem:[#allocation5 + $0xb8] sm:$0xff] %vm6937, %v6792
  %6962 = vst.msk [vmem:[#allocation5 + $0xc0] sm:$0xff] %vm6937, %v6794
  %6963 = vst.msk [vmem:[#allocation5 + $0xc8] sm:$0xff] %vm6937, %v6796
  %6964 = vst.msk [vmem:[#allocation5 + $0xd0] sm:$0xff] %vm6937, %v6798
  %6965 = vst.msk [vmem:[#allocation5 + $0xd8] sm:$0xff] %vm6937, %v6800
  %6966 = vst.msk [vmem:[#allocation5 + $0xe0] sm:$0xff] %vm6937, %v6802
  %6967 = vst.msk [vmem:[#allocation5 + $0xe8] sm:$0xff] %vm6937, %v6804
  %6968 = vst.msk [vmem:[#allocation5 + $0xf0] sm:$0xff] %vm6937, %v6806
  %6969 = vst.msk [vmem:[#allocation5 + $0xf8] sm:$0xff] %vm6937, %v6808
  %6970 = vst.msk [vmem:[#allocation5 + $0x100] sm:$0xff] %vm6937, %v6810
  %6971 = vst.msk [vmem:[#allocation5 + $0x108] sm:$0xff] %vm6937, %v6812
  %6972 = vst.msk [vmem:[#allocation5 + $0x110] sm:$0xff] %vm6937, %v6814
  %6973 = vst.msk [vmem:[#allocation5 + $0x118] sm:$0xff] %vm6937, %v6816
  %6974 = vst.msk [vmem:[#allocation5 + $0x120] sm:$0xff] %vm6937, %v6818
  %6975 = vst.msk [vmem:[#allocation5 + $0x128] sm:$0xff] %vm6937, %v6820
  %6976 = vst.msk [vmem:[#allocation5 + $0x130] sm:$0xff] %vm6937, %v6822
  %6977 = vst.msk [vmem:[#allocation5 + $0x138] sm:$0xff] %vm6937, %v6824
  %6978 = vst.msk [vmem:[#allocation5 + $0x140] sm:$0xff] %vm6937, %v6826
  %6979 = vst.msk [vmem:[#allocation5 + $0x148] sm:$0xff] %vm6937, %v6828
  %6980 = vst.msk [vmem:[#allocation5 + $0x150] sm:$0xff] %vm6937, %v6830
  %6981 = vst.msk [vmem:[#allocation5 + $0x158] sm:$0xff] %vm6937, %v6832
  %6982 = vst.msk [vmem:[#allocation5 + $0x160] sm:$0xff] %vm6937, %v6834
  %6983 = vst.msk [vmem:[#allocation5 + $0x168] sm:$0xff] %vm6937, %v6836
  %6984 = vst.msk [vmem:[#allocation5 + $0x170] sm:$0xff] %vm6937, %v6838
  %6985 = vst.msk [vmem:[#allocation5 + $0x178] sm:$0xff] %vm6937, %v6840
  %6986 = vst.msk [vmem:[#allocation5 + $0x180] sm:$0xff] %vm6937, %v6842
  %6987 = vst.msk [vmem:[#allocation5 + $0x188] sm:$0xff] %vm6937, %v6844
  %6988 = vst.msk [vmem:[#allocation5 + $0x190] sm:$0xff] %vm6937, %v6846
  %6989 = vst.msk [vmem:[#allocation5 + $0x198] sm:$0xff] %vm6937, %v6848
  %6990 = vst.msk [vmem:[#allocation5 + $0x1a0] sm:$0xff] %vm6937, %v6850
  %6991 = vst.msk [vmem:[#allocation5 + $0x1a8] sm:$0xff] %vm6937, %v6852
  %6992 = vst.msk [vmem:[#allocation5 + $0x1b0] sm:$0xff] %vm6937, %v6854
  %6993 = vst.msk [vmem:[#allocation5 + $0x1b8] sm:$0xff] %vm6937, %v6856
  %6994 = vst.msk [vmem:[#allocation5 + $0x1c0] sm:$0xff] %vm6937, %v6858
  %6995 = vst.msk [vmem:[#allocation5 + $0x1c8] sm:$0xff] %vm6937, %v6860
  %6996 = vst.msk [vmem:[#allocation5 + $0x1d0] sm:$0xff] %vm6937, %v6862
  %6997 = vst.msk [vmem:[#allocation5 + $0x1d8] sm:$0xff] %vm6937, %v6864
  %6998 = vst.msk [vmem:[#allocation5 + $0x1e0] sm:$0xff] %vm6937, %v6866
  %6999 = vst.msk [vmem:[#allocation5 + $0x1e8] sm:$0xff] %vm6937, %v6868
  %7000 = vst.msk [vmem:[#allocation5 + $0x1f0] sm:$0xff] %vm6937, %v6870
  %7001 = vst.msk [vmem:[#allocation5 + $0x1f8] sm:$0xff] %vm6937, %v6872
  %v7002 = vld [vmem:[#allocation5] sm:$0xff]
  %v7003 = vld [vmem:[#allocation5 + $0x8] sm:$0xff]
  %v7004 = vld [vmem:[#allocation5 + $0x10] sm:$0xff]
  %v7005 = vld [vmem:[#allocation5 + $0x18] sm:$0xff]
  %v7006 = vld [vmem:[#allocation5 + $0x20] sm:$0xff]
  %v7007 = vld [vmem:[#allocation5 + $0x28] sm:$0xff]
  %v7008 = vld [vmem:[#allocation5 + $0x30] sm:$0xff]
  %v7009 = vld [vmem:[#allocation5 + $0x38] sm:$0xff]
  %v7010 = vld [vmem:[#allocation5 + $0x40] sm:$0xff]
  %v7011 = vld [vmem:[#allocation5 + $0x48] sm:$0xff]
  %v7012 = vld [vmem:[#allocation5 + $0x50] sm:$0xff]
  %v7013 = vld [vmem:[#allocation5 + $0x58] sm:$0xff]
  %v7014 = vld [vmem:[#allocation5 + $0x60] sm:$0xff]
  %v7015 = vld [vmem:[#allocation5 + $0x68] sm:$0xff]
  %v7016 = vld [vmem:[#allocation5 + $0x70] sm:$0xff]
  %v7017 = vld [vmem:[#allocation5 + $0x78] sm:$0xff]
  %v7018 = vld [vmem:[#allocation5 + $0x80] sm:$0xff]
  %v7019 = vld [vmem:[#allocation5 + $0x88] sm:$0xff]
  %v7020 = vld [vmem:[#allocation5 + $0x90] sm:$0xff]
  %v7021 = vld [vmem:[#allocation5 + $0x98] sm:$0xff]
  %v7022 = vld [vmem:[#allocation5 + $0xa0] sm:$0xff]
  %v7023 = vld [vmem:[#allocation5 + $0xa8] sm:$0xff]
  %v7024 = vld [vmem:[#allocation5 + $0xb0] sm:$0xff]
  %v7025 = vld [vmem:[#allocation5 + $0xb8] sm:$0xff]
  %v7026 = vld [vmem:[#allocation5 + $0xc0] sm:$0xff]
  %v7027 = vld [vmem:[#allocation5 + $0xc8] sm:$0xff]
  %v7028 = vld [vmem:[#allocation5 + $0xd0] sm:$0xff]
  %v7029 = vld [vmem:[#allocation5 + $0xd8] sm:$0xff]
  %v7030 = vld [vmem:[#allocation5 + $0xe0] sm:$0xff]
  %v7031 = vld [vmem:[#allocation5 + $0xe8] sm:$0xff]
  %v7032 = vld [vmem:[#allocation5 + $0xf0] sm:$0xff]
  %v7033 = vld [vmem:[#allocation5 + $0xf8] sm:$0xff]
  %v7034 = vld [vmem:[#allocation5 + $0x100] sm:$0xff]
  %v7035 = vld [vmem:[#allocation5 + $0x108] sm:$0xff]
  %v7036 = vld [vmem:[#allocation5 + $0x110] sm:$0xff]
  %v7037 = vld [vmem:[#allocation5 + $0x118] sm:$0xff]
  %v7038 = vld [vmem:[#allocation5 + $0x120] sm:$0xff]
  %v7039 = vld [vmem:[#allocation5 + $0x128] sm:$0xff]
  %v7040 = vld [vmem:[#allocation5 + $0x130] sm:$0xff]
  %v7041 = vld [vmem:[#allocation5 + $0x138] sm:$0xff]
  %v7042 = vld [vmem:[#allocation5 + $0x140] sm:$0xff]
  %v7043 = vld [vmem:[#allocation5 + $0x148] sm:$0xff]
  %v7044 = vld [vmem:[#allocation5 + $0x150] sm:$0xff]
  %v7045 = vld [vmem:[#allocation5 + $0x158] sm:$0xff]
  %v7046 = vld [vmem:[#allocation5 + $0x160] sm:$0xff]
  %v7047 = vld [vmem:[#allocation5 + $0x168] sm:$0xff]
  %v7048 = vld [vmem:[#allocation5 + $0x170] sm:$0xff]
  %v7049 = vld [vmem:[#allocation5 + $0x178] sm:$0xff]
  %v7050 = vld [vmem:[#allocation5 + $0x180] sm:$0xff]
  %v7051 = vld [vmem:[#allocation5 + $0x188] sm:$0xff]
  %v7052 = vld [vmem:[#allocation5 + $0x190] sm:$0xff]
  %v7053 = vld [vmem:[#allocation5 + $0x198] sm:$0xff]
  %v7054 = vld [vmem:[#allocation5 + $0x1a0] sm:$0xff]
  %v7055 = vld [vmem:[#allocation5 + $0x1a8] sm:$0xff]
  %v7056 = vld [vmem:[#allocation5 + $0x1b0] sm:$0xff]
  %v7057 = vld [vmem:[#allocation5 + $0x1b8] sm:$0xff]
  %v7058 = vld [vmem:[#allocation5 + $0x1c0] sm:$0xff]
  %v7059 = vld [vmem:[#allocation5 + $0x1c8] sm:$0xff]
  %v7060 = vld [vmem:[#allocation5 + $0x1d0] sm:$0xff]
  %v7061 = vld [vmem:[#allocation5 + $0x1d8] sm:$0xff]
  %v7062 = vld [vmem:[#allocation5 + $0x1e0] sm:$0xff]
  %v7063 = vld [vmem:[#allocation5 + $0x1e8] sm:$0xff]
  %v7064 = vld [vmem:[#allocation5 + $0x1f0] sm:$0xff]
  %v7065 = vld [vmem:[#allocation5 + $0x1f8] sm:$0xff]
  %v7066 = vld [vmem:[%s5] sm:$0xff]
  %v7067 = vld [vmem:[%s5 + $0x8] sm:$0xff]
  %v7068 = vld [vmem:[%s5 + $0x10] sm:$0xff]
  %v7069 = vld [vmem:[%s5 + $0x18] sm:$0xff]
  %v7070 = vld [vmem:[%s5 + $0x20] sm:$0xff]
  %v7071 = vld [vmem:[%s5 + $0x28] sm:$0xff]
  %v7072 = vld [vmem:[%s5 + $0x30] sm:$0xff]
  %v7073 = vld [vmem:[%s5 + $0x38] sm:$0xff]
  %v7074 = vld [vmem:[%s5 + $0x40] sm:$0xff]
  %v7075 = vld [vmem:[%s6] sm:$0x1]
  %v7077 = vlaneseq
  %v7078 = vshrl.u32 %v7077, 7
  %v7079 = vsub.s32 0, %v7078
  %v7080 = vrot.slane %v7075, %v7079
  %vm7082 = vcmask 588800
  %v7084 = vsel %vm7082, %v7002, 0
  %v7087 = vsel %vm7082, %v7003, 0
  %v7090 = vsel %vm7082, %v7004, 0
  %v7093 = vsel %vm7082, %v7005, 0
  %v7096 = vsel %vm7082, %v7006, 0
  %v7099 = vsel %vm7082, %v7007, 0
  %v7102 = vsel %vm7082, %v7008, 0
  %v7105 = vsel %vm7082, %v7009, 0
  %v7108 = vsel %vm7082, %v7010, 0
  %v7111 = vsel %vm7082, %v7011, 0
  %v7114 = vsel %vm7082, %v7012, 0
  %v7117 = vsel %vm7082, %v7013, 0
  %v7120 = vsel %vm7082, %v7014, 0
  %v7123 = vsel %vm7082, %v7015, 0
  %v7126 = vsel %vm7082, %v7016, 0
  %v7129 = vsel %vm7082, %v7017, 0
  %v7132 = vsel %vm7082, %v7018, 0
  %v7135 = vsel %vm7082, %v7019, 0
  %v7138 = vsel %vm7082, %v7020, 0
  %v7141 = vsel %vm7082, %v7021, 0
  %v7144 = vsel %vm7082, %v7022, 0
  %v7147 = vsel %vm7082, %v7023, 0
  %v7150 = vsel %vm7082, %v7024, 0
  %v7153 = vsel %vm7082, %v7025, 0
  %v7156 = vsel %vm7082, %v7026, 0
  %v7159 = vsel %vm7082, %v7027, 0
  %v7162 = vsel %vm7082, %v7028, 0
  %v7165 = vsel %vm7082, %v7029, 0
  %v7168 = vsel %vm7082, %v7030, 0
  %v7171 = vsel %vm7082, %v7031, 0
  %v7174 = vsel %vm7082, %v7032, 0
  %v7177 = vsel %vm7082, %v7033, 0
  %v7180 = vsel %vm7082, %v7034, 0
  %v7183 = vsel %vm7082, %v7035, 0
  %v7186 = vsel %vm7082, %v7036, 0
  %v7189 = vsel %vm7082, %v7037, 0
  %v7192 = vsel %vm7082, %v7038, 0
  %v7195 = vsel %vm7082, %v7039, 0
  %v7198 = vsel %vm7082, %v7040, 0
  %v7201 = vsel %vm7082, %v7041, 0
  %v7204 = vsel %vm7082, %v7042, 0
  %v7207 = vsel %vm7082, %v7043, 0
  %v7210 = vsel %vm7082, %v7044, 0
  %v7213 = vsel %vm7082, %v7045, 0
  %v7216 = vsel %vm7082, %v7046, 0
  %v7219 = vsel %vm7082, %v7047, 0
  %v7222 = vsel %vm7082, %v7048, 0
  %v7225 = vsel %vm7082, %v7049, 0
  %v7228 = vsel %vm7082, %v7050, 0
  %v7231 = vsel %vm7082, %v7051, 0
  %v7234 = vsel %vm7082, %v7052, 0
  %v7237 = vsel %vm7082, %v7053, 0
  %v7240 = vsel %vm7082, %v7054, 0
  %v7243 = vsel %vm7082, %v7055, 0
  %v7246 = vsel %vm7082, %v7056, 0
  %v7249 = vsel %vm7082, %v7057, 0
  %v7252 = vsel %vm7082, %v7058, 0
  %v7255 = vsel %vm7082, %v7059, 0
  %v7258 = vsel %vm7082, %v7060, 0
  %v7261 = vsel %vm7082, %v7061, 0
  %v7264 = vsel %vm7082, %v7062, 0
  %v7267 = vsel %vm7082, %v7063, 0
  %v7270 = vsel %vm7082, %v7064, 0
  %v7273 = vsel %vm7082, %v7065, 0
  %7275 = vmatprep.subr.mxu0 0.0
  %7276 = vmatpush1.msra.mxu0 0.0
  %7277 = vmatprep.subr.mxu0 0.0
  %7278 = vmatpush1.msra.mxu0 0.0
  %7279 = vmatprep.subr.mxu0 0.0
  %7280 = vmatpush1.msra.mxu0 0.0
  %7281 = vmatprep.subr.mxu0 0.0
  %7282 = vmatpush1.msra.mxu0 0.0
  %7283 = vmatprep.subr.mxu0 0.0
  %7284 = vmatpush1.msra.mxu0 0.0
  %7285 = vmatprep.subr.mxu0 0.0
  %7286 = vmatpush1.msra.mxu0 0.0
  %7287 = vmatprep.subr.mxu0 0.0
  %7288 = vmatpush1.msra.mxu0 0.0
  %7289 = vmatprep.subr.mxu0 0.0
  %7290 = vmatpush1.msra.mxu0 %v7074
  %7291 = vmatprep.subr.mxu0 0.0
  %7292 = vmatpush1.msra.mxu0 %v7073
  %7293 = vmatprep.subr.mxu0 0.0
  %7294 = vmatpush1.msra.mxu0 %v7072
  %7295 = vmatprep.subr.mxu0 0.0
  %7296 = vmatpush1.msra.mxu0 %v7071
  %7297 = vmatprep.subr.mxu0 0.0
  %7298 = vmatpush1.msra.mxu0 %v7070
  %7299 = vmatprep.subr.mxu0 0.0
  %7300 = vmatpush1.msra.mxu0 %v7069
  %7301 = vmatprep.subr.mxu0 0.0
  %7302 = vmatpush1.msra.mxu0 %v7068
  %7303 = vmatprep.subr.mxu0 0.0
  %7304 = vmatpush1.msra.mxu0 %v7067
  %7305 = vmatprep.subr.mxu0 0.0
  %7306 = vmatpush1.msra.mxu0 %v7066
  %7307 = vmatprep.subr.mxu0 0.0
  %7308 = vmatpush2.msra.mxu0 0.0
  %7309 = vmatprep.subr.mxu0 0.0
  %7310 = vmatpush2.msra.mxu0 0.0
  %7311 = vmatprep.subr.mxu0 0.0
  %7312 = vmatpush2.msra.mxu0 0.0
  %7313 = vmatprep.subr.mxu0 0.0
  %7314 = vmatpush2.msra.mxu0 0.0
  %7315 = vmatprep.subr.mxu0 0.0
  %7316 = vmatpush2.msra.mxu0 0.0
  %7317 = vmatprep.subr.mxu0 0.0
  %7318 = vmatpush2.msra.mxu0 0.0
  %7319 = vmatprep.subr.mxu0 0.0
  %7320 = vmatpush2.msra.mxu0 0.0
  %7321 = vmatprep.subr.mxu0 0.0
  %7322 = vmatpush2.msra.mxu0 0.0
  %7323 = vmatprep.subr.mxu0 0.0
  %7324 = vmatpush2.msra.mxu0 0.0
  %7325 = vmatprep.subr.mxu0 0.0
  %7326 = vmatpush2.msra.mxu0 0.0
  %7327 = vmatprep.subr.mxu0 0.0
  %7328 = vmatpush2.msra.mxu0 0.0
  %7329 = vmatprep.subr.mxu0 0.0
  %7330 = vmatpush2.msra.mxu0 0.0
  %7331 = vmatprep.subr.mxu0 0.0
  %7332 = vmatpush2.msra.mxu0 0.0
  %7333 = vmatprep.subr.mxu0 0.0
  %7334 = vmatpush2.msra.mxu0 0.0
  %7335 = vmatprep.subr.mxu0 0.0
  %7336 = vmatpush2.msra.mxu0 0.0
  %7337 = vmatprep.subr.mxu0 0.0
  %7338 = vmatpush2.msra.mxu0 0.0
  %7339 = vmatprep.mubr.f32.mxu0 0.0
  %7340 = vmatmul.mubr.f32.gmra.mxu0 %v7084
  %v7341 = vpop.f32.mrf.mxu0
  %v7342 = vadd.f32 %v7080, %v7341
  %v7343 = vpop.f32.mrf.mxu0
  %7344 = vmatprep.mubr.f32.mxu0 0.0
  %7345 = vmatmul.mubr.f32.gmra.mxu0 %v7087
  %v7346 = vpop.f32.mrf.mxu0
  %v7347 = vadd.f32 %v7080, %v7346
  %v7348 = vpop.f32.mrf.mxu0
  %7349 = vmatprep.mubr.f32.mxu0 0.0
  %7350 = vmatmul.mubr.f32.gmra.mxu0 %v7090
  %v7351 = vpop.f32.mrf.mxu0
  %v7352 = vadd.f32 %v7080, %v7351
  %v7353 = vpop.f32.mrf.mxu0
  %7354 = vmatprep.mubr.f32.mxu0 0.0
  %7355 = vmatmul.mubr.f32.gmra.mxu0 %v7093
  %v7356 = vpop.f32.mrf.mxu0
  %v7357 = vadd.f32 %v7080, %v7356
  %v7358 = vpop.f32.mrf.mxu0
  %7359 = vmatprep.mubr.f32.mxu0 0.0
  %7360 = vmatmul.mubr.f32.gmra.mxu0 %v7096
  %v7361 = vpop.f32.mrf.mxu0
  %v7362 = vadd.f32 %v7080, %v7361
  %v7363 = vpop.f32.mrf.mxu0
  %7364 = vmatprep.mubr.f32.mxu0 0.0
  %7365 = vmatmul.mubr.f32.gmra.mxu0 %v7099
  %v7366 = vpop.f32.mrf.mxu0
  %v7367 = vadd.f32 %v7080, %v7366
  %v7368 = vpop.f32.mrf.mxu0
  %7369 = vmatprep.mubr.f32.mxu0 0.0
  %7370 = vmatmul.mubr.f32.gmra.mxu0 %v7102
  %v7371 = vpop.f32.mrf.mxu0
  %v7372 = vadd.f32 %v7080, %v7371
  %v7373 = vpop.f32.mrf.mxu0
  %7374 = vmatprep.mubr.f32.mxu0 0.0
  %7375 = vmatmul.mubr.f32.gmra.mxu0 %v7105
  %v7376 = vpop.f32.mrf.mxu0
  %v7377 = vadd.f32 %v7080, %v7376
  %v7378 = vpop.f32.mrf.mxu0
  %7379 = vmatprep.mubr.f32.mxu0 0.0
  %7380 = vmatmul.mubr.f32.gmra.mxu0 %v7108
  %v7381 = vpop.f32.mrf.mxu0
  %v7382 = vadd.f32 %v7080, %v7381
  %v7383 = vpop.f32.mrf.mxu0
  %7384 = vmatprep.mubr.f32.mxu0 0.0
  %7385 = vmatmul.mubr.f32.gmra.mxu0 %v7111
  %v7386 = vpop.f32.mrf.mxu0
  %v7387 = vadd.f32 %v7080, %v7386
  %v7388 = vpop.f32.mrf.mxu0
  %7389 = vmatprep.mubr.f32.mxu0 0.0
  %7390 = vmatmul.mubr.f32.gmra.mxu0 %v7114
  %v7391 = vpop.f32.mrf.mxu0
  %v7392 = vadd.f32 %v7080, %v7391
  %v7393 = vpop.f32.mrf.mxu0
  %7394 = vmatprep.mubr.f32.mxu0 0.0
  %7395 = vmatmul.mubr.f32.gmra.mxu0 %v7117
  %v7396 = vpop.f32.mrf.mxu0
  %v7397 = vadd.f32 %v7080, %v7396
  %v7398 = vpop.f32.mrf.mxu0
  %7399 = vmatprep.mubr.f32.mxu0 0.0
  %7400 = vmatmul.mubr.f32.gmra.mxu0 %v7120
  %v7401 = vpop.f32.mrf.mxu0
  %v7402 = vadd.f32 %v7080, %v7401
  %v7403 = vpop.f32.mrf.mxu0
  %7404 = vmatprep.mubr.f32.mxu0 0.0
  %7405 = vmatmul.mubr.f32.gmra.mxu0 %v7123
  %v7406 = vpop.f32.mrf.mxu0
  %v7407 = vadd.f32 %v7080, %v7406
  %v7408 = vpop.f32.mrf.mxu0
  %7409 = vmatprep.mubr.f32.mxu0 0.0
  %7410 = vmatmul.mubr.f32.gmra.mxu0 %v7126
  %v7411 = vpop.f32.mrf.mxu0
  %v7412 = vadd.f32 %v7080, %v7411
  %v7413 = vpop.f32.mrf.mxu0
  %7414 = vmatprep.mubr.f32.mxu0 0.0
  %7415 = vmatmul.mubr.f32.gmra.mxu0 %v7129
  %v7416 = vpop.f32.mrf.mxu0
  %v7417 = vadd.f32 %v7080, %v7416
  %v7418 = vpop.f32.mrf.mxu0
  %7419 = vmatprep.mubr.f32.mxu0 0.0
  %7420 = vmatmul.mubr.f32.gmra.mxu0 %v7132
  %v7421 = vpop.f32.mrf.mxu0
  %v7422 = vadd.f32 %v7080, %v7421
  %v7423 = vpop.f32.mrf.mxu0
  %7424 = vmatprep.mubr.f32.mxu0 0.0
  %7425 = vmatmul.mubr.f32.gmra.mxu0 %v7135
  %v7426 = vpop.f32.mrf.mxu0
  %v7427 = vadd.f32 %v7080, %v7426
  %v7428 = vpop.f32.mrf.mxu0
  %7429 = vmatprep.mubr.f32.mxu0 0.0
  %7430 = vmatmul.mubr.f32.gmra.mxu0 %v7138
  %v7431 = vpop.f32.mrf.mxu0
  %v7432 = vadd.f32 %v7080, %v7431
  %v7433 = vpop.f32.mrf.mxu0
  %7434 = vmatprep.mubr.f32.mxu0 0.0
  %7435 = vmatmul.mubr.f32.gmra.mxu0 %v7141
  %v7436 = vpop.f32.mrf.mxu0
  %v7437 = vadd.f32 %v7080, %v7436
  %v7438 = vpop.f32.mrf.mxu0
  %7439 = vmatprep.mubr.f32.mxu0 0.0
  %7440 = vmatmul.mubr.f32.gmra.mxu0 %v7144
  %v7441 = vpop.f32.mrf.mxu0
  %v7442 = vadd.f32 %v7080, %v7441
  %v7443 = vpop.f32.mrf.mxu0
  %7444 = vmatprep.mubr.f32.mxu0 0.0
  %7445 = vmatmul.mubr.f32.gmra.mxu0 %v7147
  %v7446 = vpop.f32.mrf.mxu0
  %v7447 = vadd.f32 %v7080, %v7446
  %v7448 = vpop.f32.mrf.mxu0
  %7449 = vmatprep.mubr.f32.mxu0 0.0
  %7450 = vmatmul.mubr.f32.gmra.mxu0 %v7150
  %v7451 = vpop.f32.mrf.mxu0
  %v7452 = vadd.f32 %v7080, %v7451
  %v7453 = vpop.f32.mrf.mxu0
  %7454 = vmatprep.mubr.f32.mxu0 0.0
  %7455 = vmatmul.mubr.f32.gmra.mxu0 %v7153
  %v7456 = vpop.f32.mrf.mxu0
  %v7457 = vadd.f32 %v7080, %v7456
  %v7458 = vpop.f32.mrf.mxu0
  %7459 = vmatprep.mubr.f32.mxu0 0.0
  %7460 = vmatmul.mubr.f32.gmra.mxu0 %v7156
  %v7461 = vpop.f32.mrf.mxu0
  %v7462 = vadd.f32 %v7080, %v7461
  %v7463 = vpop.f32.mrf.mxu0
  %7464 = vmatprep.mubr.f32.mxu0 0.0
  %7465 = vmatmul.mubr.f32.gmra.mxu0 %v7159
  %v7466 = vpop.f32.mrf.mxu0
  %v7467 = vadd.f32 %v7080, %v7466
  %v7468 = vpop.f32.mrf.mxu0
  %7469 = vmatprep.mubr.f32.mxu0 0.0
  %7470 = vmatmul.mubr.f32.gmra.mxu0 %v7162
  %v7471 = vpop.f32.mrf.mxu0
  %v7472 = vadd.f32 %v7080, %v7471
  %v7473 = vpop.f32.mrf.mxu0
  %7474 = vmatprep.mubr.f32.mxu0 0.0
  %7475 = vmatmul.mubr.f32.gmra.mxu0 %v7165
  %v7476 = vpop.f32.mrf.mxu0
  %v7477 = vadd.f32 %v7080, %v7476
  %v7478 = vpop.f32.mrf.mxu0
  %7479 = vmatprep.mubr.f32.mxu0 0.0
  %7480 = vmatmul.mubr.f32.gmra.mxu0 %v7168
  %v7481 = vpop.f32.mrf.mxu0
  %v7482 = vadd.f32 %v7080, %v7481
  %v7483 = vpop.f32.mrf.mxu0
  %7484 = vmatprep.mubr.f32.mxu0 0.0
  %7485 = vmatmul.mubr.f32.gmra.mxu0 %v7171
  %v7486 = vpop.f32.mrf.mxu0
  %v7487 = vadd.f32 %v7080, %v7486
  %v7488 = vpop.f32.mrf.mxu0
  %7489 = vmatprep.mubr.f32.mxu0 0.0
  %7490 = vmatmul.mubr.f32.gmra.mxu0 %v7174
  %v7491 = vpop.f32.mrf.mxu0
  %v7492 = vadd.f32 %v7080, %v7491
  %v7493 = vpop.f32.mrf.mxu0
  %7494 = vmatprep.mubr.f32.mxu0 0.0
  %7495 = vmatmul.mubr.f32.gmra.mxu0 %v7177
  %v7496 = vpop.f32.mrf.mxu0
  %v7497 = vadd.f32 %v7080, %v7496
  %v7498 = vpop.f32.mrf.mxu0
  %7499 = vmatprep.mubr.f32.mxu0 0.0
  %7500 = vmatmul.mubr.f32.gmra.mxu0 %v7180
  %v7501 = vpop.f32.mrf.mxu0
  %v7502 = vadd.f32 %v7080, %v7501
  %v7503 = vpop.f32.mrf.mxu0
  %7504 = vmatprep.mubr.f32.mxu0 0.0
  %7505 = vmatmul.mubr.f32.gmra.mxu0 %v7183
  %v7506 = vpop.f32.mrf.mxu0
  %v7507 = vadd.f32 %v7080, %v7506
  %v7508 = vpop.f32.mrf.mxu0
  %7509 = vmatprep.mubr.f32.mxu0 0.0
  %7510 = vmatmul.mubr.f32.gmra.mxu0 %v7186
  %v7511 = vpop.f32.mrf.mxu0
  %v7512 = vadd.f32 %v7080, %v7511
  %v7513 = vpop.f32.mrf.mxu0
  %7514 = vmatprep.mubr.f32.mxu0 0.0
  %7515 = vmatmul.mubr.f32.gmra.mxu0 %v7189
  %v7516 = vpop.f32.mrf.mxu0
  %v7517 = vadd.f32 %v7080, %v7516
  %v7518 = vpop.f32.mrf.mxu0
  %7519 = vmatprep.mubr.f32.mxu0 0.0
  %7520 = vmatmul.mubr.f32.gmra.mxu0 %v7192
  %v7521 = vpop.f32.mrf.mxu0
  %v7522 = vadd.f32 %v7080, %v7521
  %v7523 = vpop.f32.mrf.mxu0
  %7524 = vmatprep.mubr.f32.mxu0 0.0
  %7525 = vmatmul.mubr.f32.gmra.mxu0 %v7195
  %v7526 = vpop.f32.mrf.mxu0
  %v7527 = vadd.f32 %v7080, %v7526
  %v7528 = vpop.f32.mrf.mxu0
  %7529 = vmatprep.mubr.f32.mxu0 0.0
  %7530 = vmatmul.mubr.f32.gmra.mxu0 %v7198
  %v7531 = vpop.f32.mrf.mxu0
  %v7532 = vadd.f32 %v7080, %v7531
  %v7533 = vpop.f32.mrf.mxu0
  %7534 = vmatprep.mubr.f32.mxu0 0.0
  %7535 = vmatmul.mubr.f32.gmra.mxu0 %v7201
  %v7536 = vpop.f32.mrf.mxu0
  %v7537 = vadd.f32 %v7080, %v7536
  %v7538 = vpop.f32.mrf.mxu0
  %7539 = vmatprep.mubr.f32.mxu0 0.0
  %7540 = vmatmul.mubr.f32.gmra.mxu0 %v7204
  %v7541 = vpop.f32.mrf.mxu0
  %v7542 = vadd.f32 %v7080, %v7541
  %v7543 = vpop.f32.mrf.mxu0
  %7544 = vmatprep.mubr.f32.mxu0 0.0
  %7545 = vmatmul.mubr.f32.gmra.mxu0 %v7207
  %v7546 = vpop.f32.mrf.mxu0
  %v7547 = vadd.f32 %v7080, %v7546
  %v7548 = vpop.f32.mrf.mxu0
  %7549 = vmatprep.mubr.f32.mxu0 0.0
  %7550 = vmatmul.mubr.f32.gmra.mxu0 %v7210
  %v7551 = vpop.f32.mrf.mxu0
  %v7552 = vadd.f32 %v7080, %v7551
  %v7553 = vpop.f32.mrf.mxu0
  %7554 = vmatprep.mubr.f32.mxu0 0.0
  %7555 = vmatmul.mubr.f32.gmra.mxu0 %v7213
  %v7556 = vpop.f32.mrf.mxu0
  %v7557 = vadd.f32 %v7080, %v7556
  %v7558 = vpop.f32.mrf.mxu0
  %7559 = vmatprep.mubr.f32.mxu0 0.0
  %7560 = vmatmul.mubr.f32.gmra.mxu0 %v7216
  %v7561 = vpop.f32.mrf.mxu0
  %v7562 = vadd.f32 %v7080, %v7561
  %v7563 = vpop.f32.mrf.mxu0
  %7564 = vmatprep.mubr.f32.mxu0 0.0
  %7565 = vmatmul.mubr.f32.gmra.mxu0 %v7219
  %v7566 = vpop.f32.mrf.mxu0
  %v7567 = vadd.f32 %v7080, %v7566
  %v7568 = vpop.f32.mrf.mxu0
  %7569 = vmatprep.mubr.f32.mxu0 0.0
  %7570 = vmatmul.mubr.f32.gmra.mxu0 %v7222
  %v7571 = vpop.f32.mrf.mxu0
  %v7572 = vadd.f32 %v7080, %v7571
  %v7573 = vpop.f32.mrf.mxu0
  %7574 = vmatprep.mubr.f32.mxu0 0.0
  %7575 = vmatmul.mubr.f32.gmra.mxu0 %v7225
  %v7576 = vpop.f32.mrf.mxu0
  %v7577 = vadd.f32 %v7080, %v7576
  %v7578 = vpop.f32.mrf.mxu0
  %7579 = vmatprep.mubr.f32.mxu0 0.0
  %7580 = vmatmul.mubr.f32.gmra.mxu0 %v7228
  %v7581 = vpop.f32.mrf.mxu0
  %v7582 = vadd.f32 %v7080, %v7581
  %v7583 = vpop.f32.mrf.mxu0
  %7584 = vmatprep.mubr.f32.mxu0 0.0
  %7585 = vmatmul.mubr.f32.gmra.mxu0 %v7231
  %v7586 = vpop.f32.mrf.mxu0
  %v7587 = vadd.f32 %v7080, %v7586
  %v7588 = vpop.f32.mrf.mxu0
  %7589 = vmatprep.mubr.f32.mxu0 0.0
  %7590 = vmatmul.mubr.f32.gmra.mxu0 %v7234
  %v7591 = vpop.f32.mrf.mxu0
  %v7592 = vadd.f32 %v7080, %v7591
  %v7593 = vpop.f32.mrf.mxu0
  %7594 = vmatprep.mubr.f32.mxu0 0.0
  %7595 = vmatmul.mubr.f32.gmra.mxu0 %v7237
  %v7596 = vpop.f32.mrf.mxu0
  %v7597 = vadd.f32 %v7080, %v7596
  %v7598 = vpop.f32.mrf.mxu0
  %7599 = vmatprep.mubr.f32.mxu0 0.0
  %7600 = vmatmul.mubr.f32.gmra.mxu0 %v7240
  %v7601 = vpop.f32.mrf.mxu0
  %v7602 = vadd.f32 %v7080, %v7601
  %v7603 = vpop.f32.mrf.mxu0
  %7604 = vmatprep.mubr.f32.mxu0 0.0
  %7605 = vmatmul.mubr.f32.gmra.mxu0 %v7243
  %v7606 = vpop.f32.mrf.mxu0
  %v7607 = vadd.f32 %v7080, %v7606
  %v7608 = vpop.f32.mrf.mxu0
  %7609 = vmatprep.mubr.f32.mxu0 0.0
  %7610 = vmatmul.mubr.f32.gmra.mxu0 %v7246
  %v7611 = vpop.f32.mrf.mxu0
  %v7612 = vadd.f32 %v7080, %v7611
  %v7613 = vpop.f32.mrf.mxu0
  %7614 = vmatprep.mubr.f32.mxu0 0.0
  %7615 = vmatmul.mubr.f32.gmra.mxu0 %v7249
  %v7616 = vpop.f32.mrf.mxu0
  %v7617 = vadd.f32 %v7080, %v7616
  %v7618 = vpop.f32.mrf.mxu0
  %7619 = vmatprep.mubr.f32.mxu0 0.0
  %7620 = vmatmul.mubr.f32.gmra.mxu0 %v7252
  %v7621 = vpop.f32.mrf.mxu0
  %v7622 = vadd.f32 %v7080, %v7621
  %v7623 = vpop.f32.mrf.mxu0
  %7624 = vmatprep.mubr.f32.mxu0 0.0
  %7625 = vmatmul.mubr.f32.gmra.mxu0 %v7255
  %v7626 = vpop.f32.mrf.mxu0
  %v7627 = vadd.f32 %v7080, %v7626
  %v7628 = vpop.f32.mrf.mxu0
  %7629 = vmatprep.mubr.f32.mxu0 0.0
  %7630 = vmatmul.mubr.f32.gmra.mxu0 %v7258
  %v7631 = vpop.f32.mrf.mxu0
  %v7632 = vadd.f32 %v7080, %v7631
  %v7633 = vpop.f32.mrf.mxu0
  %7634 = vmatprep.mubr.f32.mxu0 0.0
  %7635 = vmatmul.mubr.f32.gmra.mxu0 %v7261
  %v7636 = vpop.f32.mrf.mxu0
  %v7637 = vadd.f32 %v7080, %v7636
  %v7638 = vpop.f32.mrf.mxu0
  %7639 = vmatprep.mubr.f32.mxu0 0.0
  %7640 = vmatmul.mubr.f32.gmra.mxu0 %v7264
  %v7641 = vpop.f32.mrf.mxu0
  %v7642 = vadd.f32 %v7080, %v7641
  %v7643 = vpop.f32.mrf.mxu0
  %7644 = vmatprep.mubr.f32.mxu0 0.0
  %7645 = vmatmul.mubr.f32.gmra.mxu0 %v7267
  %v7646 = vpop.f32.mrf.mxu0
  %v7647 = vadd.f32 %v7080, %v7646
  %v7648 = vpop.f32.mrf.mxu0
  %7649 = vmatprep.mubr.f32.mxu0 0.0
  %7650 = vmatmul.mubr.f32.gmra.mxu0 %v7270
  %v7651 = vpop.f32.mrf.mxu0
  %v7652 = vadd.f32 %v7080, %v7651
  %v7653 = vpop.f32.mrf.mxu0
  %7654 = vmatprep.mubr.f32.mxu0 0.0
  %7655 = vmatmul.mubr.f32.gmra.mxu0 %v7273
  %v7656 = vpop.f32.mrf.mxu0
  %v7657 = vadd.f32 %v7080, %v7656
  %v7658 = vpop.f32.mrf.mxu0
  %7659 = vdwg.mxu0
  %v7660 = vld [vmem:[%s7] sm:$0x1]
  %v7661 = vld [vmem:[%s8] sm:$0x1]
  %v7662 = vsel %vm3610, %v7342, 0.0
  %v7663 = vsel %vm3610, %v7347, 0.0
  %v7664 = vadd.f32 %v7662, %v7663
  %v7665 = vsel %vm3610, %v7352, 0.0
  %v7666 = vadd.f32 %v7664, %v7665
  %v7667 = vsel %vm3610, %v7357, 0.0
  %v7668 = vadd.f32 %v7666, %v7667
  %v7669 = vsel %vm3610, %v7362, 0.0
  %v7670 = vadd.f32 %v7668, %v7669
  %v7671 = vsel %vm3610, %v7367, 0.0
  %v7672 = vadd.f32 %v7670, %v7671
  %v7673 = vsel %vm3610, %v7372, 0.0
  %v7674 = vadd.f32 %v7672, %v7673
  %v7675 = vsel %vm3610, %v7377, 0.0
  %v7676 = vadd.f32 %v7674, %v7675
  %v7677 = vsel %vm3610, %v7382, 0.0
  %v7678 = vadd.f32 %v7676, %v7677
  %v7679 = vsel %vm3610, %v7387, 0.0
  %v7680 = vadd.f32 %v7678, %v7679
  %v7681 = vsel %vm3610, %v7392, 0.0
  %v7682 = vadd.f32 %v7680, %v7681
  %v7683 = vsel %vm3610, %v7397, 0.0
  %v7684 = vadd.f32 %v7682, %v7683
  %v7685 = vsel %vm3610, %v7402, 0.0
  %v7686 = vadd.f32 %v7684, %v7685
  %v7687 = vsel %vm3610, %v7407, 0.0
  %v7688 = vadd.f32 %v7686, %v7687
  %v7689 = vsel %vm3610, %v7412, 0.0
  %v7690 = vadd.f32 %v7688, %v7689
  %v7691 = vsel %vm3610, %v7417, 0.0
  %v7692 = vadd.f32 %v7690, %v7691
  %v7693 = vsel %vm3610, %v7422, 0.0
  %v7694 = vadd.f32 %v7692, %v7693
  %v7695 = vsel %vm3610, %v7427, 0.0
  %v7696 = vadd.f32 %v7694, %v7695
  %v7697 = vsel %vm3610, %v7432, 0.0
  %v7698 = vadd.f32 %v7696, %v7697
  %v7699 = vsel %vm3610, %v7437, 0.0
  %v7700 = vadd.f32 %v7698, %v7699
  %v7701 = vsel %vm3610, %v7442, 0.0
  %v7702 = vadd.f32 %v7700, %v7701
  %v7703 = vsel %vm3610, %v7447, 0.0
  %v7704 = vadd.f32 %v7702, %v7703
  %v7705 = vsel %vm3610, %v7452, 0.0
  %v7706 = vadd.f32 %v7704, %v7705
  %v7707 = vsel %vm3610, %v7457, 0.0
  %v7708 = vadd.f32 %v7706, %v7707
  %v7709 = vsel %vm3610, %v7462, 0.0
  %v7710 = vadd.f32 %v7708, %v7709
  %v7711 = vsel %vm3610, %v7467, 0.0
  %v7712 = vadd.f32 %v7710, %v7711
  %v7713 = vsel %vm3610, %v7472, 0.0
  %v7714 = vadd.f32 %v7712, %v7713
  %v7715 = vsel %vm3610, %v7477, 0.0
  %v7716 = vadd.f32 %v7714, %v7715
  %v7717 = vsel %vm3610, %v7482, 0.0
  %v7718 = vadd.f32 %v7716, %v7717
  %v7719 = vsel %vm3610, %v7487, 0.0
  %v7720 = vadd.f32 %v7718, %v7719
  %v7721 = vsel %vm3610, %v7492, 0.0
  %v7722 = vadd.f32 %v7720, %v7721
  %v7723 = vsel %vm3610, %v7497, 0.0
  %v7724 = vadd.f32 %v7722, %v7723
  %v7725 = vsel %vm3610, %v7502, 0.0
  %v7726 = vadd.f32 %v7724, %v7725
  %v7727 = vsel %vm3610, %v7507, 0.0
  %v7728 = vadd.f32 %v7726, %v7727
  %v7729 = vsel %vm3610, %v7512, 0.0
  %v7730 = vadd.f32 %v7728, %v7729
  %v7731 = vsel %vm3610, %v7517, 0.0
  %v7732 = vadd.f32 %v7730, %v7731
  %v7733 = vsel %vm3610, %v7522, 0.0
  %v7734 = vadd.f32 %v7732, %v7733
  %v7735 = vsel %vm3610, %v7527, 0.0
  %v7736 = vadd.f32 %v7734, %v7735
  %v7737 = vsel %vm3610, %v7532, 0.0
  %v7738 = vadd.f32 %v7736, %v7737
  %v7739 = vsel %vm3610, %v7537, 0.0
  %v7740 = vadd.f32 %v7738, %v7739
  %v7741 = vsel %vm3610, %v7542, 0.0
  %v7742 = vadd.f32 %v7740, %v7741
  %v7743 = vsel %vm3610, %v7547, 0.0
  %v7744 = vadd.f32 %v7742, %v7743
  %v7745 = vsel %vm3610, %v7552, 0.0
  %v7746 = vadd.f32 %v7744, %v7745
  %v7747 = vsel %vm3610, %v7557, 0.0
  %v7748 = vadd.f32 %v7746, %v7747
  %v7749 = vsel %vm3610, %v7562, 0.0
  %v7750 = vadd.f32 %v7748, %v7749
  %v7751 = vsel %vm3610, %v7567, 0.0
  %v7752 = vadd.f32 %v7750, %v7751
  %v7753 = vsel %vm3610, %v7572, 0.0
  %v7754 = vadd.f32 %v7752, %v7753
  %v7755 = vsel %vm3610, %v7577, 0.0
  %v7756 = vadd.f32 %v7754, %v7755
  %v7757 = vsel %vm3610, %v7582, 0.0
  %v7758 = vadd.f32 %v7756, %v7757
  %v7759 = vsel %vm3610, %v7587, 0.0
  %v7760 = vadd.f32 %v7758, %v7759
  %v7761 = vsel %vm3610, %v7592, 0.0
  %v7762 = vadd.f32 %v7760, %v7761
  %v7763 = vsel %vm3610, %v7597, 0.0
  %v7764 = vadd.f32 %v7762, %v7763
  %v7765 = vsel %vm3610, %v7602, 0.0
  %v7766 = vadd.f32 %v7764, %v7765
  %v7767 = vsel %vm3610, %v7607, 0.0
  %v7768 = vadd.f32 %v7766, %v7767
  %v7769 = vsel %vm3610, %v7612, 0.0
  %v7770 = vadd.f32 %v7768, %v7769
  %v7771 = vsel %vm3610, %v7617, 0.0
  %v7772 = vadd.f32 %v7770, %v7771
  %v7773 = vsel %vm3610, %v7622, 0.0
  %v7774 = vadd.f32 %v7772, %v7773
  %v7775 = vsel %vm3610, %v7627, 0.0
  %v7776 = vadd.f32 %v7774, %v7775
  %v7777 = vsel %vm3610, %v7632, 0.0
  %v7778 = vadd.f32 %v7776, %v7777
  %v7779 = vsel %vm3610, %v7637, 0.0
  %v7780 = vadd.f32 %v7778, %v7779
  %v7781 = vsel %vm3610, %v7642, 0.0
  %v7782 = vadd.f32 %v7780, %v7781
  %v7783 = vsel %vm3610, %v7647, 0.0
  %v7784 = vadd.f32 %v7782, %v7783
  %v7785 = vsel %vm3610, %v7652, 0.0
  %v7786 = vadd.f32 %v7784, %v7785
  %v7787 = vsel %vm3610, %v7657, 0.0
  %v7788 = vadd.f32 %v7786, %v7787
  %v7789 = vrot.slane %v7788, 4
  %v7790 = vadd.f32 %v7788, %v7789
  %v7791 = vrot.slane %v7790, 2
  %v7792 = vadd.f32 %v7790, %v7791
  %v7793 = vrot.slane %v7792, 1
  %v7794 = vadd.f32 %v7792, %v7793
  %v7795 = vmul.f32 %v7794, 0.001953125
  %v7796 = vmul.f32 %v7342, %v7342
  %v7797 = vmul.f32 %v7347, %v7347
  %v7798 = vmul.f32 %v7352, %v7352
  %v7799 = vmul.f32 %v7357, %v7357
  %v7800 = vmul.f32 %v7362, %v7362
  %v7801 = vmul.f32 %v7367, %v7367
  %v7802 = vmul.f32 %v7372, %v7372
  %v7803 = vmul.f32 %v7377, %v7377
  %v7804 = vmul.f32 %v7382, %v7382
  %v7805 = vmul.f32 %v7387, %v7387
  %v7806 = vmul.f32 %v7392, %v7392
  %v7807 = vmul.f32 %v7397, %v7397
  %v7808 = vmul.f32 %v7402, %v7402
  %v7809 = vmul.f32 %v7407, %v7407
  %v7810 = vmul.f32 %v7412, %v7412
  %v7811 = vmul.f32 %v7417, %v7417
  %v7812 = vmul.f32 %v7422, %v7422
  %v7813 = vmul.f32 %v7427, %v7427
  %v7814 = vmul.f32 %v7432, %v7432
  %v7815 = vmul.f32 %v7437, %v7437
  %v7816 = vmul.f32 %v7442, %v7442
  %v7817 = vmul.f32 %v7447, %v7447
  %v7818 = vmul.f32 %v7452, %v7452
  %v7819 = vmul.f32 %v7457, %v7457
  %v7820 = vmul.f32 %v7462, %v7462
  %v7821 = vmul.f32 %v7467, %v7467
  %v7822 = vmul.f32 %v7472, %v7472
  %v7823 = vmul.f32 %v7477, %v7477
  %v7824 = vmul.f32 %v7482, %v7482
  %v7825 = vmul.f32 %v7487, %v7487
  %v7826 = vmul.f32 %v7492, %v7492
  %v7827 = vmul.f32 %v7497, %v7497
  %v7828 = vmul.f32 %v7502, %v7502
  %v7829 = vmul.f32 %v7507, %v7507
  %v7830 = vmul.f32 %v7512, %v7512
  %v7831 = vmul.f32 %v7517, %v7517
  %v7832 = vmul.f32 %v7522, %v7522
  %v7833 = vmul.f32 %v7527, %v7527
  %v7834 = vmul.f32 %v7532, %v7532
  %v7835 = vmul.f32 %v7537, %v7537
  %v7836 = vmul.f32 %v7542, %v7542
  %v7837 = vmul.f32 %v7547, %v7547
  %v7838 = vmul.f32 %v7552, %v7552
  %v7839 = vmul.f32 %v7557, %v7557
  %v7840 = vmul.f32 %v7562, %v7562
  %v7841 = vmul.f32 %v7567, %v7567
  %v7842 = vmul.f32 %v7572, %v7572
  %v7843 = vmul.f32 %v7577, %v7577
  %v7844 = vmul.f32 %v7582, %v7582
  %v7845 = vmul.f32 %v7587, %v7587
  %v7846 = vmul.f32 %v7592, %v7592
  %v7847 = vmul.f32 %v7597, %v7597
  %v7848 = vmul.f32 %v7602, %v7602
  %v7849 = vmul.f32 %v7607, %v7607
  %v7850 = vmul.f32 %v7612, %v7612
  %v7851 = vmul.f32 %v7617, %v7617
  %v7852 = vmul.f32 %v7622, %v7622
  %v7853 = vmul.f32 %v7627, %v7627
  %v7854 = vmul.f32 %v7632, %v7632
  %v7855 = vmul.f32 %v7637, %v7637
  %v7856 = vmul.f32 %v7642, %v7642
  %v7857 = vmul.f32 %v7647, %v7647
  %v7858 = vmul.f32 %v7652, %v7652
  %v7859 = vmul.f32 %v7657, %v7657
  %v7860 = vsel %vm3610, %v7796, 0.0
  %v7861 = vsel %vm3610, %v7797, 0.0
  %v7862 = vadd.f32 %v7860, %v7861
  %v7863 = vsel %vm3610, %v7798, 0.0
  %v7864 = vadd.f32 %v7862, %v7863
  %v7865 = vsel %vm3610, %v7799, 0.0
  %v7866 = vadd.f32 %v7864, %v7865
  %v7867 = vsel %vm3610, %v7800, 0.0
  %v7868 = vadd.f32 %v7866, %v7867
  %v7869 = vsel %vm3610, %v7801, 0.0
  %v7870 = vadd.f32 %v7868, %v7869
  %v7871 = vsel %vm3610, %v7802, 0.0
  %v7872 = vadd.f32 %v7870, %v7871
  %v7873 = vsel %vm3610, %v7803, 0.0
  %v7874 = vadd.f32 %v7872, %v7873
  %v7875 = vsel %vm3610, %v7804, 0.0
  %v7876 = vadd.f32 %v7874, %v7875
  %v7877 = vsel %vm3610, %v7805, 0.0
  %v7878 = vadd.f32 %v7876, %v7877
  %v7879 = vsel %vm3610, %v7806, 0.0
  %v7880 = vadd.f32 %v7878, %v7879
  %v7881 = vsel %vm3610, %v7807, 0.0
  %v7882 = vadd.f32 %v7880, %v7881
  %v7883 = vsel %vm3610, %v7808, 0.0
  %v7884 = vadd.f32 %v7882, %v7883
  %v7885 = vsel %vm3610, %v7809, 0.0
  %v7886 = vadd.f32 %v7884, %v7885
  %v7887 = vsel %vm3610, %v7810, 0.0
  %v7888 = vadd.f32 %v7886, %v7887
  %v7889 = vsel %vm3610, %v7811, 0.0
  %v7890 = vadd.f32 %v7888, %v7889
  %v7891 = vsel %vm3610, %v7812, 0.0
  %v7892 = vadd.f32 %v7890, %v7891
  %v7893 = vsel %vm3610, %v7813, 0.0
  %v7894 = vadd.f32 %v7892, %v7893
  %v7895 = vsel %vm3610, %v7814, 0.0
  %v7896 = vadd.f32 %v7894, %v7895
  %v7897 = vsel %vm3610, %v7815, 0.0
  %v7898 = vadd.f32 %v7896, %v7897
  %v7899 = vsel %vm3610, %v7816, 0.0
  %v7900 = vadd.f32 %v7898, %v7899
  %v7901 = vsel %vm3610, %v7817, 0.0
  %v7902 = vadd.f32 %v7900, %v7901
  %v7903 = vsel %vm3610, %v7818, 0.0
  %v7904 = vadd.f32 %v7902, %v7903
  %v7905 = vsel %vm3610, %v7819, 0.0
  %v7906 = vadd.f32 %v7904, %v7905
  %v7907 = vsel %vm3610, %v7820, 0.0
  %v7908 = vadd.f32 %v7906, %v7907
  %v7909 = vsel %vm3610, %v7821, 0.0
  %v7910 = vadd.f32 %v7908, %v7909
  %v7911 = vsel %vm3610, %v7822, 0.0
  %v7912 = vadd.f32 %v7910, %v7911
  %v7913 = vsel %vm3610, %v7823, 0.0
  %v7914 = vadd.f32 %v7912, %v7913
  %v7915 = vsel %vm3610, %v7824, 0.0
  %v7916 = vadd.f32 %v7914, %v7915
  %v7917 = vsel %vm3610, %v7825, 0.0
  %v7918 = vadd.f32 %v7916, %v7917
  %v7919 = vsel %vm3610, %v7826, 0.0
  %v7920 = vadd.f32 %v7918, %v7919
  %v7921 = vsel %vm3610, %v7827, 0.0
  %v7922 = vadd.f32 %v7920, %v7921
  %v7923 = vsel %vm3610, %v7828, 0.0
  %v7924 = vadd.f32 %v7922, %v7923
  %v7925 = vsel %vm3610, %v7829, 0.0
  %v7926 = vadd.f32 %v7924, %v7925
  %v7927 = vsel %vm3610, %v7830, 0.0
  %v7928 = vadd.f32 %v7926, %v7927
  %v7929 = vsel %vm3610, %v7831, 0.0
  %v7930 = vadd.f32 %v7928, %v7929
  %v7931 = vsel %vm3610, %v7832, 0.0
  %v7932 = vadd.f32 %v7930, %v7931
  %v7933 = vsel %vm3610, %v7833, 0.0
  %v7934 = vadd.f32 %v7932, %v7933
  %v7935 = vsel %vm3610, %v7834, 0.0
  %v7936 = vadd.f32 %v7934, %v7935
  %v7937 = vsel %vm3610, %v7835, 0.0
  %v7938 = vadd.f32 %v7936, %v7937
  %v7939 = vsel %vm3610, %v7836, 0.0
  %v7940 = vadd.f32 %v7938, %v7939
  %v7941 = vsel %vm3610, %v7837, 0.0
  %v7942 = vadd.f32 %v7940, %v7941
  %v7943 = vsel %vm3610, %v7838, 0.0
  %v7944 = vadd.f32 %v7942, %v7943
  %v7945 = vsel %vm3610, %v7839, 0.0
  %v7946 = vadd.f32 %v7944, %v7945
  %v7947 = vsel %vm3610, %v7840, 0.0
  %v7948 = vadd.f32 %v7946, %v7947
  %v7949 = vsel %vm3610, %v7841, 0.0
  %v7950 = vadd.f32 %v7948, %v7949
  %v7951 = vsel %vm3610, %v7842, 0.0
  %v7952 = vadd.f32 %v7950, %v7951
  %v7953 = vsel %vm3610, %v7843, 0.0
  %v7954 = vadd.f32 %v7952, %v7953
  %v7955 = vsel %vm3610, %v7844, 0.0
  %v7956 = vadd.f32 %v7954, %v7955
  %v7957 = vsel %vm3610, %v7845, 0.0
  %v7958 = vadd.f32 %v7956, %v7957
  %v7959 = vsel %vm3610, %v7846, 0.0
  %v7960 = vadd.f32 %v7958, %v7959
  %v7961 = vsel %vm3610, %v7847, 0.0
  %v7962 = vadd.f32 %v7960, %v7961
  %v7963 = vsel %vm3610, %v7848, 0.0
  %v7964 = vadd.f32 %v7962, %v7963
  %v7965 = vsel %vm3610, %v7849, 0.0
  %v7966 = vadd.f32 %v7964, %v7965
  %v7967 = vsel %vm3610, %v7850, 0.0
  %v7968 = vadd.f32 %v7966, %v7967
  %v7969 = vsel %vm3610, %v7851, 0.0
  %v7970 = vadd.f32 %v7968, %v7969
  %v7971 = vsel %vm3610, %v7852, 0.0
  %v7972 = vadd.f32 %v7970, %v7971
  %v7973 = vsel %vm3610, %v7853, 0.0
  %v7974 = vadd.f32 %v7972, %v7973
  %v7975 = vsel %vm3610, %v7854, 0.0
  %v7976 = vadd.f32 %v7974, %v7975
  %v7977 = vsel %vm3610, %v7855, 0.0
  %v7978 = vadd.f32 %v7976, %v7977
  %v7979 = vsel %vm3610, %v7856, 0.0
  %v7980 = vadd.f32 %v7978, %v7979
  %v7981 = vsel %vm3610, %v7857, 0.0
  %v7982 = vadd.f32 %v7980, %v7981
  %v7983 = vsel %vm3610, %v7858, 0.0
  %v7984 = vadd.f32 %v7982, %v7983
  %v7985 = vsel %vm3610, %v7859, 0.0
  %v7986 = vadd.f32 %v7984, %v7985
  %v7987 = vrot.slane %v7986, 4
  %v7988 = vadd.f32 %v7986, %v7987
  %v7989 = vrot.slane %v7988, 2
  %v7990 = vadd.f32 %v7988, %v7989
  %v7991 = vrot.slane %v7990, 1
  %v7992 = vadd.f32 %v7990, %v7991
  %v7993 = vmul.f32 %v7992, 0.001953125
  %v7994 = vmul.f32 %v7795, %v7795
  %v7995 = vsub.f32 %v7993, %v7994
  %v7996 = vadd.f32 %v7995, 1e-05
  %v7997 = vrsqrt.pop %v7996
  %v7998 = vmul.f32 %v7660, %v7997
  %v7999 = vmul.f32 %v7795, %v7998
  %v8000 = vsub.f32 %v7661, %v7999
  %v8002 = vlaneseq
  %v8003 = vshrl.u32 %v8002, 7
  %v8004 = vsub.s32 0, %v8003
  %v8005 = vrot.slane %v7998, %v8004
  %v8007 = vmul.f32 %v7342, %v8005
  %v8008 = vmul.f32 %v7347, %v8005
  %v8009 = vmul.f32 %v7352, %v8005
  %v8010 = vmul.f32 %v7357, %v8005
  %v8011 = vmul.f32 %v7362, %v8005
  %v8012 = vmul.f32 %v7367, %v8005
  %v8013 = vmul.f32 %v7372, %v8005
  %v8014 = vmul.f32 %v7377, %v8005
  %v8015 = vmul.f32 %v7382, %v8005
  %v8016 = vmul.f32 %v7387, %v8005
  %v8017 = vmul.f32 %v7392, %v8005
  %v8018 = vmul.f32 %v7397, %v8005
  %v8019 = vmul.f32 %v7402, %v8005
  %v8020 = vmul.f32 %v7407, %v8005
  %v8021 = vmul.f32 %v7412, %v8005
  %v8022 = vmul.f32 %v7417, %v8005
  %v8023 = vmul.f32 %v7422, %v8005
  %v8024 = vmul.f32 %v7427, %v8005
  %v8025 = vmul.f32 %v7432, %v8005
  %v8026 = vmul.f32 %v7437, %v8005
  %v8027 = vmul.f32 %v7442, %v8005
  %v8028 = vmul.f32 %v7447, %v8005
  %v8029 = vmul.f32 %v7452, %v8005
  %v8030 = vmul.f32 %v7457, %v8005
  %v8031 = vmul.f32 %v7462, %v8005
  %v8032 = vmul.f32 %v7467, %v8005
  %v8033 = vmul.f32 %v7472, %v8005
  %v8034 = vmul.f32 %v7477, %v8005
  %v8035 = vmul.f32 %v7482, %v8005
  %v8036 = vmul.f32 %v7487, %v8005
  %v8037 = vmul.f32 %v7492, %v8005
  %v8038 = vmul.f32 %v7497, %v8005
  %v8039 = vmul.f32 %v7502, %v8005
  %v8040 = vmul.f32 %v7507, %v8005
  %v8041 = vmul.f32 %v7512, %v8005
  %v8042 = vmul.f32 %v7517, %v8005
  %v8043 = vmul.f32 %v7522, %v8005
  %v8044 = vmul.f32 %v7527, %v8005
  %v8045 = vmul.f32 %v7532, %v8005
  %v8046 = vmul.f32 %v7537, %v8005
  %v8047 = vmul.f32 %v7542, %v8005
  %v8048 = vmul.f32 %v7547, %v8005
  %v8049 = vmul.f32 %v7552, %v8005
  %v8050 = vmul.f32 %v7557, %v8005
  %v8051 = vmul.f32 %v7562, %v8005
  %v8052 = vmul.f32 %v7567, %v8005
  %v8053 = vmul.f32 %v7572, %v8005
  %v8054 = vmul.f32 %v7577, %v8005
  %v8055 = vmul.f32 %v7582, %v8005
  %v8056 = vmul.f32 %v7587, %v8005
  %v8057 = vmul.f32 %v7592, %v8005
  %v8058 = vmul.f32 %v7597, %v8005
  %v8059 = vmul.f32 %v7602, %v8005
  %v8060 = vmul.f32 %v7607, %v8005
  %v8061 = vmul.f32 %v7612, %v8005
  %v8062 = vmul.f32 %v7617, %v8005
  %v8063 = vmul.f32 %v7622, %v8005
  %v8064 = vmul.f32 %v7627, %v8005
  %v8065 = vmul.f32 %v7632, %v8005
  %v8066 = vmul.f32 %v7637, %v8005
  %v8067 = vmul.f32 %v7642, %v8005
  %v8068 = vmul.f32 %v7647, %v8005
  %v8069 = vmul.f32 %v7652, %v8005
  %v8070 = vmul.f32 %v7657, %v8005
  %v8072 = vlaneseq
  %v8073 = vshrl.u32 %v8072, 7
  %v8074 = vsub.s32 0, %v8073
  %v8075 = vrot.slane %v8000, %v8074
  %v8077 = vadd.f32 %v8007, %v8075
  %v8078 = vadd.f32 %v8008, %v8075
  %v8079 = vadd.f32 %v8009, %v8075
  %v8080 = vadd.f32 %v8010, %v8075
  %v8081 = vadd.f32 %v8011, %v8075
  %v8082 = vadd.f32 %v8012, %v8075
  %v8083 = vadd.f32 %v8013, %v8075
  %v8084 = vadd.f32 %v8014, %v8075
  %v8085 = vadd.f32 %v8015, %v8075
  %v8086 = vadd.f32 %v8016, %v8075
  %v8087 = vadd.f32 %v8017, %v8075
  %v8088 = vadd.f32 %v8018, %v8075
  %v8089 = vadd.f32 %v8019, %v8075
  %v8090 = vadd.f32 %v8020, %v8075
  %v8091 = vadd.f32 %v8021, %v8075
  %v8092 = vadd.f32 %v8022, %v8075
  %v8093 = vadd.f32 %v8023, %v8075
  %v8094 = vadd.f32 %v8024, %v8075
  %v8095 = vadd.f32 %v8025, %v8075
  %v8096 = vadd.f32 %v8026, %v8075
  %v8097 = vadd.f32 %v8027, %v8075
  %v8098 = vadd.f32 %v8028, %v8075
  %v8099 = vadd.f32 %v8029, %v8075
  %v8100 = vadd.f32 %v8030, %v8075
  %v8101 = vadd.f32 %v8031, %v8075
  %v8102 = vadd.f32 %v8032, %v8075
  %v8103 = vadd.f32 %v8033, %v8075
  %v8104 = vadd.f32 %v8034, %v8075
  %v8105 = vadd.f32 %v8035, %v8075
  %v8106 = vadd.f32 %v8036, %v8075
  %v8107 = vadd.f32 %v8037, %v8075
  %v8108 = vadd.f32 %v8038, %v8075
  %v8109 = vadd.f32 %v8039, %v8075
  %v8110 = vadd.f32 %v8040, %v8075
  %v8111 = vadd.f32 %v8041, %v8075
  %v8112 = vadd.f32 %v8042, %v8075
  %v8113 = vadd.f32 %v8043, %v8075
  %v8114 = vadd.f32 %v8044, %v8075
  %v8115 = vadd.f32 %v8045, %v8075
  %v8116 = vadd.f32 %v8046, %v8075
  %v8117 = vadd.f32 %v8047, %v8075
  %v8118 = vadd.f32 %v8048, %v8075
  %v8119 = vadd.f32 %v8049, %v8075
  %v8120 = vadd.f32 %v8050, %v8075
  %v8121 = vadd.f32 %v8051, %v8075
  %v8122 = vadd.f32 %v8052, %v8075
  %v8123 = vadd.f32 %v8053, %v8075
  %v8124 = vadd.f32 %v8054, %v8075
  %v8125 = vadd.f32 %v8055, %v8075
  %v8126 = vadd.f32 %v8056, %v8075
  %v8127 = vadd.f32 %v8057, %v8075
  %v8128 = vadd.f32 %v8058, %v8075
  %v8129 = vadd.f32 %v8059, %v8075
  %v8130 = vadd.f32 %v8060, %v8075
  %v8131 = vadd.f32 %v8061, %v8075
  %v8132 = vadd.f32 %v8062, %v8075
  %v8133 = vadd.f32 %v8063, %v8075
  %v8134 = vadd.f32 %v8064, %v8075
  %v8135 = vadd.f32 %v8065, %v8075
  %v8136 = vadd.f32 %v8066, %v8075
  %v8137 = vadd.f32 %v8067, %v8075
  %v8138 = vadd.f32 %v8068, %v8075
  %v8139 = vadd.f32 %v8069, %v8075
  %v8140 = vadd.f32 %v8070, %v8075
  %v8141 = vmax.f32 %v8077, 0.0
  %v8142 = vmax.f32 %v8078, 0.0
  %v8143 = vmax.f32 %v8079, 0.0
  %v8144 = vmax.f32 %v8080, 0.0
  %v8145 = vmax.f32 %v8081, 0.0
  %v8146 = vmax.f32 %v8082, 0.0
  %v8147 = vmax.f32 %v8083, 0.0
  %v8148 = vmax.f32 %v8084, 0.0
  %v8149 = vmax.f32 %v8085, 0.0
  %v8150 = vmax.f32 %v8086, 0.0
  %v8151 = vmax.f32 %v8087, 0.0
  %v8152 = vmax.f32 %v8088, 0.0
  %v8153 = vmax.f32 %v8089, 0.0
  %v8154 = vmax.f32 %v8090, 0.0
  %v8155 = vmax.f32 %v8091, 0.0
  %v8156 = vmax.f32 %v8092, 0.0
  %v8157 = vmax.f32 %v8093, 0.0
  %v8158 = vmax.f32 %v8094, 0.0
  %v8159 = vmax.f32 %v8095, 0.0
  %v8160 = vmax.f32 %v8096, 0.0
  %v8161 = vmax.f32 %v8097, 0.0
  %v8162 = vmax.f32 %v8098, 0.0
  %v8163 = vmax.f32 %v8099, 0.0
  %v8164 = vmax.f32 %v8100, 0.0
  %v8165 = vmax.f32 %v8101, 0.0
  %v8166 = vmax.f32 %v8102, 0.0
  %v8167 = vmax.f32 %v8103, 0.0
  %v8168 = vmax.f32 %v8104, 0.0
  %v8169 = vmax.f32 %v8105, 0.0
  %v8170 = vmax.f32 %v8106, 0.0
  %v8171 = vmax.f32 %v8107, 0.0
  %v8172 = vmax.f32 %v8108, 0.0
  %v8173 = vmax.f32 %v8109, 0.0
  %v8174 = vmax.f32 %v8110, 0.0
  %v8175 = vmax.f32 %v8111, 0.0
  %v8176 = vmax.f32 %v8112, 0.0
  %v8177 = vmax.f32 %v8113, 0.0
  %v8178 = vmax.f32 %v8114, 0.0
  %v8179 = vmax.f32 %v8115, 0.0
  %v8180 = vmax.f32 %v8116, 0.0
  %v8181 = vmax.f32 %v8117, 0.0
  %v8182 = vmax.f32 %v8118, 0.0
  %v8183 = vmax.f32 %v8119, 0.0
  %v8184 = vmax.f32 %v8120, 0.0
  %v8185 = vmax.f32 %v8121, 0.0
  %v8186 = vmax.f32 %v8122, 0.0
  %v8187 = vmax.f32 %v8123, 0.0
  %v8188 = vmax.f32 %v8124, 0.0
  %v8189 = vmax.f32 %v8125, 0.0
  %v8190 = vmax.f32 %v8126, 0.0
  %v8191 = vmax.f32 %v8127, 0.0
  %v8192 = vmax.f32 %v8128, 0.0
  %v8193 = vmax.f32 %v8129, 0.0
  %v8194 = vmax.f32 %v8130, 0.0
  %v8195 = vmax.f32 %v8131, 0.0
  %v8196 = vmax.f32 %v8132, 0.0
  %v8197 = vmax.f32 %v8133, 0.0
  %v8198 = vmax.f32 %v8134, 0.0
  %v8199 = vmax.f32 %v8135, 0.0
  %v8200 = vmax.f32 %v8136, 0.0
  %v8201 = vmax.f32 %v8137, 0.0
  %v8202 = vmax.f32 %v8138, 0.0
  %v8203 = vmax.f32 %v8139, 0.0
  %v8204 = vmax.f32 %v8140, 0.0
  %v8205 = vld [vmem:[%s9] sm:$0x3]
  %v8208 = vunpack.c.l.s4 1966171168
  %v8209 = vunpack.c.0.s8 %v8208
  %v8210 = vlaneseq
  %v8211 = vshrl.u32 %v8210, 7
  %v8212 = vsub.s32 %v8209, %v8211
  %v8213 = vrot.slane %v8205, %v8212
  %v8214 = vcombine.high %v8213, %v8213
  %v8216 = vunpack.c.l.s4 1966171168
  %v8217 = vunpack.c.0.s8 %v8216
  %v8218 = vlaneseq
  %v8219 = vshrl.u32 %v8218, 7
  %v8220 = vsub.s32 %v8217, %v8219
  %v8221 = vrot.slane %v8213, %v8220
  %v8223 = vunpack.c.l.s4 1966171168
  %v8224 = vunpack.c.0.s8 %v8223
  %v8225 = vlaneseq
  %v8226 = vshrl.u32 %v8225, 7
  %v8227 = vsub.s32 %v8224, %v8226
  %v8228 = vrot.slane %v8214, %v8227
  %v8229 = vlaneseq
  %v8230 = vshrl.u32 %v8229, 7
  %v8231 = vsub.s32 0, %v8230
  %v8232 = vrot.slane %v8221, %v8231
  %v8233 = vlaneseq
  %v8234 = vshrl.u32 %v8233, 7
  %v8235 = vsub.s32 0, %v8234
  %v8236 = vrot.slane %v8228, %v8235
  %v8239 = vadd.f32 %v8141, %v8232
  %v8240 = vadd.f32 %v8142, %v8232
  %v8241 = vadd.f32 %v8143, %v8232
  %v8242 = vadd.f32 %v8144, %v8232
  %v8243 = vadd.f32 %v8145, %v8232
  %v8244 = vadd.f32 %v8146, %v8232
  %v8245 = vadd.f32 %v8147, %v8232
  %v8246 = vadd.f32 %v8148, %v8232
  %v8247 = vadd.f32 %v8149, %v8232
  %v8248 = vadd.f32 %v8150, %v8232
  %v8249 = vadd.f32 %v8151, %v8232
  %v8250 = vadd.f32 %v8152, %v8232
  %v8251 = vadd.f32 %v8153, %v8232
  %v8252 = vadd.f32 %v8154, %v8232
  %v8253 = vadd.f32 %v8155, %v8232
  %v8254 = vadd.f32 %v8156, %v8232
  %v8255 = vadd.f32 %v8157, %v8232
  %v8256 = vadd.f32 %v8158, %v8232
  %v8257 = vadd.f32 %v8159, %v8232
  %v8258 = vadd.f32 %v8160, %v8232
  %v8259 = vadd.f32 %v8161, %v8232
  %v8260 = vadd.f32 %v8162, %v8232
  %v8261 = vadd.f32 %v8163, %v8232
  %v8262 = vadd.f32 %v8164, %v8232
  %v8263 = vadd.f32 %v8165, %v8232
  %v8264 = vadd.f32 %v8166, %v8232
  %v8265 = vadd.f32 %v8167, %v8232
  %v8266 = vadd.f32 %v8168, %v8232
  %v8267 = vadd.f32 %v8169, %v8232
  %v8268 = vadd.f32 %v8170, %v8232
  %v8269 = vadd.f32 %v8171, %v8232
  %v8270 = vadd.f32 %v8172, %v8232
  %v8271 = vadd.f32 %v8173, %v8236
  %v8272 = vadd.f32 %v8174, %v8236
  %v8273 = vadd.f32 %v8175, %v8236
  %v8274 = vadd.f32 %v8176, %v8236
  %v8275 = vadd.f32 %v8177, %v8236
  %v8276 = vadd.f32 %v8178, %v8236
  %v8277 = vadd.f32 %v8179, %v8236
  %v8278 = vadd.f32 %v8180, %v8236
  %v8279 = vadd.f32 %v8181, %v8236
  %v8280 = vadd.f32 %v8182, %v8236
  %v8281 = vadd.f32 %v8183, %v8236
  %v8282 = vadd.f32 %v8184, %v8236
  %v8283 = vadd.f32 %v8185, %v8236
  %v8284 = vadd.f32 %v8186, %v8236
  %v8285 = vadd.f32 %v8187, %v8236
  %v8286 = vadd.f32 %v8188, %v8236
  %v8287 = vadd.f32 %v8189, %v8236
  %v8288 = vadd.f32 %v8190, %v8236
  %v8289 = vadd.f32 %v8191, %v8236
  %v8290 = vadd.f32 %v8192, %v8236
  %v8291 = vadd.f32 %v8193, %v8236
  %v8292 = vadd.f32 %v8194, %v8236
  %v8293 = vadd.f32 %v8195, %v8236
  %v8294 = vadd.f32 %v8196, %v8236
  %v8295 = vadd.f32 %v8197, %v8236
  %v8296 = vadd.f32 %v8198, %v8236
  %v8297 = vadd.f32 %v8199, %v8236
  %v8298 = vadd.f32 %v8200, %v8236
  %v8299 = vadd.f32 %v8201, %v8236
  %v8300 = vadd.f32 %v8202, %v8236
  %v8301 = vadd.f32 %v8203, %v8236
  %v8302 = vadd.f32 %v8204, %v8236
  %8303 = vst.msk [vmem:[%s10] sm:$0xff] %vm3610, %v8239
  %8304 = vst.msk [vmem:[%s10 + $0x8] sm:$0xff] %vm3610, %v8240
  %8305 = vst.msk [vmem:[%s10 + $0x10] sm:$0xff] %vm3610, %v8241
  %8306 = vst.msk [vmem:[%s10 + $0x18] sm:$0xff] %vm3610, %v8242
  %8307 = vst.msk [vmem:[%s10 + $0x20] sm:$0xff] %vm3610, %v8243
  %8308 = vst.msk [vmem:[%s10 + $0x28] sm:$0xff] %vm3610, %v8244
  %8309 = vst.msk [vmem:[%s10 + $0x30] sm:$0xff] %vm3610, %v8245
  %8310 = vst.msk [vmem:[%s10 + $0x38] sm:$0xff] %vm3610, %v8246
  %8311 = vst.msk [vmem:[%s10 + $0x40] sm:$0xff] %vm3610, %v8247
  %8312 = vst.msk [vmem:[%s10 + $0x48] sm:$0xff] %vm3610, %v8248
  %8313 = vst.msk [vmem:[%s10 + $0x50] sm:$0xff] %vm3610, %v8249
  %8314 = vst.msk [vmem:[%s10 + $0x58] sm:$0xff] %vm3610, %v8250
  %8315 = vst.msk [vmem:[%s10 + $0x60] sm:$0xff] %vm3610, %v8251
  %8316 = vst.msk [vmem:[%s10 + $0x68] sm:$0xff] %vm3610, %v8252
  %8317 = vst.msk [vmem:[%s10 + $0x70] sm:$0xff] %vm3610, %v8253
  %8318 = vst.msk [vmem:[%s10 + $0x78] sm:$0xff] %vm3610, %v8254
  %8319 = vst.msk [vmem:[%s10 + $0x80] sm:$0xff] %vm3610, %v8255
  %8320 = vst.msk [vmem:[%s10 + $0x88] sm:$0xff] %vm3610, %v8256
  %8321 = vst.msk [vmem:[%s10 + $0x90] sm:$0xff] %vm3610, %v8257
  %8322 = vst.msk [vmem:[%s10 + $0x98] sm:$0xff] %vm3610, %v8258
  %8323 = vst.msk [vmem:[%s10 + $0xa0] sm:$0xff] %vm3610, %v8259
  %8324 = vst.msk [vmem:[%s10 + $0xa8] sm:$0xff] %vm3610, %v8260
  %8325 = vst.msk [vmem:[%s10 + $0xb0] sm:$0xff] %vm3610, %v8261
  %8326 = vst.msk [vmem:[%s10 + $0xb8] sm:$0xff] %vm3610, %v8262
  %8327 = vst.msk [vmem:[%s10 + $0xc0] sm:$0xff] %vm3610, %v8263
  %8328 = vst.msk [vmem:[%s10 + $0xc8] sm:$0xff] %vm3610, %v8264
  %8329 = vst.msk [vmem:[%s10 + $0xd0] sm:$0xff] %vm3610, %v8265
  %8330 = vst.msk [vmem:[%s10 + $0xd8] sm:$0xff] %vm3610, %v8266
  %8331 = vst.msk [vmem:[%s10 + $0xe0] sm:$0xff] %vm3610, %v8267
  %8332 = vst.msk [vmem:[%s10 + $0xe8] sm:$0xff] %vm3610, %v8268
  %8333 = vst.msk [vmem:[%s10 + $0xf0] sm:$0xff] %vm3610, %v8269
  %8334 = vst.msk [vmem:[%s10 + $0xf8] sm:$0xff] %vm3610, %v8270
  %8335 = vst.msk [vmem:[%s10 + $0x100] sm:$0xff] %vm3610, %v8271
  %8336 = vst.msk [vmem:[%s10 + $0x108] sm:$0xff] %vm3610, %v8272
  %8337 = vst.msk [vmem:[%s10 + $0x110] sm:$0xff] %vm3610, %v8273
  %8338 = vst.msk [vmem:[%s10 + $0x118] sm:$0xff] %vm3610, %v8274
  %8339 = vst.msk [vmem:[%s10 + $0x120] sm:$0xff] %vm3610, %v8275
  %8340 = vst.msk [vmem:[%s10 + $0x128] sm:$0xff] %vm3610, %v8276
  %8341 = vst.msk [vmem:[%s10 + $0x130] sm:$0xff] %vm3610, %v8277
  %8342 = vst.msk [vmem:[%s10 + $0x138] sm:$0xff] %vm3610, %v8278
  %8343 = vst.msk [vmem:[%s10 + $0x140] sm:$0xff] %vm3610, %v8279
  %8344 = vst.msk [vmem:[%s10 + $0x148] sm:$0xff] %vm3610, %v8280
  %8345 = vst.msk [vmem:[%s10 + $0x150] sm:$0xff] %vm3610, %v8281
  %8346 = vst.msk [vmem:[%s10 + $0x158] sm:$0xff] %vm3610, %v8282
  %8347 = vst.msk [vmem:[%s10 + $0x160] sm:$0xff] %vm3610, %v8283
  %8348 = vst.msk [vmem:[%s10 + $0x168] sm:$0xff] %vm3610, %v8284
  %8349 = vst.msk [vmem:[%s10 + $0x170] sm:$0xff] %vm3610, %v8285
  %8350 = vst.msk [vmem:[%s10 + $0x178] sm:$0xff] %vm3610, %v8286
  %8351 = vst.msk [vmem:[%s10 + $0x180] sm:$0xff] %vm3610, %v8287
  %8352 = vst.msk [vmem:[%s10 + $0x188] sm:$0xff] %vm3610, %v8288
  %8353 = vst.msk [vmem:[%s10 + $0x190] sm:$0xff] %vm3610, %v8289
  %8354 = vst.msk [vmem:[%s10 + $0x198] sm:$0xff] %vm3610, %v8290
  %8355 = vst.msk [vmem:[%s10 + $0x1a0] sm:$0xff] %vm3610, %v8291
  %8356 = vst.msk [vmem:[%s10 + $0x1a8] sm:$0xff] %vm3610, %v8292
  %8357 = vst.msk [vmem:[%s10 + $0x1b0] sm:$0xff] %vm3610, %v8293
  %8358 = vst.msk [vmem:[%s10 + $0x1b8] sm:$0xff] %vm3610, %v8294
  %8359 = vst.msk [vmem:[%s10 + $0x1c0] sm:$0xff] %vm3610, %v8295
  %8360 = vst.msk [vmem:[%s10 + $0x1c8] sm:$0xff] %vm3610, %v8296
  %8361 = vst.msk [vmem:[%s10 + $0x1d0] sm:$0xff] %vm3610, %v8297
  %8362 = vst.msk [vmem:[%s10 + $0x1d8] sm:$0xff] %vm3610, %v8298
  %8363 = vst.msk [vmem:[%s10 + $0x1e0] sm:$0xff] %vm3610, %v8299
  %8364 = vst.msk [vmem:[%s10 + $0x1e8] sm:$0xff] %vm3610, %v8300
  %8365 = vst.msk [vmem:[%s10 + $0x1f0] sm:$0xff] %vm3610, %v8301
  %8366 = vst.msk [vmem:[%s10 + $0x1f8] sm:$0xff] %vm3610, %v8302
  // Predicated region
  $region42: #{tpu_custom_call.1} parent=0 // pred_check
    _
  $region43: #{tpu_custom_call.1} parent=0 // pred_check_branch
    %8368 = sbr.rel (0) target = $region45
  $region44: #{tpu_custom_call.1} parent=0 // pred_region
    _
  $region45: #{tpu_custom_call.1} parent=0 // pred_fallthru
    _
  // Predicated region
  $region46: #{tpu_custom_call.1} parent=0 // pred_check
    _
  $region47: #{tpu_custom_call.1} parent=0 // pred_check_branch
    %8370 = sbr.rel (0) target = $region49
  $region48: #{tpu_custom_call.1} parent=0 // pred_region
    _
  $region49: #{tpu_custom_call.1} parent=0 // pred_fallthru
    _

</llo_original>
